<compile_context>
chip_gen: v6e
topology: v6e:2x2x1
jax: 0.10.0
libtpu: 0.0.40
codegen_flags: <defaults>
</compile_context>

<pallas_src>
import jax
import jax.numpy as jnp
from jax import lax
from jax.experimental import pallas as pl
from jax.experimental.pallas import tpu as pltpu


def _round_up(x, m):
    return (x + m - 1) // m * m


# -----------------------------------------------------------------------------
# Pallas kernel: one hop, one edge-tile grid step (grid = (E/te,)).
# -----------------------------------------------------------------------------
def kg_hop_kernel(hht_ref, htt_ref, rel_ref, agg_ref, qw_ref, kw_ref,
                  out_f32_ref, out_cd_ref,
                  c_sc, u_sc, qagg_sc):
    ei = pl.program_id(0)
    n_eb = pl.num_programs(0)
    cd = hht_ref.dtype                                  # MXU operand dtype (bf16 / f32)

    @pl.when(ei == 0)
    def _init():
        c_sc[...] = jnp.full_like(c_sc, -1e30)
        u_sc[...] = jnp.zeros_like(u_sc)
        # Hoisted once per hop: (agg @ q_w), so the per-step head side is only a
        # one-hot gather.  q_w is never read again after this step.
        qagg_sc[...] = jnp.dot(agg_ref[...], qw_ref[...],
                               preferred_element_type=jnp.float32).astype(cd)

    hht_b = hht_ref[...]                                # (te, Np) one-hot heads (0-rows = pad)
    htt_b = htt_ref[...]                                # (te, Np) one-hot tails
    rel_f32 = rel_ref[...].astype(jnp.float32)          # (te, D)

    # --- gathers as one-hot matmuls on the MXU (f32 accumulation) -------------------
    left = jnp.dot(hht_b, qagg_sc[...],
                   preferred_element_type=jnp.float32)          # (te, D) = (agg @ q_w)[head]
    tail_emb = jnp.dot(htt_b, agg_ref[...],
                       preferred_element_type=jnp.float32)      # (te, D) = agg[tail]

    # --- attention logits (f32 elementwise, cd MXU operands) ------------------------
    rt = rel_f32 * tail_emb                                      # (te, D) = rel * agg[tail]
    right = jnp.tanh(jnp.dot(rt.astype(cd), kw_ref[...],
                             preferred_element_type=jnp.float32))
    att = jnp.sum(left * right, axis=1, keepdims=True)           # (te, 1)

    # --- running shift (range guard only) -------------------------------------------
    # The softmax denominator, this shift, and the scatter_mean count are per-entity
    # positive scales and cancel under the later F.normalize, so only exp() range
    # matters.  Padded edge rows (all-zero hht rows, att == 0) are masked out of the
    # block max; exponents of valid rows are <= 0 by construction and padded rows are
    # clamped, so no inf/NaN can reach the scatter.
    valid = jnp.sum(hht_b, axis=1, keepdims=True)                # (te, 1): 1 real / 0 pad
    att_m = jnp.where(valid > 0.5, att, -1e30)
    blk_max = jnp.max(att_m, axis=0, keepdims=True)              # (1, 1)
    c_new = jnp.maximum(c_sc[...], blk_max)                      # (1, 1)
    alpha = jnp.exp(c_sc[...] - c_new)                           # (1, 1) rescale, <= 1
    c_sc[...] = c_new

    p = jnp.exp(jnp.minimum(att - c_new, 0.0))                   # (te, 1), <= 1
    msg = p * rt                                                 # (te, D)

    # --- scatter-add over this edge tile: contract hht's edge axis on the MXU -------
    contract = (((0,), (0,)), ((), ()))                          # transposed-LHS matmul
    u_blk = lax.dot_general(hht_b, msg.astype(cd), contract,
                            preferred_element_type=jnp.float32)  # (Np, D)
    u_sc[...] = u_sc[...] * alpha + u_blk

    @pl.when(ei == n_eb - 1)
    def _finalize():
        u = u_sc[...]
        # F.normalize(dim=1, eps=1e-12) == x * rsqrt(max(sum(x^2), eps^2)).
        # Entities with no in-edges (and padded entity rows) have u == 0 and stay 0.
        ssq = jnp.sum(u * u, axis=1, keepdims=True)
        agg = u * lax.rsqrt(jnp.maximum(ssq, 1e-24))
        out_f32_ref[...] = agg
        out_cd_ref[...] = agg.astype(out_cd_ref.dtype)           # next hop's input dtype


# -----------------------------------------------------------------------------
# One-hop pallas_call wrapper.
# -----------------------------------------------------------------------------
def _kg_hop(agg_cd, hht, htt, rel, qw, kw, *, te):
    ep, np_ = hht.shape
    d = agg_cd.shape[1]
    cd = agg_cd.dtype
    grid = (ep // te,)

    grid_spec = pltpu.PrefetchScalarGridSpec(
        num_scalar_prefetch=0,
        grid=grid,
        in_specs=[
            pl.BlockSpec((te, np_), lambda ei: (ei, 0)),   # hht tile (streamed, scatter/head)
            pl.BlockSpec((te, np_), lambda ei: (ei, 0)),   # htt tile (streamed, tail gather)
            pl.BlockSpec((te, d), lambda ei: (ei, 0)),     # relation embeddings (streamed)
            pl.BlockSpec((np_, d), lambda ei: (0, 0)),     # agg (resident)
            pl.BlockSpec((d, d), lambda ei: (0, 0)),       # q_w (resident, read at ei==0)
            pl.BlockSpec((d, d), lambda ei: (0, 0)),       # k_w (resident)
        ],
        out_specs=[
            pl.BlockSpec((np_, d), lambda ei: (0, 0)),     # agg_out f32 (residual path)
            pl.BlockSpec((np_, d), lambda ei: (0, 0)),     # agg_out cd  (next hop input)
        ],
        scratch_shapes=[
            pltpu.VMEM((1, 1), jnp.float32),               # running shift constant
            pltpu.VMEM((np_, d), jnp.float32),             # running weighted-message sums
            pltpu.VMEM((np_, d), cd),                      # cached agg @ q_w
        ],
    )
    return pl.pallas_call(
        kg_hop_kernel,
        out_shape=(jax.ShapeDtypeStruct((np_, d), jnp.float32),
                   jax.ShapeDtypeStruct((np_, d), cd)),
        grid_spec=grid_spec,
        compiler_params=pltpu.CompilerParams(
            # single reduction axis over edge tiles; accumulators live in VMEM scratch.
            dimension_semantics=("arbitrary",),
            # 48 MiB fits v7x's 64 MiB VMEM and leaves ample room on v5e/v6e (128 MiB).
            vmem_limit_bytes=48 * 1024 * 1024,
        ),
    )(hht, htt, rel, agg_cd, qw, kw)


# -----------------------------------------------------------------------------
# Full forward (n_hops hops; one pallas_call per hop).
# -----------------------------------------------------------------------------
def kg_attention_forward(entity_emb, edge_index, edge_type, edge_emb, q_w, k_w,
                         *, n_hops, compute_dtype=jnp.bfloat16, edge_tile=512):
    n, d = entity_emb.shape
    head, tail = edge_index[0], edge_index[1]
    e = head.shape[0]

    dp = _round_up(d, 128)          # lane-dense feature dim
    np_ = _round_up(n, 128)         # MXU-friendly entity dim
    ep = _round_up(e, edge_tile)    # whole edge tiles
    cd = compute_dtype

    ent = jnp.pad(entity_emb.astype(jnp.float32), ((0, np_ - n), (0, dp - d)))
    rel = jnp.pad(edge_emb[edge_type].astype(jnp.float32),
                  ((0, ep - e), (0, dp - d))).astype(cd)
    qw = jnp.pad(q_w.astype(jnp.float32), ((0, dp - d), (0, dp - d))).astype(cd)
    kw = jnp.pad(k_w.astype(jnp.float32), ((0, dp - d), (0, dp - d))).astype(cd)

    # one-hot gather/scatter matrices (exact in bf16); padded edge rows are all-zero,
    # so they contribute nothing to the scatter matmuls.
    hht = jnp.pad(jax.nn.one_hot(head, np_, dtype=cd), ((0, ep - e), (0, 0)))
    htt = jnp.pad(jax.nn.one_hot(tail, np_, dtype=cd), ((0, ep - e), (0, 0)))

    agg_cd = ent.astype(cd)
    out = jnp.zeros_like(ent)
    for _ in range(n_hops):
        agg_f32, agg_cd = _kg_hop(agg_cd, hht, htt, rel, qw, kw, te=edge_tile)
        out = out + agg_f32 + ent
    return out[:n, :d]


# -----------------------------------------------------------------------------
# Pure-JAX reference (faithful to the PyTorch forward with mess_dropout=False).
# -----------------------------------------------------------------------------
def kg_attention_reference(entity_emb, edge_index, edge_type, edge_emb,
                           q_w, k_w, *, n_hops):
    n_entities = entity_emb.shape[0]
    head, tail = edge_index[0], edge_index[1]
    rel = edge_emb[edge_type]

    agg = entity_emb
    out = jnp.zeros_like(entity_emb)
    for _ in range(n_hops):
        left = agg[head] @ q_w
        right = jnp.tanh((rel * agg[tail]) @ k_w)
        att = jnp.sum(left * right, axis=1)
        seg_max = jax.ops.segment_max(att, head, num_segments=n_entities)
        exp_att = jnp.exp(att - seg_max[head])
        seg_sum = jax.ops.segment_sum(exp_att, head, num_segments=n_entities)
        att_norm = exp_att / seg_sum[head]
        msg = att_norm[:, None] * rel * agg[tail]
        agg_sum = jax.ops.segment_sum(msg, head, num_segments=n_entities)
        cnt = jax.ops.segment_sum(jnp.ones_like(att), head,
                                  num_segments=n_entities)
        agg = agg_sum / jnp.maximum(cnt, 1.0)[:, None]
        nrm = jnp.sqrt(jnp.sum(agg * agg, axis=1, keepdims=True))
        agg = agg / jnp.maximum(nrm, 1e-12)
        out = out + agg + entity_emb
    return out


if __name__ == "__main__":
    # small, deterministic problem sizes:
    #   Np = 384 (padded from 300), Dp = 128 (padded from 96), 3 edge tiles of 512
    #   (padded from 1500) -> exercises init / accumulate / finalize and pad masking.
    n_entities = 300
    n_edges = 1500
    emb_size = 96
    n_relations = 7
    n_hops = 2

    key = jax.random.PRNGKey(0)
    k_ent, k_edge, k_head, k_tail, k_type, k_q, k_k = jax.random.split(key, 7)

    # modest embedding scale keeps attention logits in a realistic range
    entity_emb = 0.5 * jax.random.normal(k_ent, (n_entities, emb_size), jnp.float32)
    edge_emb = 0.5 * jax.random.normal(k_edge, (n_relations, emb_size), jnp.float32)
    head = jax.random.randint(k_head, (n_edges,), 0, n_entities, jnp.int32)
    tail = jax.random.randint(k_tail, (n_edges,), 0, n_entities, jnp.int32)
    edge_index = jnp.stack([head, tail], axis=0)
    edge_type = jax.random.randint(k_type, (n_edges,), 0, n_relations, jnp.int32)

    # xavier_uniform_ init for q_w, k_w: U(-b, b), b = sqrt(6 / (fan_in + fan_out))
    bound = (6.0 / (emb_size + emb_size)) ** 0.5
    q_w = jax.random.uniform(k_q, (emb_size, emb_size), jnp.float32, -bound, bound)
    k_w = jax.random.uniform(k_k, (emb_size, emb_size), jnp.float32, -bound, bound)

    ref = kg_attention_reference(entity_emb, edge_index, edge_type, edge_emb,
                                 q_w, k_w, n_hops=n_hops)

    # strict correctness check: f32 MXU operands, f32 everywhere
    out_f32 = jax.block_until_ready(kg_attention_forward(
        entity_emb, edge_index, edge_type, edge_emb, q_w, k_w,
        n_hops=n_hops, compute_dtype=jnp.float32))
    assert out_f32.shape == (n_entities, emb_size)
    assert jnp.allclose(out_f32, ref, atol=2e-3, rtol=2e-3), "f32 kernel mismatch"

    # fast path: bf16 MXU operands, f32 accumulation / softmax / normalize
    out_bf16 = jax.block_until_ready(kg_attention_forward(
        entity_emb, edge_index, edge_type, edge_emb, q_w, k_w,
        n_hops=n_hops, compute_dtype=jnp.bfloat16))
    assert out_bf16.shape == (n_entities, emb_size)
    assert jnp.allclose(out_bf16, ref, atol=5e-2, rtol=5e-2), "bf16 kernel mismatch"

    print("KERNEL_OK")
</pallas_src>

<mosaic_0001>
module attributes {stable_mosaic.version = 11 : i64} {
  func.func @kg_hop_kernel(%arg0: i32, %arg1: memref<512x384xf32, #tpu.memory_space<vmem>>, %arg2: memref<512x384xf32, #tpu.memory_space<vmem>>, %arg3: memref<512x128xf32, #tpu.memory_space<vmem>>, %arg4: memref<384x128xf32, #tpu.memory_space<vmem>>, %arg5: memref<128x128xf32, #tpu.memory_space<vmem>>, %arg6: memref<128x128xf32, #tpu.memory_space<vmem>>, %arg7: memref<384x128xf32, #tpu.memory_space<vmem>>, %arg8: memref<384x128xf32, #tpu.memory_space<vmem>>, %arg9: memref<1x1xf32, #tpu.memory_space<vmem>>, %arg10: memref<384x128xf32, #tpu.memory_space<vmem>>, %arg11: memref<384x128xf32, #tpu.memory_space<vmem>>) attributes {dimension_semantics = [#tpu.dimension_semantics<arbitrary>], iteration_bounds = array<i64: 3>, scalar_prefetch = 0 : i64, scratch_operands = 3 : i64, tpu.core_type = #tpu.core_type<tc>, window_params = [{transform_indices = @transform_0, window_bounds = array<i64: 512, 384>}, {transform_indices = @transform_1, window_bounds = array<i64: 512, 384>}, {transform_indices = @transform_2, window_bounds = array<i64: 512, 128>}, {pipeline_mode = #tpu.pipeline_mode<synchronous>, transform_indices = @transform_3, window_bounds = array<i64: 384, 128>}, {pipeline_mode = #tpu.pipeline_mode<synchronous>, transform_indices = @transform_4, window_bounds = array<i64: 128, 128>}, {pipeline_mode = #tpu.pipeline_mode<synchronous>, transform_indices = @transform_5, window_bounds = array<i64: 128, 128>}, {pipeline_mode = #tpu.pipeline_mode<synchronous>, transform_indices = @transform_6, window_bounds = array<i64: 384, 128>}, {pipeline_mode = #tpu.pipeline_mode<synchronous>, transform_indices = @transform_7, window_bounds = array<i64: 384, 128>}]} {
    %c0_i32 = arith.constant 0 : i32
    %0 = arith.cmpi eq, %arg0, %c0_i32 : i32
    %1 = arith.extui %0 : i1 to i32
    %c0_i32_0 = arith.constant 0 : i32
    %2 = arith.cmpi ne, %1, %c0_i32_0 : i32
    scf.if %2 {
      %cst_32 = arith.constant -1.000000e+30 : f32
      %47 = vector.broadcast %cst_32 : f32 to vector<1x1xf32>
      %c0_33 = arith.constant 0 : index
      %c0_34 = arith.constant 0 : index
      %48 = vector.load %arg9[%c0_33, %c0_34] : memref<1x1xf32, #tpu.memory_space<vmem>>, vector<1x1xf32>
      tpu.vector_store %arg9[%c0_33, %c0_34], %47 {strides = array<i32>} : memref<1x1xf32, #tpu.memory_space<vmem>>, vector<1x1xf32>,
      %cst_35 = arith.constant 0.000000e+00 : f32
      %49 = vector.broadcast %cst_35 : f32 to vector<384x128xf32>
      %c0_36 = arith.constant 0 : index
      %c0_37 = arith.constant 0 : index
      %50 = vector.load %arg10[%c0_36, %c0_37] : memref<384x128xf32, #tpu.memory_space<vmem>>, vector<384x128xf32>
      tpu.vector_store %arg10[%c0_36, %c0_37], %49 {strides = array<i32>} : memref<384x128xf32, #tpu.memory_space<vmem>>, vector<384x128xf32>,
      %c0_38 = arith.constant 0 : index
      %c0_39 = arith.constant 0 : index
      %51 = vector.load %arg4[%c0_38, %c0_39] : memref<384x128xf32, #tpu.memory_space<vmem>>, vector<384x128xf32>
      %c0_40 = arith.constant 0 : index
      %c0_41 = arith.constant 0 : index
      %52 = vector.load %arg5[%c0_40, %c0_41] : memref<128x128xf32, #tpu.memory_space<vmem>>, vector<128x128xf32>
      %cst_42 = arith.constant dense<0.000000e+00> : vector<384x128xf32>
      %53 = tpu.matmul %51, %52, %cst_42 {dimension_numbers = #tpu.dot_dimension_numbers<[1], [0], [0], [1], [0, 0, 1, 1], [], []>} : vector<384x128xf32>, vector<128x128xf32>, vector<384x128xf32> -> vector<384x128xf32>
      %c0_43 = arith.constant 0 : index
      %c0_44 = arith.constant 0 : index
      %54 = vector.load %arg11[%c0_43, %c0_44] : memref<384x128xf32, #tpu.memory_space<vmem>>, vector<384x128xf32>
      tpu.vector_store %arg11[%c0_43, %c0_44], %53 {strides = array<i32>} : memref<384x128xf32, #tpu.memory_space<vmem>>, vector<384x128xf32>,
    } else {
    }
    %c0 = arith.constant 0 : index
    %c0_1 = arith.constant 0 : index
    %3 = vector.load %arg1[%c0, %c0_1] : memref<512x384xf32, #tpu.memory_space<vmem>>, vector<512x384xf32>
    %c0_2 = arith.constant 0 : index
    %c0_3 = arith.constant 0 : index
    %4 = vector.load %arg2[%c0_2, %c0_3] : memref<512x384xf32, #tpu.memory_space<vmem>>, vector<512x384xf32>
    %c0_4 = arith.constant 0 : index
    %c0_5 = arith.constant 0 : index
    %5 = vector.load %arg3[%c0_4, %c0_5] : memref<512x128xf32, #tpu.memory_space<vmem>>, vector<512x128xf32>
    %c0_6 = arith.constant 0 : index
    %c0_7 = arith.constant 0 : index
    %6 = vector.load %arg11[%c0_6, %c0_7] : memref<384x128xf32, #tpu.memory_space<vmem>>, vector<384x128xf32>
    %cst = arith.constant dense<0.000000e+00> : vector<512x128xf32>
    %7 = tpu.matmul %3, %6, %cst {dimension_numbers = #tpu.dot_dimension_numbers<[1], [0], [0], [1], [0, 0, 1, 1], [], []>} : vector<512x384xf32>, vector<384x128xf32>, vector<512x128xf32> -> vector<512x128xf32>
    %c0_8 = arith.constant 0 : index
    %c0_9 = arith.constant 0 : index
    %8 = vector.load %arg4[%c0_8, %c0_9] : memref<384x128xf32, #tpu.memory_space<vmem>>, vector<384x128xf32>
    %cst_10 = arith.constant dense<0.000000e+00> : vector<512x128xf32>
    %9 = tpu.matmul %4, %8, %cst_10 {dimension_numbers = #tpu.dot_dimension_numbers<[1], [0], [0], [1], [0, 0, 1, 1], [], []>} : vector<512x384xf32>, vector<384x128xf32>, vector<512x128xf32> -> vector<512x128xf32>
    %10 = arith.mulf %5, %9 : vector<512x128xf32>
    %c0_11 = arith.constant 0 : index
    %c0_12 = arith.constant 0 : index
    %11 = vector.load %arg6[%c0_11, %c0_12] : memref<128x128xf32, #tpu.memory_space<vmem>>, vector<128x128xf32>
    %cst_13 = arith.constant dense<0.000000e+00> : vector<512x128xf32>
    %12 = tpu.matmul %10, %11, %cst_13 {dimension_numbers = #tpu.dot_dimension_numbers<[1], [0], [0], [1], [0, 0, 1, 1], [], []>} : vector<512x128xf32>, vector<128x128xf32>, vector<512x128xf32> -> vector<512x128xf32>
    %13 = math.tanh %12 : vector<512x128xf32>
    %14 = arith.mulf %7, %13 : vector<512x128xf32>
    %cst_14 = arith.constant dense<0.000000e+00> : vector<512xf32>
    %15 = vector.multi_reduction <add>, %14, %cst_14 [1] : vector<512x128xf32> to vector<512xf32>
    %16 = vector.shape_cast %15 : vector<512xf32> to vector<512x1xf32>
    %cst_15 = arith.constant dense<0.000000e+00> : vector<512xf32>
    %17 = vector.multi_reduction <add>, %3, %cst_15 [1] : vector<512x384xf32> to vector<512xf32>
    %18 = vector.shape_cast %17 : vector<512xf32> to vector<512x1xf32>
    %cst_16 = arith.constant 5.000000e-01 : f32
    %19 = vector.broadcast %cst_16 : f32 to vector<512x1xf32>
    %20 = arith.cmpf ogt, %18, %19 : vector<512x1xf32>
    %cst_17 = arith.constant -1.000000e+30 : f32
    %21 = vector.broadcast %cst_17 : f32 to vector<512x1xf32>
    %22 = arith.select %20, %16, %21 : vector<512x1xi1>, vector<512x1xf32>
    %cst_18 = arith.constant dense<0xFF800000> : vector<1xf32>
    %23 = vector.multi_reduction <maximumf>, %22, %cst_18 [0] : vector<512x1xf32> to vector<1xf32>
    %24 = vector.shape_cast %23 : vector<1xf32> to vector<1x1xf32>
    %c0_19 = arith.constant 0 : index
    %c0_20 = arith.constant 0 : index
    %25 = vector.load %arg9[%c0_19, %c0_20] : memref<1x1xf32, #tpu.memory_space<vmem>>, vector<1x1xf32>
    %26 = arith.maximumf %25, %24 : vector<1x1xf32>
    %c0_21 = arith.constant 0 : index
    %c0_22 = arith.constant 0 : index
    %27 = vector.load %arg9[%c0_21, %c0_22] : memref<1x1xf32, #tpu.memory_space<vmem>>, vector<1x1xf32>
    %28 = arith.subf %27, %26 : vector<1x1xf32>
    %29 = math.exp %28 : vector<1x1xf32>
    %c0_23 = arith.constant 0 : index
    %c0_24 = arith.constant 0 : index
    %30 = vector.load %arg9[%c0_23, %c0_24] : memref<1x1xf32, #tpu.memory_space<vmem>>, vector<1x1xf32>
    tpu.vector_store %arg9[%c0_23, %c0_24], %26 {strides = array<i32>} : memref<1x1xf32, #tpu.memory_space<vmem>>, vector<1x1xf32>,
    %31 = vector.broadcast %26 : vector<1x1xf32> to vector<512x1xf32>
    %32 = arith.subf %16, %31 : vector<512x1xf32>
    %cst_25 = arith.constant 0.000000e+00 : f32
    %33 = vector.broadcast %cst_25 : f32 to vector<512x1xf32>
    %34 = arith.minimumf %32, %33 : vector<512x1xf32>
    %35 = math.exp %34 : vector<512x1xf32>
    %36 = vector.broadcast %35 : vector<512x1xf32> to vector<512x128xf32>
    %37 = arith.mulf %36, %10 : vector<512x128xf32>
    %cst_26 = arith.constant dense<0.000000e+00> : vector<384x128xf32>
    %38 = tpu.matmul %3, %37, %cst_26 {dimension_numbers = #tpu.dot_dimension_numbers<[0], [0], [1], [1], [0, 1, 1, 1], [], []>} : vector<512x384xf32>, vector<512x128xf32>, vector<384x128xf32> -> vector<384x128xf32>
    %c0_27 = arith.constant 0 : index
    %c0_28 = arith.constant 0 : index
    %39 = vector.load %arg10[%c0_27, %c0_28] : memref<384x128xf32, #tpu.memory_space<vmem>>, vector<384x128xf32>
    %40 = vector.broadcast %29 : vector<1x1xf32> to vector<384x128xf32>
    %41 = arith.mulf %39, %40 : vector<384x128xf32>
    %42 = arith.addf %41, %38 : vector<384x128xf32>
    %c0_29 = arith.constant 0 : index
    %c0_30 = arith.constant 0 : index
    %43 = vector.load %arg10[%c0_29, %c0_30] : memref<384x128xf32, #tpu.memory_space<vmem>>, vector<384x128xf32>
    tpu.vector_store %arg10[%c0_29, %c0_30], %42 {strides = array<i32>} : memref<384x128xf32, #tpu.memory_space<vmem>>, vector<384x128xf32>,
    %c2_i32 = arith.constant 2 : i32
    %44 = arith.cmpi eq, %arg0, %c2_i32 : i32
    %45 = arith.extui %44 : i1 to i32
    %c0_i32_31 = arith.constant 0 : i32
    %46 = arith.cmpi ne, %45, %c0_i32_31 : i32
    scf.if %46 {
      %c0_32 = arith.constant 0 : index
      %c0_33 = arith.constant 0 : index
      %47 = vector.load %arg10[%c0_32, %c0_33] : memref<384x128xf32, #tpu.memory_space<vmem>>, vector<384x128xf32>
      %48 = arith.mulf %47, %47 : vector<384x128xf32>
      %cst_34 = arith.constant dense<0.000000e+00> : vector<384xf32>
      %49 = vector.multi_reduction <add>, %48, %cst_34 [1] : vector<384x128xf32> to vector<384xf32>
      %50 = vector.shape_cast %49 : vector<384xf32> to vector<384x1xf32>
      %cst_35 = arith.constant 1.000000e-24 : f32
      %51 = vector.broadcast %cst_35 : f32 to vector<384x1xf32>
      %52 = arith.maximumf %50, %51 : vector<384x1xf32>
      %53 = math.rsqrt %52 : vector<384x1xf32>
      %54 = vector.broadcast %53 : vector<384x1xf32> to vector<384x128xf32>
      %55 = arith.mulf %47, %54 : vector<384x128xf32>
      %c0_36 = arith.constant 0 : index
      %c0_37 = arith.constant 0 : index
      %56 = vector.load %arg7[%c0_36, %c0_37] : memref<384x128xf32, #tpu.memory_space<vmem>>, vector<384x128xf32>
      tpu.vector_store %arg7[%c0_36, %c0_37], %55 {strides = array<i32>} : memref<384x128xf32, #tpu.memory_space<vmem>>, vector<384x128xf32>,
      %c0_38 = arith.constant 0 : index
      %c0_39 = arith.constant 0 : index
      %57 = vector.load %arg8[%c0_38, %c0_39] : memref<384x128xf32, #tpu.memory_space<vmem>>, vector<384x128xf32>
      tpu.vector_store %arg8[%c0_38, %c0_39], %55 {strides = array<i32>} : memref<384x128xf32, #tpu.memory_space<vmem>>, vector<384x128xf32>,
    } else {
    }
    return
  }
  func.func @transform_0(%arg0: i32) -> (i32, i32) {
    %c0_i32 = arith.constant 0 : i32
    %c0_i32_0 = arith.constant 0 : i32
    return %arg0, %c0_i32 : i32, i32
  }
  func.func @transform_1(%arg0: i32) -> (i32, i32) {
    %c0_i32 = arith.constant 0 : i32
    %c0_i32_0 = arith.constant 0 : i32
    return %arg0, %c0_i32 : i32, i32
  }
  func.func @transform_2(%arg0: i32) -> (i32, i32) {
    %c0_i32 = arith.constant 0 : i32
    %c0_i32_0 = arith.constant 0 : i32
    return %arg0, %c0_i32 : i32, i32
  }
  func.func @transform_3(%arg0: i32) -> (i32, i32) {
    %c0_i32 = arith.constant 0 : i32
    %c0_i32_0 = arith.constant 0 : i32
    %c0_i32_1 = arith.constant 0 : i32
    return %c0_i32, %c0_i32_0 : i32, i32
  }
  func.func @transform_4(%arg0: i32) -> (i32, i32) {
    %c0_i32 = arith.constant 0 : i32
    %c0_i32_0 = arith.constant 0 : i32
    %c0_i32_1 = arith.constant 0 : i32
    return %c0_i32, %c0_i32_0 : i32, i32
  }
  func.func @transform_5(%arg0: i32) -> (i32, i32) {
    %c0_i32 = arith.constant 0 : i32
    %c0_i32_0 = arith.constant 0 : i32
    %c0_i32_1 = arith.constant 0 : i32
    return %c0_i32, %c0_i32_0 : i32, i32
  }
  func.func @transform_6(%arg0: i32) -> (i32, i32) {
    %c0_i32 = arith.constant 0 : i32
    %c0_i32_0 = arith.constant 0 : i32
    %c0_i32_1 = arith.constant 0 : i32
    return %c0_i32, %c0_i32_0 : i32, i32
  }
  func.func @transform_7(%arg0: i32) -> (i32, i32) {
    %c0_i32 = arith.constant 0 : i32
    %c0_i32_0 = arith.constant 0 : i32
    %c0_i32_1 = arith.constant 0 : i32
    return %c0_i32, %c0_i32_0 : i32, i32
  }
}

</mosaic_0001>

<llo_original>
// kernel: tpu_custom_call.1
$region0: #{tpu_custom_call.1}
  #allocation0 [shape = 'u32[]', space=smem, size = 0x4, offset = 0x4, fixed_abs, tag = 'smem constant byte address 0x4 - core index']
  #allocation1 [shape = 'u32[144,128]{1,0:T(1,128)}', space=vmem, size = 0x12000, scoped, tag = 'internal scratch']
  #allocation2 [shape = 'f32[1,1]{1,0:T(1,128)}', space=vmem, size = 0x200, scoped, tag = 'scratch operand']
  #allocation3 [shape = 'f32[384,128]{1,0:T(8,128)}', space=vmem, size = 0x30000, scoped, tag = 'scratch operand']
  #allocation4 [shape = 'f32[384,128]{1,0:T(8,128)}', space=vmem, size = 0x30000, scoped, tag = 'scratch operand']
  %s0 = inlined_call_operand.hbm [shape: f32[1536,384], index: 0, kind: input, shape index: {}]
  %s1 = inlined_call_operand.hbm [shape: f32[1536,384], index: 1, kind: input, shape index: {}]
  %s2 = inlined_call_operand.hbm [shape: f32[1536,128], index: 2, kind: input, shape index: {}]
  %s3 = inlined_call_operand.hbm [shape: f32[384,128], index: 3, kind: input, shape index: {}]
  %s4 = inlined_call_operand.hbm [shape: f32[128,128], index: 4, kind: input, shape index: {}]
  %s5 = inlined_call_operand.hbm [shape: f32[128,128], index: 5, kind: input, shape index: {}]
  %s6 = inlined_call_operand.hbm [shape: f32[384,128], index: 6, kind: output, shape index: {0}]
  %s7 = inlined_call_operand.hbm [shape: f32[384,128], index: 7, kind: output, shape index: {1}]
  %8 = xla_tuple %s6, %s7
  %s9 = sld [smem:[#allocation0]]
  $region97: #{tpu_custom_call.1} parent=0
    _
  %s11 = ssub.s32 1, %s9
  %s12 = scalar_select 0, %s11, %s9
  $region1: #{tpu_custom_call.1} parent=0
    #allocation5 [shape = 'u8[1572864]{0}', space=vmem, size = 0x180000, scoped, tag = 'input window, operand 0']
    #allocation6 [shape = 's32[2]{0}', space=sflag, size = 0x8, scoped, tag = 'scoped memory for tpu_custom_call.1']
    #allocation7 [shape = 's32[2]{0}', space=sflag, size = 0x8, scoped, tag = 'scoped memory for tpu_custom_call.1']
    #allocation8 [shape = 'u8[1572864]{0}', space=vmem, size = 0x180000, scoped, tag = 'input window, operand 1']
    #allocation9 [shape = 's32[2]{0}', space=sflag, size = 0x8, scoped, tag = 'scoped memory for tpu_custom_call.1']
    #allocation10 [shape = 'u8[524288]{0}', space=vmem, size = 0x80000, scoped, tag = 'input window, operand 2']
    #allocation11 [shape = 'u8[196608]{0}', space=vmem, size = 0x30000, scoped, tag = 'input window, operand 3, single buffered']
    #allocation12 [shape = 's32[1]{0}', space=sflag, size = 0x4, scoped, tag = 'scoped memory for tpu_custom_call.1']
    #allocation13 [shape = 'u8[65536]{0}', space=vmem, size = 0x10000, scoped, tag = 'input window, operand 4, single buffered']
    #allocation14 [shape = 'u8[65536]{0}', space=vmem, size = 0x10000, scoped, tag = 'input window, operand 5, single buffered']
    #allocation15 [shape = 's32[1]{0}', space=sflag, size = 0x4, scoped, tag = 'scoped memory for tpu_custom_call.1']
    #allocation16 [shape = 'u8[196608]{0}', space=vmem, size = 0x30000, scoped, tag = 'output window, operand 0, single buffered']
    #allocation17 [shape = 'u8[196608]{0}', space=vmem, size = 0x30000, scoped, tag = 'output window, operand 1, single buffered']
    #allocation18 [shape = 's32[1]{0}', space=sflag, size = 0x4, scoped, tag = 'scoped memory for tpu_custom_call.1']
    %13 = vsyncpa [#allocation6], 0
    %s14 = scalar_lea.sflag [#allocation6], 1
    %15 = vsyncpa %s14, 0
    %16 = vsyncpa [#allocation9], 0
    %s17 = scalar_lea.sflag [#allocation9], 1
    %18 = vsyncpa %s17, 0
    %19 = vsyncpa [#allocation12], 0
    %20 = vsyncpa [#allocation15], 0
    %21 = vsyncpa [#allocation7], 0
    %22 = vsyncpa [#allocation18], 0
    loop: start=0, step=1, limit=5
    $region2: #{tpu_custom_call.1} parent=1 // loop_pre_header
      _
    $region3: #{tpu_custom_call.1} parent=1 // loop_header
      %s24 = sphi 0, %s28
      %p25 = scmp.ge.s32.totalorder %s24, 5
      %s34 = sphi 0, %s36
      %s37 = sphi 0, %s34
      %s38 = sphi 0, %s37
      %s54 = sphi 0, %s38
      %s60 = sphi 0, %s62
      %s63 = sphi 0, %s60
      %s64 = sphi 0, %s63
      %s80 = sphi 0, %s64
      %s86 = sphi 0, %s88
      %s89 = sphi 0, %s86
      %s90 = sphi 0, %s89
      %s106 = sphi 0, %s90
      %s110 = sphi 0, %s110
      %s112 = sphi 0, %s110
      %s113 = sphi 0, %s112
      %s127 = sphi 0, %s113
      %s131 = sphi 0, %s131
      %s133 = sphi 0, %s131
      %s134 = sphi 0, %s133
      %s148 = sphi 0, %s134
      %s152 = sphi 0, %s152
      %s154 = sphi 0, %s152
      %s155 = sphi 0, %s154
      %s169 = sphi 0, %s155
      %s173 = sphi 0, %s173
      %s175 = sphi 0, %s173
      %s176 = sphi 0, %s175
      %s190 = sphi 0, %s176
      %s194 = sphi 0, %s194
      %s196 = sphi 0, %s194
      %s197 = sphi 0, %s196
      %s211 = sphi 0, %s197
    $region4: #{tpu_custom_call.1} parent=1 // loop_header_branch
      %27 = sbr.rel (%p25) target = $region8
    $region5: #{tpu_custom_call.1} parent=1 // loop_body
      %s29 = ssub.s32 %s24, 1
      %s30 = ssub.s32 %s24, 2
      %s31 = sadd.s32 %s24, 1
      %s32 = ssub.s32 %s24, %s31
      %p33 = scmp.eq.s32.totalorder %s32, 0
      %s35 = sadd.s32 %s34, 1
      %s36 = scalar_select %p33, %s34, %s35
      %p39 = pneg %p33
      %p40 = scmp.eq.s32.totalorder %s24, 2
      %p41 = por %p39, %p40
      %p42 = scmp.ne.s32.totalorder %s34, %s37
      %p43 = scmp.eq.s32.totalorder %s24, 0
      %p44 = por %p42, %p43
      %p45 = scmp.ne.s32.totalorder %s34, %s37
      %p46 = scmp.eq.s32.totalorder %s29, 2
      %p47 = por %p45, %p46
      %p48 = scmp.ne.s32.totalorder %s37, %s38
      %p49 = scmp.eq.s32.totalorder %s29, 0
      %p50 = por %p48, %p49
      %p51 = scmp.ne.s32.totalorder %s37, %s38
      %p52 = scmp.eq.s32.totalorder %s30, 2
      %p53 = por %p51, %p52
      %p55 = scmp.ne.s32.totalorder %s38, %s54
      %p56 = scmp.eq.s32.totalorder %s30, 0
      %p57 = por %p55, %p56
      %s58 = ssub.s32 %s24, %s31
      %p59 = scmp.eq.s32.totalorder %s58, 0
      %s61 = sadd.s32 %s60, 1
      %s62 = scalar_select %p59, %s60, %s61
      %p65 = pneg %p59
      %p66 = scmp.eq.s32.totalorder %s24, 2
      %p67 = por %p65, %p66
      %p68 = scmp.ne.s32.totalorder %s60, %s63
      %p69 = scmp.eq.s32.totalorder %s24, 0
      %p70 = por %p68, %p69
      %p71 = scmp.ne.s32.totalorder %s60, %s63
      %p72 = scmp.eq.s32.totalorder %s29, 2
      %p73 = por %p71, %p72
      %p74 = scmp.ne.s32.totalorder %s63, %s64
      %p75 = scmp.eq.s32.totalorder %s29, 0
      %p76 = por %p74, %p75
      %p77 = scmp.ne.s32.totalorder %s63, %s64
      %p78 = scmp.eq.s32.totalorder %s30, 2
      %p79 = por %p77, %p78
      %p81 = scmp.ne.s32.totalorder %s64, %s80
      %p82 = scmp.eq.s32.totalorder %s30, 0
      %p83 = por %p81, %p82
      %s84 = ssub.s32 %s24, %s31
      %p85 = scmp.eq.s32.totalorder %s84, 0
      %s87 = sadd.s32 %s86, 1
      %s88 = scalar_select %p85, %s86, %s87
      %p91 = pneg %p85
      %p92 = scmp.eq.s32.totalorder %s24, 2
      %p93 = por %p91, %p92
      %p94 = scmp.ne.s32.totalorder %s86, %s89
      %p95 = scmp.eq.s32.totalorder %s24, 0
      %p96 = por %p94, %p95
      %p97 = scmp.ne.s32.totalorder %s86, %s89
      %p98 = scmp.eq.s32.totalorder %s29, 2
      %p99 = por %p97, %p98
      %p100 = scmp.ne.s32.totalorder %s89, %s90
      %p101 = scmp.eq.s32.totalorder %s29, 0
      %p102 = por %p100, %p101
      %p103 = scmp.ne.s32.totalorder %s89, %s90
      %p104 = scmp.eq.s32.totalorder %s30, 2
      %p105 = por %p103, %p104
      %p107 = scmp.ne.s32.totalorder %s90, %s106
      %p108 = scmp.eq.s32.totalorder %s30, 0
      %p109 = por %p107, %p108
      %s111 = sadd.s32 %s110, 1
      %p114 = scmp.eq.s32.totalorder %s24, 2
      %p115 = scmp.ne.s32.totalorder %s110, %s112
      %p116 = scmp.eq.s32.totalorder %s24, 0
      %p117 = por %p115, %p116
      %p118 = scmp.ne.s32.totalorder %s110, %s112
      %p119 = scmp.eq.s32.totalorder %s29, 2
      %p120 = por %p118, %p119
      %p121 = scmp.ne.s32.totalorder %s112, %s113
      %p122 = scmp.eq.s32.totalorder %s29, 0
      %p123 = por %p121, %p122
      %p124 = scmp.ne.s32.totalorder %s112, %s113
      %p125 = scmp.eq.s32.totalorder %s30, 2
      %p126 = por %p124, %p125
      %p128 = scmp.ne.s32.totalorder %s113, %s127
      %p129 = scmp.eq.s32.totalorder %s30, 0
      %p130 = por %p128, %p129
      %s132 = sadd.s32 %s131, 1
      %p135 = scmp.eq.s32.totalorder %s24, 2
      %p136 = scmp.ne.s32.totalorder %s131, %s133
      %p137 = scmp.eq.s32.totalorder %s24, 0
      %p138 = por %p136, %p137
      %p139 = scmp.ne.s32.totalorder %s131, %s133
      %p140 = scmp.eq.s32.totalorder %s29, 2
      %p141 = por %p139, %p140
      %p142 = scmp.ne.s32.totalorder %s133, %s134
      %p143 = scmp.eq.s32.totalorder %s29, 0
      %p144 = por %p142, %p143
      %p145 = scmp.ne.s32.totalorder %s133, %s134
      %p146 = scmp.eq.s32.totalorder %s30, 2
      %p147 = por %p145, %p146
      %p149 = scmp.ne.s32.totalorder %s134, %s148
      %p150 = scmp.eq.s32.totalorder %s30, 0
      %p151 = por %p149, %p150
      %s153 = sadd.s32 %s152, 1
      %p156 = scmp.eq.s32.totalorder %s24, 2
      %p157 = scmp.ne.s32.totalorder %s152, %s154
      %p158 = scmp.eq.s32.totalorder %s24, 0
      %p159 = por %p157, %p158
      %p160 = scmp.ne.s32.totalorder %s152, %s154
      %p161 = scmp.eq.s32.totalorder %s29, 2
      %p162 = por %p160, %p161
      %p163 = scmp.ne.s32.totalorder %s154, %s155
      %p164 = scmp.eq.s32.totalorder %s29, 0
      %p165 = por %p163, %p164
      %p166 = scmp.ne.s32.totalorder %s154, %s155
      %p167 = scmp.eq.s32.totalorder %s30, 2
      %p168 = por %p166, %p167
      %p170 = scmp.ne.s32.totalorder %s155, %s169
      %p171 = scmp.eq.s32.totalorder %s30, 0
      %p172 = por %p170, %p171
      %s174 = sadd.s32 %s173, 1
      %p177 = scmp.eq.s32.totalorder %s24, 2
      %p178 = scmp.ne.s32.totalorder %s173, %s175
      %p179 = scmp.eq.s32.totalorder %s24, 0
      %p180 = por %p178, %p179
      %p181 = scmp.ne.s32.totalorder %s173, %s175
      %p182 = scmp.eq.s32.totalorder %s29, 2
      %p183 = por %p181, %p182
      %p184 = scmp.ne.s32.totalorder %s175, %s176
      %p185 = scmp.eq.s32.totalorder %s29, 0
      %p186 = por %p184, %p185
      %p187 = scmp.ne.s32.totalorder %s175, %s176
      %p188 = scmp.eq.s32.totalorder %s30, 2
      %p189 = por %p187, %p188
      %p191 = scmp.ne.s32.totalorder %s176, %s190
      %p192 = scmp.eq.s32.totalorder %s30, 0
      %p193 = por %p191, %p192
      %s195 = sadd.s32 %s194, 1
      %p198 = scmp.eq.s32.totalorder %s24, 2
      %p199 = scmp.ne.s32.totalorder %s194, %s196
      %p200 = scmp.eq.s32.totalorder %s24, 0
      %p201 = por %p199, %p200
      %p202 = scmp.ne.s32.totalorder %s194, %s196
      %p203 = scmp.eq.s32.totalorder %s29, 2
      %p204 = por %p202, %p203
      %p205 = scmp.ne.s32.totalorder %s196, %s197
      %p206 = scmp.eq.s32.totalorder %s29, 0
      %p207 = por %p205, %p206
      %p208 = scmp.ne.s32.totalorder %s196, %s197
      %p209 = scmp.eq.s32.totalorder %s30, 2
      %p210 = por %p208, %p209
      %p212 = scmp.ne.s32.totalorder %s197, %s211
      %p213 = scmp.eq.s32.totalorder %s30, 0
      %p214 = por %p212, %p213
      %p215 = scmp.le.s32.totalorder 1, %s24
      %p216 = scmp.lt.s32.totalorder %s24, 4
      %p217 = pnand %p215, %p216
      %p218 = pneg %p217
      // Predicated region
      $region9: #{tpu_custom_call.1} parent=5 // pred_check
        _
      $region10: #{tpu_custom_call.1} parent=5 // pred_check_branch
        %220 = sbr.rel (%p217) target = $region12
      $region11: #{tpu_custom_call.1} parent=5 // pred_region
        %s221 = ssub.s32 %s24, 1
        // Predicated region
        $region13: #{tpu_custom_call.1} parent=11 // pred_check
          %p222 = pneg %p123
        $region14: #{tpu_custom_call.1} parent=11 // pred_check_branch
          %224 = sbr.rel (%p222) target = $region16
        $region15: #{tpu_custom_call.1} parent=11 // pred_region
          %s226 = ssub.s32 6144, 6144
          %227 = vsyncadd [#allocation12], %s226
          %s228 = sshll.u32 [#allocation11], 4
          %s229 = int_to_ptr.vmem [resolvable:$true] %s228
          %234 = dma.hbm_to_vmem [thread:$0]  %s3, 6144, %s229, [#allocation12], 128, 128, 8
        $region16: #{tpu_custom_call.1} parent=11 // pred_fallthru
          _
        // Predicated region
        $region17: #{tpu_custom_call.1} parent=11 // pred_check
          %p235 = pneg %p144
        $region18: #{tpu_custom_call.1} parent=11 // pred_check_branch
          %237 = sbr.rel (%p235) target = $region20
        $region19: #{tpu_custom_call.1} parent=11 // pred_region
          %s239 = ssub.s32 2048, 2048
          %240 = vsyncadd [#allocation12], %s239
          %s241 = sshll.u32 [#allocation13], 4
          %s242 = int_to_ptr.vmem [resolvable:$true] %s241
          %247 = dma.hbm_to_vmem [thread:$0]  %s4, 2048, %s242, [#allocation12], 128, 128, 8
        $region20: #{tpu_custom_call.1} parent=11 // pred_fallthru
          _
        // Predicated region
        $region21: #{tpu_custom_call.1} parent=11 // pred_check
          %p248 = pneg %p165
        $region22: #{tpu_custom_call.1} parent=11 // pred_check_branch
          %250 = sbr.rel (%p248) target = $region24
        $region23: #{tpu_custom_call.1} parent=11 // pred_region
          %s252 = ssub.s32 2048, 2048
          %253 = vsyncadd [#allocation15], %s252
          %s254 = sshll.u32 [#allocation14], 4
          %s255 = int_to_ptr.vmem [resolvable:$true] %s254
          %260 = dma.hbm_to_vmem [thread:$0]  %s5, 2048, %s255, [#allocation15], 128, 128, 8
        $region24: #{tpu_custom_call.1} parent=11 // pred_fallthru
          _
      $region12: #{tpu_custom_call.1} parent=5 // pred_fallthru
        _
      %p261 = scmp.lt.s32.totalorder %s24, 3
      // Predicated region
      $region25: #{tpu_custom_call.1} parent=5 // pred_check
        %p262 = pneg %p261
      $region26: #{tpu_custom_call.1} parent=5 // pred_check_branch
        %264 = sbr.rel (%p262) target = $region28
      $region27: #{tpu_custom_call.1} parent=5 // pred_region
        // Predicated region
        $region29: #{tpu_custom_call.1} parent=27 // pred_check
          %p265 = pneg %p44
        $region30: #{tpu_custom_call.1} parent=27 // pred_check_branch
          %267 = sbr.rel (%p265) target = $region32
        $region31: #{tpu_custom_call.1} parent=27 // pred_region
          %s268 = sand.u32 %s34, 1
          %s269 = scalar_lea.sflag [#allocation6], %s268
          %s270 = sand.u32 %s34, 1
          %s271 = smul.addr %s270, 1536
          %s272 = scalar_lea.vmem [#allocation5], %s271
          %s273 = smul.u32 64, %s24
          %s275 = ssub.s32 24576, 24576
          %276 = vsyncadd %s269, %s275
          %s277 = smul.addr %s273, 3
          %s278 = smul.addr %s277, 128
          %s279 = scalar_lea.hbm %s0, %s278
          %s280 = sshll.u32 %s272, 4
          %s281 = int_to_ptr.vmem [resolvable:$true] %s280
          %286 = dma.hbm_to_vmem [thread:$0]  %s279, 24576, %s281, %s269, 384, 384, 24
        $region32: #{tpu_custom_call.1} parent=27 // pred_fallthru
          _
        // Predicated region
        $region33: #{tpu_custom_call.1} parent=27 // pred_check
          %p287 = pneg %p70
        $region34: #{tpu_custom_call.1} parent=27 // pred_check_branch
          %289 = sbr.rel (%p287) target = $region36
        $region35: #{tpu_custom_call.1} parent=27 // pred_region
          %s290 = sand.u32 %s24, 1
          %s291 = scalar_lea.sflag [#allocation9], %s290
          %s292 = sand.u32 %s60, 1
          %s293 = smul.addr %s292, 1536
          %s294 = scalar_lea.vmem [#allocation8], %s293
          %s295 = smul.u32 64, %s24
          %s297 = ssub.s32 24576, 24576
          %298 = vsyncadd %s291, %s297
          %s299 = smul.addr %s295, 3
          %s300 = smul.addr %s299, 128
          %s301 = scalar_lea.hbm %s1, %s300
          %s302 = sshll.u32 %s294, 4
          %s303 = int_to_ptr.vmem [resolvable:$true] %s302
          %308 = dma.hbm_to_vmem [thread:$0]  %s301, 24576, %s303, %s291, 384, 384, 24
        $region36: #{tpu_custom_call.1} parent=27 // pred_fallthru
          _
        // Predicated region
        $region37: #{tpu_custom_call.1} parent=27 // pred_check
          %p309 = pneg %p96
        $region38: #{tpu_custom_call.1} parent=27 // pred_check_branch
          %311 = sbr.rel (%p309) target = $region40
        $region39: #{tpu_custom_call.1} parent=27 // pred_region
          %s312 = sand.u32 %s24, 1
          %s313 = scalar_lea.sflag [#allocation9], %s312
          %s314 = sand.u32 %s86, 1
          %s315 = smul.addr %s314, 512
          %s316 = scalar_lea.vmem [#allocation10], %s315
          %s317 = smul.u32 64, %s24
          %s319 = ssub.s32 8192, 8192
          %320 = vsyncadd %s313, %s319
          %s321 = smul.addr %s317, 128
          %s322 = scalar_lea.hbm %s2, %s321
          %s323 = sshll.u32 %s316, 4
          %s324 = int_to_ptr.vmem [resolvable:$true] %s323
          %329 = dma.hbm_to_vmem [thread:$0]  %s322, 8192, %s324, %s313, 128, 128, 8
        $region40: #{tpu_custom_call.1} parent=27 // pred_fallthru
          _
      $region28: #{tpu_custom_call.1} parent=5 // pred_fallthru
        _
      %p330 = scmp.le.s32.totalorder 1, %s24
      %p331 = scmp.lt.s32.totalorder %s24, 4
      %p332 = pnand %p330, %p331
      %p333 = pneg %p332
      // Predicated region
      $region41: #{tpu_custom_call.1} parent=5 // pred_check
        _
      $region42: #{tpu_custom_call.1} parent=5 // pred_check_branch
        %335 = sbr.rel (%p332) target = $region44
      $region43: #{tpu_custom_call.1} parent=5 // pred_region
        %s336 = ssub.s32 %s24, 1
        %s337 = sand.u32 %s37, 1
        %s338 = scalar_lea.sflag [#allocation6], %s337
        %s339 = sand.u32 %s37, 1
        %s340 = smul.addr %s339, 1536
        %s341 = scalar_lea.vmem [#allocation5], %s340
        // Predicated region
        $region45: #{tpu_custom_call.1} parent=43 // pred_check
          %p342 = pneg %p50
        $region46: #{tpu_custom_call.1} parent=43 // pred_check_branch
          %344 = sbr.rel (%p342) target = $region48
        $region47: #{tpu_custom_call.1} parent=43 // pred_region
          %345 = dma.done %s338, 24576
        $region48: #{tpu_custom_call.1} parent=43 // pred_fallthru
          _
        %s346 = sand.u32 %s29, 1
        %s347 = scalar_lea.sflag [#allocation9], %s346
        %s348 = sand.u32 %s63, 1
        %s349 = smul.addr %s348, 1536
        %s350 = scalar_lea.vmem [#allocation8], %s349
        // Predicated region
        $region49: #{tpu_custom_call.1} parent=43 // pred_check
          %p351 = pneg %p76
        $region50: #{tpu_custom_call.1} parent=43 // pred_check_branch
          %353 = sbr.rel (%p351) target = $region52
        $region51: #{tpu_custom_call.1} parent=43 // pred_region
          %354 = dma.done %s347, 24576
        $region52: #{tpu_custom_call.1} parent=43 // pred_fallthru
          _
        %s355 = sand.u32 %s29, 1
        %s356 = scalar_lea.sflag [#allocation9], %s355
        %s357 = sand.u32 %s89, 1
        %s358 = smul.addr %s357, 512
        %s359 = scalar_lea.vmem [#allocation10], %s358
        // Predicated region
        $region53: #{tpu_custom_call.1} parent=43 // pred_check
          %p360 = pneg %p102
        $region54: #{tpu_custom_call.1} parent=43 // pred_check_branch
          %362 = sbr.rel (%p360) target = $region56
        $region55: #{tpu_custom_call.1} parent=43 // pred_region
          %363 = dma.done %s356, 8192
        $region56: #{tpu_custom_call.1} parent=43 // pred_fallthru
          _
        // Predicated region
        $region57: #{tpu_custom_call.1} parent=43 // pred_check
          %p364 = pneg %p123
        $region58: #{tpu_custom_call.1} parent=43 // pred_check_branch
          %366 = sbr.rel (%p364) target = $region60
        $region59: #{tpu_custom_call.1} parent=43 // pred_region
          %367 = dma.done [#allocation12], 6144
        $region60: #{tpu_custom_call.1} parent=43 // pred_fallthru
          _
        // Predicated region
        $region61: #{tpu_custom_call.1} parent=43 // pred_check
          %p368 = pneg %p144
        $region62: #{tpu_custom_call.1} parent=43 // pred_check_branch
          %370 = sbr.rel (%p368) target = $region64
        $region63: #{tpu_custom_call.1} parent=43 // pred_region
          %371 = dma.done [#allocation12], 2048
        $region64: #{tpu_custom_call.1} parent=43 // pred_fallthru
          _
        // Predicated region
        $region65: #{tpu_custom_call.1} parent=43 // pred_check
          %p372 = pneg %p165
        $region66: #{tpu_custom_call.1} parent=43 // pred_check_branch
          %374 = sbr.rel (%p372) target = $region68
        $region67: #{tpu_custom_call.1} parent=43 // pred_region
          %375 = dma.done [#allocation15], 2048
        $region68: #{tpu_custom_call.1} parent=43 // pred_fallthru
          _
        %s376 = sand.u32 %s37, 1
        %s377 = scalar_lea.sflag [#allocation6], %s376
        %s378 = sand.u32 %s37, 1
        %s379 = smul.addr %s378, 1536
        %s380 = scalar_lea.vmem [#allocation5], %s379
        %p381 = pneg %p50
        %p382 = pneg %p47
        %s383 = sand.u32 %s29, 1
        %s384 = scalar_lea.sflag [#allocation9], %s383
        %s385 = sand.u32 %s63, 1
        %s386 = smul.addr %s385, 1536
        %s387 = scalar_lea.vmem [#allocation8], %s386
        %p388 = pneg %p76
        %p389 = pneg %p73
        %s390 = sand.u32 %s29, 1
        %s391 = scalar_lea.sflag [#allocation9], %s390
        %s392 = sand.u32 %s89, 1
        %s393 = smul.addr %s392, 512
        %s394 = scalar_lea.vmem [#allocation10], %s393
        %p395 = pneg %p102
        %p396 = pneg %p99
        %p397 = pneg %p123
        %p398 = pneg %p120
        %p399 = pneg %p144
        %p400 = pneg %p141
        %p401 = pneg %p165
        %p402 = pneg %p162
        %p403 = pneg %p186
        %p404 = pneg %p183
        %p405 = pneg %p207
        %p406 = pneg %p204
        %s407 = smul.u32 64, %s29
        %s408 = smul.u32 64, %s29
        %s409 = smul.u32 64, %s29
        %p410 = scmp.eq.s32.totalorder %s29, 0
        // Predicated region
        $region69: #{tpu_custom_call.1} parent=43 // pred_check
          %p411 = pneg %p410
        $region70: #{tpu_custom_call.1} parent=43 // pred_check_branch
          %413 = sbr.rel (%p411) target = $region72
        $region71: #{tpu_custom_call.1} parent=43 // pred_region
          %vm414 = vcmask 0
          %415 = vst.msk [vmem:[#allocation2] sm:$0x1] %vm414, -1e+30
          %416 = vst [vmem:[#allocation3] sm:$0xff] 0.0
          %417 = vst [vmem:[#allocation3 + $0x8] sm:$0xff] 0.0
          %418 = vst [vmem:[#allocation3 + $0x10] sm:$0xff] 0.0
          %419 = vst [vmem:[#allocation3 + $0x18] sm:$0xff] 0.0
          %420 = vst [vmem:[#allocation3 + $0x20] sm:$0xff] 0.0
          %421 = vst [vmem:[#allocation3 + $0x28] sm:$0xff] 0.0
          %422 = vst [vmem:[#allocation3 + $0x30] sm:$0xff] 0.0
          %423 = vst [vmem:[#allocation3 + $0x38] sm:$0xff] 0.0
          %424 = vst [vmem:[#allocation3 + $0x40] sm:$0xff] 0.0
          %425 = vst [vmem:[#allocation3 + $0x48] sm:$0xff] 0.0
          %426 = vst [vmem:[#allocation3 + $0x50] sm:$0xff] 0.0
          %427 = vst [vmem:[#allocation3 + $0x58] sm:$0xff] 0.0
          %428 = vst [vmem:[#allocation3 + $0x60] sm:$0xff] 0.0
          %429 = vst [vmem:[#allocation3 + $0x68] sm:$0xff] 0.0
          %430 = vst [vmem:[#allocation3 + $0x70] sm:$0xff] 0.0
          %431 = vst [vmem:[#allocation3 + $0x78] sm:$0xff] 0.0
          %432 = vst [vmem:[#allocation3 + $0x80] sm:$0xff] 0.0
          %433 = vst [vmem:[#allocation3 + $0x88] sm:$0xff] 0.0
          %434 = vst [vmem:[#allocation3 + $0x90] sm:$0xff] 0.0
          %435 = vst [vmem:[#allocation3 + $0x98] sm:$0xff] 0.0
          %436 = vst [vmem:[#allocation3 + $0xa0] sm:$0xff] 0.0
          %437 = vst [vmem:[#allocation3 + $0xa8] sm:$0xff] 0.0
          %438 = vst [vmem:[#allocation3 + $0xb0] sm:$0xff] 0.0
          %439 = vst [vmem:[#allocation3 + $0xb8] sm:$0xff] 0.0
          %440 = vst [vmem:[#allocation3 + $0xc0] sm:$0xff] 0.0
          %441 = vst [vmem:[#allocation3 + $0xc8] sm:$0xff] 0.0
          %442 = vst [vmem:[#allocation3 + $0xd0] sm:$0xff] 0.0
          %443 = vst [vmem:[#allocation3 + $0xd8] sm:$0xff] 0.0
          %444 = vst [vmem:[#allocation3 + $0xe0] sm:$0xff] 0.0
          %445 = vst [vmem:[#allocation3 + $0xe8] sm:$0xff] 0.0
          %446 = vst [vmem:[#allocation3 + $0xf0] sm:$0xff] 0.0
          %447 = vst [vmem:[#allocation3 + $0xf8] sm:$0xff] 0.0
          %448 = vst [vmem:[#allocation3 + $0x100] sm:$0xff] 0.0
          %449 = vst [vmem:[#allocation3 + $0x108] sm:$0xff] 0.0
          %450 = vst [vmem:[#allocation3 + $0x110] sm:$0xff] 0.0
          %451 = vst [vmem:[#allocation3 + $0x118] sm:$0xff] 0.0
          %452 = vst [vmem:[#allocation3 + $0x120] sm:$0xff] 0.0
          %453 = vst [vmem:[#allocation3 + $0x128] sm:$0xff] 0.0
          %454 = vst [vmem:[#allocation3 + $0x130] sm:$0xff] 0.0
          %455 = vst [vmem:[#allocation3 + $0x138] sm:$0xff] 0.0
          %456 = vst [vmem:[#allocation3 + $0x140] sm:$0xff] 0.0
          %457 = vst [vmem:[#allocation3 + $0x148] sm:$0xff] 0.0
          %458 = vst [vmem:[#allocation3 + $0x150] sm:$0xff] 0.0
          %459 = vst [vmem:[#allocation3 + $0x158] sm:$0xff] 0.0
          %460 = vst [vmem:[#allocation3 + $0x160] sm:$0xff] 0.0
          %461 = vst [vmem:[#allocation3 + $0x168] sm:$0xff] 0.0
          %462 = vst [vmem:[#allocation3 + $0x170] sm:$0xff] 0.0
          %463 = vst [vmem:[#allocation3 + $0x178] sm:$0xff] 0.0
          %v464 = vld [vmem:[#allocation11] sm:$0xff]
          %v465 = vld [vmem:[#allocation11 + $0x8] sm:$0xff]
          %v466 = vld [vmem:[#allocation11 + $0x10] sm:$0xff]
          %v467 = vld [vmem:[#allocation11 + $0x18] sm:$0xff]
          %v468 = vld [vmem:[#allocation11 + $0x20] sm:$0xff]
          %v469 = vld [vmem:[#allocation11 + $0x28] sm:$0xff]
          %v470 = vld [vmem:[#allocation11 + $0x30] sm:$0xff]
          %v471 = vld [vmem:[#allocation11 + $0x38] sm:$0xff]
          %v472 = vld [vmem:[#allocation11 + $0x40] sm:$0xff]
          %v473 = vld [vmem:[#allocation11 + $0x48] sm:$0xff]
          %v474 = vld [vmem:[#allocation11 + $0x50] sm:$0xff]
          %v475 = vld [vmem:[#allocation11 + $0x58] sm:$0xff]
          %v476 = vld [vmem:[#allocation11 + $0x60] sm:$0xff]
          %v477 = vld [vmem:[#allocation11 + $0x68] sm:$0xff]
          %v478 = vld [vmem:[#allocation11 + $0x70] sm:$0xff]
          %v479 = vld [vmem:[#allocation11 + $0x78] sm:$0xff]
          %v480 = vld [vmem:[#allocation11 + $0x80] sm:$0xff]
          %v481 = vld [vmem:[#allocation11 + $0x88] sm:$0xff]
          %v482 = vld [vmem:[#allocation11 + $0x90] sm:$0xff]
          %v483 = vld [vmem:[#allocation11 + $0x98] sm:$0xff]
          %v484 = vld [vmem:[#allocation11 + $0xa0] sm:$0xff]
          %v485 = vld [vmem:[#allocation11 + $0xa8] sm:$0xff]
          %v486 = vld [vmem:[#allocation11 + $0xb0] sm:$0xff]
          %v487 = vld [vmem:[#allocation11 + $0xb8] sm:$0xff]
          %v488 = vld [vmem:[#allocation11 + $0xc0] sm:$0xff]
          %v489 = vld [vmem:[#allocation11 + $0xc8] sm:$0xff]
          %v490 = vld [vmem:[#allocation11 + $0xd0] sm:$0xff]
          %v491 = vld [vmem:[#allocation11 + $0xd8] sm:$0xff]
          %v492 = vld [vmem:[#allocation11 + $0xe0] sm:$0xff]
          %v493 = vld [vmem:[#allocation11 + $0xe8] sm:$0xff]
          %v494 = vld [vmem:[#allocation11 + $0xf0] sm:$0xff]
          %v495 = vld [vmem:[#allocation11 + $0xf8] sm:$0xff]
          %v496 = vld [vmem:[#allocation11 + $0x100] sm:$0xff]
          %v497 = vld [vmem:[#allocation11 + $0x108] sm:$0xff]
          %v498 = vld [vmem:[#allocation11 + $0x110] sm:$0xff]
          %v499 = vld [vmem:[#allocation11 + $0x118] sm:$0xff]
          %v500 = vld [vmem:[#allocation11 + $0x120] sm:$0xff]
          %v501 = vld [vmem:[#allocation11 + $0x128] sm:$0xff]
          %v502 = vld [vmem:[#allocation11 + $0x130] sm:$0xff]
          %v503 = vld [vmem:[#allocation11 + $0x138] sm:$0xff]
          %v504 = vld [vmem:[#allocation11 + $0x140] sm:$0xff]
          %v505 = vld [vmem:[#allocation11 + $0x148] sm:$0xff]
          %v506 = vld [vmem:[#allocation11 + $0x150] sm:$0xff]
          %v507 = vld [vmem:[#allocation11 + $0x158] sm:$0xff]
          %v508 = vld [vmem:[#allocation11 + $0x160] sm:$0xff]
          %v509 = vld [vmem:[#allocation11 + $0x168] sm:$0xff]
          %v510 = vld [vmem:[#allocation11 + $0x170] sm:$0xff]
          %v511 = vld [vmem:[#allocation11 + $0x178] sm:$0xff]
          %v512 = vld [vmem:[#allocation13] sm:$0xff]
          %v513 = vld [vmem:[#allocation13 + $0x8] sm:$0xff]
          %v514 = vld [vmem:[#allocation13 + $0x10] sm:$0xff]
          %v515 = vld [vmem:[#allocation13 + $0x18] sm:$0xff]
          %v516 = vld [vmem:[#allocation13 + $0x20] sm:$0xff]
          %v517 = vld [vmem:[#allocation13 + $0x28] sm:$0xff]
          %v518 = vld [vmem:[#allocation13 + $0x30] sm:$0xff]
          %v519 = vld [vmem:[#allocation13 + $0x38] sm:$0xff]
          %v520 = vld [vmem:[#allocation13 + $0x40] sm:$0xff]
          %v521 = vld [vmem:[#allocation13 + $0x48] sm:$0xff]
          %v522 = vld [vmem:[#allocation13 + $0x50] sm:$0xff]
          %v523 = vld [vmem:[#allocation13 + $0x58] sm:$0xff]
          %v524 = vld [vmem:[#allocation13 + $0x60] sm:$0xff]
          %v525 = vld [vmem:[#allocation13 + $0x68] sm:$0xff]
          %v526 = vld [vmem:[#allocation13 + $0x70] sm:$0xff]
          %v527 = vld [vmem:[#allocation13 + $0x78] sm:$0xff]
          %528 = vmatprep.subr.mxu0 0.0
          %529 = vmatpush1.msra.mxu0 %v527
          %530 = vmatprep.subr.mxu0 0.0
          %531 = vmatpush1.msra.mxu0 %v526
          %532 = vmatprep.subr.mxu0 0.0
          %533 = vmatpush1.msra.mxu0 %v525
          %534 = vmatprep.subr.mxu0 0.0
          %535 = vmatpush1.msra.mxu0 %v524
          %536 = vmatprep.subr.mxu0 0.0
          %537 = vmatpush1.msra.mxu0 %v523
          %538 = vmatprep.subr.mxu0 0.0
          %539 = vmatpush1.msra.mxu0 %v522
          %540 = vmatprep.subr.mxu0 0.0
          %541 = vmatpush1.msra.mxu0 %v521
          %542 = vmatprep.subr.mxu0 0.0
          %543 = vmatpush1.msra.mxu0 %v520
          %544 = vmatprep.subr.mxu0 0.0
          %545 = vmatpush1.msra.mxu0 %v519
          %546 = vmatprep.subr.mxu0 0.0
          %547 = vmatpush1.msra.mxu0 %v518
          %548 = vmatprep.subr.mxu0 0.0
          %549 = vmatpush1.msra.mxu0 %v517
          %550 = vmatprep.subr.mxu0 0.0
          %551 = vmatpush1.msra.mxu0 %v516
          %552 = vmatprep.subr.mxu0 0.0
          %553 = vmatpush1.msra.mxu0 %v515
          %554 = vmatprep.subr.mxu0 0.0
          %555 = vmatpush1.msra.mxu0 %v514
          %556 = vmatprep.subr.mxu0 0.0
          %557 = vmatpush1.msra.mxu0 %v513
          %558 = vmatprep.subr.mxu0 0.0
          %559 = vmatpush1.msra.mxu0 %v512
          %560 = vmatprep.subr.mxu0 0.0
          %561 = vmatpush2.msra.mxu0 0.0
          %562 = vmatprep.subr.mxu0 0.0
          %563 = vmatpush2.msra.mxu0 0.0
          %564 = vmatprep.subr.mxu0 0.0
          %565 = vmatpush2.msra.mxu0 0.0
          %566 = vmatprep.subr.mxu0 0.0
          %567 = vmatpush2.msra.mxu0 0.0
          %568 = vmatprep.subr.mxu0 0.0
          %569 = vmatpush2.msra.mxu0 0.0
          %570 = vmatprep.subr.mxu0 0.0
          %571 = vmatpush2.msra.mxu0 0.0
          %572 = vmatprep.subr.mxu0 0.0
          %573 = vmatpush2.msra.mxu0 0.0
          %574 = vmatprep.subr.mxu0 0.0
          %575 = vmatpush2.msra.mxu0 0.0
          %576 = vmatprep.subr.mxu0 0.0
          %577 = vmatpush2.msra.mxu0 0.0
          %578 = vmatprep.subr.mxu0 0.0
          %579 = vmatpush2.msra.mxu0 0.0
          %580 = vmatprep.subr.mxu0 0.0
          %581 = vmatpush2.msra.mxu0 0.0
          %582 = vmatprep.subr.mxu0 0.0
          %583 = vmatpush2.msra.mxu0 0.0
          %584 = vmatprep.subr.mxu0 0.0
          %585 = vmatpush2.msra.mxu0 0.0
          %586 = vmatprep.subr.mxu0 0.0
          %587 = vmatpush2.msra.mxu0 0.0
          %588 = vmatprep.subr.mxu0 0.0
          %589 = vmatpush2.msra.mxu0 0.0
          %590 = vmatprep.subr.mxu0 0.0
          %591 = vmatpush2.msra.mxu0 0.0
          %592 = vmatprep.mubr.f32.mxu0 0.0
          %593 = vmatmul.mubr.f32.gmra.mxu0 %v464
          %v594 = vpop.f32.mrf.mxu0
          %v595 = vadd.f32 0.0, %v594
          %v596 = vpop.f32.mrf.mxu0
          %597 = vmatprep.mubr.f32.mxu0 0.0
          %598 = vmatmul.mubr.f32.gmra.mxu0 %v465
          %v599 = vpop.f32.mrf.mxu0
          %v600 = vadd.f32 0.0, %v599
          %v601 = vpop.f32.mrf.mxu0
          %602 = vmatprep.mubr.f32.mxu0 0.0
          %603 = vmatmul.mubr.f32.gmra.mxu0 %v466
          %v604 = vpop.f32.mrf.mxu0
          %v605 = vadd.f32 0.0, %v604
          %v606 = vpop.f32.mrf.mxu0
          %607 = vmatprep.mubr.f32.mxu0 0.0
          %608 = vmatmul.mubr.f32.gmra.mxu0 %v467
          %v609 = vpop.f32.mrf.mxu0
          %v610 = vadd.f32 0.0, %v609
          %v611 = vpop.f32.mrf.mxu0
          %612 = vmatprep.mubr.f32.mxu0 0.0
          %613 = vmatmul.mubr.f32.gmra.mxu0 %v468
          %v614 = vpop.f32.mrf.mxu0
          %v615 = vadd.f32 0.0, %v614
          %v616 = vpop.f32.mrf.mxu0
          %617 = vmatprep.mubr.f32.mxu0 0.0
          %618 = vmatmul.mubr.f32.gmra.mxu0 %v469
          %v619 = vpop.f32.mrf.mxu0
          %v620 = vadd.f32 0.0, %v619
          %v621 = vpop.f32.mrf.mxu0
          %622 = vmatprep.mubr.f32.mxu0 0.0
          %623 = vmatmul.mubr.f32.gmra.mxu0 %v470
          %v624 = vpop.f32.mrf.mxu0
          %v625 = vadd.f32 0.0, %v624
          %v626 = vpop.f32.mrf.mxu0
          %627 = vmatprep.mubr.f32.mxu0 0.0
          %628 = vmatmul.mubr.f32.gmra.mxu0 %v471
          %v629 = vpop.f32.mrf.mxu0
          %v630 = vadd.f32 0.0, %v629
          %v631 = vpop.f32.mrf.mxu0
          %632 = vmatprep.mubr.f32.mxu0 0.0
          %633 = vmatmul.mubr.f32.gmra.mxu0 %v472
          %v634 = vpop.f32.mrf.mxu0
          %v635 = vadd.f32 0.0, %v634
          %v636 = vpop.f32.mrf.mxu0
          %637 = vmatprep.mubr.f32.mxu0 0.0
          %638 = vmatmul.mubr.f32.gmra.mxu0 %v473
          %v639 = vpop.f32.mrf.mxu0
          %v640 = vadd.f32 0.0, %v639
          %v641 = vpop.f32.mrf.mxu0
          %642 = vmatprep.mubr.f32.mxu0 0.0
          %643 = vmatmul.mubr.f32.gmra.mxu0 %v474
          %v644 = vpop.f32.mrf.mxu0
          %v645 = vadd.f32 0.0, %v644
          %v646 = vpop.f32.mrf.mxu0
          %647 = vmatprep.mubr.f32.mxu0 0.0
          %648 = vmatmul.mubr.f32.gmra.mxu0 %v475
          %v649 = vpop.f32.mrf.mxu0
          %v650 = vadd.f32 0.0, %v649
          %v651 = vpop.f32.mrf.mxu0
          %652 = vmatprep.mubr.f32.mxu0 0.0
          %653 = vmatmul.mubr.f32.gmra.mxu0 %v476
          %v654 = vpop.f32.mrf.mxu0
          %v655 = vadd.f32 0.0, %v654
          %v656 = vpop.f32.mrf.mxu0
          %657 = vmatprep.mubr.f32.mxu0 0.0
          %658 = vmatmul.mubr.f32.gmra.mxu0 %v477
          %v659 = vpop.f32.mrf.mxu0
          %v660 = vadd.f32 0.0, %v659
          %v661 = vpop.f32.mrf.mxu0
          %662 = vmatprep.mubr.f32.mxu0 0.0
          %663 = vmatmul.mubr.f32.gmra.mxu0 %v478
          %v664 = vpop.f32.mrf.mxu0
          %v665 = vadd.f32 0.0, %v664
          %v666 = vpop.f32.mrf.mxu0
          %667 = vmatprep.mubr.f32.mxu0 0.0
          %668 = vmatmul.mubr.f32.gmra.mxu0 %v479
          %v669 = vpop.f32.mrf.mxu0
          %v670 = vadd.f32 0.0, %v669
          %v671 = vpop.f32.mrf.mxu0
          %672 = vmatprep.mubr.f32.mxu0 0.0
          %673 = vmatmul.mubr.f32.gmra.mxu0 %v480
          %v674 = vpop.f32.mrf.mxu0
          %v675 = vadd.f32 0.0, %v674
          %v676 = vpop.f32.mrf.mxu0
          %677 = vmatprep.mubr.f32.mxu0 0.0
          %678 = vmatmul.mubr.f32.gmra.mxu0 %v481
          %v679 = vpop.f32.mrf.mxu0
          %v680 = vadd.f32 0.0, %v679
          %v681 = vpop.f32.mrf.mxu0
          %682 = vmatprep.mubr.f32.mxu0 0.0
          %683 = vmatmul.mubr.f32.gmra.mxu0 %v482
          %v684 = vpop.f32.mrf.mxu0
          %v685 = vadd.f32 0.0, %v684
          %v686 = vpop.f32.mrf.mxu0
          %687 = vmatprep.mubr.f32.mxu0 0.0
          %688 = vmatmul.mubr.f32.gmra.mxu0 %v483
          %v689 = vpop.f32.mrf.mxu0
          %v690 = vadd.f32 0.0, %v689
          %v691 = vpop.f32.mrf.mxu0
          %692 = vmatprep.mubr.f32.mxu0 0.0
          %693 = vmatmul.mubr.f32.gmra.mxu0 %v484
          %v694 = vpop.f32.mrf.mxu0
          %v695 = vadd.f32 0.0, %v694
          %v696 = vpop.f32.mrf.mxu0
          %697 = vmatprep.mubr.f32.mxu0 0.0
          %698 = vmatmul.mubr.f32.gmra.mxu0 %v485
          %v699 = vpop.f32.mrf.mxu0
          %v700 = vadd.f32 0.0, %v699
          %v701 = vpop.f32.mrf.mxu0
          %702 = vmatprep.mubr.f32.mxu0 0.0
          %703 = vmatmul.mubr.f32.gmra.mxu0 %v486
          %v704 = vpop.f32.mrf.mxu0
          %v705 = vadd.f32 0.0, %v704
          %v706 = vpop.f32.mrf.mxu0
          %707 = vmatprep.mubr.f32.mxu0 0.0
          %708 = vmatmul.mubr.f32.gmra.mxu0 %v487
          %v709 = vpop.f32.mrf.mxu0
          %v710 = vadd.f32 0.0, %v709
          %v711 = vpop.f32.mrf.mxu0
          %712 = vmatprep.mubr.f32.mxu0 0.0
          %713 = vmatmul.mubr.f32.gmra.mxu0 %v488
          %v714 = vpop.f32.mrf.mxu0
          %v715 = vadd.f32 0.0, %v714
          %v716 = vpop.f32.mrf.mxu0
          %717 = vmatprep.mubr.f32.mxu0 0.0
          %718 = vmatmul.mubr.f32.gmra.mxu0 %v489
          %v719 = vpop.f32.mrf.mxu0
          %v720 = vadd.f32 0.0, %v719
          %v721 = vpop.f32.mrf.mxu0
          %722 = vmatprep.mubr.f32.mxu0 0.0
          %723 = vmatmul.mubr.f32.gmra.mxu0 %v490
          %v724 = vpop.f32.mrf.mxu0
          %v725 = vadd.f32 0.0, %v724
          %v726 = vpop.f32.mrf.mxu0
          %727 = vmatprep.mubr.f32.mxu0 0.0
          %728 = vmatmul.mubr.f32.gmra.mxu0 %v491
          %v729 = vpop.f32.mrf.mxu0
          %v730 = vadd.f32 0.0, %v729
          %v731 = vpop.f32.mrf.mxu0
          %732 = vmatprep.mubr.f32.mxu0 0.0
          %733 = vmatmul.mubr.f32.gmra.mxu0 %v492
          %v734 = vpop.f32.mrf.mxu0
          %v735 = vadd.f32 0.0, %v734
          %v736 = vpop.f32.mrf.mxu0
          %737 = vmatprep.mubr.f32.mxu0 0.0
          %738 = vmatmul.mubr.f32.gmra.mxu0 %v493
          %v739 = vpop.f32.mrf.mxu0
          %v740 = vadd.f32 0.0, %v739
          %v741 = vpop.f32.mrf.mxu0
          %742 = vmatprep.mubr.f32.mxu0 0.0
          %743 = vmatmul.mubr.f32.gmra.mxu0 %v494
          %v744 = vpop.f32.mrf.mxu0
          %v745 = vadd.f32 0.0, %v744
          %v746 = vpop.f32.mrf.mxu0
          %747 = vmatprep.mubr.f32.mxu0 0.0
          %748 = vmatmul.mubr.f32.gmra.mxu0 %v495
          %v749 = vpop.f32.mrf.mxu0
          %v750 = vadd.f32 0.0, %v749
          %v751 = vpop.f32.mrf.mxu0
          %752 = vmatprep.mubr.f32.mxu0 0.0
          %753 = vmatmul.mubr.f32.gmra.mxu0 %v496
          %v754 = vpop.f32.mrf.mxu0
          %v755 = vadd.f32 0.0, %v754
          %v756 = vpop.f32.mrf.mxu0
          %757 = vmatprep.mubr.f32.mxu0 0.0
          %758 = vmatmul.mubr.f32.gmra.mxu0 %v497
          %v759 = vpop.f32.mrf.mxu0
          %v760 = vadd.f32 0.0, %v759
          %v761 = vpop.f32.mrf.mxu0
          %762 = vmatprep.mubr.f32.mxu0 0.0
          %763 = vmatmul.mubr.f32.gmra.mxu0 %v498
          %v764 = vpop.f32.mrf.mxu0
          %v765 = vadd.f32 0.0, %v764
          %v766 = vpop.f32.mrf.mxu0
          %767 = vmatprep.mubr.f32.mxu0 0.0
          %768 = vmatmul.mubr.f32.gmra.mxu0 %v499
          %v769 = vpop.f32.mrf.mxu0
          %v770 = vadd.f32 0.0, %v769
          %v771 = vpop.f32.mrf.mxu0
          %772 = vmatprep.mubr.f32.mxu0 0.0
          %773 = vmatmul.mubr.f32.gmra.mxu0 %v500
          %v774 = vpop.f32.mrf.mxu0
          %v775 = vadd.f32 0.0, %v774
          %v776 = vpop.f32.mrf.mxu0
          %777 = vmatprep.mubr.f32.mxu0 0.0
          %778 = vmatmul.mubr.f32.gmra.mxu0 %v501
          %v779 = vpop.f32.mrf.mxu0
          %v780 = vadd.f32 0.0, %v779
          %v781 = vpop.f32.mrf.mxu0
          %782 = vmatprep.mubr.f32.mxu0 0.0
          %783 = vmatmul.mubr.f32.gmra.mxu0 %v502
          %v784 = vpop.f32.mrf.mxu0
          %v785 = vadd.f32 0.0, %v784
          %v786 = vpop.f32.mrf.mxu0
          %787 = vmatprep.mubr.f32.mxu0 0.0
          %788 = vmatmul.mubr.f32.gmra.mxu0 %v503
          %v789 = vpop.f32.mrf.mxu0
          %v790 = vadd.f32 0.0, %v789
          %v791 = vpop.f32.mrf.mxu0
          %792 = vmatprep.mubr.f32.mxu0 0.0
          %793 = vmatmul.mubr.f32.gmra.mxu0 %v504
          %v794 = vpop.f32.mrf.mxu0
          %v795 = vadd.f32 0.0, %v794
          %v796 = vpop.f32.mrf.mxu0
          %797 = vmatprep.mubr.f32.mxu0 0.0
          %798 = vmatmul.mubr.f32.gmra.mxu0 %v505
          %v799 = vpop.f32.mrf.mxu0
          %v800 = vadd.f32 0.0, %v799
          %v801 = vpop.f32.mrf.mxu0
          %802 = vmatprep.mubr.f32.mxu0 0.0
          %803 = vmatmul.mubr.f32.gmra.mxu0 %v506
          %v804 = vpop.f32.mrf.mxu0
          %v805 = vadd.f32 0.0, %v804
          %v806 = vpop.f32.mrf.mxu0
          %807 = vmatprep.mubr.f32.mxu0 0.0
          %808 = vmatmul.mubr.f32.gmra.mxu0 %v507
          %v809 = vpop.f32.mrf.mxu0
          %v810 = vadd.f32 0.0, %v809
          %v811 = vpop.f32.mrf.mxu0
          %812 = vmatprep.mubr.f32.mxu0 0.0
          %813 = vmatmul.mubr.f32.gmra.mxu0 %v508
          %v814 = vpop.f32.mrf.mxu0
          %v815 = vadd.f32 0.0, %v814
          %v816 = vpop.f32.mrf.mxu0
          %817 = vmatprep.mubr.f32.mxu0 0.0
          %818 = vmatmul.mubr.f32.gmra.mxu0 %v509
          %v819 = vpop.f32.mrf.mxu0
          %v820 = vadd.f32 0.0, %v819
          %v821 = vpop.f32.mrf.mxu0
          %822 = vmatprep.mubr.f32.mxu0 0.0
          %823 = vmatmul.mubr.f32.gmra.mxu0 %v510
          %v824 = vpop.f32.mrf.mxu0
          %v825 = vadd.f32 0.0, %v824
          %v826 = vpop.f32.mrf.mxu0
          %827 = vmatprep.mubr.f32.mxu0 0.0
          %828 = vmatmul.mubr.f32.gmra.mxu0 %v511
          %v829 = vpop.f32.mrf.mxu0
          %v830 = vadd.f32 0.0, %v829
          %v831 = vpop.f32.mrf.mxu0
          %832 = vdwg.mxu0
          %833 = vst [vmem:[#allocation4] sm:$0xff] %v595
          %834 = vst [vmem:[#allocation4 + $0x8] sm:$0xff] %v600
          %835 = vst [vmem:[#allocation4 + $0x10] sm:$0xff] %v605
          %836 = vst [vmem:[#allocation4 + $0x18] sm:$0xff] %v610
          %837 = vst [vmem:[#allocation4 + $0x20] sm:$0xff] %v615
          %838 = vst [vmem:[#allocation4 + $0x28] sm:$0xff] %v620
          %839 = vst [vmem:[#allocation4 + $0x30] sm:$0xff] %v625
          %840 = vst [vmem:[#allocation4 + $0x38] sm:$0xff] %v630
          %841 = vst [vmem:[#allocation4 + $0x40] sm:$0xff] %v635
          %842 = vst [vmem:[#allocation4 + $0x48] sm:$0xff] %v640
          %843 = vst [vmem:[#allocation4 + $0x50] sm:$0xff] %v645
          %844 = vst [vmem:[#allocation4 + $0x58] sm:$0xff] %v650
          %845 = vst [vmem:[#allocation4 + $0x60] sm:$0xff] %v655
          %846 = vst [vmem:[#allocation4 + $0x68] sm:$0xff] %v660
          %847 = vst [vmem:[#allocation4 + $0x70] sm:$0xff] %v665
          %848 = vst [vmem:[#allocation4 + $0x78] sm:$0xff] %v670
          %849 = vst [vmem:[#allocation4 + $0x80] sm:$0xff] %v675
          %850 = vst [vmem:[#allocation4 + $0x88] sm:$0xff] %v680
          %851 = vst [vmem:[#allocation4 + $0x90] sm:$0xff] %v685
          %852 = vst [vmem:[#allocation4 + $0x98] sm:$0xff] %v690
          %853 = vst [vmem:[#allocation4 + $0xa0] sm:$0xff] %v695
          %854 = vst [vmem:[#allocation4 + $0xa8] sm:$0xff] %v700
          %855 = vst [vmem:[#allocation4 + $0xb0] sm:$0xff] %v705
          %856 = vst [vmem:[#allocation4 + $0xb8] sm:$0xff] %v710
          %857 = vst [vmem:[#allocation4 + $0xc0] sm:$0xff] %v715
          %858 = vst [vmem:[#allocation4 + $0xc8] sm:$0xff] %v720
          %859 = vst [vmem:[#allocation4 + $0xd0] sm:$0xff] %v725
          %860 = vst [vmem:[#allocation4 + $0xd8] sm:$0xff] %v730
          %861 = vst [vmem:[#allocation4 + $0xe0] sm:$0xff] %v735
          %862 = vst [vmem:[#allocation4 + $0xe8] sm:$0xff] %v740
          %863 = vst [vmem:[#allocation4 + $0xf0] sm:$0xff] %v745
          %864 = vst [vmem:[#allocation4 + $0xf8] sm:$0xff] %v750
          %865 = vst [vmem:[#allocation4 + $0x100] sm:$0xff] %v755
          %866 = vst [vmem:[#allocation4 + $0x108] sm:$0xff] %v760
          %867 = vst [vmem:[#allocation4 + $0x110] sm:$0xff] %v765
          %868 = vst [vmem:[#allocation4 + $0x118] sm:$0xff] %v770
          %869 = vst [vmem:[#allocation4 + $0x120] sm:$0xff] %v775
          %870 = vst [vmem:[#allocation4 + $0x128] sm:$0xff] %v780
          %871 = vst [vmem:[#allocation4 + $0x130] sm:$0xff] %v785
          %872 = vst [vmem:[#allocation4 + $0x138] sm:$0xff] %v790
          %873 = vst [vmem:[#allocation4 + $0x140] sm:$0xff] %v795
          %874 = vst [vmem:[#allocation4 + $0x148] sm:$0xff] %v800
          %875 = vst [vmem:[#allocation4 + $0x150] sm:$0xff] %v805
          %876 = vst [vmem:[#allocation4 + $0x158] sm:$0xff] %v810
          %877 = vst [vmem:[#allocation4 + $0x160] sm:$0xff] %v815
          %878 = vst [vmem:[#allocation4 + $0x168] sm:$0xff] %v820
          %879 = vst [vmem:[#allocation4 + $0x170] sm:$0xff] %v825
          %880 = vst [vmem:[#allocation4 + $0x178] sm:$0xff] %v830
        $region72: #{tpu_custom_call.1} parent=43 // pred_fallthru
          _
        %v881 = vld [vmem:[%s341] sm:$0xff]
        %v882 = vld [vmem:[%s341 + $0x8] sm:$0xff]
        %v883 = vld [vmem:[%s341 + $0x10] sm:$0xff]
        %v884 = vld [vmem:[%s341 + $0x18] sm:$0xff]
        %v885 = vld [vmem:[%s341 + $0x20] sm:$0xff]
        %v886 = vld [vmem:[%s341 + $0x28] sm:$0xff]
        %v887 = vld [vmem:[%s341 + $0x30] sm:$0xff]
        %v888 = vld [vmem:[%s341 + $0x38] sm:$0xff]
        %v889 = vld [vmem:[%s341 + $0x40] sm:$0xff]
        %v890 = vld [vmem:[%s341 + $0x48] sm:$0xff]
        %v891 = vld [vmem:[%s341 + $0x50] sm:$0xff]
        %v892 = vld [vmem:[%s341 + $0x58] sm:$0xff]
        %v893 = vld [vmem:[%s341 + $0x60] sm:$0xff]
        %v894 = vld [vmem:[%s341 + $0x68] sm:$0xff]
        %v895 = vld [vmem:[%s341 + $0x70] sm:$0xff]
        %v896 = vld [vmem:[%s341 + $0x78] sm:$0xff]
        %v897 = vld [vmem:[%s341 + $0x80] sm:$0xff]
        %v898 = vld [vmem:[%s341 + $0x88] sm:$0xff]
        %v899 = vld [vmem:[%s341 + $0x90] sm:$0xff]
        %v900 = vld [vmem:[%s341 + $0x98] sm:$0xff]
        %v901 = vld [vmem:[%s341 + $0xa0] sm:$0xff]
        %v902 = vld [vmem:[%s341 + $0xa8] sm:$0xff]
        %v903 = vld [vmem:[%s341 + $0xb0] sm:$0xff]
        %v904 = vld [vmem:[%s341 + $0xb8] sm:$0xff]
        %v905 = vld [vmem:[%s341 + $0xc0] sm:$0xff]
        %v906 = vld [vmem:[%s341 + $0xc8] sm:$0xff]
        %v907 = vld [vmem:[%s341 + $0xd0] sm:$0xff]
        %v908 = vld [vmem:[%s341 + $0xd8] sm:$0xff]
        %v909 = vld [vmem:[%s341 + $0xe0] sm:$0xff]
        %v910 = vld [vmem:[%s341 + $0xe8] sm:$0xff]
        %v911 = vld [vmem:[%s341 + $0xf0] sm:$0xff]
        %v912 = vld [vmem:[%s341 + $0xf8] sm:$0xff]
        %v913 = vld [vmem:[%s341 + $0x100] sm:$0xff]
        %v914 = vld [vmem:[%s341 + $0x108] sm:$0xff]
        %v915 = vld [vmem:[%s341 + $0x110] sm:$0xff]
        %v916 = vld [vmem:[%s341 + $0x118] sm:$0xff]
        %v917 = vld [vmem:[%s341 + $0x120] sm:$0xff]
        %v918 = vld [vmem:[%s341 + $0x128] sm:$0xff]
        %v919 = vld [vmem:[%s341 + $0x130] sm:$0xff]
        %v920 = vld [vmem:[%s341 + $0x138] sm:$0xff]
        %v921 = vld [vmem:[%s341 + $0x140] sm:$0xff]
        %v922 = vld [vmem:[%s341 + $0x148] sm:$0xff]
        %v923 = vld [vmem:[%s341 + $0x150] sm:$0xff]
        %v924 = vld [vmem:[%s341 + $0x158] sm:$0xff]
        %v925 = vld [vmem:[%s341 + $0x160] sm:$0xff]
        %v926 = vld [vmem:[%s341 + $0x168] sm:$0xff]
        %v927 = vld [vmem:[%s341 + $0x170] sm:$0xff]
        %v928 = vld [vmem:[%s341 + $0x178] sm:$0xff]
        %v929 = vld [vmem:[%s341 + $0x180] sm:$0xff]
        %v930 = vld [vmem:[%s341 + $0x188] sm:$0xff]
        %v931 = vld [vmem:[%s341 + $0x190] sm:$0xff]
        %v932 = vld [vmem:[%s341 + $0x198] sm:$0xff]
        %v933 = vld [vmem:[%s341 + $0x1a0] sm:$0xff]
        %v934 = vld [vmem:[%s341 + $0x1a8] sm:$0xff]
        %v935 = vld [vmem:[%s341 + $0x1b0] sm:$0xff]
        %v936 = vld [vmem:[%s341 + $0x1b8] sm:$0xff]
        %v937 = vld [vmem:[%s341 + $0x1c0] sm:$0xff]
        %v938 = vld [vmem:[%s341 + $0x1c8] sm:$0xff]
        %v939 = vld [vmem:[%s341 + $0x1d0] sm:$0xff]
        %v940 = vld [vmem:[%s341 + $0x1d8] sm:$0xff]
        %v941 = vld [vmem:[%s341 + $0x1e0] sm:$0xff]
        %v942 = vld [vmem:[%s341 + $0x1e8] sm:$0xff]
        %v943 = vld [vmem:[%s341 + $0x1f0] sm:$0xff]
        %v944 = vld [vmem:[%s341 + $0x1f8] sm:$0xff]
        %v945 = vld [vmem:[%s341 + $0x200] sm:$0xff]
        %v946 = vld [vmem:[%s341 + $0x208] sm:$0xff]
        %v947 = vld [vmem:[%s341 + $0x210] sm:$0xff]
        %v948 = vld [vmem:[%s341 + $0x218] sm:$0xff]
        %v949 = vld [vmem:[%s341 + $0x220] sm:$0xff]
        %v950 = vld [vmem:[%s341 + $0x228] sm:$0xff]
        %v951 = vld [vmem:[%s341 + $0x230] sm:$0xff]
        %v952 = vld [vmem:[%s341 + $0x238] sm:$0xff]
        %v953 = vld [vmem:[%s341 + $0x240] sm:$0xff]
        %v954 = vld [vmem:[%s341 + $0x248] sm:$0xff]
        %v955 = vld [vmem:[%s341 + $0x250] sm:$0xff]
        %v956 = vld [vmem:[%s341 + $0x258] sm:$0xff]
        %v957 = vld [vmem:[%s341 + $0x260] sm:$0xff]
        %v958 = vld [vmem:[%s341 + $0x268] sm:$0xff]
        %v959 = vld [vmem:[%s341 + $0x270] sm:$0xff]
        %v960 = vld [vmem:[%s341 + $0x278] sm:$0xff]
        %v961 = vld [vmem:[%s341 + $0x280] sm:$0xff]
        %v962 = vld [vmem:[%s341 + $0x288] sm:$0xff]
        %v963 = vld [vmem:[%s341 + $0x290] sm:$0xff]
        %v964 = vld [vmem:[%s341 + $0x298] sm:$0xff]
        %v965 = vld [vmem:[%s341 + $0x2a0] sm:$0xff]
        %v966 = vld [vmem:[%s341 + $0x2a8] sm:$0xff]
        %v967 = vld [vmem:[%s341 + $0x2b0] sm:$0xff]
        %v968 = vld [vmem:[%s341 + $0x2b8] sm:$0xff]
        %v969 = vld [vmem:[%s341 + $0x2c0] sm:$0xff]
        %v970 = vld [vmem:[%s341 + $0x2c8] sm:$0xff]
        %v971 = vld [vmem:[%s341 + $0x2d0] sm:$0xff]
        %v972 = vld [vmem:[%s341 + $0x2d8] sm:$0xff]
        %v973 = vld [vmem:[%s341 + $0x2e0] sm:$0xff]
        %v974 = vld [vmem:[%s341 + $0x2e8] sm:$0xff]
        %v975 = vld [vmem:[%s341 + $0x2f0] sm:$0xff]
        %v976 = vld [vmem:[%s341 + $0x2f8] sm:$0xff]
        %v977 = vld [vmem:[%s341 + $0x300] sm:$0xff]
        %v978 = vld [vmem:[%s341 + $0x308] sm:$0xff]
        %v979 = vld [vmem:[%s341 + $0x310] sm:$0xff]
        %v980 = vld [vmem:[%s341 + $0x318] sm:$0xff]
        %v981 = vld [vmem:[%s341 + $0x320] sm:$0xff]
        %v982 = vld [vmem:[%s341 + $0x328] sm:$0xff]
        %v983 = vld [vmem:[%s341 + $0x330] sm:$0xff]
        %v984 = vld [vmem:[%s341 + $0x338] sm:$0xff]
        %v985 = vld [vmem:[%s341 + $0x340] sm:$0xff]
        %v986 = vld [vmem:[%s341 + $0x348] sm:$0xff]
        %v987 = vld [vmem:[%s341 + $0x350] sm:$0xff]
        %v988 = vld [vmem:[%s341 + $0x358] sm:$0xff]
        %v989 = vld [vmem:[%s341 + $0x360] sm:$0xff]
        %v990 = vld [vmem:[%s341 + $0x368] sm:$0xff]
        %v991 = vld [vmem:[%s341 + $0x370] sm:$0xff]
        %v992 = vld [vmem:[%s341 + $0x378] sm:$0xff]
        %v993 = vld [vmem:[%s341 + $0x380] sm:$0xff]
        %v994 = vld [vmem:[%s341 + $0x388] sm:$0xff]
        %v995 = vld [vmem:[%s341 + $0x390] sm:$0xff]
        %v996 = vld [vmem:[%s341 + $0x398] sm:$0xff]
        %v997 = vld [vmem:[%s341 + $0x3a0] sm:$0xff]
        %v998 = vld [vmem:[%s341 + $0x3a8] sm:$0xff]
        %v999 = vld [vmem:[%s341 + $0x3b0] sm:$0xff]
        %v1000 = vld [vmem:[%s341 + $0x3b8] sm:$0xff]
        %v1001 = vld [vmem:[%s341 + $0x3c0] sm:$0xff]
        %v1002 = vld [vmem:[%s341 + $0x3c8] sm:$0xff]
        %v1003 = vld [vmem:[%s341 + $0x3d0] sm:$0xff]
        %v1004 = vld [vmem:[%s341 + $0x3d8] sm:$0xff]
        %v1005 = vld [vmem:[%s341 + $0x3e0] sm:$0xff]
        %v1006 = vld [vmem:[%s341 + $0x3e8] sm:$0xff]
        %v1007 = vld [vmem:[%s341 + $0x3f0] sm:$0xff]
        %v1008 = vld [vmem:[%s341 + $0x3f8] sm:$0xff]
        %v1009 = vld [vmem:[%s341 + $0x400] sm:$0xff]
        %v1010 = vld [vmem:[%s341 + $0x408] sm:$0xff]
        %v1011 = vld [vmem:[%s341 + $0x410] sm:$0xff]
        %v1012 = vld [vmem:[%s341 + $0x418] sm:$0xff]
        %v1013 = vld [vmem:[%s341 + $0x420] sm:$0xff]
        %v1014 = vld [vmem:[%s341 + $0x428] sm:$0xff]
        %v1015 = vld [vmem:[%s341 + $0x430] sm:$0xff]
        %v1016 = vld [vmem:[%s341 + $0x438] sm:$0xff]
        %v1017 = vld [vmem:[%s341 + $0x440] sm:$0xff]
        %v1018 = vld [vmem:[%s341 + $0x448] sm:$0xff]
        %v1019 = vld [vmem:[%s341 + $0x450] sm:$0xff]
        %v1020 = vld [vmem:[%s341 + $0x458] sm:$0xff]
        %v1021 = vld [vmem:[%s341 + $0x460] sm:$0xff]
        %v1022 = vld [vmem:[%s341 + $0x468] sm:$0xff]
        %v1023 = vld [vmem:[%s341 + $0x470] sm:$0xff]
        %v1024 = vld [vmem:[%s341 + $0x478] sm:$0xff]
        %v1025 = vld [vmem:[%s341 + $0x480] sm:$0xff]
        %v1026 = vld [vmem:[%s341 + $0x488] sm:$0xff]
        %v1027 = vld [vmem:[%s341 + $0x490] sm:$0xff]
        %v1028 = vld [vmem:[%s341 + $0x498] sm:$0xff]
        %v1029 = vld [vmem:[%s341 + $0x4a0] sm:$0xff]
        %v1030 = vld [vmem:[%s341 + $0x4a8] sm:$0xff]
        %v1031 = vld [vmem:[%s341 + $0x4b0] sm:$0xff]
        %v1032 = vld [vmem:[%s341 + $0x4b8] sm:$0xff]
        %v1033 = vld [vmem:[%s341 + $0x4c0] sm:$0xff]
        %v1034 = vld [vmem:[%s341 + $0x4c8] sm:$0xff]
        %v1035 = vld [vmem:[%s341 + $0x4d0] sm:$0xff]
        %v1036 = vld [vmem:[%s341 + $0x4d8] sm:$0xff]
        %v1037 = vld [vmem:[%s341 + $0x4e0] sm:$0xff]
        %v1038 = vld [vmem:[%s341 + $0x4e8] sm:$0xff]
        %v1039 = vld [vmem:[%s341 + $0x4f0] sm:$0xff]
        %v1040 = vld [vmem:[%s341 + $0x4f8] sm:$0xff]
        %v1041 = vld [vmem:[%s341 + $0x500] sm:$0xff]
        %v1042 = vld [vmem:[%s341 + $0x508] sm:$0xff]
        %v1043 = vld [vmem:[%s341 + $0x510] sm:$0xff]
        %v1044 = vld [vmem:[%s341 + $0x518] sm:$0xff]
        %v1045 = vld [vmem:[%s341 + $0x520] sm:$0xff]
        %v1046 = vld [vmem:[%s341 + $0x528] sm:$0xff]
        %v1047 = vld [vmem:[%s341 + $0x530] sm:$0xff]
        %v1048 = vld [vmem:[%s341 + $0x538] sm:$0xff]
        %v1049 = vld [vmem:[%s341 + $0x540] sm:$0xff]
        %v1050 = vld [vmem:[%s341 + $0x548] sm:$0xff]
        %v1051 = vld [vmem:[%s341 + $0x550] sm:$0xff]
        %v1052 = vld [vmem:[%s341 + $0x558] sm:$0xff]
        %v1053 = vld [vmem:[%s341 + $0x560] sm:$0xff]
        %v1054 = vld [vmem:[%s341 + $0x568] sm:$0xff]
        %v1055 = vld [vmem:[%s341 + $0x570] sm:$0xff]
        %v1056 = vld [vmem:[%s341 + $0x578] sm:$0xff]
        %v1057 = vld [vmem:[%s341 + $0x580] sm:$0xff]
        %v1058 = vld [vmem:[%s341 + $0x588] sm:$0xff]
        %v1059 = vld [vmem:[%s341 + $0x590] sm:$0xff]
        %v1060 = vld [vmem:[%s341 + $0x598] sm:$0xff]
        %v1061 = vld [vmem:[%s341 + $0x5a0] sm:$0xff]
        %v1062 = vld [vmem:[%s341 + $0x5a8] sm:$0xff]
        %v1063 = vld [vmem:[%s341 + $0x5b0] sm:$0xff]
        %v1064 = vld [vmem:[%s341 + $0x5b8] sm:$0xff]
        %v1065 = vld [vmem:[%s341 + $0x5c0] sm:$0xff]
        %v1066 = vld [vmem:[%s341 + $0x5c8] sm:$0xff]
        %v1067 = vld [vmem:[%s341 + $0x5d0] sm:$0xff]
        %v1068 = vld [vmem:[%s341 + $0x5d8] sm:$0xff]
        %v1069 = vld [vmem:[%s341 + $0x5e0] sm:$0xff]
        %v1070 = vld [vmem:[%s341 + $0x5e8] sm:$0xff]
        %v1071 = vld [vmem:[%s341 + $0x5f0] sm:$0xff]
        %v1072 = vld [vmem:[%s341 + $0x5f8] sm:$0xff]
        %v1073 = vld [vmem:[%s350] sm:$0xff]
        %v1074 = vld [vmem:[%s350 + $0x8] sm:$0xff]
        %v1075 = vld [vmem:[%s350 + $0x10] sm:$0xff]
        %v1076 = vld [vmem:[%s350 + $0x18] sm:$0xff]
        %v1077 = vld [vmem:[%s350 + $0x20] sm:$0xff]
        %v1078 = vld [vmem:[%s350 + $0x28] sm:$0xff]
        %v1079 = vld [vmem:[%s350 + $0x30] sm:$0xff]
        %v1080 = vld [vmem:[%s350 + $0x38] sm:$0xff]
        %v1081 = vld [vmem:[%s350 + $0x40] sm:$0xff]
        %v1082 = vld [vmem:[%s350 + $0x48] sm:$0xff]
        %v1083 = vld [vmem:[%s350 + $0x50] sm:$0xff]
        %v1084 = vld [vmem:[%s350 + $0x58] sm:$0xff]
        %v1085 = vld [vmem:[%s350 + $0x60] sm:$0xff]
        %v1086 = vld [vmem:[%s350 + $0x68] sm:$0xff]
        %v1087 = vld [vmem:[%s350 + $0x70] sm:$0xff]
        %v1088 = vld [vmem:[%s350 + $0x78] sm:$0xff]
        %v1089 = vld [vmem:[%s350 + $0x80] sm:$0xff]
        %v1090 = vld [vmem:[%s350 + $0x88] sm:$0xff]
        %v1091 = vld [vmem:[%s350 + $0x90] sm:$0xff]
        %v1092 = vld [vmem:[%s350 + $0x98] sm:$0xff]
        %v1093 = vld [vmem:[%s350 + $0xa0] sm:$0xff]
        %v1094 = vld [vmem:[%s350 + $0xa8] sm:$0xff]
        %v1095 = vld [vmem:[%s350 + $0xb0] sm:$0xff]
        %v1096 = vld [vmem:[%s350 + $0xb8] sm:$0xff]
        %v1097 = vld [vmem:[%s350 + $0xc0] sm:$0xff]
        %v1098 = vld [vmem:[%s350 + $0xc8] sm:$0xff]
        %v1099 = vld [vmem:[%s350 + $0xd0] sm:$0xff]
        %v1100 = vld [vmem:[%s350 + $0xd8] sm:$0xff]
        %v1101 = vld [vmem:[%s350 + $0xe0] sm:$0xff]
        %v1102 = vld [vmem:[%s350 + $0xe8] sm:$0xff]
        %v1103 = vld [vmem:[%s350 + $0xf0] sm:$0xff]
        %v1104 = vld [vmem:[%s350 + $0xf8] sm:$0xff]
        %v1105 = vld [vmem:[%s350 + $0x100] sm:$0xff]
        %v1106 = vld [vmem:[%s350 + $0x108] sm:$0xff]
        %v1107 = vld [vmem:[%s350 + $0x110] sm:$0xff]
        %v1108 = vld [vmem:[%s350 + $0x118] sm:$0xff]
        %v1109 = vld [vmem:[%s350 + $0x120] sm:$0xff]
        %v1110 = vld [vmem:[%s350 + $0x128] sm:$0xff]
        %v1111 = vld [vmem:[%s350 + $0x130] sm:$0xff]
        %v1112 = vld [vmem:[%s350 + $0x138] sm:$0xff]
        %v1113 = vld [vmem:[%s350 + $0x140] sm:$0xff]
        %v1114 = vld [vmem:[%s350 + $0x148] sm:$0xff]
        %v1115 = vld [vmem:[%s350 + $0x150] sm:$0xff]
        %v1116 = vld [vmem:[%s350 + $0x158] sm:$0xff]
        %v1117 = vld [vmem:[%s350 + $0x160] sm:$0xff]
        %v1118 = vld [vmem:[%s350 + $0x168] sm:$0xff]
        %v1119 = vld [vmem:[%s350 + $0x170] sm:$0xff]
        %v1120 = vld [vmem:[%s350 + $0x178] sm:$0xff]
        %v1121 = vld [vmem:[%s350 + $0x180] sm:$0xff]
        %v1122 = vld [vmem:[%s350 + $0x188] sm:$0xff]
        %v1123 = vld [vmem:[%s350 + $0x190] sm:$0xff]
        %v1124 = vld [vmem:[%s350 + $0x198] sm:$0xff]
        %v1125 = vld [vmem:[%s350 + $0x1a0] sm:$0xff]
        %v1126 = vld [vmem:[%s350 + $0x1a8] sm:$0xff]
        %v1127 = vld [vmem:[%s350 + $0x1b0] sm:$0xff]
        %v1128 = vld [vmem:[%s350 + $0x1b8] sm:$0xff]
        %v1129 = vld [vmem:[%s350 + $0x1c0] sm:$0xff]
        %v1130 = vld [vmem:[%s350 + $0x1c8] sm:$0xff]
        %v1131 = vld [vmem:[%s350 + $0x1d0] sm:$0xff]
        %v1132 = vld [vmem:[%s350 + $0x1d8] sm:$0xff]
        %v1133 = vld [vmem:[%s350 + $0x1e0] sm:$0xff]
        %v1134 = vld [vmem:[%s350 + $0x1e8] sm:$0xff]
        %v1135 = vld [vmem:[%s350 + $0x1f0] sm:$0xff]
        %v1136 = vld [vmem:[%s350 + $0x1f8] sm:$0xff]
        %v1137 = vld [vmem:[%s350 + $0x200] sm:$0xff]
        %v1138 = vld [vmem:[%s350 + $0x208] sm:$0xff]
        %v1139 = vld [vmem:[%s350 + $0x210] sm:$0xff]
        %v1140 = vld [vmem:[%s350 + $0x218] sm:$0xff]
        %v1141 = vld [vmem:[%s350 + $0x220] sm:$0xff]
        %v1142 = vld [vmem:[%s350 + $0x228] sm:$0xff]
        %v1143 = vld [vmem:[%s350 + $0x230] sm:$0xff]
        %v1144 = vld [vmem:[%s350 + $0x238] sm:$0xff]
        %v1145 = vld [vmem:[%s350 + $0x240] sm:$0xff]
        %v1146 = vld [vmem:[%s350 + $0x248] sm:$0xff]
        %v1147 = vld [vmem:[%s350 + $0x250] sm:$0xff]
        %v1148 = vld [vmem:[%s350 + $0x258] sm:$0xff]
        %v1149 = vld [vmem:[%s350 + $0x260] sm:$0xff]
        %v1150 = vld [vmem:[%s350 + $0x268] sm:$0xff]
        %v1151 = vld [vmem:[%s350 + $0x270] sm:$0xff]
        %v1152 = vld [vmem:[%s350 + $0x278] sm:$0xff]
        %v1153 = vld [vmem:[%s350 + $0x280] sm:$0xff]
        %v1154 = vld [vmem:[%s350 + $0x288] sm:$0xff]
        %v1155 = vld [vmem:[%s350 + $0x290] sm:$0xff]
        %v1156 = vld [vmem:[%s350 + $0x298] sm:$0xff]
        %v1157 = vld [vmem:[%s350 + $0x2a0] sm:$0xff]
        %v1158 = vld [vmem:[%s350 + $0x2a8] sm:$0xff]
        %v1159 = vld [vmem:[%s350 + $0x2b0] sm:$0xff]
        %v1160 = vld [vmem:[%s350 + $0x2b8] sm:$0xff]
        %v1161 = vld [vmem:[%s350 + $0x2c0] sm:$0xff]
        %v1162 = vld [vmem:[%s350 + $0x2c8] sm:$0xff]
        %v1163 = vld [vmem:[%s350 + $0x2d0] sm:$0xff]
        %v1164 = vld [vmem:[%s350 + $0x2d8] sm:$0xff]
        %v1165 = vld [vmem:[%s350 + $0x2e0] sm:$0xff]
        %v1166 = vld [vmem:[%s350 + $0x2e8] sm:$0xff]
        %v1167 = vld [vmem:[%s350 + $0x2f0] sm:$0xff]
        %v1168 = vld [vmem:[%s350 + $0x2f8] sm:$0xff]
        %v1169 = vld [vmem:[%s350 + $0x300] sm:$0xff]
        %v1170 = vld [vmem:[%s350 + $0x308] sm:$0xff]
        %v1171 = vld [vmem:[%s350 + $0x310] sm:$0xff]
        %v1172 = vld [vmem:[%s350 + $0x318] sm:$0xff]
        %v1173 = vld [vmem:[%s350 + $0x320] sm:$0xff]
        %v1174 = vld [vmem:[%s350 + $0x328] sm:$0xff]
        %v1175 = vld [vmem:[%s350 + $0x330] sm:$0xff]
        %v1176 = vld [vmem:[%s350 + $0x338] sm:$0xff]
        %v1177 = vld [vmem:[%s350 + $0x340] sm:$0xff]
        %v1178 = vld [vmem:[%s350 + $0x348] sm:$0xff]
        %v1179 = vld [vmem:[%s350 + $0x350] sm:$0xff]
        %v1180 = vld [vmem:[%s350 + $0x358] sm:$0xff]
        %v1181 = vld [vmem:[%s350 + $0x360] sm:$0xff]
        %v1182 = vld [vmem:[%s350 + $0x368] sm:$0xff]
        %v1183 = vld [vmem:[%s350 + $0x370] sm:$0xff]
        %v1184 = vld [vmem:[%s350 + $0x378] sm:$0xff]
        %v1185 = vld [vmem:[%s350 + $0x380] sm:$0xff]
        %v1186 = vld [vmem:[%s350 + $0x388] sm:$0xff]
        %v1187 = vld [vmem:[%s350 + $0x390] sm:$0xff]
        %v1188 = vld [vmem:[%s350 + $0x398] sm:$0xff]
        %v1189 = vld [vmem:[%s350 + $0x3a0] sm:$0xff]
        %v1190 = vld [vmem:[%s350 + $0x3a8] sm:$0xff]
        %v1191 = vld [vmem:[%s350 + $0x3b0] sm:$0xff]
        %v1192 = vld [vmem:[%s350 + $0x3b8] sm:$0xff]
        %v1193 = vld [vmem:[%s350 + $0x3c0] sm:$0xff]
        %v1194 = vld [vmem:[%s350 + $0x3c8] sm:$0xff]
        %v1195 = vld [vmem:[%s350 + $0x3d0] sm:$0xff]
        %v1196 = vld [vmem:[%s350 + $0x3d8] sm:$0xff]
        %v1197 = vld [vmem:[%s350 + $0x3e0] sm:$0xff]
        %v1198 = vld [vmem:[%s350 + $0x3e8] sm:$0xff]
        %v1199 = vld [vmem:[%s350 + $0x3f0] sm:$0xff]
        %v1200 = vld [vmem:[%s350 + $0x3f8] sm:$0xff]
        %v1201 = vld [vmem:[%s350 + $0x400] sm:$0xff]
        %v1202 = vld [vmem:[%s350 + $0x408] sm:$0xff]
        %v1203 = vld [vmem:[%s350 + $0x410] sm:$0xff]
        %v1204 = vld [vmem:[%s350 + $0x418] sm:$0xff]
        %v1205 = vld [vmem:[%s350 + $0x420] sm:$0xff]
        %v1206 = vld [vmem:[%s350 + $0x428] sm:$0xff]
        %v1207 = vld [vmem:[%s350 + $0x430] sm:$0xff]
        %v1208 = vld [vmem:[%s350 + $0x438] sm:$0xff]
        %v1209 = vld [vmem:[%s350 + $0x440] sm:$0xff]
        %v1210 = vld [vmem:[%s350 + $0x448] sm:$0xff]
        %v1211 = vld [vmem:[%s350 + $0x450] sm:$0xff]
        %v1212 = vld [vmem:[%s350 + $0x458] sm:$0xff]
        %v1213 = vld [vmem:[%s350 + $0x460] sm:$0xff]
        %v1214 = vld [vmem:[%s350 + $0x468] sm:$0xff]
        %v1215 = vld [vmem:[%s350 + $0x470] sm:$0xff]
        %v1216 = vld [vmem:[%s350 + $0x478] sm:$0xff]
        %v1217 = vld [vmem:[%s350 + $0x480] sm:$0xff]
        %v1218 = vld [vmem:[%s350 + $0x488] sm:$0xff]
        %v1219 = vld [vmem:[%s350 + $0x490] sm:$0xff]
        %v1220 = vld [vmem:[%s350 + $0x498] sm:$0xff]
        %v1221 = vld [vmem:[%s350 + $0x4a0] sm:$0xff]
        %v1222 = vld [vmem:[%s350 + $0x4a8] sm:$0xff]
        %v1223 = vld [vmem:[%s350 + $0x4b0] sm:$0xff]
        %v1224 = vld [vmem:[%s350 + $0x4b8] sm:$0xff]
        %v1225 = vld [vmem:[%s350 + $0x4c0] sm:$0xff]
        %v1226 = vld [vmem:[%s350 + $0x4c8] sm:$0xff]
        %v1227 = vld [vmem:[%s350 + $0x4d0] sm:$0xff]
        %v1228 = vld [vmem:[%s350 + $0x4d8] sm:$0xff]
        %v1229 = vld [vmem:[%s350 + $0x4e0] sm:$0xff]
        %v1230 = vld [vmem:[%s350 + $0x4e8] sm:$0xff]
        %v1231 = vld [vmem:[%s350 + $0x4f0] sm:$0xff]
        %v1232 = vld [vmem:[%s350 + $0x4f8] sm:$0xff]
        %v1233 = vld [vmem:[%s350 + $0x500] sm:$0xff]
        %v1234 = vld [vmem:[%s350 + $0x508] sm:$0xff]
        %v1235 = vld [vmem:[%s350 + $0x510] sm:$0xff]
        %v1236 = vld [vmem:[%s350 + $0x518] sm:$0xff]
        %v1237 = vld [vmem:[%s350 + $0x520] sm:$0xff]
        %v1238 = vld [vmem:[%s350 + $0x528] sm:$0xff]
        %v1239 = vld [vmem:[%s350 + $0x530] sm:$0xff]
        %v1240 = vld [vmem:[%s350 + $0x538] sm:$0xff]
        %v1241 = vld [vmem:[%s350 + $0x540] sm:$0xff]
        %v1242 = vld [vmem:[%s350 + $0x548] sm:$0xff]
        %v1243 = vld [vmem:[%s350 + $0x550] sm:$0xff]
        %v1244 = vld [vmem:[%s350 + $0x558] sm:$0xff]
        %v1245 = vld [vmem:[%s350 + $0x560] sm:$0xff]
        %v1246 = vld [vmem:[%s350 + $0x568] sm:$0xff]
        %v1247 = vld [vmem:[%s350 + $0x570] sm:$0xff]
        %v1248 = vld [vmem:[%s350 + $0x578] sm:$0xff]
        %v1249 = vld [vmem:[%s350 + $0x580] sm:$0xff]
        %v1250 = vld [vmem:[%s350 + $0x588] sm:$0xff]
        %v1251 = vld [vmem:[%s350 + $0x590] sm:$0xff]
        %v1252 = vld [vmem:[%s350 + $0x598] sm:$0xff]
        %v1253 = vld [vmem:[%s350 + $0x5a0] sm:$0xff]
        %v1254 = vld [vmem:[%s350 + $0x5a8] sm:$0xff]
        %v1255 = vld [vmem:[%s350 + $0x5b0] sm:$0xff]
        %v1256 = vld [vmem:[%s350 + $0x5b8] sm:$0xff]
        %v1257 = vld [vmem:[%s350 + $0x5c0] sm:$0xff]
        %v1258 = vld [vmem:[%s350 + $0x5c8] sm:$0xff]
        %v1259 = vld [vmem:[%s350 + $0x5d0] sm:$0xff]
        %v1260 = vld [vmem:[%s350 + $0x5d8] sm:$0xff]
        %v1261 = vld [vmem:[%s350 + $0x5e0] sm:$0xff]
        %v1262 = vld [vmem:[%s350 + $0x5e8] sm:$0xff]
        %v1263 = vld [vmem:[%s350 + $0x5f0] sm:$0xff]
        %v1264 = vld [vmem:[%s350 + $0x5f8] sm:$0xff]
        %v1265 = vld [vmem:[%s359] sm:$0xff]
        %v1266 = vld [vmem:[%s359 + $0x8] sm:$0xff]
        %v1267 = vld [vmem:[%s359 + $0x10] sm:$0xff]
        %v1268 = vld [vmem:[%s359 + $0x18] sm:$0xff]
        %v1269 = vld [vmem:[%s359 + $0x20] sm:$0xff]
        %v1270 = vld [vmem:[%s359 + $0x28] sm:$0xff]
        %v1271 = vld [vmem:[%s359 + $0x30] sm:$0xff]
        %v1272 = vld [vmem:[%s359 + $0x38] sm:$0xff]
        %v1273 = vld [vmem:[%s359 + $0x40] sm:$0xff]
        %v1274 = vld [vmem:[%s359 + $0x48] sm:$0xff]
        %v1275 = vld [vmem:[%s359 + $0x50] sm:$0xff]
        %v1276 = vld [vmem:[%s359 + $0x58] sm:$0xff]
        %v1277 = vld [vmem:[%s359 + $0x60] sm:$0xff]
        %v1278 = vld [vmem:[%s359 + $0x68] sm:$0xff]
        %v1279 = vld [vmem:[%s359 + $0x70] sm:$0xff]
        %v1280 = vld [vmem:[%s359 + $0x78] sm:$0xff]
        %v1281 = vld [vmem:[%s359 + $0x80] sm:$0xff]
        %v1282 = vld [vmem:[%s359 + $0x88] sm:$0xff]
        %v1283 = vld [vmem:[%s359 + $0x90] sm:$0xff]
        %v1284 = vld [vmem:[%s359 + $0x98] sm:$0xff]
        %v1285 = vld [vmem:[%s359 + $0xa0] sm:$0xff]
        %v1286 = vld [vmem:[%s359 + $0xa8] sm:$0xff]
        %v1287 = vld [vmem:[%s359 + $0xb0] sm:$0xff]
        %v1288 = vld [vmem:[%s359 + $0xb8] sm:$0xff]
        %v1289 = vld [vmem:[%s359 + $0xc0] sm:$0xff]
        %v1290 = vld [vmem:[%s359 + $0xc8] sm:$0xff]
        %v1291 = vld [vmem:[%s359 + $0xd0] sm:$0xff]
        %v1292 = vld [vmem:[%s359 + $0xd8] sm:$0xff]
        %v1293 = vld [vmem:[%s359 + $0xe0] sm:$0xff]
        %v1294 = vld [vmem:[%s359 + $0xe8] sm:$0xff]
        %v1295 = vld [vmem:[%s359 + $0xf0] sm:$0xff]
        %v1296 = vld [vmem:[%s359 + $0xf8] sm:$0xff]
        %v1297 = vld [vmem:[%s359 + $0x100] sm:$0xff]
        %v1298 = vld [vmem:[%s359 + $0x108] sm:$0xff]
        %v1299 = vld [vmem:[%s359 + $0x110] sm:$0xff]
        %v1300 = vld [vmem:[%s359 + $0x118] sm:$0xff]
        %v1301 = vld [vmem:[%s359 + $0x120] sm:$0xff]
        %v1302 = vld [vmem:[%s359 + $0x128] sm:$0xff]
        %v1303 = vld [vmem:[%s359 + $0x130] sm:$0xff]
        %v1304 = vld [vmem:[%s359 + $0x138] sm:$0xff]
        %v1305 = vld [vmem:[%s359 + $0x140] sm:$0xff]
        %v1306 = vld [vmem:[%s359 + $0x148] sm:$0xff]
        %v1307 = vld [vmem:[%s359 + $0x150] sm:$0xff]
        %v1308 = vld [vmem:[%s359 + $0x158] sm:$0xff]
        %v1309 = vld [vmem:[%s359 + $0x160] sm:$0xff]
        %v1310 = vld [vmem:[%s359 + $0x168] sm:$0xff]
        %v1311 = vld [vmem:[%s359 + $0x170] sm:$0xff]
        %v1312 = vld [vmem:[%s359 + $0x178] sm:$0xff]
        %v1313 = vld [vmem:[%s359 + $0x180] sm:$0xff]
        %v1314 = vld [vmem:[%s359 + $0x188] sm:$0xff]
        %v1315 = vld [vmem:[%s359 + $0x190] sm:$0xff]
        %v1316 = vld [vmem:[%s359 + $0x198] sm:$0xff]
        %v1317 = vld [vmem:[%s359 + $0x1a0] sm:$0xff]
        %v1318 = vld [vmem:[%s359 + $0x1a8] sm:$0xff]
        %v1319 = vld [vmem:[%s359 + $0x1b0] sm:$0xff]
        %v1320 = vld [vmem:[%s359 + $0x1b8] sm:$0xff]
        %v1321 = vld [vmem:[%s359 + $0x1c0] sm:$0xff]
        %v1322 = vld [vmem:[%s359 + $0x1c8] sm:$0xff]
        %v1323 = vld [vmem:[%s359 + $0x1d0] sm:$0xff]
        %v1324 = vld [vmem:[%s359 + $0x1d8] sm:$0xff]
        %v1325 = vld [vmem:[%s359 + $0x1e0] sm:$0xff]
        %v1326 = vld [vmem:[%s359 + $0x1e8] sm:$0xff]
        %v1327 = vld [vmem:[%s359 + $0x1f0] sm:$0xff]
        %v1328 = vld [vmem:[%s359 + $0x1f8] sm:$0xff]
        %v1329 = vld [vmem:[#allocation4] sm:$0xff]
        %v1330 = vld [vmem:[#allocation4 + $0x8] sm:$0xff]
        %v1331 = vld [vmem:[#allocation4 + $0x10] sm:$0xff]
        %v1332 = vld [vmem:[#allocation4 + $0x18] sm:$0xff]
        %v1333 = vld [vmem:[#allocation4 + $0x20] sm:$0xff]
        %v1334 = vld [vmem:[#allocation4 + $0x28] sm:$0xff]
        %v1335 = vld [vmem:[#allocation4 + $0x30] sm:$0xff]
        %v1336 = vld [vmem:[#allocation4 + $0x38] sm:$0xff]
        %v1337 = vld [vmem:[#allocation4 + $0x40] sm:$0xff]
        %v1338 = vld [vmem:[#allocation4 + $0x48] sm:$0xff]
        %v1339 = vld [vmem:[#allocation4 + $0x50] sm:$0xff]
        %v1340 = vld [vmem:[#allocation4 + $0x58] sm:$0xff]
        %v1341 = vld [vmem:[#allocation4 + $0x60] sm:$0xff]
        %v1342 = vld [vmem:[#allocation4 + $0x68] sm:$0xff]
        %v1343 = vld [vmem:[#allocation4 + $0x70] sm:$0xff]
        %v1344 = vld [vmem:[#allocation4 + $0x78] sm:$0xff]
        %v1345 = vld [vmem:[#allocation4 + $0x80] sm:$0xff]
        %v1346 = vld [vmem:[#allocation4 + $0x88] sm:$0xff]
        %v1347 = vld [vmem:[#allocation4 + $0x90] sm:$0xff]
        %v1348 = vld [vmem:[#allocation4 + $0x98] sm:$0xff]
        %v1349 = vld [vmem:[#allocation4 + $0xa0] sm:$0xff]
        %v1350 = vld [vmem:[#allocation4 + $0xa8] sm:$0xff]
        %v1351 = vld [vmem:[#allocation4 + $0xb0] sm:$0xff]
        %v1352 = vld [vmem:[#allocation4 + $0xb8] sm:$0xff]
        %v1353 = vld [vmem:[#allocation4 + $0xc0] sm:$0xff]
        %v1354 = vld [vmem:[#allocation4 + $0xc8] sm:$0xff]
        %v1355 = vld [vmem:[#allocation4 + $0xd0] sm:$0xff]
        %v1356 = vld [vmem:[#allocation4 + $0xd8] sm:$0xff]
        %v1357 = vld [vmem:[#allocation4 + $0xe0] sm:$0xff]
        %v1358 = vld [vmem:[#allocation4 + $0xe8] sm:$0xff]
        %v1359 = vld [vmem:[#allocation4 + $0xf0] sm:$0xff]
        %v1360 = vld [vmem:[#allocation4 + $0xf8] sm:$0xff]
        %v1361 = vld [vmem:[#allocation4 + $0x100] sm:$0xff]
        %v1362 = vld [vmem:[#allocation4 + $0x108] sm:$0xff]
        %v1363 = vld [vmem:[#allocation4 + $0x110] sm:$0xff]
        %v1364 = vld [vmem:[#allocation4 + $0x118] sm:$0xff]
        %v1365 = vld [vmem:[#allocation4 + $0x120] sm:$0xff]
        %v1366 = vld [vmem:[#allocation4 + $0x128] sm:$0xff]
        %v1367 = vld [vmem:[#allocation4 + $0x130] sm:$0xff]
        %v1368 = vld [vmem:[#allocation4 + $0x138] sm:$0xff]
        %v1369 = vld [vmem:[#allocation4 + $0x140] sm:$0xff]
        %v1370 = vld [vmem:[#allocation4 + $0x148] sm:$0xff]
        %v1371 = vld [vmem:[#allocation4 + $0x150] sm:$0xff]
        %v1372 = vld [vmem:[#allocation4 + $0x158] sm:$0xff]
        %v1373 = vld [vmem:[#allocation4 + $0x160] sm:$0xff]
        %v1374 = vld [vmem:[#allocation4 + $0x168] sm:$0xff]
        %v1375 = vld [vmem:[#allocation4 + $0x170] sm:$0xff]
        %v1376 = vld [vmem:[#allocation4 + $0x178] sm:$0xff]
        %1377 = vmatprep.subr.mxu0 0.0
        %1378 = vmatpush1.msra.mxu0 %v1344
        %1379 = vmatprep.subr.mxu0 0.0
        %1380 = vmatpush1.msra.mxu0 %v1343
        %1381 = vmatprep.subr.mxu0 0.0
        %1382 = vmatpush1.msra.mxu0 %v1342
        %1383 = vmatprep.subr.mxu0 0.0
        %1384 = vmatpush1.msra.mxu0 %v1341
        %1385 = vmatprep.subr.mxu0 0.0
        %1386 = vmatpush1.msra.mxu0 %v1340
        %1387 = vmatprep.subr.mxu0 0.0
        %1388 = vmatpush1.msra.mxu0 %v1339
        %1389 = vmatprep.subr.mxu0 0.0
        %1390 = vmatpush1.msra.mxu0 %v1338
        %1391 = vmatprep.subr.mxu0 0.0
        %1392 = vmatpush1.msra.mxu0 %v1337
        %1393 = vmatprep.subr.mxu0 0.0
        %1394 = vmatpush1.msra.mxu0 %v1336
        %1395 = vmatprep.subr.mxu0 0.0
        %1396 = vmatpush1.msra.mxu0 %v1335
        %1397 = vmatprep.subr.mxu0 0.0
        %1398 = vmatpush1.msra.mxu0 %v1334
        %1399 = vmatprep.subr.mxu0 0.0
        %1400 = vmatpush1.msra.mxu0 %v1333
        %1401 = vmatprep.subr.mxu0 0.0
        %1402 = vmatpush1.msra.mxu0 %v1332
        %1403 = vmatprep.subr.mxu0 0.0
        %1404 = vmatpush1.msra.mxu0 %v1331
        %1405 = vmatprep.subr.mxu0 0.0
        %1406 = vmatpush1.msra.mxu0 %v1330
        %1407 = vmatprep.subr.mxu0 0.0
        %1408 = vmatpush1.msra.mxu0 %v1329
        %1409 = vmatprep.subr.mxu0 0.0
        %1410 = vmatpush2.msra.mxu0 %v1360
        %1411 = vmatprep.subr.mxu0 0.0
        %1412 = vmatpush2.msra.mxu0 %v1359
        %1413 = vmatprep.subr.mxu0 0.0
        %1414 = vmatpush2.msra.mxu0 %v1358
        %1415 = vmatprep.subr.mxu0 0.0
        %1416 = vmatpush2.msra.mxu0 %v1357
        %1417 = vmatprep.subr.mxu0 0.0
        %1418 = vmatpush2.msra.mxu0 %v1356
        %1419 = vmatprep.subr.mxu0 0.0
        %1420 = vmatpush2.msra.mxu0 %v1355
        %1421 = vmatprep.subr.mxu0 0.0
        %1422 = vmatpush2.msra.mxu0 %v1354
        %1423 = vmatprep.subr.mxu0 0.0
        %1424 = vmatpush2.msra.mxu0 %v1353
        %1425 = vmatprep.subr.mxu0 0.0
        %1426 = vmatpush2.msra.mxu0 %v1352
        %1427 = vmatprep.subr.mxu0 0.0
        %1428 = vmatpush2.msra.mxu0 %v1351
        %1429 = vmatprep.subr.mxu0 0.0
        %1430 = vmatpush2.msra.mxu0 %v1350
        %1431 = vmatprep.subr.mxu0 0.0
        %1432 = vmatpush2.msra.mxu0 %v1349
        %1433 = vmatprep.subr.mxu0 0.0
        %1434 = vmatpush2.msra.mxu0 %v1348
        %1435 = vmatprep.subr.mxu0 0.0
        %1436 = vmatpush2.msra.mxu0 %v1347
        %1437 = vmatprep.subr.mxu0 0.0
        %1438 = vmatpush2.msra.mxu0 %v1346
        %1439 = vmatprep.subr.mxu0 0.0
        %1440 = vmatpush2.msra.mxu0 %v1345
        %1441 = vmatprep.mubr.f32.mxu0 %v882
        %1442 = vmatmul.mubr.f32.gmra.mxu0 %v881
        %v1443 = vpop.f32.mrf.mxu0
        %v1444 = vadd.f32 0.0, %v1443
        %v1445 = vpop.f32.mrf.mxu0
        %1446 = vmatprep.mubr.f32.mxu0 %v885
        %1447 = vmatmul.mubr.f32.gmra.mxu0 %v884
        %v1448 = vpop.f32.mrf.mxu0
        %v1449 = vadd.f32 0.0, %v1448
        %v1450 = vpop.f32.mrf.mxu0
        %1451 = vmatprep.mubr.f32.mxu0 %v888
        %1452 = vmatmul.mubr.f32.gmra.mxu0 %v887
        %v1453 = vpop.f32.mrf.mxu0
        %v1454 = vadd.f32 0.0, %v1453
        %v1455 = vpop.f32.mrf.mxu0
        %1456 = vmatprep.mubr.f32.mxu0 %v891
        %1457 = vmatmul.mubr.f32.gmra.mxu0 %v890
        %v1458 = vpop.f32.mrf.mxu0
        %v1459 = vadd.f32 0.0, %v1458
        %v1460 = vpop.f32.mrf.mxu0
        %1461 = vmatprep.mubr.f32.mxu0 %v894
        %1462 = vmatmul.mubr.f32.gmra.mxu0 %v893
        %v1463 = vpop.f32.mrf.mxu0
        %v1464 = vadd.f32 0.0, %v1463
        %v1465 = vpop.f32.mrf.mxu0
        %1466 = vmatprep.mubr.f32.mxu0 %v897
        %1467 = vmatmul.mubr.f32.gmra.mxu0 %v896
        %v1468 = vpop.f32.mrf.mxu0
        %v1469 = vadd.f32 0.0, %v1468
        %v1470 = vpop.f32.mrf.mxu0
        %1471 = vmatprep.mubr.f32.mxu0 %v900
        %1472 = vmatmul.mubr.f32.gmra.mxu0 %v899
        %v1473 = vpop.f32.mrf.mxu0
        %v1474 = vadd.f32 0.0, %v1473
        %v1475 = vpop.f32.mrf.mxu0
        %1476 = vmatprep.mubr.f32.mxu0 %v903
        %1477 = vmatmul.mubr.f32.gmra.mxu0 %v902
        %v1478 = vpop.f32.mrf.mxu0
        %v1479 = vadd.f32 0.0, %v1478
        %v1480 = vpop.f32.mrf.mxu0
        %1481 = vmatprep.mubr.f32.mxu0 %v906
        %1482 = vmatmul.mubr.f32.gmra.mxu0 %v905
        %v1483 = vpop.f32.mrf.mxu0
        %v1484 = vadd.f32 0.0, %v1483
        %v1485 = vpop.f32.mrf.mxu0
        %1486 = vmatprep.mubr.f32.mxu0 %v909
        %1487 = vmatmul.mubr.f32.gmra.mxu0 %v908
        %v1488 = vpop.f32.mrf.mxu0
        %v1489 = vadd.f32 0.0, %v1488
        %v1490 = vpop.f32.mrf.mxu0
        %1491 = vmatprep.mubr.f32.mxu0 %v912
        %1492 = vmatmul.mubr.f32.gmra.mxu0 %v911
        %v1493 = vpop.f32.mrf.mxu0
        %v1494 = vadd.f32 0.0, %v1493
        %v1495 = vpop.f32.mrf.mxu0
        %1496 = vmatprep.mubr.f32.mxu0 %v915
        %1497 = vmatmul.mubr.f32.gmra.mxu0 %v914
        %v1498 = vpop.f32.mrf.mxu0
        %v1499 = vadd.f32 0.0, %v1498
        %v1500 = vpop.f32.mrf.mxu0
        %1501 = vmatprep.mubr.f32.mxu0 %v918
        %1502 = vmatmul.mubr.f32.gmra.mxu0 %v917
        %v1503 = vpop.f32.mrf.mxu0
        %v1504 = vadd.f32 0.0, %v1503
        %v1505 = vpop.f32.mrf.mxu0
        %1506 = vmatprep.mubr.f32.mxu0 %v921
        %1507 = vmatmul.mubr.f32.gmra.mxu0 %v920
        %v1508 = vpop.f32.mrf.mxu0
        %v1509 = vadd.f32 0.0, %v1508
        %v1510 = vpop.f32.mrf.mxu0
        %1511 = vmatprep.mubr.f32.mxu0 %v924
        %1512 = vmatmul.mubr.f32.gmra.mxu0 %v923
        %v1513 = vpop.f32.mrf.mxu0
        %v1514 = vadd.f32 0.0, %v1513
        %v1515 = vpop.f32.mrf.mxu0
        %1516 = vmatprep.mubr.f32.mxu0 %v927
        %1517 = vmatmul.mubr.f32.gmra.mxu0 %v926
        %v1518 = vpop.f32.mrf.mxu0
        %v1519 = vadd.f32 0.0, %v1518
        %v1520 = vpop.f32.mrf.mxu0
        %1521 = vmatprep.mubr.f32.mxu0 %v930
        %1522 = vmatmul.mubr.f32.gmra.mxu0 %v929
        %v1523 = vpop.f32.mrf.mxu0
        %v1524 = vadd.f32 0.0, %v1523
        %v1525 = vpop.f32.mrf.mxu0
        %1526 = vmatprep.mubr.f32.mxu0 %v933
        %1527 = vmatmul.mubr.f32.gmra.mxu0 %v932
        %v1528 = vpop.f32.mrf.mxu0
        %v1529 = vadd.f32 0.0, %v1528
        %v1530 = vpop.f32.mrf.mxu0
        %1531 = vmatprep.mubr.f32.mxu0 %v936
        %1532 = vmatmul.mubr.f32.gmra.mxu0 %v935
        %v1533 = vpop.f32.mrf.mxu0
        %v1534 = vadd.f32 0.0, %v1533
        %v1535 = vpop.f32.mrf.mxu0
        %1536 = vmatprep.mubr.f32.mxu0 %v939
        %1537 = vmatmul.mubr.f32.gmra.mxu0 %v938
        %v1538 = vpop.f32.mrf.mxu0
        %v1539 = vadd.f32 0.0, %v1538
        %v1540 = vpop.f32.mrf.mxu0
        %1541 = vmatprep.mubr.f32.mxu0 %v942
        %1542 = vmatmul.mubr.f32.gmra.mxu0 %v941
        %v1543 = vpop.f32.mrf.mxu0
        %v1544 = vadd.f32 0.0, %v1543
        %v1545 = vpop.f32.mrf.mxu0
        %1546 = vmatprep.mubr.f32.mxu0 %v945
        %1547 = vmatmul.mubr.f32.gmra.mxu0 %v944
        %v1548 = vpop.f32.mrf.mxu0
        %v1549 = vadd.f32 0.0, %v1548
        %v1550 = vpop.f32.mrf.mxu0
        %1551 = vmatprep.mubr.f32.mxu0 %v948
        %1552 = vmatmul.mubr.f32.gmra.mxu0 %v947
        %v1553 = vpop.f32.mrf.mxu0
        %v1554 = vadd.f32 0.0, %v1553
        %v1555 = vpop.f32.mrf.mxu0
        %1556 = vmatprep.mubr.f32.mxu0 %v951
        %1557 = vmatmul.mubr.f32.gmra.mxu0 %v950
        %v1558 = vpop.f32.mrf.mxu0
        %v1559 = vadd.f32 0.0, %v1558
        %v1560 = vpop.f32.mrf.mxu0
        %1561 = vmatprep.mubr.f32.mxu0 %v954
        %1562 = vmatmul.mubr.f32.gmra.mxu0 %v953
        %v1563 = vpop.f32.mrf.mxu0
        %v1564 = vadd.f32 0.0, %v1563
        %v1565 = vpop.f32.mrf.mxu0
        %1566 = vmatprep.mubr.f32.mxu0 %v957
        %1567 = vmatmul.mubr.f32.gmra.mxu0 %v956
        %v1568 = vpop.f32.mrf.mxu0
        %v1569 = vadd.f32 0.0, %v1568
        %v1570 = vpop.f32.mrf.mxu0
        %1571 = vmatprep.mubr.f32.mxu0 %v960
        %1572 = vmatmul.mubr.f32.gmra.mxu0 %v959
        %v1573 = vpop.f32.mrf.mxu0
        %v1574 = vadd.f32 0.0, %v1573
        %v1575 = vpop.f32.mrf.mxu0
        %1576 = vmatprep.mubr.f32.mxu0 %v963
        %1577 = vmatmul.mubr.f32.gmra.mxu0 %v962
        %v1578 = vpop.f32.mrf.mxu0
        %v1579 = vadd.f32 0.0, %v1578
        %v1580 = vpop.f32.mrf.mxu0
        %1581 = vmatprep.mubr.f32.mxu0 %v966
        %1582 = vmatmul.mubr.f32.gmra.mxu0 %v965
        %v1583 = vpop.f32.mrf.mxu0
        %v1584 = vadd.f32 0.0, %v1583
        %v1585 = vpop.f32.mrf.mxu0
        %1586 = vmatprep.mubr.f32.mxu0 %v969
        %1587 = vmatmul.mubr.f32.gmra.mxu0 %v968
        %v1588 = vpop.f32.mrf.mxu0
        %v1589 = vadd.f32 0.0, %v1588
        %v1590 = vpop.f32.mrf.mxu0
        %1591 = vmatprep.mubr.f32.mxu0 %v972
        %1592 = vmatmul.mubr.f32.gmra.mxu0 %v971
        %v1593 = vpop.f32.mrf.mxu0
        %v1594 = vadd.f32 0.0, %v1593
        %v1595 = vpop.f32.mrf.mxu0
        %1596 = vmatprep.mubr.f32.mxu0 %v975
        %1597 = vmatmul.mubr.f32.gmra.mxu0 %v974
        %v1598 = vpop.f32.mrf.mxu0
        %v1599 = vadd.f32 0.0, %v1598
        %v1600 = vpop.f32.mrf.mxu0
        %1601 = vmatprep.mubr.f32.mxu0 %v978
        %1602 = vmatmul.mubr.f32.gmra.mxu0 %v977
        %v1603 = vpop.f32.mrf.mxu0
        %v1604 = vadd.f32 0.0, %v1603
        %v1605 = vpop.f32.mrf.mxu0
        %1606 = vmatprep.mubr.f32.mxu0 %v981
        %1607 = vmatmul.mubr.f32.gmra.mxu0 %v980
        %v1608 = vpop.f32.mrf.mxu0
        %v1609 = vadd.f32 0.0, %v1608
        %v1610 = vpop.f32.mrf.mxu0
        %1611 = vmatprep.mubr.f32.mxu0 %v984
        %1612 = vmatmul.mubr.f32.gmra.mxu0 %v983
        %v1613 = vpop.f32.mrf.mxu0
        %v1614 = vadd.f32 0.0, %v1613
        %v1615 = vpop.f32.mrf.mxu0
        %1616 = vmatprep.mubr.f32.mxu0 %v987
        %1617 = vmatmul.mubr.f32.gmra.mxu0 %v986
        %v1618 = vpop.f32.mrf.mxu0
        %v1619 = vadd.f32 0.0, %v1618
        %v1620 = vpop.f32.mrf.mxu0
        %1621 = vmatprep.mubr.f32.mxu0 %v990
        %1622 = vmatmul.mubr.f32.gmra.mxu0 %v989
        %v1623 = vpop.f32.mrf.mxu0
        %v1624 = vadd.f32 0.0, %v1623
        %v1625 = vpop.f32.mrf.mxu0
        %1626 = vmatprep.mubr.f32.mxu0 %v993
        %1627 = vmatmul.mubr.f32.gmra.mxu0 %v992
        %v1628 = vpop.f32.mrf.mxu0
        %v1629 = vadd.f32 0.0, %v1628
        %v1630 = vpop.f32.mrf.mxu0
        %1631 = vmatprep.mubr.f32.mxu0 %v996
        %1632 = vmatmul.mubr.f32.gmra.mxu0 %v995
        %v1633 = vpop.f32.mrf.mxu0
        %v1634 = vadd.f32 0.0, %v1633
        %v1635 = vpop.f32.mrf.mxu0
        %1636 = vmatprep.mubr.f32.mxu0 %v999
        %1637 = vmatmul.mubr.f32.gmra.mxu0 %v998
        %v1638 = vpop.f32.mrf.mxu0
        %v1639 = vadd.f32 0.0, %v1638
        %v1640 = vpop.f32.mrf.mxu0
        %1641 = vmatprep.mubr.f32.mxu0 %v1002
        %1642 = vmatmul.mubr.f32.gmra.mxu0 %v1001
        %v1643 = vpop.f32.mrf.mxu0
        %v1644 = vadd.f32 0.0, %v1643
        %v1645 = vpop.f32.mrf.mxu0
        %1646 = vmatprep.mubr.f32.mxu0 %v1005
        %1647 = vmatmul.mubr.f32.gmra.mxu0 %v1004
        %v1648 = vpop.f32.mrf.mxu0
        %v1649 = vadd.f32 0.0, %v1648
        %v1650 = vpop.f32.mrf.mxu0
        %1651 = vmatprep.mubr.f32.mxu0 %v1008
        %1652 = vmatmul.mubr.f32.gmra.mxu0 %v1007
        %v1653 = vpop.f32.mrf.mxu0
        %v1654 = vadd.f32 0.0, %v1653
        %v1655 = vpop.f32.mrf.mxu0
        %1656 = vmatprep.mubr.f32.mxu0 %v1011
        %1657 = vmatmul.mubr.f32.gmra.mxu0 %v1010
        %v1658 = vpop.f32.mrf.mxu0
        %v1659 = vadd.f32 0.0, %v1658
        %v1660 = vpop.f32.mrf.mxu0
        %1661 = vmatprep.mubr.f32.mxu0 %v1014
        %1662 = vmatmul.mubr.f32.gmra.mxu0 %v1013
        %v1663 = vpop.f32.mrf.mxu0
        %v1664 = vadd.f32 0.0, %v1663
        %v1665 = vpop.f32.mrf.mxu0
        %1666 = vmatprep.mubr.f32.mxu0 %v1017
        %1667 = vmatmul.mubr.f32.gmra.mxu0 %v1016
        %v1668 = vpop.f32.mrf.mxu0
        %v1669 = vadd.f32 0.0, %v1668
        %v1670 = vpop.f32.mrf.mxu0
        %1671 = vmatprep.mubr.f32.mxu0 %v1020
        %1672 = vmatmul.mubr.f32.gmra.mxu0 %v1019
        %v1673 = vpop.f32.mrf.mxu0
        %v1674 = vadd.f32 0.0, %v1673
        %v1675 = vpop.f32.mrf.mxu0
        %1676 = vmatprep.mubr.f32.mxu0 %v1023
        %1677 = vmatmul.mubr.f32.gmra.mxu0 %v1022
        %v1678 = vpop.f32.mrf.mxu0
        %v1679 = vadd.f32 0.0, %v1678
        %v1680 = vpop.f32.mrf.mxu0
        %1681 = vmatprep.mubr.f32.mxu0 %v1026
        %1682 = vmatmul.mubr.f32.gmra.mxu0 %v1025
        %v1683 = vpop.f32.mrf.mxu0
        %v1684 = vadd.f32 0.0, %v1683
        %v1685 = vpop.f32.mrf.mxu0
        %1686 = vmatprep.mubr.f32.mxu0 %v1029
        %1687 = vmatmul.mubr.f32.gmra.mxu0 %v1028
        %v1688 = vpop.f32.mrf.mxu0
        %v1689 = vadd.f32 0.0, %v1688
        %v1690 = vpop.f32.mrf.mxu0
        %1691 = vmatprep.mubr.f32.mxu0 %v1032
        %1692 = vmatmul.mubr.f32.gmra.mxu0 %v1031
        %v1693 = vpop.f32.mrf.mxu0
        %v1694 = vadd.f32 0.0, %v1693
        %v1695 = vpop.f32.mrf.mxu0
        %1696 = vmatprep.mubr.f32.mxu0 %v1035
        %1697 = vmatmul.mubr.f32.gmra.mxu0 %v1034
        %v1698 = vpop.f32.mrf.mxu0
        %v1699 = vadd.f32 0.0, %v1698
        %v1700 = vpop.f32.mrf.mxu0
        %1701 = vmatprep.mubr.f32.mxu0 %v1038
        %1702 = vmatmul.mubr.f32.gmra.mxu0 %v1037
        %v1703 = vpop.f32.mrf.mxu0
        %v1704 = vadd.f32 0.0, %v1703
        %v1705 = vpop.f32.mrf.mxu0
        %1706 = vmatprep.mubr.f32.mxu0 %v1041
        %1707 = vmatmul.mubr.f32.gmra.mxu0 %v1040
        %v1708 = vpop.f32.mrf.mxu0
        %v1709 = vadd.f32 0.0, %v1708
        %v1710 = vpop.f32.mrf.mxu0
        %1711 = vmatprep.mubr.f32.mxu0 %v1044
        %1712 = vmatmul.mubr.f32.gmra.mxu0 %v1043
        %v1713 = vpop.f32.mrf.mxu0
        %v1714 = vadd.f32 0.0, %v1713
        %v1715 = vpop.f32.mrf.mxu0
        %1716 = vmatprep.mubr.f32.mxu0 %v1047
        %1717 = vmatmul.mubr.f32.gmra.mxu0 %v1046
        %v1718 = vpop.f32.mrf.mxu0
        %v1719 = vadd.f32 0.0, %v1718
        %v1720 = vpop.f32.mrf.mxu0
        %1721 = vmatprep.mubr.f32.mxu0 %v1050
        %1722 = vmatmul.mubr.f32.gmra.mxu0 %v1049
        %v1723 = vpop.f32.mrf.mxu0
        %v1724 = vadd.f32 0.0, %v1723
        %v1725 = vpop.f32.mrf.mxu0
        %1726 = vmatprep.mubr.f32.mxu0 %v1053
        %1727 = vmatmul.mubr.f32.gmra.mxu0 %v1052
        %v1728 = vpop.f32.mrf.mxu0
        %v1729 = vadd.f32 0.0, %v1728
        %v1730 = vpop.f32.mrf.mxu0
        %1731 = vmatprep.mubr.f32.mxu0 %v1056
        %1732 = vmatmul.mubr.f32.gmra.mxu0 %v1055
        %v1733 = vpop.f32.mrf.mxu0
        %v1734 = vadd.f32 0.0, %v1733
        %v1735 = vpop.f32.mrf.mxu0
        %1736 = vmatprep.mubr.f32.mxu0 %v1059
        %1737 = vmatmul.mubr.f32.gmra.mxu0 %v1058
        %v1738 = vpop.f32.mrf.mxu0
        %v1739 = vadd.f32 0.0, %v1738
        %v1740 = vpop.f32.mrf.mxu0
        %1741 = vmatprep.mubr.f32.mxu0 %v1062
        %1742 = vmatmul.mubr.f32.gmra.mxu0 %v1061
        %v1743 = vpop.f32.mrf.mxu0
        %v1744 = vadd.f32 0.0, %v1743
        %v1745 = vpop.f32.mrf.mxu0
        %1746 = vmatprep.mubr.f32.mxu0 %v1065
        %1747 = vmatmul.mubr.f32.gmra.mxu0 %v1064
        %v1748 = vpop.f32.mrf.mxu0
        %v1749 = vadd.f32 0.0, %v1748
        %v1750 = vpop.f32.mrf.mxu0
        %1751 = vmatprep.mubr.f32.mxu0 %v1068
        %1752 = vmatmul.mubr.f32.gmra.mxu0 %v1067
        %v1753 = vpop.f32.mrf.mxu0
        %v1754 = vadd.f32 0.0, %v1753
        %v1755 = vpop.f32.mrf.mxu0
        %1756 = vmatprep.mubr.f32.mxu0 %v1071
        %1757 = vmatmul.mubr.f32.gmra.mxu0 %v1070
        %v1758 = vpop.f32.mrf.mxu0
        %v1759 = vadd.f32 0.0, %v1758
        %v1760 = vpop.f32.mrf.mxu0
        %1761 = vdwg.mxu0
        %1762 = vmatprep.subr.mxu0 0.0
        %1763 = vmatpush1.msra.mxu0 %v1376
        %1764 = vmatprep.subr.mxu0 0.0
        %1765 = vmatpush1.msra.mxu0 %v1375
        %1766 = vmatprep.subr.mxu0 0.0
        %1767 = vmatpush1.msra.mxu0 %v1374
        %1768 = vmatprep.subr.mxu0 0.0
        %1769 = vmatpush1.msra.mxu0 %v1373
        %1770 = vmatprep.subr.mxu0 0.0
        %1771 = vmatpush1.msra.mxu0 %v1372
        %1772 = vmatprep.subr.mxu0 0.0
        %1773 = vmatpush1.msra.mxu0 %v1371
        %1774 = vmatprep.subr.mxu0 0.0
        %1775 = vmatpush1.msra.mxu0 %v1370
        %1776 = vmatprep.subr.mxu0 0.0
        %1777 = vmatpush1.msra.mxu0 %v1369
        %1778 = vmatprep.subr.mxu0 0.0
        %1779 = vmatpush1.msra.mxu0 %v1368
        %1780 = vmatprep.subr.mxu0 0.0
        %1781 = vmatpush1.msra.mxu0 %v1367
        %1782 = vmatprep.subr.mxu0 0.0
        %1783 = vmatpush1.msra.mxu0 %v1366
        %1784 = vmatprep.subr.mxu0 0.0
        %1785 = vmatpush1.msra.mxu0 %v1365
        %1786 = vmatprep.subr.mxu0 0.0
        %1787 = vmatpush1.msra.mxu0 %v1364
        %1788 = vmatprep.subr.mxu0 0.0
        %1789 = vmatpush1.msra.mxu0 %v1363
        %1790 = vmatprep.subr.mxu0 0.0
        %1791 = vmatpush1.msra.mxu0 %v1362
        %1792 = vmatprep.subr.mxu0 0.0
        %1793 = vmatpush1.msra.mxu0 %v1361
        %1794 = vmatprep.subr.mxu0 0.0
        %1795 = vmatpush2.msra.mxu0 0.0
        %1796 = vmatprep.subr.mxu0 0.0
        %1797 = vmatpush2.msra.mxu0 0.0
        %1798 = vmatprep.subr.mxu0 0.0
        %1799 = vmatpush2.msra.mxu0 0.0
        %1800 = vmatprep.subr.mxu0 0.0
        %1801 = vmatpush2.msra.mxu0 0.0
        %1802 = vmatprep.subr.mxu0 0.0
        %1803 = vmatpush2.msra.mxu0 0.0
        %1804 = vmatprep.subr.mxu0 0.0
        %1805 = vmatpush2.msra.mxu0 0.0
        %1806 = vmatprep.subr.mxu0 0.0
        %1807 = vmatpush2.msra.mxu0 0.0
        %1808 = vmatprep.subr.mxu0 0.0
        %1809 = vmatpush2.msra.mxu0 0.0
        %1810 = vmatprep.subr.mxu0 0.0
        %1811 = vmatpush2.msra.mxu0 0.0
        %1812 = vmatprep.subr.mxu0 0.0
        %1813 = vmatpush2.msra.mxu0 0.0
        %1814 = vmatprep.subr.mxu0 0.0
        %1815 = vmatpush2.msra.mxu0 0.0
        %1816 = vmatprep.subr.mxu0 0.0
        %1817 = vmatpush2.msra.mxu0 0.0
        %1818 = vmatprep.subr.mxu0 0.0
        %1819 = vmatpush2.msra.mxu0 0.0
        %1820 = vmatprep.subr.mxu0 0.0
        %1821 = vmatpush2.msra.mxu0 0.0
        %1822 = vmatprep.subr.mxu0 0.0
        %1823 = vmatpush2.msra.mxu0 0.0
        %1824 = vmatprep.subr.mxu0 0.0
        %1825 = vmatpush2.msra.mxu0 0.0
        %1826 = vmatprep.mubr.f32.mxu0 0.0
        %1827 = vmatmul.mubr.f32.gmra.mxu0 %v883
        %v1828 = vpop.f32.mrf.mxu0
        %v1829 = vadd.f32 %v1444, %v1828
        %v1830 = vpop.f32.mrf.mxu0
        %1831 = vmatprep.mubr.f32.mxu0 0.0
        %1832 = vmatmul.mubr.f32.gmra.mxu0 %v886
        %v1833 = vpop.f32.mrf.mxu0
        %v1834 = vadd.f32 %v1449, %v1833
        %v1835 = vpop.f32.mrf.mxu0
        %1836 = vmatprep.mubr.f32.mxu0 0.0
        %1837 = vmatmul.mubr.f32.gmra.mxu0 %v889
        %v1838 = vpop.f32.mrf.mxu0
        %v1839 = vadd.f32 %v1454, %v1838
        %v1840 = vpop.f32.mrf.mxu0
        %1841 = vmatprep.mubr.f32.mxu0 0.0
        %1842 = vmatmul.mubr.f32.gmra.mxu0 %v892
        %v1843 = vpop.f32.mrf.mxu0
        %v1844 = vadd.f32 %v1459, %v1843
        %v1845 = vpop.f32.mrf.mxu0
        %1846 = vmatprep.mubr.f32.mxu0 0.0
        %1847 = vmatmul.mubr.f32.gmra.mxu0 %v895
        %v1848 = vpop.f32.mrf.mxu0
        %v1849 = vadd.f32 %v1464, %v1848
        %v1850 = vpop.f32.mrf.mxu0
        %1851 = vmatprep.mubr.f32.mxu0 0.0
        %1852 = vmatmul.mubr.f32.gmra.mxu0 %v898
        %v1853 = vpop.f32.mrf.mxu0
        %v1854 = vadd.f32 %v1469, %v1853
        %v1855 = vpop.f32.mrf.mxu0
        %1856 = vmatprep.mubr.f32.mxu0 0.0
        %1857 = vmatmul.mubr.f32.gmra.mxu0 %v901
        %v1858 = vpop.f32.mrf.mxu0
        %v1859 = vadd.f32 %v1474, %v1858
        %v1860 = vpop.f32.mrf.mxu0
        %1861 = vmatprep.mubr.f32.mxu0 0.0
        %1862 = vmatmul.mubr.f32.gmra.mxu0 %v904
        %v1863 = vpop.f32.mrf.mxu0
        %v1864 = vadd.f32 %v1479, %v1863
        %v1865 = vpop.f32.mrf.mxu0
        %1866 = vmatprep.mubr.f32.mxu0 0.0
        %1867 = vmatmul.mubr.f32.gmra.mxu0 %v907
        %v1868 = vpop.f32.mrf.mxu0
        %v1869 = vadd.f32 %v1484, %v1868
        %v1870 = vpop.f32.mrf.mxu0
        %1871 = vmatprep.mubr.f32.mxu0 0.0
        %1872 = vmatmul.mubr.f32.gmra.mxu0 %v910
        %v1873 = vpop.f32.mrf.mxu0
        %v1874 = vadd.f32 %v1489, %v1873
        %v1875 = vpop.f32.mrf.mxu0
        %1876 = vmatprep.mubr.f32.mxu0 0.0
        %1877 = vmatmul.mubr.f32.gmra.mxu0 %v913
        %v1878 = vpop.f32.mrf.mxu0
        %v1879 = vadd.f32 %v1494, %v1878
        %v1880 = vpop.f32.mrf.mxu0
        %1881 = vmatprep.mubr.f32.mxu0 0.0
        %1882 = vmatmul.mubr.f32.gmra.mxu0 %v916
        %v1883 = vpop.f32.mrf.mxu0
        %v1884 = vadd.f32 %v1499, %v1883
        %v1885 = vpop.f32.mrf.mxu0
        %1886 = vmatprep.mubr.f32.mxu0 0.0
        %1887 = vmatmul.mubr.f32.gmra.mxu0 %v919
        %v1888 = vpop.f32.mrf.mxu0
        %v1889 = vadd.f32 %v1504, %v1888
        %v1890 = vpop.f32.mrf.mxu0
        %1891 = vmatprep.mubr.f32.mxu0 0.0
        %1892 = vmatmul.mubr.f32.gmra.mxu0 %v922
        %v1893 = vpop.f32.mrf.mxu0
        %v1894 = vadd.f32 %v1509, %v1893
        %v1895 = vpop.f32.mrf.mxu0
        %1896 = vmatprep.mubr.f32.mxu0 0.0
        %1897 = vmatmul.mubr.f32.gmra.mxu0 %v925
        %v1898 = vpop.f32.mrf.mxu0
        %v1899 = vadd.f32 %v1514, %v1898
        %v1900 = vpop.f32.mrf.mxu0
        %1901 = vmatprep.mubr.f32.mxu0 0.0
        %1902 = vmatmul.mubr.f32.gmra.mxu0 %v928
        %v1903 = vpop.f32.mrf.mxu0
        %v1904 = vadd.f32 %v1519, %v1903
        %v1905 = vpop.f32.mrf.mxu0
        %1906 = vmatprep.mubr.f32.mxu0 0.0
        %1907 = vmatmul.mubr.f32.gmra.mxu0 %v931
        %v1908 = vpop.f32.mrf.mxu0
        %v1909 = vadd.f32 %v1524, %v1908
        %v1910 = vpop.f32.mrf.mxu0
        %1911 = vmatprep.mubr.f32.mxu0 0.0
        %1912 = vmatmul.mubr.f32.gmra.mxu0 %v934
        %v1913 = vpop.f32.mrf.mxu0
        %v1914 = vadd.f32 %v1529, %v1913
        %v1915 = vpop.f32.mrf.mxu0
        %1916 = vmatprep.mubr.f32.mxu0 0.0
        %1917 = vmatmul.mubr.f32.gmra.mxu0 %v937
        %v1918 = vpop.f32.mrf.mxu0
        %v1919 = vadd.f32 %v1534, %v1918
        %v1920 = vpop.f32.mrf.mxu0
        %1921 = vmatprep.mubr.f32.mxu0 0.0
        %1922 = vmatmul.mubr.f32.gmra.mxu0 %v940
        %v1923 = vpop.f32.mrf.mxu0
        %v1924 = vadd.f32 %v1539, %v1923
        %v1925 = vpop.f32.mrf.mxu0
        %1926 = vmatprep.mubr.f32.mxu0 0.0
        %1927 = vmatmul.mubr.f32.gmra.mxu0 %v943
        %v1928 = vpop.f32.mrf.mxu0
        %v1929 = vadd.f32 %v1544, %v1928
        %v1930 = vpop.f32.mrf.mxu0
        %1931 = vmatprep.mubr.f32.mxu0 0.0
        %1932 = vmatmul.mubr.f32.gmra.mxu0 %v946
        %v1933 = vpop.f32.mrf.mxu0
        %v1934 = vadd.f32 %v1549, %v1933
        %v1935 = vpop.f32.mrf.mxu0
        %1936 = vmatprep.mubr.f32.mxu0 0.0
        %1937 = vmatmul.mubr.f32.gmra.mxu0 %v949
        %v1938 = vpop.f32.mrf.mxu0
        %v1939 = vadd.f32 %v1554, %v1938
        %v1940 = vpop.f32.mrf.mxu0
        %1941 = vmatprep.mubr.f32.mxu0 0.0
        %1942 = vmatmul.mubr.f32.gmra.mxu0 %v952
        %v1943 = vpop.f32.mrf.mxu0
        %v1944 = vadd.f32 %v1559, %v1943
        %v1945 = vpop.f32.mrf.mxu0
        %1946 = vmatprep.mubr.f32.mxu0 0.0
        %1947 = vmatmul.mubr.f32.gmra.mxu0 %v955
        %v1948 = vpop.f32.mrf.mxu0
        %v1949 = vadd.f32 %v1564, %v1948
        %v1950 = vpop.f32.mrf.mxu0
        %1951 = vmatprep.mubr.f32.mxu0 0.0
        %1952 = vmatmul.mubr.f32.gmra.mxu0 %v958
        %v1953 = vpop.f32.mrf.mxu0
        %v1954 = vadd.f32 %v1569, %v1953
        %v1955 = vpop.f32.mrf.mxu0
        %1956 = vmatprep.mubr.f32.mxu0 0.0
        %1957 = vmatmul.mubr.f32.gmra.mxu0 %v961
        %v1958 = vpop.f32.mrf.mxu0
        %v1959 = vadd.f32 %v1574, %v1958
        %v1960 = vpop.f32.mrf.mxu0
        %1961 = vmatprep.mubr.f32.mxu0 0.0
        %1962 = vmatmul.mubr.f32.gmra.mxu0 %v964
        %v1963 = vpop.f32.mrf.mxu0
        %v1964 = vadd.f32 %v1579, %v1963
        %v1965 = vpop.f32.mrf.mxu0
        %1966 = vmatprep.mubr.f32.mxu0 0.0
        %1967 = vmatmul.mubr.f32.gmra.mxu0 %v967
        %v1968 = vpop.f32.mrf.mxu0
        %v1969 = vadd.f32 %v1584, %v1968
        %v1970 = vpop.f32.mrf.mxu0
        %1971 = vmatprep.mubr.f32.mxu0 0.0
        %1972 = vmatmul.mubr.f32.gmra.mxu0 %v970
        %v1973 = vpop.f32.mrf.mxu0
        %v1974 = vadd.f32 %v1589, %v1973
        %v1975 = vpop.f32.mrf.mxu0
        %1976 = vmatprep.mubr.f32.mxu0 0.0
        %1977 = vmatmul.mubr.f32.gmra.mxu0 %v973
        %v1978 = vpop.f32.mrf.mxu0
        %v1979 = vadd.f32 %v1594, %v1978
        %v1980 = vpop.f32.mrf.mxu0
        %1981 = vmatprep.mubr.f32.mxu0 0.0
        %1982 = vmatmul.mubr.f32.gmra.mxu0 %v976
        %v1983 = vpop.f32.mrf.mxu0
        %v1984 = vadd.f32 %v1599, %v1983
        %v1985 = vpop.f32.mrf.mxu0
        %1986 = vmatprep.mubr.f32.mxu0 0.0
        %1987 = vmatmul.mubr.f32.gmra.mxu0 %v979
        %v1988 = vpop.f32.mrf.mxu0
        %v1989 = vadd.f32 %v1604, %v1988
        %v1990 = vpop.f32.mrf.mxu0
        %1991 = vmatprep.mubr.f32.mxu0 0.0
        %1992 = vmatmul.mubr.f32.gmra.mxu0 %v982
        %v1993 = vpop.f32.mrf.mxu0
        %v1994 = vadd.f32 %v1609, %v1993
        %v1995 = vpop.f32.mrf.mxu0
        %1996 = vmatprep.mubr.f32.mxu0 0.0
        %1997 = vmatmul.mubr.f32.gmra.mxu0 %v985
        %v1998 = vpop.f32.mrf.mxu0
        %v1999 = vadd.f32 %v1614, %v1998
        %v2000 = vpop.f32.mrf.mxu0
        %2001 = vmatprep.mubr.f32.mxu0 0.0
        %2002 = vmatmul.mubr.f32.gmra.mxu0 %v988
        %v2003 = vpop.f32.mrf.mxu0
        %v2004 = vadd.f32 %v1619, %v2003
        %v2005 = vpop.f32.mrf.mxu0
        %2006 = vmatprep.mubr.f32.mxu0 0.0
        %2007 = vmatmul.mubr.f32.gmra.mxu0 %v991
        %v2008 = vpop.f32.mrf.mxu0
        %v2009 = vadd.f32 %v1624, %v2008
        %v2010 = vpop.f32.mrf.mxu0
        %2011 = vmatprep.mubr.f32.mxu0 0.0
        %2012 = vmatmul.mubr.f32.gmra.mxu0 %v994
        %v2013 = vpop.f32.mrf.mxu0
        %v2014 = vadd.f32 %v1629, %v2013
        %v2015 = vpop.f32.mrf.mxu0
        %2016 = vmatprep.mubr.f32.mxu0 0.0
        %2017 = vmatmul.mubr.f32.gmra.mxu0 %v997
        %v2018 = vpop.f32.mrf.mxu0
        %v2019 = vadd.f32 %v1634, %v2018
        %v2020 = vpop.f32.mrf.mxu0
        %2021 = vmatprep.mubr.f32.mxu0 0.0
        %2022 = vmatmul.mubr.f32.gmra.mxu0 %v1000
        %v2023 = vpop.f32.mrf.mxu0
        %v2024 = vadd.f32 %v1639, %v2023
        %v2025 = vpop.f32.mrf.mxu0
        %2026 = vmatprep.mubr.f32.mxu0 0.0
        %2027 = vmatmul.mubr.f32.gmra.mxu0 %v1003
        %v2028 = vpop.f32.mrf.mxu0
        %v2029 = vadd.f32 %v1644, %v2028
        %v2030 = vpop.f32.mrf.mxu0
        %2031 = vmatprep.mubr.f32.mxu0 0.0
        %2032 = vmatmul.mubr.f32.gmra.mxu0 %v1006
        %v2033 = vpop.f32.mrf.mxu0
        %v2034 = vadd.f32 %v1649, %v2033
        %v2035 = vpop.f32.mrf.mxu0
        %2036 = vmatprep.mubr.f32.mxu0 0.0
        %2037 = vmatmul.mubr.f32.gmra.mxu0 %v1009
        %v2038 = vpop.f32.mrf.mxu0
        %v2039 = vadd.f32 %v1654, %v2038
        %v2040 = vpop.f32.mrf.mxu0
        %2041 = vmatprep.mubr.f32.mxu0 0.0
        %2042 = vmatmul.mubr.f32.gmra.mxu0 %v1012
        %v2043 = vpop.f32.mrf.mxu0
        %v2044 = vadd.f32 %v1659, %v2043
        %v2045 = vpop.f32.mrf.mxu0
        %2046 = vmatprep.mubr.f32.mxu0 0.0
        %2047 = vmatmul.mubr.f32.gmra.mxu0 %v1015
        %v2048 = vpop.f32.mrf.mxu0
        %v2049 = vadd.f32 %v1664, %v2048
        %v2050 = vpop.f32.mrf.mxu0
        %2051 = vmatprep.mubr.f32.mxu0 0.0
        %2052 = vmatmul.mubr.f32.gmra.mxu0 %v1018
        %v2053 = vpop.f32.mrf.mxu0
        %v2054 = vadd.f32 %v1669, %v2053
        %v2055 = vpop.f32.mrf.mxu0
        %2056 = vmatprep.mubr.f32.mxu0 0.0
        %2057 = vmatmul.mubr.f32.gmra.mxu0 %v1021
        %v2058 = vpop.f32.mrf.mxu0
        %v2059 = vadd.f32 %v1674, %v2058
        %v2060 = vpop.f32.mrf.mxu0
        %2061 = vmatprep.mubr.f32.mxu0 0.0
        %2062 = vmatmul.mubr.f32.gmra.mxu0 %v1024
        %v2063 = vpop.f32.mrf.mxu0
        %v2064 = vadd.f32 %v1679, %v2063
        %v2065 = vpop.f32.mrf.mxu0
        %2066 = vmatprep.mubr.f32.mxu0 0.0
        %2067 = vmatmul.mubr.f32.gmra.mxu0 %v1027
        %v2068 = vpop.f32.mrf.mxu0
        %v2069 = vadd.f32 %v1684, %v2068
        %v2070 = vpop.f32.mrf.mxu0
        %2071 = vmatprep.mubr.f32.mxu0 0.0
        %2072 = vmatmul.mubr.f32.gmra.mxu0 %v1030
        %v2073 = vpop.f32.mrf.mxu0
        %v2074 = vadd.f32 %v1689, %v2073
        %v2075 = vpop.f32.mrf.mxu0
        %2076 = vmatprep.mubr.f32.mxu0 0.0
        %2077 = vmatmul.mubr.f32.gmra.mxu0 %v1033
        %v2078 = vpop.f32.mrf.mxu0
        %v2079 = vadd.f32 %v1694, %v2078
        %v2080 = vpop.f32.mrf.mxu0
        %2081 = vmatprep.mubr.f32.mxu0 0.0
        %2082 = vmatmul.mubr.f32.gmra.mxu0 %v1036
        %v2083 = vpop.f32.mrf.mxu0
        %v2084 = vadd.f32 %v1699, %v2083
        %v2085 = vpop.f32.mrf.mxu0
        %2086 = vmatprep.mubr.f32.mxu0 0.0
        %2087 = vmatmul.mubr.f32.gmra.mxu0 %v1039
        %v2088 = vpop.f32.mrf.mxu0
        %v2089 = vadd.f32 %v1704, %v2088
        %v2090 = vpop.f32.mrf.mxu0
        %2091 = vmatprep.mubr.f32.mxu0 0.0
        %2092 = vmatmul.mubr.f32.gmra.mxu0 %v1042
        %v2093 = vpop.f32.mrf.mxu0
        %v2094 = vadd.f32 %v1709, %v2093
        %v2095 = vpop.f32.mrf.mxu0
        %2096 = vmatprep.mubr.f32.mxu0 0.0
        %2097 = vmatmul.mubr.f32.gmra.mxu0 %v1045
        %v2098 = vpop.f32.mrf.mxu0
        %v2099 = vadd.f32 %v1714, %v2098
        %v2100 = vpop.f32.mrf.mxu0
        %2101 = vmatprep.mubr.f32.mxu0 0.0
        %2102 = vmatmul.mubr.f32.gmra.mxu0 %v1048
        %v2103 = vpop.f32.mrf.mxu0
        %v2104 = vadd.f32 %v1719, %v2103
        %v2105 = vpop.f32.mrf.mxu0
        %2106 = vmatprep.mubr.f32.mxu0 0.0
        %2107 = vmatmul.mubr.f32.gmra.mxu0 %v1051
        %v2108 = vpop.f32.mrf.mxu0
        %v2109 = vadd.f32 %v1724, %v2108
        %v2110 = vpop.f32.mrf.mxu0
        %2111 = vmatprep.mubr.f32.mxu0 0.0
        %2112 = vmatmul.mubr.f32.gmra.mxu0 %v1054
        %v2113 = vpop.f32.mrf.mxu0
        %v2114 = vadd.f32 %v1729, %v2113
        %v2115 = vpop.f32.mrf.mxu0
        %2116 = vmatprep.mubr.f32.mxu0 0.0
        %2117 = vmatmul.mubr.f32.gmra.mxu0 %v1057
        %v2118 = vpop.f32.mrf.mxu0
        %v2119 = vadd.f32 %v1734, %v2118
        %v2120 = vpop.f32.mrf.mxu0
        %2121 = vmatprep.mubr.f32.mxu0 0.0
        %2122 = vmatmul.mubr.f32.gmra.mxu0 %v1060
        %v2123 = vpop.f32.mrf.mxu0
        %v2124 = vadd.f32 %v1739, %v2123
        %v2125 = vpop.f32.mrf.mxu0
        %2126 = vmatprep.mubr.f32.mxu0 0.0
        %2127 = vmatmul.mubr.f32.gmra.mxu0 %v1063
        %v2128 = vpop.f32.mrf.mxu0
        %v2129 = vadd.f32 %v1744, %v2128
        %v2130 = vpop.f32.mrf.mxu0
        %2131 = vmatprep.mubr.f32.mxu0 0.0
        %2132 = vmatmul.mubr.f32.gmra.mxu0 %v1066
        %v2133 = vpop.f32.mrf.mxu0
        %v2134 = vadd.f32 %v1749, %v2133
        %v2135 = vpop.f32.mrf.mxu0
        %2136 = vmatprep.mubr.f32.mxu0 0.0
        %2137 = vmatmul.mubr.f32.gmra.mxu0 %v1069
        %v2138 = vpop.f32.mrf.mxu0
        %v2139 = vadd.f32 %v1754, %v2138
        %v2140 = vpop.f32.mrf.mxu0
        %2141 = vmatprep.mubr.f32.mxu0 0.0
        %2142 = vmatmul.mubr.f32.gmra.mxu0 %v1072
        %v2143 = vpop.f32.mrf.mxu0
        %v2144 = vadd.f32 %v1759, %v2143
        %v2145 = vpop.f32.mrf.mxu0
        %2146 = vdwg.mxu0
        %v2147 = vld [vmem:[#allocation11] sm:$0xff]
        %v2148 = vld [vmem:[#allocation11 + $0x8] sm:$0xff]
        %v2149 = vld [vmem:[#allocation11 + $0x10] sm:$0xff]
        %v2150 = vld [vmem:[#allocation11 + $0x18] sm:$0xff]
        %v2151 = vld [vmem:[#allocation11 + $0x20] sm:$0xff]
        %v2152 = vld [vmem:[#allocation11 + $0x28] sm:$0xff]
        %v2153 = vld [vmem:[#allocation11 + $0x30] sm:$0xff]
        %v2154 = vld [vmem:[#allocation11 + $0x38] sm:$0xff]
        %v2155 = vld [vmem:[#allocation11 + $0x40] sm:$0xff]
        %v2156 = vld [vmem:[#allocation11 + $0x48] sm:$0xff]
        %v2157 = vld [vmem:[#allocation11 + $0x50] sm:$0xff]
        %v2158 = vld [vmem:[#allocation11 + $0x58] sm:$0xff]
        %v2159 = vld [vmem:[#allocation11 + $0x60] sm:$0xff]
        %v2160 = vld [vmem:[#allocation11 + $0x68] sm:$0xff]
        %v2161 = vld [vmem:[#allocation11 + $0x70] sm:$0xff]
        %v2162 = vld [vmem:[#allocation11 + $0x78] sm:$0xff]
        %v2163 = vld [vmem:[#allocation11 + $0x80] sm:$0xff]
        %v2164 = vld [vmem:[#allocation11 + $0x88] sm:$0xff]
        %v2165 = vld [vmem:[#allocation11 + $0x90] sm:$0xff]
        %v2166 = vld [vmem:[#allocation11 + $0x98] sm:$0xff]
        %v2167 = vld [vmem:[#allocation11 + $0xa0] sm:$0xff]
        %v2168 = vld [vmem:[#allocation11 + $0xa8] sm:$0xff]
        %v2169 = vld [vmem:[#allocation11 + $0xb0] sm:$0xff]
        %v2170 = vld [vmem:[#allocation11 + $0xb8] sm:$0xff]
        %v2171 = vld [vmem:[#allocation11 + $0xc0] sm:$0xff]
        %v2172 = vld [vmem:[#allocation11 + $0xc8] sm:$0xff]
        %v2173 = vld [vmem:[#allocation11 + $0xd0] sm:$0xff]
        %v2174 = vld [vmem:[#allocation11 + $0xd8] sm:$0xff]
        %v2175 = vld [vmem:[#allocation11 + $0xe0] sm:$0xff]
        %v2176 = vld [vmem:[#allocation11 + $0xe8] sm:$0xff]
        %v2177 = vld [vmem:[#allocation11 + $0xf0] sm:$0xff]
        %v2178 = vld [vmem:[#allocation11 + $0xf8] sm:$0xff]
        %v2179 = vld [vmem:[#allocation11 + $0x100] sm:$0xff]
        %v2180 = vld [vmem:[#allocation11 + $0x108] sm:$0xff]
        %v2181 = vld [vmem:[#allocation11 + $0x110] sm:$0xff]
        %v2182 = vld [vmem:[#allocation11 + $0x118] sm:$0xff]
        %v2183 = vld [vmem:[#allocation11 + $0x120] sm:$0xff]
        %v2184 = vld [vmem:[#allocation11 + $0x128] sm:$0xff]
        %v2185 = vld [vmem:[#allocation11 + $0x130] sm:$0xff]
        %v2186 = vld [vmem:[#allocation11 + $0x138] sm:$0xff]
        %v2187 = vld [vmem:[#allocation11 + $0x140] sm:$0xff]
        %v2188 = vld [vmem:[#allocation11 + $0x148] sm:$0xff]
        %v2189 = vld [vmem:[#allocation11 + $0x150] sm:$0xff]
        %v2190 = vld [vmem:[#allocation11 + $0x158] sm:$0xff]
        %v2191 = vld [vmem:[#allocation11 + $0x160] sm:$0xff]
        %v2192 = vld [vmem:[#allocation11 + $0x168] sm:$0xff]
        %v2193 = vld [vmem:[#allocation11 + $0x170] sm:$0xff]
        %v2194 = vld [vmem:[#allocation11 + $0x178] sm:$0xff]
        %2195 = vmatprep.subr.mxu0 0.0
        %2196 = vmatpush1.msra.mxu0 %v2162
        %2197 = vmatprep.subr.mxu0 0.0
        %2198 = vmatpush1.msra.mxu0 %v2161
        %2199 = vmatprep.subr.mxu0 0.0
        %2200 = vmatpush1.msra.mxu0 %v2160
        %2201 = vmatprep.subr.mxu0 0.0
        %2202 = vmatpush1.msra.mxu0 %v2159
        %2203 = vmatprep.subr.mxu0 0.0
        %2204 = vmatpush1.msra.mxu0 %v2158
        %2205 = vmatprep.subr.mxu0 0.0
        %2206 = vmatpush1.msra.mxu0 %v2157
        %2207 = vmatprep.subr.mxu0 0.0
        %2208 = vmatpush1.msra.mxu0 %v2156
        %2209 = vmatprep.subr.mxu0 0.0
        %2210 = vmatpush1.msra.mxu0 %v2155
        %2211 = vmatprep.subr.mxu0 0.0
        %2212 = vmatpush1.msra.mxu0 %v2154
        %2213 = vmatprep.subr.mxu0 0.0
        %2214 = vmatpush1.msra.mxu0 %v2153
        %2215 = vmatprep.subr.mxu0 0.0
        %2216 = vmatpush1.msra.mxu0 %v2152
        %2217 = vmatprep.subr.mxu0 0.0
        %2218 = vmatpush1.msra.mxu0 %v2151
        %2219 = vmatprep.subr.mxu0 0.0
        %2220 = vmatpush1.msra.mxu0 %v2150
        %2221 = vmatprep.subr.mxu0 0.0
        %2222 = vmatpush1.msra.mxu0 %v2149
        %2223 = vmatprep.subr.mxu0 0.0
        %2224 = vmatpush1.msra.mxu0 %v2148
        %2225 = vmatprep.subr.mxu0 0.0
        %2226 = vmatpush1.msra.mxu0 %v2147
        %2227 = vmatprep.subr.mxu0 0.0
        %2228 = vmatpush2.msra.mxu0 %v2178
        %2229 = vmatprep.subr.mxu0 0.0
        %2230 = vmatpush2.msra.mxu0 %v2177
        %2231 = vmatprep.subr.mxu0 0.0
        %2232 = vmatpush2.msra.mxu0 %v2176
        %2233 = vmatprep.subr.mxu0 0.0
        %2234 = vmatpush2.msra.mxu0 %v2175
        %2235 = vmatprep.subr.mxu0 0.0
        %2236 = vmatpush2.msra.mxu0 %v2174
        %2237 = vmatprep.subr.mxu0 0.0
        %2238 = vmatpush2.msra.mxu0 %v2173
        %2239 = vmatprep.subr.mxu0 0.0
        %2240 = vmatpush2.msra.mxu0 %v2172
        %2241 = vmatprep.subr.mxu0 0.0
        %2242 = vmatpush2.msra.mxu0 %v2171
        %2243 = vmatprep.subr.mxu0 0.0
        %2244 = vmatpush2.msra.mxu0 %v2170
        %2245 = vmatprep.subr.mxu0 0.0
        %2246 = vmatpush2.msra.mxu0 %v2169
        %2247 = vmatprep.subr.mxu0 0.0
        %2248 = vmatpush2.msra.mxu0 %v2168
        %2249 = vmatprep.subr.mxu0 0.0
        %2250 = vmatpush2.msra.mxu0 %v2167
        %2251 = vmatprep.subr.mxu0 0.0
        %2252 = vmatpush2.msra.mxu0 %v2166
        %2253 = vmatprep.subr.mxu0 0.0
        %2254 = vmatpush2.msra.mxu0 %v2165
        %2255 = vmatprep.subr.mxu0 0.0
        %2256 = vmatpush2.msra.mxu0 %v2164
        %2257 = vmatprep.subr.mxu0 0.0
        %2258 = vmatpush2.msra.mxu0 %v2163
        %2259 = vmatprep.mubr.f32.mxu0 %v1074
        %2260 = vmatmul.mubr.f32.gmra.mxu0 %v1073
        %v2261 = vpop.f32.mrf.mxu0
        %v2262 = vadd.f32 0.0, %v2261
        %v2263 = vpop.f32.mrf.mxu0
        %2264 = vmatprep.mubr.f32.mxu0 %v1077
        %2265 = vmatmul.mubr.f32.gmra.mxu0 %v1076
        %v2266 = vpop.f32.mrf.mxu0
        %v2267 = vadd.f32 0.0, %v2266
        %v2268 = vpop.f32.mrf.mxu0
        %2269 = vmatprep.mubr.f32.mxu0 %v1080
        %2270 = vmatmul.mubr.f32.gmra.mxu0 %v1079
        %v2271 = vpop.f32.mrf.mxu0
        %v2272 = vadd.f32 0.0, %v2271
        %v2273 = vpop.f32.mrf.mxu0
        %2274 = vmatprep.mubr.f32.mxu0 %v1083
        %2275 = vmatmul.mubr.f32.gmra.mxu0 %v1082
        %v2276 = vpop.f32.mrf.mxu0
        %v2277 = vadd.f32 0.0, %v2276
        %v2278 = vpop.f32.mrf.mxu0
        %2279 = vmatprep.mubr.f32.mxu0 %v1086
        %2280 = vmatmul.mubr.f32.gmra.mxu0 %v1085
        %v2281 = vpop.f32.mrf.mxu0
        %v2282 = vadd.f32 0.0, %v2281
        %v2283 = vpop.f32.mrf.mxu0
        %2284 = vmatprep.mubr.f32.mxu0 %v1089
        %2285 = vmatmul.mubr.f32.gmra.mxu0 %v1088
        %v2286 = vpop.f32.mrf.mxu0
        %v2287 = vadd.f32 0.0, %v2286
        %v2288 = vpop.f32.mrf.mxu0
        %2289 = vmatprep.mubr.f32.mxu0 %v1092
        %2290 = vmatmul.mubr.f32.gmra.mxu0 %v1091
        %v2291 = vpop.f32.mrf.mxu0
        %v2292 = vadd.f32 0.0, %v2291
        %v2293 = vpop.f32.mrf.mxu0
        %2294 = vmatprep.mubr.f32.mxu0 %v1095
        %2295 = vmatmul.mubr.f32.gmra.mxu0 %v1094
        %v2296 = vpop.f32.mrf.mxu0
        %v2297 = vadd.f32 0.0, %v2296
        %v2298 = vpop.f32.mrf.mxu0
        %2299 = vmatprep.mubr.f32.mxu0 %v1098
        %2300 = vmatmul.mubr.f32.gmra.mxu0 %v1097
        %v2301 = vpop.f32.mrf.mxu0
        %v2302 = vadd.f32 0.0, %v2301
        %v2303 = vpop.f32.mrf.mxu0
        %2304 = vmatprep.mubr.f32.mxu0 %v1101
        %2305 = vmatmul.mubr.f32.gmra.mxu0 %v1100
        %v2306 = vpop.f32.mrf.mxu0
        %v2307 = vadd.f32 0.0, %v2306
        %v2308 = vpop.f32.mrf.mxu0
        %2309 = vmatprep.mubr.f32.mxu0 %v1104
        %2310 = vmatmul.mubr.f32.gmra.mxu0 %v1103
        %v2311 = vpop.f32.mrf.mxu0
        %v2312 = vadd.f32 0.0, %v2311
        %v2313 = vpop.f32.mrf.mxu0
        %2314 = vmatprep.mubr.f32.mxu0 %v1107
        %2315 = vmatmul.mubr.f32.gmra.mxu0 %v1106
        %v2316 = vpop.f32.mrf.mxu0
        %v2317 = vadd.f32 0.0, %v2316
        %v2318 = vpop.f32.mrf.mxu0
        %2319 = vmatprep.mubr.f32.mxu0 %v1110
        %2320 = vmatmul.mubr.f32.gmra.mxu0 %v1109
        %v2321 = vpop.f32.mrf.mxu0
        %v2322 = vadd.f32 0.0, %v2321
        %v2323 = vpop.f32.mrf.mxu0
        %2324 = vmatprep.mubr.f32.mxu0 %v1113
        %2325 = vmatmul.mubr.f32.gmra.mxu0 %v1112
        %v2326 = vpop.f32.mrf.mxu0
        %v2327 = vadd.f32 0.0, %v2326
        %v2328 = vpop.f32.mrf.mxu0
        %2329 = vmatprep.mubr.f32.mxu0 %v1116
        %2330 = vmatmul.mubr.f32.gmra.mxu0 %v1115
        %v2331 = vpop.f32.mrf.mxu0
        %v2332 = vadd.f32 0.0, %v2331
        %v2333 = vpop.f32.mrf.mxu0
        %2334 = vmatprep.mubr.f32.mxu0 %v1119
        %2335 = vmatmul.mubr.f32.gmra.mxu0 %v1118
        %v2336 = vpop.f32.mrf.mxu0
        %v2337 = vadd.f32 0.0, %v2336
        %v2338 = vpop.f32.mrf.mxu0
        %2339 = vmatprep.mubr.f32.mxu0 %v1122
        %2340 = vmatmul.mubr.f32.gmra.mxu0 %v1121
        %v2341 = vpop.f32.mrf.mxu0
        %v2342 = vadd.f32 0.0, %v2341
        %v2343 = vpop.f32.mrf.mxu0
        %2344 = vmatprep.mubr.f32.mxu0 %v1125
        %2345 = vmatmul.mubr.f32.gmra.mxu0 %v1124
        %v2346 = vpop.f32.mrf.mxu0
        %v2347 = vadd.f32 0.0, %v2346
        %v2348 = vpop.f32.mrf.mxu0
        %2349 = vmatprep.mubr.f32.mxu0 %v1128
        %2350 = vmatmul.mubr.f32.gmra.mxu0 %v1127
        %v2351 = vpop.f32.mrf.mxu0
        %v2352 = vadd.f32 0.0, %v2351
        %v2353 = vpop.f32.mrf.mxu0
        %2354 = vmatprep.mubr.f32.mxu0 %v1131
        %2355 = vmatmul.mubr.f32.gmra.mxu0 %v1130
        %v2356 = vpop.f32.mrf.mxu0
        %v2357 = vadd.f32 0.0, %v2356
        %v2358 = vpop.f32.mrf.mxu0
        %2359 = vmatprep.mubr.f32.mxu0 %v1134
        %2360 = vmatmul.mubr.f32.gmra.mxu0 %v1133
        %v2361 = vpop.f32.mrf.mxu0
        %v2362 = vadd.f32 0.0, %v2361
        %v2363 = vpop.f32.mrf.mxu0
        %2364 = vmatprep.mubr.f32.mxu0 %v1137
        %2365 = vmatmul.mubr.f32.gmra.mxu0 %v1136
        %v2366 = vpop.f32.mrf.mxu0
        %v2367 = vadd.f32 0.0, %v2366
        %v2368 = vpop.f32.mrf.mxu0
        %2369 = vmatprep.mubr.f32.mxu0 %v1140
        %2370 = vmatmul.mubr.f32.gmra.mxu0 %v1139
        %v2371 = vpop.f32.mrf.mxu0
        %v2372 = vadd.f32 0.0, %v2371
        %v2373 = vpop.f32.mrf.mxu0
        %2374 = vmatprep.mubr.f32.mxu0 %v1143
        %2375 = vmatmul.mubr.f32.gmra.mxu0 %v1142
        %v2376 = vpop.f32.mrf.mxu0
        %v2377 = vadd.f32 0.0, %v2376
        %v2378 = vpop.f32.mrf.mxu0
        %2379 = vmatprep.mubr.f32.mxu0 %v1146
        %2380 = vmatmul.mubr.f32.gmra.mxu0 %v1145
        %v2381 = vpop.f32.mrf.mxu0
        %v2382 = vadd.f32 0.0, %v2381
        %v2383 = vpop.f32.mrf.mxu0
        %2384 = vmatprep.mubr.f32.mxu0 %v1149
        %2385 = vmatmul.mubr.f32.gmra.mxu0 %v1148
        %v2386 = vpop.f32.mrf.mxu0
        %v2387 = vadd.f32 0.0, %v2386
        %v2388 = vpop.f32.mrf.mxu0
        %2389 = vmatprep.mubr.f32.mxu0 %v1152
        %2390 = vmatmul.mubr.f32.gmra.mxu0 %v1151
        %v2391 = vpop.f32.mrf.mxu0
        %v2392 = vadd.f32 0.0, %v2391
        %v2393 = vpop.f32.mrf.mxu0
        %2394 = vmatprep.mubr.f32.mxu0 %v1155
        %2395 = vmatmul.mubr.f32.gmra.mxu0 %v1154
        %v2396 = vpop.f32.mrf.mxu0
        %v2397 = vadd.f32 0.0, %v2396
        %v2398 = vpop.f32.mrf.mxu0
        %2399 = vmatprep.mubr.f32.mxu0 %v1158
        %2400 = vmatmul.mubr.f32.gmra.mxu0 %v1157
        %v2401 = vpop.f32.mrf.mxu0
        %v2402 = vadd.f32 0.0, %v2401
        %v2403 = vpop.f32.mrf.mxu0
        %2404 = vmatprep.mubr.f32.mxu0 %v1161
        %2405 = vmatmul.mubr.f32.gmra.mxu0 %v1160
        %v2406 = vpop.f32.mrf.mxu0
        %v2407 = vadd.f32 0.0, %v2406
        %v2408 = vpop.f32.mrf.mxu0
        %2409 = vmatprep.mubr.f32.mxu0 %v1164
        %2410 = vmatmul.mubr.f32.gmra.mxu0 %v1163
        %v2411 = vpop.f32.mrf.mxu0
        %v2412 = vadd.f32 0.0, %v2411
        %v2413 = vpop.f32.mrf.mxu0
        %2414 = vmatprep.mubr.f32.mxu0 %v1167
        %2415 = vmatmul.mubr.f32.gmra.mxu0 %v1166
        %v2416 = vpop.f32.mrf.mxu0
        %v2417 = vadd.f32 0.0, %v2416
        %v2418 = vpop.f32.mrf.mxu0
        %2419 = vmatprep.mubr.f32.mxu0 %v1170
        %2420 = vmatmul.mubr.f32.gmra.mxu0 %v1169
        %v2421 = vpop.f32.mrf.mxu0
        %v2422 = vadd.f32 0.0, %v2421
        %v2423 = vpop.f32.mrf.mxu0
        %2424 = vmatprep.mubr.f32.mxu0 %v1173
        %2425 = vmatmul.mubr.f32.gmra.mxu0 %v1172
        %v2426 = vpop.f32.mrf.mxu0
        %v2427 = vadd.f32 0.0, %v2426
        %v2428 = vpop.f32.mrf.mxu0
        %2429 = vmatprep.mubr.f32.mxu0 %v1176
        %2430 = vmatmul.mubr.f32.gmra.mxu0 %v1175
        %v2431 = vpop.f32.mrf.mxu0
        %v2432 = vadd.f32 0.0, %v2431
        %v2433 = vpop.f32.mrf.mxu0
        %2434 = vmatprep.mubr.f32.mxu0 %v1179
        %2435 = vmatmul.mubr.f32.gmra.mxu0 %v1178
        %v2436 = vpop.f32.mrf.mxu0
        %v2437 = vadd.f32 0.0, %v2436
        %v2438 = vpop.f32.mrf.mxu0
        %2439 = vmatprep.mubr.f32.mxu0 %v1182
        %2440 = vmatmul.mubr.f32.gmra.mxu0 %v1181
        %v2441 = vpop.f32.mrf.mxu0
        %v2442 = vadd.f32 0.0, %v2441
        %v2443 = vpop.f32.mrf.mxu0
        %2444 = vmatprep.mubr.f32.mxu0 %v1185
        %2445 = vmatmul.mubr.f32.gmra.mxu0 %v1184
        %v2446 = vpop.f32.mrf.mxu0
        %v2447 = vadd.f32 0.0, %v2446
        %v2448 = vpop.f32.mrf.mxu0
        %2449 = vmatprep.mubr.f32.mxu0 %v1188
        %2450 = vmatmul.mubr.f32.gmra.mxu0 %v1187
        %v2451 = vpop.f32.mrf.mxu0
        %v2452 = vadd.f32 0.0, %v2451
        %v2453 = vpop.f32.mrf.mxu0
        %2454 = vmatprep.mubr.f32.mxu0 %v1191
        %2455 = vmatmul.mubr.f32.gmra.mxu0 %v1190
        %v2456 = vpop.f32.mrf.mxu0
        %v2457 = vadd.f32 0.0, %v2456
        %v2458 = vpop.f32.mrf.mxu0
        %2459 = vmatprep.mubr.f32.mxu0 %v1194
        %2460 = vmatmul.mubr.f32.gmra.mxu0 %v1193
        %v2461 = vpop.f32.mrf.mxu0
        %v2462 = vadd.f32 0.0, %v2461
        %v2463 = vpop.f32.mrf.mxu0
        %2464 = vmatprep.mubr.f32.mxu0 %v1197
        %2465 = vmatmul.mubr.f32.gmra.mxu0 %v1196
        %v2466 = vpop.f32.mrf.mxu0
        %v2467 = vadd.f32 0.0, %v2466
        %v2468 = vpop.f32.mrf.mxu0
        %2469 = vmatprep.mubr.f32.mxu0 %v1200
        %2470 = vmatmul.mubr.f32.gmra.mxu0 %v1199
        %v2471 = vpop.f32.mrf.mxu0
        %v2472 = vadd.f32 0.0, %v2471
        %v2473 = vpop.f32.mrf.mxu0
        %2474 = vmatprep.mubr.f32.mxu0 %v1203
        %2475 = vmatmul.mubr.f32.gmra.mxu0 %v1202
        %v2476 = vpop.f32.mrf.mxu0
        %v2477 = vadd.f32 0.0, %v2476
        %v2478 = vpop.f32.mrf.mxu0
        %2479 = vmatprep.mubr.f32.mxu0 %v1206
        %2480 = vmatmul.mubr.f32.gmra.mxu0 %v1205
        %v2481 = vpop.f32.mrf.mxu0
        %v2482 = vadd.f32 0.0, %v2481
        %v2483 = vpop.f32.mrf.mxu0
        %2484 = vmatprep.mubr.f32.mxu0 %v1209
        %2485 = vmatmul.mubr.f32.gmra.mxu0 %v1208
        %v2486 = vpop.f32.mrf.mxu0
        %v2487 = vadd.f32 0.0, %v2486
        %v2488 = vpop.f32.mrf.mxu0
        %2489 = vmatprep.mubr.f32.mxu0 %v1212
        %2490 = vmatmul.mubr.f32.gmra.mxu0 %v1211
        %v2491 = vpop.f32.mrf.mxu0
        %v2492 = vadd.f32 0.0, %v2491
        %v2493 = vpop.f32.mrf.mxu0
        %2494 = vmatprep.mubr.f32.mxu0 %v1215
        %2495 = vmatmul.mubr.f32.gmra.mxu0 %v1214
        %v2496 = vpop.f32.mrf.mxu0
        %v2497 = vadd.f32 0.0, %v2496
        %v2498 = vpop.f32.mrf.mxu0
        %2499 = vmatprep.mubr.f32.mxu0 %v1218
        %2500 = vmatmul.mubr.f32.gmra.mxu0 %v1217
        %v2501 = vpop.f32.mrf.mxu0
        %v2502 = vadd.f32 0.0, %v2501
        %v2503 = vpop.f32.mrf.mxu0
        %2504 = vmatprep.mubr.f32.mxu0 %v1221
        %2505 = vmatmul.mubr.f32.gmra.mxu0 %v1220
        %v2506 = vpop.f32.mrf.mxu0
        %v2507 = vadd.f32 0.0, %v2506
        %v2508 = vpop.f32.mrf.mxu0
        %2509 = vmatprep.mubr.f32.mxu0 %v1224
        %2510 = vmatmul.mubr.f32.gmra.mxu0 %v1223
        %v2511 = vpop.f32.mrf.mxu0
        %v2512 = vadd.f32 0.0, %v2511
        %v2513 = vpop.f32.mrf.mxu0
        %2514 = vmatprep.mubr.f32.mxu0 %v1227
        %2515 = vmatmul.mubr.f32.gmra.mxu0 %v1226
        %v2516 = vpop.f32.mrf.mxu0
        %v2517 = vadd.f32 0.0, %v2516
        %v2518 = vpop.f32.mrf.mxu0
        %2519 = vmatprep.mubr.f32.mxu0 %v1230
        %2520 = vmatmul.mubr.f32.gmra.mxu0 %v1229
        %v2521 = vpop.f32.mrf.mxu0
        %v2522 = vadd.f32 0.0, %v2521
        %v2523 = vpop.f32.mrf.mxu0
        %2524 = vmatprep.mubr.f32.mxu0 %v1233
        %2525 = vmatmul.mubr.f32.gmra.mxu0 %v1232
        %v2526 = vpop.f32.mrf.mxu0
        %v2527 = vadd.f32 0.0, %v2526
        %v2528 = vpop.f32.mrf.mxu0
        %2529 = vmatprep.mubr.f32.mxu0 %v1236
        %2530 = vmatmul.mubr.f32.gmra.mxu0 %v1235
        %v2531 = vpop.f32.mrf.mxu0
        %v2532 = vadd.f32 0.0, %v2531
        %v2533 = vpop.f32.mrf.mxu0
        %2534 = vmatprep.mubr.f32.mxu0 %v1239
        %2535 = vmatmul.mubr.f32.gmra.mxu0 %v1238
        %v2536 = vpop.f32.mrf.mxu0
        %v2537 = vadd.f32 0.0, %v2536
        %v2538 = vpop.f32.mrf.mxu0
        %2539 = vmatprep.mubr.f32.mxu0 %v1242
        %2540 = vmatmul.mubr.f32.gmra.mxu0 %v1241
        %v2541 = vpop.f32.mrf.mxu0
        %v2542 = vadd.f32 0.0, %v2541
        %v2543 = vpop.f32.mrf.mxu0
        %2544 = vmatprep.mubr.f32.mxu0 %v1245
        %2545 = vmatmul.mubr.f32.gmra.mxu0 %v1244
        %v2546 = vpop.f32.mrf.mxu0
        %v2547 = vadd.f32 0.0, %v2546
        %v2548 = vpop.f32.mrf.mxu0
        %2549 = vmatprep.mubr.f32.mxu0 %v1248
        %2550 = vmatmul.mubr.f32.gmra.mxu0 %v1247
        %v2551 = vpop.f32.mrf.mxu0
        %v2552 = vadd.f32 0.0, %v2551
        %v2553 = vpop.f32.mrf.mxu0
        %2554 = vmatprep.mubr.f32.mxu0 %v1251
        %2555 = vmatmul.mubr.f32.gmra.mxu0 %v1250
        %v2556 = vpop.f32.mrf.mxu0
        %v2557 = vadd.f32 0.0, %v2556
        %v2558 = vpop.f32.mrf.mxu0
        %2559 = vmatprep.mubr.f32.mxu0 %v1254
        %2560 = vmatmul.mubr.f32.gmra.mxu0 %v1253
        %v2561 = vpop.f32.mrf.mxu0
        %v2562 = vadd.f32 0.0, %v2561
        %v2563 = vpop.f32.mrf.mxu0
        %2564 = vmatprep.mubr.f32.mxu0 %v1257
        %2565 = vmatmul.mubr.f32.gmra.mxu0 %v1256
        %v2566 = vpop.f32.mrf.mxu0
        %v2567 = vadd.f32 0.0, %v2566
        %v2568 = vpop.f32.mrf.mxu0
        %2569 = vmatprep.mubr.f32.mxu0 %v1260
        %2570 = vmatmul.mubr.f32.gmra.mxu0 %v1259
        %v2571 = vpop.f32.mrf.mxu0
        %v2572 = vadd.f32 0.0, %v2571
        %v2573 = vpop.f32.mrf.mxu0
        %2574 = vmatprep.mubr.f32.mxu0 %v1263
        %2575 = vmatmul.mubr.f32.gmra.mxu0 %v1262
        %v2576 = vpop.f32.mrf.mxu0
        %v2577 = vadd.f32 0.0, %v2576
        %v2578 = vpop.f32.mrf.mxu0
        %2579 = vdwg.mxu0
        %2580 = vmatprep.subr.mxu0 0.0
        %2581 = vmatpush1.msra.mxu0 %v2194
        %2582 = vmatprep.subr.mxu0 0.0
        %2583 = vmatpush1.msra.mxu0 %v2193
        %2584 = vmatprep.subr.mxu0 0.0
        %2585 = vmatpush1.msra.mxu0 %v2192
        %2586 = vmatprep.subr.mxu0 0.0
        %2587 = vmatpush1.msra.mxu0 %v2191
        %2588 = vmatprep.subr.mxu0 0.0
        %2589 = vmatpush1.msra.mxu0 %v2190
        %2590 = vmatprep.subr.mxu0 0.0
        %2591 = vmatpush1.msra.mxu0 %v2189
        %2592 = vmatprep.subr.mxu0 0.0
        %2593 = vmatpush1.msra.mxu0 %v2188
        %2594 = vmatprep.subr.mxu0 0.0
        %2595 = vmatpush1.msra.mxu0 %v2187
        %2596 = vmatprep.subr.mxu0 0.0
        %2597 = vmatpush1.msra.mxu0 %v2186
        %2598 = vmatprep.subr.mxu0 0.0
        %2599 = vmatpush1.msra.mxu0 %v2185
        %2600 = vmatprep.subr.mxu0 0.0
        %2601 = vmatpush1.msra.mxu0 %v2184
        %2602 = vmatprep.subr.mxu0 0.0
        %2603 = vmatpush1.msra.mxu0 %v2183
        %2604 = vmatprep.subr.mxu0 0.0
        %2605 = vmatpush1.msra.mxu0 %v2182
        %2606 = vmatprep.subr.mxu0 0.0
        %2607 = vmatpush1.msra.mxu0 %v2181
        %2608 = vmatprep.subr.mxu0 0.0
        %2609 = vmatpush1.msra.mxu0 %v2180
        %2610 = vmatprep.subr.mxu0 0.0
        %2611 = vmatpush1.msra.mxu0 %v2179
        %2612 = vmatprep.subr.mxu0 0.0
        %2613 = vmatpush2.msra.mxu0 0.0
        %2614 = vmatprep.subr.mxu0 0.0
        %2615 = vmatpush2.msra.mxu0 0.0
        %2616 = vmatprep.subr.mxu0 0.0
        %2617 = vmatpush2.msra.mxu0 0.0
        %2618 = vmatprep.subr.mxu0 0.0
        %2619 = vmatpush2.msra.mxu0 0.0
        %2620 = vmatprep.subr.mxu0 0.0
        %2621 = vmatpush2.msra.mxu0 0.0
        %2622 = vmatprep.subr.mxu0 0.0
        %2623 = vmatpush2.msra.mxu0 0.0
        %2624 = vmatprep.subr.mxu0 0.0
        %2625 = vmatpush2.msra.mxu0 0.0
        %2626 = vmatprep.subr.mxu0 0.0
        %2627 = vmatpush2.msra.mxu0 0.0
        %2628 = vmatprep.subr.mxu0 0.0
        %2629 = vmatpush2.msra.mxu0 0.0
        %2630 = vmatprep.subr.mxu0 0.0
        %2631 = vmatpush2.msra.mxu0 0.0
        %2632 = vmatprep.subr.mxu0 0.0
        %2633 = vmatpush2.msra.mxu0 0.0
        %2634 = vmatprep.subr.mxu0 0.0
        %2635 = vmatpush2.msra.mxu0 0.0
        %2636 = vmatprep.subr.mxu0 0.0
        %2637 = vmatpush2.msra.mxu0 0.0
        %2638 = vmatprep.subr.mxu0 0.0
        %2639 = vmatpush2.msra.mxu0 0.0
        %2640 = vmatprep.subr.mxu0 0.0
        %2641 = vmatpush2.msra.mxu0 0.0
        %2642 = vmatprep.subr.mxu0 0.0
        %2643 = vmatpush2.msra.mxu0 0.0
        %2644 = vmatprep.mubr.f32.mxu0 0.0
        %2645 = vmatmul.mubr.f32.gmra.mxu0 %v1075
        %v2646 = vpop.f32.mrf.mxu0
        %v2647 = vadd.f32 %v2262, %v2646
        %v2648 = vpop.f32.mrf.mxu0
        %2649 = vmatprep.mubr.f32.mxu0 0.0
        %2650 = vmatmul.mubr.f32.gmra.mxu0 %v1078
        %v2651 = vpop.f32.mrf.mxu0
        %v2652 = vadd.f32 %v2267, %v2651
        %v2653 = vpop.f32.mrf.mxu0
        %2654 = vmatprep.mubr.f32.mxu0 0.0
        %2655 = vmatmul.mubr.f32.gmra.mxu0 %v1081
        %v2656 = vpop.f32.mrf.mxu0
        %v2657 = vadd.f32 %v2272, %v2656
        %v2658 = vpop.f32.mrf.mxu0
        %2659 = vmatprep.mubr.f32.mxu0 0.0
        %2660 = vmatmul.mubr.f32.gmra.mxu0 %v1084
        %v2661 = vpop.f32.mrf.mxu0
        %v2662 = vadd.f32 %v2277, %v2661
        %v2663 = vpop.f32.mrf.mxu0
        %2664 = vmatprep.mubr.f32.mxu0 0.0
        %2665 = vmatmul.mubr.f32.gmra.mxu0 %v1087
        %v2666 = vpop.f32.mrf.mxu0
        %v2667 = vadd.f32 %v2282, %v2666
        %v2668 = vpop.f32.mrf.mxu0
        %2669 = vmatprep.mubr.f32.mxu0 0.0
        %2670 = vmatmul.mubr.f32.gmra.mxu0 %v1090
        %v2671 = vpop.f32.mrf.mxu0
        %v2672 = vadd.f32 %v2287, %v2671
        %v2673 = vpop.f32.mrf.mxu0
        %2674 = vmatprep.mubr.f32.mxu0 0.0
        %2675 = vmatmul.mubr.f32.gmra.mxu0 %v1093
        %v2676 = vpop.f32.mrf.mxu0
        %v2677 = vadd.f32 %v2292, %v2676
        %v2678 = vpop.f32.mrf.mxu0
        %2679 = vmatprep.mubr.f32.mxu0 0.0
        %2680 = vmatmul.mubr.f32.gmra.mxu0 %v1096
        %v2681 = vpop.f32.mrf.mxu0
        %v2682 = vadd.f32 %v2297, %v2681
        %v2683 = vpop.f32.mrf.mxu0
        %2684 = vmatprep.mubr.f32.mxu0 0.0
        %2685 = vmatmul.mubr.f32.gmra.mxu0 %v1099
        %v2686 = vpop.f32.mrf.mxu0
        %v2687 = vadd.f32 %v2302, %v2686
        %v2688 = vpop.f32.mrf.mxu0
        %2689 = vmatprep.mubr.f32.mxu0 0.0
        %2690 = vmatmul.mubr.f32.gmra.mxu0 %v1102
        %v2691 = vpop.f32.mrf.mxu0
        %v2692 = vadd.f32 %v2307, %v2691
        %v2693 = vpop.f32.mrf.mxu0
        %2694 = vmatprep.mubr.f32.mxu0 0.0
        %2695 = vmatmul.mubr.f32.gmra.mxu0 %v1105
        %v2696 = vpop.f32.mrf.mxu0
        %v2697 = vadd.f32 %v2312, %v2696
        %v2698 = vpop.f32.mrf.mxu0
        %2699 = vmatprep.mubr.f32.mxu0 0.0
        %2700 = vmatmul.mubr.f32.gmra.mxu0 %v1108
        %v2701 = vpop.f32.mrf.mxu0
        %v2702 = vadd.f32 %v2317, %v2701
        %v2703 = vpop.f32.mrf.mxu0
        %2704 = vmatprep.mubr.f32.mxu0 0.0
        %2705 = vmatmul.mubr.f32.gmra.mxu0 %v1111
        %v2706 = vpop.f32.mrf.mxu0
        %v2707 = vadd.f32 %v2322, %v2706
        %v2708 = vpop.f32.mrf.mxu0
        %2709 = vmatprep.mubr.f32.mxu0 0.0
        %2710 = vmatmul.mubr.f32.gmra.mxu0 %v1114
        %v2711 = vpop.f32.mrf.mxu0
        %v2712 = vadd.f32 %v2327, %v2711
        %v2713 = vpop.f32.mrf.mxu0
        %2714 = vmatprep.mubr.f32.mxu0 0.0
        %2715 = vmatmul.mubr.f32.gmra.mxu0 %v1117
        %v2716 = vpop.f32.mrf.mxu0
        %v2717 = vadd.f32 %v2332, %v2716
        %v2718 = vpop.f32.mrf.mxu0
        %2719 = vmatprep.mubr.f32.mxu0 0.0
        %2720 = vmatmul.mubr.f32.gmra.mxu0 %v1120
        %v2721 = vpop.f32.mrf.mxu0
        %v2722 = vadd.f32 %v2337, %v2721
        %v2723 = vpop.f32.mrf.mxu0
        %2724 = vmatprep.mubr.f32.mxu0 0.0
        %2725 = vmatmul.mubr.f32.gmra.mxu0 %v1123
        %v2726 = vpop.f32.mrf.mxu0
        %v2727 = vadd.f32 %v2342, %v2726
        %v2728 = vpop.f32.mrf.mxu0
        %2729 = vmatprep.mubr.f32.mxu0 0.0
        %2730 = vmatmul.mubr.f32.gmra.mxu0 %v1126
        %v2731 = vpop.f32.mrf.mxu0
        %v2732 = vadd.f32 %v2347, %v2731
        %v2733 = vpop.f32.mrf.mxu0
        %2734 = vmatprep.mubr.f32.mxu0 0.0
        %2735 = vmatmul.mubr.f32.gmra.mxu0 %v1129
        %v2736 = vpop.f32.mrf.mxu0
        %v2737 = vadd.f32 %v2352, %v2736
        %v2738 = vpop.f32.mrf.mxu0
        %2739 = vmatprep.mubr.f32.mxu0 0.0
        %2740 = vmatmul.mubr.f32.gmra.mxu0 %v1132
        %v2741 = vpop.f32.mrf.mxu0
        %v2742 = vadd.f32 %v2357, %v2741
        %v2743 = vpop.f32.mrf.mxu0
        %2744 = vmatprep.mubr.f32.mxu0 0.0
        %2745 = vmatmul.mubr.f32.gmra.mxu0 %v1135
        %v2746 = vpop.f32.mrf.mxu0
        %v2747 = vadd.f32 %v2362, %v2746
        %v2748 = vpop.f32.mrf.mxu0
        %2749 = vmatprep.mubr.f32.mxu0 0.0
        %2750 = vmatmul.mubr.f32.gmra.mxu0 %v1138
        %v2751 = vpop.f32.mrf.mxu0
        %v2752 = vadd.f32 %v2367, %v2751
        %v2753 = vpop.f32.mrf.mxu0
        %2754 = vmatprep.mubr.f32.mxu0 0.0
        %2755 = vmatmul.mubr.f32.gmra.mxu0 %v1141
        %v2756 = vpop.f32.mrf.mxu0
        %v2757 = vadd.f32 %v2372, %v2756
        %v2758 = vpop.f32.mrf.mxu0
        %2759 = vmatprep.mubr.f32.mxu0 0.0
        %2760 = vmatmul.mubr.f32.gmra.mxu0 %v1144
        %v2761 = vpop.f32.mrf.mxu0
        %v2762 = vadd.f32 %v2377, %v2761
        %v2763 = vpop.f32.mrf.mxu0
        %2764 = vmatprep.mubr.f32.mxu0 0.0
        %2765 = vmatmul.mubr.f32.gmra.mxu0 %v1147
        %v2766 = vpop.f32.mrf.mxu0
        %v2767 = vadd.f32 %v2382, %v2766
        %v2768 = vpop.f32.mrf.mxu0
        %2769 = vmatprep.mubr.f32.mxu0 0.0
        %2770 = vmatmul.mubr.f32.gmra.mxu0 %v1150
        %v2771 = vpop.f32.mrf.mxu0
        %v2772 = vadd.f32 %v2387, %v2771
        %v2773 = vpop.f32.mrf.mxu0
        %2774 = vmatprep.mubr.f32.mxu0 0.0
        %2775 = vmatmul.mubr.f32.gmra.mxu0 %v1153
        %v2776 = vpop.f32.mrf.mxu0
        %v2777 = vadd.f32 %v2392, %v2776
        %v2778 = vpop.f32.mrf.mxu0
        %2779 = vmatprep.mubr.f32.mxu0 0.0
        %2780 = vmatmul.mubr.f32.gmra.mxu0 %v1156
        %v2781 = vpop.f32.mrf.mxu0
        %v2782 = vadd.f32 %v2397, %v2781
        %v2783 = vpop.f32.mrf.mxu0
        %2784 = vmatprep.mubr.f32.mxu0 0.0
        %2785 = vmatmul.mubr.f32.gmra.mxu0 %v1159
        %v2786 = vpop.f32.mrf.mxu0
        %v2787 = vadd.f32 %v2402, %v2786
        %v2788 = vpop.f32.mrf.mxu0
        %2789 = vmatprep.mubr.f32.mxu0 0.0
        %2790 = vmatmul.mubr.f32.gmra.mxu0 %v1162
        %v2791 = vpop.f32.mrf.mxu0
        %v2792 = vadd.f32 %v2407, %v2791
        %v2793 = vpop.f32.mrf.mxu0
        %2794 = vmatprep.mubr.f32.mxu0 0.0
        %2795 = vmatmul.mubr.f32.gmra.mxu0 %v1165
        %v2796 = vpop.f32.mrf.mxu0
        %v2797 = vadd.f32 %v2412, %v2796
        %v2798 = vpop.f32.mrf.mxu0
        %2799 = vmatprep.mubr.f32.mxu0 0.0
        %2800 = vmatmul.mubr.f32.gmra.mxu0 %v1168
        %v2801 = vpop.f32.mrf.mxu0
        %v2802 = vadd.f32 %v2417, %v2801
        %v2803 = vpop.f32.mrf.mxu0
        %2804 = vmatprep.mubr.f32.mxu0 0.0
        %2805 = vmatmul.mubr.f32.gmra.mxu0 %v1171
        %v2806 = vpop.f32.mrf.mxu0
        %v2807 = vadd.f32 %v2422, %v2806
        %v2808 = vpop.f32.mrf.mxu0
        %2809 = vmatprep.mubr.f32.mxu0 0.0
        %2810 = vmatmul.mubr.f32.gmra.mxu0 %v1174
        %v2811 = vpop.f32.mrf.mxu0
        %v2812 = vadd.f32 %v2427, %v2811
        %v2813 = vpop.f32.mrf.mxu0
        %2814 = vmatprep.mubr.f32.mxu0 0.0
        %2815 = vmatmul.mubr.f32.gmra.mxu0 %v1177
        %v2816 = vpop.f32.mrf.mxu0
        %v2817 = vadd.f32 %v2432, %v2816
        %v2818 = vpop.f32.mrf.mxu0
        %2819 = vmatprep.mubr.f32.mxu0 0.0
        %2820 = vmatmul.mubr.f32.gmra.mxu0 %v1180
        %v2821 = vpop.f32.mrf.mxu0
        %v2822 = vadd.f32 %v2437, %v2821
        %v2823 = vpop.f32.mrf.mxu0
        %2824 = vmatprep.mubr.f32.mxu0 0.0
        %2825 = vmatmul.mubr.f32.gmra.mxu0 %v1183
        %v2826 = vpop.f32.mrf.mxu0
        %v2827 = vadd.f32 %v2442, %v2826
        %v2828 = vpop.f32.mrf.mxu0
        %2829 = vmatprep.mubr.f32.mxu0 0.0
        %2830 = vmatmul.mubr.f32.gmra.mxu0 %v1186
        %v2831 = vpop.f32.mrf.mxu0
        %v2832 = vadd.f32 %v2447, %v2831
        %v2833 = vpop.f32.mrf.mxu0
        %2834 = vmatprep.mubr.f32.mxu0 0.0
        %2835 = vmatmul.mubr.f32.gmra.mxu0 %v1189
        %v2836 = vpop.f32.mrf.mxu0
        %v2837 = vadd.f32 %v2452, %v2836
        %v2838 = vpop.f32.mrf.mxu0
        %2839 = vmatprep.mubr.f32.mxu0 0.0
        %2840 = vmatmul.mubr.f32.gmra.mxu0 %v1192
        %v2841 = vpop.f32.mrf.mxu0
        %v2842 = vadd.f32 %v2457, %v2841
        %v2843 = vpop.f32.mrf.mxu0
        %2844 = vmatprep.mubr.f32.mxu0 0.0
        %2845 = vmatmul.mubr.f32.gmra.mxu0 %v1195
        %v2846 = vpop.f32.mrf.mxu0
        %v2847 = vadd.f32 %v2462, %v2846
        %v2848 = vpop.f32.mrf.mxu0
        %2849 = vmatprep.mubr.f32.mxu0 0.0
        %2850 = vmatmul.mubr.f32.gmra.mxu0 %v1198
        %v2851 = vpop.f32.mrf.mxu0
        %v2852 = vadd.f32 %v2467, %v2851
        %v2853 = vpop.f32.mrf.mxu0
        %2854 = vmatprep.mubr.f32.mxu0 0.0
        %2855 = vmatmul.mubr.f32.gmra.mxu0 %v1201
        %v2856 = vpop.f32.mrf.mxu0
        %v2857 = vadd.f32 %v2472, %v2856
        %v2858 = vpop.f32.mrf.mxu0
        %2859 = vmatprep.mubr.f32.mxu0 0.0
        %2860 = vmatmul.mubr.f32.gmra.mxu0 %v1204
        %v2861 = vpop.f32.mrf.mxu0
        %v2862 = vadd.f32 %v2477, %v2861
        %v2863 = vpop.f32.mrf.mxu0
        %2864 = vmatprep.mubr.f32.mxu0 0.0
        %2865 = vmatmul.mubr.f32.gmra.mxu0 %v1207
        %v2866 = vpop.f32.mrf.mxu0
        %v2867 = vadd.f32 %v2482, %v2866
        %v2868 = vpop.f32.mrf.mxu0
        %2869 = vmatprep.mubr.f32.mxu0 0.0
        %2870 = vmatmul.mubr.f32.gmra.mxu0 %v1210
        %v2871 = vpop.f32.mrf.mxu0
        %v2872 = vadd.f32 %v2487, %v2871
        %v2873 = vpop.f32.mrf.mxu0
        %2874 = vmatprep.mubr.f32.mxu0 0.0
        %2875 = vmatmul.mubr.f32.gmra.mxu0 %v1213
        %v2876 = vpop.f32.mrf.mxu0
        %v2877 = vadd.f32 %v2492, %v2876
        %v2878 = vpop.f32.mrf.mxu0
        %2879 = vmatprep.mubr.f32.mxu0 0.0
        %2880 = vmatmul.mubr.f32.gmra.mxu0 %v1216
        %v2881 = vpop.f32.mrf.mxu0
        %v2882 = vadd.f32 %v2497, %v2881
        %v2883 = vpop.f32.mrf.mxu0
        %2884 = vmatprep.mubr.f32.mxu0 0.0
        %2885 = vmatmul.mubr.f32.gmra.mxu0 %v1219
        %v2886 = vpop.f32.mrf.mxu0
        %v2887 = vadd.f32 %v2502, %v2886
        %v2888 = vpop.f32.mrf.mxu0
        %2889 = vmatprep.mubr.f32.mxu0 0.0
        %2890 = vmatmul.mubr.f32.gmra.mxu0 %v1222
        %v2891 = vpop.f32.mrf.mxu0
        %v2892 = vadd.f32 %v2507, %v2891
        %v2893 = vpop.f32.mrf.mxu0
        %2894 = vmatprep.mubr.f32.mxu0 0.0
        %2895 = vmatmul.mubr.f32.gmra.mxu0 %v1225
        %v2896 = vpop.f32.mrf.mxu0
        %v2897 = vadd.f32 %v2512, %v2896
        %v2898 = vpop.f32.mrf.mxu0
        %2899 = vmatprep.mubr.f32.mxu0 0.0
        %2900 = vmatmul.mubr.f32.gmra.mxu0 %v1228
        %v2901 = vpop.f32.mrf.mxu0
        %v2902 = vadd.f32 %v2517, %v2901
        %v2903 = vpop.f32.mrf.mxu0
        %2904 = vmatprep.mubr.f32.mxu0 0.0
        %2905 = vmatmul.mubr.f32.gmra.mxu0 %v1231
        %v2906 = vpop.f32.mrf.mxu0
        %v2907 = vadd.f32 %v2522, %v2906
        %v2908 = vpop.f32.mrf.mxu0
        %2909 = vmatprep.mubr.f32.mxu0 0.0
        %2910 = vmatmul.mubr.f32.gmra.mxu0 %v1234
        %v2911 = vpop.f32.mrf.mxu0
        %v2912 = vadd.f32 %v2527, %v2911
        %v2913 = vpop.f32.mrf.mxu0
        %2914 = vmatprep.mubr.f32.mxu0 0.0
        %2915 = vmatmul.mubr.f32.gmra.mxu0 %v1237
        %v2916 = vpop.f32.mrf.mxu0
        %v2917 = vadd.f32 %v2532, %v2916
        %v2918 = vpop.f32.mrf.mxu0
        %2919 = vmatprep.mubr.f32.mxu0 0.0
        %2920 = vmatmul.mubr.f32.gmra.mxu0 %v1240
        %v2921 = vpop.f32.mrf.mxu0
        %v2922 = vadd.f32 %v2537, %v2921
        %v2923 = vpop.f32.mrf.mxu0
        %2924 = vmatprep.mubr.f32.mxu0 0.0
        %2925 = vmatmul.mubr.f32.gmra.mxu0 %v1243
        %v2926 = vpop.f32.mrf.mxu0
        %v2927 = vadd.f32 %v2542, %v2926
        %v2928 = vpop.f32.mrf.mxu0
        %2929 = vmatprep.mubr.f32.mxu0 0.0
        %2930 = vmatmul.mubr.f32.gmra.mxu0 %v1246
        %v2931 = vpop.f32.mrf.mxu0
        %v2932 = vadd.f32 %v2547, %v2931
        %v2933 = vpop.f32.mrf.mxu0
        %2934 = vmatprep.mubr.f32.mxu0 0.0
        %2935 = vmatmul.mubr.f32.gmra.mxu0 %v1249
        %v2936 = vpop.f32.mrf.mxu0
        %v2937 = vadd.f32 %v2552, %v2936
        %v2938 = vpop.f32.mrf.mxu0
        %2939 = vmatprep.mubr.f32.mxu0 0.0
        %2940 = vmatmul.mubr.f32.gmra.mxu0 %v1252
        %v2941 = vpop.f32.mrf.mxu0
        %v2942 = vadd.f32 %v2557, %v2941
        %v2943 = vpop.f32.mrf.mxu0
        %2944 = vmatprep.mubr.f32.mxu0 0.0
        %2945 = vmatmul.mubr.f32.gmra.mxu0 %v1255
        %v2946 = vpop.f32.mrf.mxu0
        %v2947 = vadd.f32 %v2562, %v2946
        %v2948 = vpop.f32.mrf.mxu0
        %2949 = vmatprep.mubr.f32.mxu0 0.0
        %2950 = vmatmul.mubr.f32.gmra.mxu0 %v1258
        %v2951 = vpop.f32.mrf.mxu0
        %v2952 = vadd.f32 %v2567, %v2951
        %v2953 = vpop.f32.mrf.mxu0
        %2954 = vmatprep.mubr.f32.mxu0 0.0
        %2955 = vmatmul.mubr.f32.gmra.mxu0 %v1261
        %v2956 = vpop.f32.mrf.mxu0
        %v2957 = vadd.f32 %v2572, %v2956
        %v2958 = vpop.f32.mrf.mxu0
        %2959 = vmatprep.mubr.f32.mxu0 0.0
        %2960 = vmatmul.mubr.f32.gmra.mxu0 %v1264
        %v2961 = vpop.f32.mrf.mxu0
        %v2962 = vadd.f32 %v2577, %v2961
        %v2963 = vpop.f32.mrf.mxu0
        %2964 = vdwg.mxu0
        %v2965 = vmul.f32 %v1265, %v2647
        %v2966 = vmul.f32 %v1266, %v2652
        %v2967 = vmul.f32 %v1267, %v2657
        %v2968 = vmul.f32 %v1268, %v2662
        %v2969 = vmul.f32 %v1269, %v2667
        %v2970 = vmul.f32 %v1270, %v2672
        %v2971 = vmul.f32 %v1271, %v2677
        %v2972 = vmul.f32 %v1272, %v2682
        %v2973 = vmul.f32 %v1273, %v2687
        %v2974 = vmul.f32 %v1274, %v2692
        %v2975 = vmul.f32 %v1275, %v2697
        %v2976 = vmul.f32 %v1276, %v2702
        %v2977 = vmul.f32 %v1277, %v2707
        %v2978 = vmul.f32 %v1278, %v2712
        %v2979 = vmul.f32 %v1279, %v2717
        %v2980 = vmul.f32 %v1280, %v2722
        %v2981 = vmul.f32 %v1281, %v2727
        %v2982 = vmul.f32 %v1282, %v2732
        %v2983 = vmul.f32 %v1283, %v2737
        %v2984 = vmul.f32 %v1284, %v2742
        %v2985 = vmul.f32 %v1285, %v2747
        %v2986 = vmul.f32 %v1286, %v2752
        %v2987 = vmul.f32 %v1287, %v2757
        %v2988 = vmul.f32 %v1288, %v2762
        %v2989 = vmul.f32 %v1289, %v2767
        %v2990 = vmul.f32 %v1290, %v2772
        %v2991 = vmul.f32 %v1291, %v2777
        %v2992 = vmul.f32 %v1292, %v2782
        %v2993 = vmul.f32 %v1293, %v2787
        %v2994 = vmul.f32 %v1294, %v2792
        %v2995 = vmul.f32 %v1295, %v2797
        %v2996 = vmul.f32 %v1296, %v2802
        %v2997 = vmul.f32 %v1297, %v2807
        %v2998 = vmul.f32 %v1298, %v2812
        %v2999 = vmul.f32 %v1299, %v2817
        %v3000 = vmul.f32 %v1300, %v2822
        %v3001 = vmul.f32 %v1301, %v2827
        %v3002 = vmul.f32 %v1302, %v2832
        %v3003 = vmul.f32 %v1303, %v2837
        %v3004 = vmul.f32 %v1304, %v2842
        %v3005 = vmul.f32 %v1305, %v2847
        %v3006 = vmul.f32 %v1306, %v2852
        %v3007 = vmul.f32 %v1307, %v2857
        %v3008 = vmul.f32 %v1308, %v2862
        %v3009 = vmul.f32 %v1309, %v2867
        %v3010 = vmul.f32 %v1310, %v2872
        %v3011 = vmul.f32 %v1311, %v2877
        %v3012 = vmul.f32 %v1312, %v2882
        %v3013 = vmul.f32 %v1313, %v2887
        %v3014 = vmul.f32 %v1314, %v2892
        %v3015 = vmul.f32 %v1315, %v2897
        %v3016 = vmul.f32 %v1316, %v2902
        %v3017 = vmul.f32 %v1317, %v2907
        %v3018 = vmul.f32 %v1318, %v2912
        %v3019 = vmul.f32 %v1319, %v2917
        %v3020 = vmul.f32 %v1320, %v2922
        %v3021 = vmul.f32 %v1321, %v2927
        %v3022 = vmul.f32 %v1322, %v2932
        %v3023 = vmul.f32 %v1323, %v2937
        %v3024 = vmul.f32 %v1324, %v2942
        %v3025 = vmul.f32 %v1325, %v2947
        %v3026 = vmul.f32 %v1326, %v2952
        %v3027 = vmul.f32 %v1327, %v2957
        %v3028 = vmul.f32 %v1328, %v2962
        %v3029 = vld [vmem:[#allocation14] sm:$0xff]
        %v3030 = vld [vmem:[#allocation14 + $0x8] sm:$0xff]
        %v3031 = vld [vmem:[#allocation14 + $0x10] sm:$0xff]
        %v3032 = vld [vmem:[#allocation14 + $0x18] sm:$0xff]
        %v3033 = vld [vmem:[#allocation14 + $0x20] sm:$0xff]
        %v3034 = vld [vmem:[#allocation14 + $0x28] sm:$0xff]
        %v3035 = vld [vmem:[#allocation14 + $0x30] sm:$0xff]
        %v3036 = vld [vmem:[#allocation14 + $0x38] sm:$0xff]
        %v3037 = vld [vmem:[#allocation14 + $0x40] sm:$0xff]
        %v3038 = vld [vmem:[#allocation14 + $0x48] sm:$0xff]
        %v3039 = vld [vmem:[#allocation14 + $0x50] sm:$0xff]
        %v3040 = vld [vmem:[#allocation14 + $0x58] sm:$0xff]
        %v3041 = vld [vmem:[#allocation14 + $0x60] sm:$0xff]
        %v3042 = vld [vmem:[#allocation14 + $0x68] sm:$0xff]
        %v3043 = vld [vmem:[#allocation14 + $0x70] sm:$0xff]
        %v3044 = vld [vmem:[#allocation14 + $0x78] sm:$0xff]
        %3045 = vmatprep.subr.mxu0 0.0
        %3046 = vmatpush1.msra.mxu0 %v3044
        %3047 = vmatprep.subr.mxu0 0.0
        %3048 = vmatpush1.msra.mxu0 %v3043
        %3049 = vmatprep.subr.mxu0 0.0
        %3050 = vmatpush1.msra.mxu0 %v3042
        %3051 = vmatprep.subr.mxu0 0.0
        %3052 = vmatpush1.msra.mxu0 %v3041
        %3053 = vmatprep.subr.mxu0 0.0
        %3054 = vmatpush1.msra.mxu0 %v3040
        %3055 = vmatprep.subr.mxu0 0.0
        %3056 = vmatpush1.msra.mxu0 %v3039
        %3057 = vmatprep.subr.mxu0 0.0
        %3058 = vmatpush1.msra.mxu0 %v3038
        %3059 = vmatprep.subr.mxu0 0.0
        %3060 = vmatpush1.msra.mxu0 %v3037
        %3061 = vmatprep.subr.mxu0 0.0
        %3062 = vmatpush1.msra.mxu0 %v3036
        %3063 = vmatprep.subr.mxu0 0.0
        %3064 = vmatpush1.msra.mxu0 %v3035
        %3065 = vmatprep.subr.mxu0 0.0
        %3066 = vmatpush1.msra.mxu0 %v3034
        %3067 = vmatprep.subr.mxu0 0.0
        %3068 = vmatpush1.msra.mxu0 %v3033
        %3069 = vmatprep.subr.mxu0 0.0
        %3070 = vmatpush1.msra.mxu0 %v3032
        %3071 = vmatprep.subr.mxu0 0.0
        %3072 = vmatpush1.msra.mxu0 %v3031
        %3073 = vmatprep.subr.mxu0 0.0
        %3074 = vmatpush1.msra.mxu0 %v3030
        %3075 = vmatprep.subr.mxu0 0.0
        %3076 = vmatpush1.msra.mxu0 %v3029
        %3077 = vmatprep.subr.mxu0 0.0
        %3078 = vmatpush2.msra.mxu0 0.0
        %3079 = vmatprep.subr.mxu0 0.0
        %3080 = vmatpush2.msra.mxu0 0.0
        %3081 = vmatprep.subr.mxu0 0.0
        %3082 = vmatpush2.msra.mxu0 0.0
        %3083 = vmatprep.subr.mxu0 0.0
        %3084 = vmatpush2.msra.mxu0 0.0
        %3085 = vmatprep.subr.mxu0 0.0
        %3086 = vmatpush2.msra.mxu0 0.0
        %3087 = vmatprep.subr.mxu0 0.0
        %3088 = vmatpush2.msra.mxu0 0.0
        %3089 = vmatprep.subr.mxu0 0.0
        %3090 = vmatpush2.msra.mxu0 0.0
        %3091 = vmatprep.subr.mxu0 0.0
        %3092 = vmatpush2.msra.mxu0 0.0
        %3093 = vmatprep.subr.mxu0 0.0
        %3094 = vmatpush2.msra.mxu0 0.0
        %3095 = vmatprep.subr.mxu0 0.0
        %3096 = vmatpush2.msra.mxu0 0.0
        %3097 = vmatprep.subr.mxu0 0.0
        %3098 = vmatpush2.msra.mxu0 0.0
        %3099 = vmatprep.subr.mxu0 0.0
        %3100 = vmatpush2.msra.mxu0 0.0
        %3101 = vmatprep.subr.mxu0 0.0
        %3102 = vmatpush2.msra.mxu0 0.0
        %3103 = vmatprep.subr.mxu0 0.0
        %3104 = vmatpush2.msra.mxu0 0.0
        %3105 = vmatprep.subr.mxu0 0.0
        %3106 = vmatpush2.msra.mxu0 0.0
        %3107 = vmatprep.subr.mxu0 0.0
        %3108 = vmatpush2.msra.mxu0 0.0
        %3109 = vmatprep.mubr.f32.mxu0 0.0
        %3110 = vmatmul.mubr.f32.gmra.mxu0 %v2965
        %v3111 = vpop.f32.mrf.mxu0
        %v3112 = vadd.f32 0.0, %v3111
        %v3113 = vpop.f32.mrf.mxu0
        %3114 = vmatprep.mubr.f32.mxu0 0.0
        %3115 = vmatmul.mubr.f32.gmra.mxu0 %v2966
        %v3116 = vpop.f32.mrf.mxu0
        %v3117 = vadd.f32 0.0, %v3116
        %v3118 = vpop.f32.mrf.mxu0
        %3119 = vmatprep.mubr.f32.mxu0 0.0
        %3120 = vmatmul.mubr.f32.gmra.mxu0 %v2967
        %v3121 = vpop.f32.mrf.mxu0
        %v3122 = vadd.f32 0.0, %v3121
        %v3123 = vpop.f32.mrf.mxu0
        %3124 = vmatprep.mubr.f32.mxu0 0.0
        %3125 = vmatmul.mubr.f32.gmra.mxu0 %v2968
        %v3126 = vpop.f32.mrf.mxu0
        %v3127 = vadd.f32 0.0, %v3126
        %v3128 = vpop.f32.mrf.mxu0
        %3129 = vmatprep.mubr.f32.mxu0 0.0
        %3130 = vmatmul.mubr.f32.gmra.mxu0 %v2969
        %v3131 = vpop.f32.mrf.mxu0
        %v3132 = vadd.f32 0.0, %v3131
        %v3133 = vpop.f32.mrf.mxu0
        %3134 = vmatprep.mubr.f32.mxu0 0.0
        %3135 = vmatmul.mubr.f32.gmra.mxu0 %v2970
        %v3136 = vpop.f32.mrf.mxu0
        %v3137 = vadd.f32 0.0, %v3136
        %v3138 = vpop.f32.mrf.mxu0
        %3139 = vmatprep.mubr.f32.mxu0 0.0
        %3140 = vmatmul.mubr.f32.gmra.mxu0 %v2971
        %v3141 = vpop.f32.mrf.mxu0
        %v3142 = vadd.f32 0.0, %v3141
        %v3143 = vpop.f32.mrf.mxu0
        %3144 = vmatprep.mubr.f32.mxu0 0.0
        %3145 = vmatmul.mubr.f32.gmra.mxu0 %v2972
        %v3146 = vpop.f32.mrf.mxu0
        %v3147 = vadd.f32 0.0, %v3146
        %v3148 = vpop.f32.mrf.mxu0
        %3149 = vmatprep.mubr.f32.mxu0 0.0
        %3150 = vmatmul.mubr.f32.gmra.mxu0 %v2973
        %v3151 = vpop.f32.mrf.mxu0
        %v3152 = vadd.f32 0.0, %v3151
        %v3153 = vpop.f32.mrf.mxu0
        %3154 = vmatprep.mubr.f32.mxu0 0.0
        %3155 = vmatmul.mubr.f32.gmra.mxu0 %v2974
        %v3156 = vpop.f32.mrf.mxu0
        %v3157 = vadd.f32 0.0, %v3156
        %v3158 = vpop.f32.mrf.mxu0
        %3159 = vmatprep.mubr.f32.mxu0 0.0
        %3160 = vmatmul.mubr.f32.gmra.mxu0 %v2975
        %v3161 = vpop.f32.mrf.mxu0
        %v3162 = vadd.f32 0.0, %v3161
        %v3163 = vpop.f32.mrf.mxu0
        %3164 = vmatprep.mubr.f32.mxu0 0.0
        %3165 = vmatmul.mubr.f32.gmra.mxu0 %v2976
        %v3166 = vpop.f32.mrf.mxu0
        %v3167 = vadd.f32 0.0, %v3166
        %v3168 = vpop.f32.mrf.mxu0
        %3169 = vmatprep.mubr.f32.mxu0 0.0
        %3170 = vmatmul.mubr.f32.gmra.mxu0 %v2977
        %v3171 = vpop.f32.mrf.mxu0
        %v3172 = vadd.f32 0.0, %v3171
        %v3173 = vpop.f32.mrf.mxu0
        %3174 = vmatprep.mubr.f32.mxu0 0.0
        %3175 = vmatmul.mubr.f32.gmra.mxu0 %v2978
        %v3176 = vpop.f32.mrf.mxu0
        %v3177 = vadd.f32 0.0, %v3176
        %v3178 = vpop.f32.mrf.mxu0
        %3179 = vmatprep.mubr.f32.mxu0 0.0
        %3180 = vmatmul.mubr.f32.gmra.mxu0 %v2979
        %v3181 = vpop.f32.mrf.mxu0
        %v3182 = vadd.f32 0.0, %v3181
        %v3183 = vpop.f32.mrf.mxu0
        %3184 = vmatprep.mubr.f32.mxu0 0.0
        %3185 = vmatmul.mubr.f32.gmra.mxu0 %v2980
        %v3186 = vpop.f32.mrf.mxu0
        %v3187 = vadd.f32 0.0, %v3186
        %v3188 = vpop.f32.mrf.mxu0
        %3189 = vmatprep.mubr.f32.mxu0 0.0
        %3190 = vmatmul.mubr.f32.gmra.mxu0 %v2981
        %v3191 = vpop.f32.mrf.mxu0
        %v3192 = vadd.f32 0.0, %v3191
        %v3193 = vpop.f32.mrf.mxu0
        %3194 = vmatprep.mubr.f32.mxu0 0.0
        %3195 = vmatmul.mubr.f32.gmra.mxu0 %v2982
        %v3196 = vpop.f32.mrf.mxu0
        %v3197 = vadd.f32 0.0, %v3196
        %v3198 = vpop.f32.mrf.mxu0
        %3199 = vmatprep.mubr.f32.mxu0 0.0
        %3200 = vmatmul.mubr.f32.gmra.mxu0 %v2983
        %v3201 = vpop.f32.mrf.mxu0
        %v3202 = vadd.f32 0.0, %v3201
        %v3203 = vpop.f32.mrf.mxu0
        %3204 = vmatprep.mubr.f32.mxu0 0.0
        %3205 = vmatmul.mubr.f32.gmra.mxu0 %v2984
        %v3206 = vpop.f32.mrf.mxu0
        %v3207 = vadd.f32 0.0, %v3206
        %v3208 = vpop.f32.mrf.mxu0
        %3209 = vmatprep.mubr.f32.mxu0 0.0
        %3210 = vmatmul.mubr.f32.gmra.mxu0 %v2985
        %v3211 = vpop.f32.mrf.mxu0
        %v3212 = vadd.f32 0.0, %v3211
        %v3213 = vpop.f32.mrf.mxu0
        %3214 = vmatprep.mubr.f32.mxu0 0.0
        %3215 = vmatmul.mubr.f32.gmra.mxu0 %v2986
        %v3216 = vpop.f32.mrf.mxu0
        %v3217 = vadd.f32 0.0, %v3216
        %v3218 = vpop.f32.mrf.mxu0
        %3219 = vmatprep.mubr.f32.mxu0 0.0
        %3220 = vmatmul.mubr.f32.gmra.mxu0 %v2987
        %v3221 = vpop.f32.mrf.mxu0
        %v3222 = vadd.f32 0.0, %v3221
        %v3223 = vpop.f32.mrf.mxu0
        %3224 = vmatprep.mubr.f32.mxu0 0.0
        %3225 = vmatmul.mubr.f32.gmra.mxu0 %v2988
        %v3226 = vpop.f32.mrf.mxu0
        %v3227 = vadd.f32 0.0, %v3226
        %v3228 = vpop.f32.mrf.mxu0
        %3229 = vmatprep.mubr.f32.mxu0 0.0
        %3230 = vmatmul.mubr.f32.gmra.mxu0 %v2989
        %v3231 = vpop.f32.mrf.mxu0
        %v3232 = vadd.f32 0.0, %v3231
        %v3233 = vpop.f32.mrf.mxu0
        %3234 = vmatprep.mubr.f32.mxu0 0.0
        %3235 = vmatmul.mubr.f32.gmra.mxu0 %v2990
        %v3236 = vpop.f32.mrf.mxu0
        %v3237 = vadd.f32 0.0, %v3236
        %v3238 = vpop.f32.mrf.mxu0
        %3239 = vmatprep.mubr.f32.mxu0 0.0
        %3240 = vmatmul.mubr.f32.gmra.mxu0 %v2991
        %v3241 = vpop.f32.mrf.mxu0
        %v3242 = vadd.f32 0.0, %v3241
        %v3243 = vpop.f32.mrf.mxu0
        %3244 = vmatprep.mubr.f32.mxu0 0.0
        %3245 = vmatmul.mubr.f32.gmra.mxu0 %v2992
        %v3246 = vpop.f32.mrf.mxu0
        %v3247 = vadd.f32 0.0, %v3246
        %v3248 = vpop.f32.mrf.mxu0
        %3249 = vmatprep.mubr.f32.mxu0 0.0
        %3250 = vmatmul.mubr.f32.gmra.mxu0 %v2993
        %v3251 = vpop.f32.mrf.mxu0
        %v3252 = vadd.f32 0.0, %v3251
        %v3253 = vpop.f32.mrf.mxu0
        %3254 = vmatprep.mubr.f32.mxu0 0.0
        %3255 = vmatmul.mubr.f32.gmra.mxu0 %v2994
        %v3256 = vpop.f32.mrf.mxu0
        %v3257 = vadd.f32 0.0, %v3256
        %v3258 = vpop.f32.mrf.mxu0
        %3259 = vmatprep.mubr.f32.mxu0 0.0
        %3260 = vmatmul.mubr.f32.gmra.mxu0 %v2995
        %v3261 = vpop.f32.mrf.mxu0
        %v3262 = vadd.f32 0.0, %v3261
        %v3263 = vpop.f32.mrf.mxu0
        %3264 = vmatprep.mubr.f32.mxu0 0.0
        %3265 = vmatmul.mubr.f32.gmra.mxu0 %v2996
        %v3266 = vpop.f32.mrf.mxu0
        %v3267 = vadd.f32 0.0, %v3266
        %v3268 = vpop.f32.mrf.mxu0
        %3269 = vmatprep.mubr.f32.mxu0 0.0
        %3270 = vmatmul.mubr.f32.gmra.mxu0 %v2997
        %v3271 = vpop.f32.mrf.mxu0
        %v3272 = vadd.f32 0.0, %v3271
        %v3273 = vpop.f32.mrf.mxu0
        %3274 = vmatprep.mubr.f32.mxu0 0.0
        %3275 = vmatmul.mubr.f32.gmra.mxu0 %v2998
        %v3276 = vpop.f32.mrf.mxu0
        %v3277 = vadd.f32 0.0, %v3276
        %v3278 = vpop.f32.mrf.mxu0
        %3279 = vmatprep.mubr.f32.mxu0 0.0
        %3280 = vmatmul.mubr.f32.gmra.mxu0 %v2999
        %v3281 = vpop.f32.mrf.mxu0
        %v3282 = vadd.f32 0.0, %v3281
        %v3283 = vpop.f32.mrf.mxu0
        %3284 = vmatprep.mubr.f32.mxu0 0.0
        %3285 = vmatmul.mubr.f32.gmra.mxu0 %v3000
        %v3286 = vpop.f32.mrf.mxu0
        %v3287 = vadd.f32 0.0, %v3286
        %v3288 = vpop.f32.mrf.mxu0
        %3289 = vmatprep.mubr.f32.mxu0 0.0
        %3290 = vmatmul.mubr.f32.gmra.mxu0 %v3001
        %v3291 = vpop.f32.mrf.mxu0
        %v3292 = vadd.f32 0.0, %v3291
        %v3293 = vpop.f32.mrf.mxu0
        %3294 = vmatprep.mubr.f32.mxu0 0.0
        %3295 = vmatmul.mubr.f32.gmra.mxu0 %v3002
        %v3296 = vpop.f32.mrf.mxu0
        %v3297 = vadd.f32 0.0, %v3296
        %v3298 = vpop.f32.mrf.mxu0
        %3299 = vmatprep.mubr.f32.mxu0 0.0
        %3300 = vmatmul.mubr.f32.gmra.mxu0 %v3003
        %v3301 = vpop.f32.mrf.mxu0
        %v3302 = vadd.f32 0.0, %v3301
        %v3303 = vpop.f32.mrf.mxu0
        %3304 = vmatprep.mubr.f32.mxu0 0.0
        %3305 = vmatmul.mubr.f32.gmra.mxu0 %v3004
        %v3306 = vpop.f32.mrf.mxu0
        %v3307 = vadd.f32 0.0, %v3306
        %v3308 = vpop.f32.mrf.mxu0
        %3309 = vmatprep.mubr.f32.mxu0 0.0
        %3310 = vmatmul.mubr.f32.gmra.mxu0 %v3005
        %v3311 = vpop.f32.mrf.mxu0
        %v3312 = vadd.f32 0.0, %v3311
        %v3313 = vpop.f32.mrf.mxu0
        %3314 = vmatprep.mubr.f32.mxu0 0.0
        %3315 = vmatmul.mubr.f32.gmra.mxu0 %v3006
        %v3316 = vpop.f32.mrf.mxu0
        %v3317 = vadd.f32 0.0, %v3316
        %v3318 = vpop.f32.mrf.mxu0
        %3319 = vmatprep.mubr.f32.mxu0 0.0
        %3320 = vmatmul.mubr.f32.gmra.mxu0 %v3007
        %v3321 = vpop.f32.mrf.mxu0
        %v3322 = vadd.f32 0.0, %v3321
        %v3323 = vpop.f32.mrf.mxu0
        %3324 = vmatprep.mubr.f32.mxu0 0.0
        %3325 = vmatmul.mubr.f32.gmra.mxu0 %v3008
        %v3326 = vpop.f32.mrf.mxu0
        %v3327 = vadd.f32 0.0, %v3326
        %v3328 = vpop.f32.mrf.mxu0
        %3329 = vmatprep.mubr.f32.mxu0 0.0
        %3330 = vmatmul.mubr.f32.gmra.mxu0 %v3009
        %v3331 = vpop.f32.mrf.mxu0
        %v3332 = vadd.f32 0.0, %v3331
        %v3333 = vpop.f32.mrf.mxu0
        %3334 = vmatprep.mubr.f32.mxu0 0.0
        %3335 = vmatmul.mubr.f32.gmra.mxu0 %v3010
        %v3336 = vpop.f32.mrf.mxu0
        %v3337 = vadd.f32 0.0, %v3336
        %v3338 = vpop.f32.mrf.mxu0
        %3339 = vmatprep.mubr.f32.mxu0 0.0
        %3340 = vmatmul.mubr.f32.gmra.mxu0 %v3011
        %v3341 = vpop.f32.mrf.mxu0
        %v3342 = vadd.f32 0.0, %v3341
        %v3343 = vpop.f32.mrf.mxu0
        %3344 = vmatprep.mubr.f32.mxu0 0.0
        %3345 = vmatmul.mubr.f32.gmra.mxu0 %v3012
        %v3346 = vpop.f32.mrf.mxu0
        %v3347 = vadd.f32 0.0, %v3346
        %v3348 = vpop.f32.mrf.mxu0
        %3349 = vmatprep.mubr.f32.mxu0 0.0
        %3350 = vmatmul.mubr.f32.gmra.mxu0 %v3013
        %v3351 = vpop.f32.mrf.mxu0
        %v3352 = vadd.f32 0.0, %v3351
        %v3353 = vpop.f32.mrf.mxu0
        %3354 = vmatprep.mubr.f32.mxu0 0.0
        %3355 = vmatmul.mubr.f32.gmra.mxu0 %v3014
        %v3356 = vpop.f32.mrf.mxu0
        %v3357 = vadd.f32 0.0, %v3356
        %v3358 = vpop.f32.mrf.mxu0
        %3359 = vmatprep.mubr.f32.mxu0 0.0
        %3360 = vmatmul.mubr.f32.gmra.mxu0 %v3015
        %v3361 = vpop.f32.mrf.mxu0
        %v3362 = vadd.f32 0.0, %v3361
        %v3363 = vpop.f32.mrf.mxu0
        %3364 = vmatprep.mubr.f32.mxu0 0.0
        %3365 = vmatmul.mubr.f32.gmra.mxu0 %v3016
        %v3366 = vpop.f32.mrf.mxu0
        %v3367 = vadd.f32 0.0, %v3366
        %v3368 = vpop.f32.mrf.mxu0
        %3369 = vmatprep.mubr.f32.mxu0 0.0
        %3370 = vmatmul.mubr.f32.gmra.mxu0 %v3017
        %v3371 = vpop.f32.mrf.mxu0
        %v3372 = vadd.f32 0.0, %v3371
        %v3373 = vpop.f32.mrf.mxu0
        %3374 = vmatprep.mubr.f32.mxu0 0.0
        %3375 = vmatmul.mubr.f32.gmra.mxu0 %v3018
        %v3376 = vpop.f32.mrf.mxu0
        %v3377 = vadd.f32 0.0, %v3376
        %v3378 = vpop.f32.mrf.mxu0
        %3379 = vmatprep.mubr.f32.mxu0 0.0
        %3380 = vmatmul.mubr.f32.gmra.mxu0 %v3019
        %v3381 = vpop.f32.mrf.mxu0
        %v3382 = vadd.f32 0.0, %v3381
        %v3383 = vpop.f32.mrf.mxu0
        %3384 = vmatprep.mubr.f32.mxu0 0.0
        %3385 = vmatmul.mubr.f32.gmra.mxu0 %v3020
        %v3386 = vpop.f32.mrf.mxu0
        %v3387 = vadd.f32 0.0, %v3386
        %v3388 = vpop.f32.mrf.mxu0
        %3389 = vmatprep.mubr.f32.mxu0 0.0
        %3390 = vmatmul.mubr.f32.gmra.mxu0 %v3021
        %v3391 = vpop.f32.mrf.mxu0
        %v3392 = vadd.f32 0.0, %v3391
        %v3393 = vpop.f32.mrf.mxu0
        %3394 = vmatprep.mubr.f32.mxu0 0.0
        %3395 = vmatmul.mubr.f32.gmra.mxu0 %v3022
        %v3396 = vpop.f32.mrf.mxu0
        %v3397 = vadd.f32 0.0, %v3396
        %v3398 = vpop.f32.mrf.mxu0
        %3399 = vmatprep.mubr.f32.mxu0 0.0
        %3400 = vmatmul.mubr.f32.gmra.mxu0 %v3023
        %v3401 = vpop.f32.mrf.mxu0
        %v3402 = vadd.f32 0.0, %v3401
        %v3403 = vpop.f32.mrf.mxu0
        %3404 = vmatprep.mubr.f32.mxu0 0.0
        %3405 = vmatmul.mubr.f32.gmra.mxu0 %v3024
        %v3406 = vpop.f32.mrf.mxu0
        %v3407 = vadd.f32 0.0, %v3406
        %v3408 = vpop.f32.mrf.mxu0
        %3409 = vmatprep.mubr.f32.mxu0 0.0
        %3410 = vmatmul.mubr.f32.gmra.mxu0 %v3025
        %v3411 = vpop.f32.mrf.mxu0
        %v3412 = vadd.f32 0.0, %v3411
        %v3413 = vpop.f32.mrf.mxu0
        %3414 = vmatprep.mubr.f32.mxu0 0.0
        %3415 = vmatmul.mubr.f32.gmra.mxu0 %v3026
        %v3416 = vpop.f32.mrf.mxu0
        %v3417 = vadd.f32 0.0, %v3416
        %v3418 = vpop.f32.mrf.mxu0
        %3419 = vmatprep.mubr.f32.mxu0 0.0
        %3420 = vmatmul.mubr.f32.gmra.mxu0 %v3027
        %v3421 = vpop.f32.mrf.mxu0
        %v3422 = vadd.f32 0.0, %v3421
        %v3423 = vpop.f32.mrf.mxu0
        %3424 = vmatprep.mubr.f32.mxu0 0.0
        %3425 = vmatmul.mubr.f32.gmra.mxu0 %v3028
        %v3426 = vpop.f32.mrf.mxu0
        %v3427 = vadd.f32 0.0, %v3426
        %v3428 = vpop.f32.mrf.mxu0
        %3429 = vdwg.mxu0
        %v3430 = vtanh.pop %v3112
        %v3431 = vtanh.pop %v3117
        %v3432 = vtanh.pop %v3122
        %v3433 = vtanh.pop %v3127
        %v3434 = vtanh.pop %v3132
        %v3435 = vtanh.pop %v3137
        %v3436 = vtanh.pop %v3142
        %v3437 = vtanh.pop %v3147
        %v3438 = vtanh.pop %v3152
        %v3439 = vtanh.pop %v3157
        %v3440 = vtanh.pop %v3162
        %v3441 = vtanh.pop %v3167
        %v3442 = vtanh.pop %v3172
        %v3443 = vtanh.pop %v3177
        %v3444 = vtanh.pop %v3182
        %v3445 = vtanh.pop %v3187
        %v3446 = vtanh.pop %v3192
        %v3447 = vtanh.pop %v3197
        %v3448 = vtanh.pop %v3202
        %v3449 = vtanh.pop %v3207
        %v3450 = vtanh.pop %v3212
        %v3451 = vtanh.pop %v3217
        %v3452 = vtanh.pop %v3222
        %v3453 = vtanh.pop %v3227
        %v3454 = vtanh.pop %v3232
        %v3455 = vtanh.pop %v3237
        %v3456 = vtanh.pop %v3242
        %v3457 = vtanh.pop %v3247
        %v3458 = vtanh.pop %v3252
        %v3459 = vtanh.pop %v3257
        %v3460 = vtanh.pop %v3262
        %v3461 = vtanh.pop %v3267
        %v3462 = vtanh.pop %v3272
        %v3463 = vtanh.pop %v3277
        %v3464 = vtanh.pop %v3282
        %v3465 = vtanh.pop %v3287
        %v3466 = vtanh.pop %v3292
        %v3467 = vtanh.pop %v3297
        %v3468 = vtanh.pop %v3302
        %v3469 = vtanh.pop %v3307
        %v3470 = vtanh.pop %v3312
        %v3471 = vtanh.pop %v3317
        %v3472 = vtanh.pop %v3322
        %v3473 = vtanh.pop %v3327
        %v3474 = vtanh.pop %v3332
        %v3475 = vtanh.pop %v3337
        %v3476 = vtanh.pop %v3342
        %v3477 = vtanh.pop %v3347
        %v3478 = vtanh.pop %v3352
        %v3479 = vtanh.pop %v3357
        %v3480 = vtanh.pop %v3362
        %v3481 = vtanh.pop %v3367
        %v3482 = vtanh.pop %v3372
        %v3483 = vtanh.pop %v3377
        %v3484 = vtanh.pop %v3382
        %v3485 = vtanh.pop %v3387
        %v3486 = vtanh.pop %v3392
        %v3487 = vtanh.pop %v3397
        %v3488 = vtanh.pop %v3402
        %v3489 = vtanh.pop %v3407
        %v3490 = vtanh.pop %v3412
        %v3491 = vtanh.pop %v3417
        %v3492 = vtanh.pop %v3422
        %v3493 = vtanh.pop %v3427
        %v3494 = vmul.f32 %v1829, %v3430
        %v3495 = vmul.f32 %v1834, %v3431
        %v3496 = vmul.f32 %v1839, %v3432
        %v3497 = vmul.f32 %v1844, %v3433
        %v3498 = vmul.f32 %v1849, %v3434
        %v3499 = vmul.f32 %v1854, %v3435
        %v3500 = vmul.f32 %v1859, %v3436
        %v3501 = vmul.f32 %v1864, %v3437
        %v3502 = vmul.f32 %v1869, %v3438
        %v3503 = vmul.f32 %v1874, %v3439
        %v3504 = vmul.f32 %v1879, %v3440
        %v3505 = vmul.f32 %v1884, %v3441
        %v3506 = vmul.f32 %v1889, %v3442
        %v3507 = vmul.f32 %v1894, %v3443
        %v3508 = vmul.f32 %v1899, %v3444
        %v3509 = vmul.f32 %v1904, %v3445
        %v3510 = vmul.f32 %v1909, %v3446
        %v3511 = vmul.f32 %v1914, %v3447
        %v3512 = vmul.f32 %v1919, %v3448
        %v3513 = vmul.f32 %v1924, %v3449
        %v3514 = vmul.f32 %v1929, %v3450
        %v3515 = vmul.f32 %v1934, %v3451
        %v3516 = vmul.f32 %v1939, %v3452
        %v3517 = vmul.f32 %v1944, %v3453
        %v3518 = vmul.f32 %v1949, %v3454
        %v3519 = vmul.f32 %v1954, %v3455
        %v3520 = vmul.f32 %v1959, %v3456
        %v3521 = vmul.f32 %v1964, %v3457
        %v3522 = vmul.f32 %v1969, %v3458
        %v3523 = vmul.f32 %v1974, %v3459
        %v3524 = vmul.f32 %v1979, %v3460
        %v3525 = vmul.f32 %v1984, %v3461
        %v3526 = vmul.f32 %v1989, %v3462
        %v3527 = vmul.f32 %v1994, %v3463
        %v3528 = vmul.f32 %v1999, %v3464
        %v3529 = vmul.f32 %v2004, %v3465
        %v3530 = vmul.f32 %v2009, %v3466
        %v3531 = vmul.f32 %v2014, %v3467
        %v3532 = vmul.f32 %v2019, %v3468
        %v3533 = vmul.f32 %v2024, %v3469
        %v3534 = vmul.f32 %v2029, %v3470
        %v3535 = vmul.f32 %v2034, %v3471
        %v3536 = vmul.f32 %v2039, %v3472
        %v3537 = vmul.f32 %v2044, %v3473
        %v3538 = vmul.f32 %v2049, %v3474
        %v3539 = vmul.f32 %v2054, %v3475
        %v3540 = vmul.f32 %v2059, %v3476
        %v3541 = vmul.f32 %v2064, %v3477
        %v3542 = vmul.f32 %v2069, %v3478
        %v3543 = vmul.f32 %v2074, %v3479
        %v3544 = vmul.f32 %v2079, %v3480
        %v3545 = vmul.f32 %v2084, %v3481
        %v3546 = vmul.f32 %v2089, %v3482
        %v3547 = vmul.f32 %v2094, %v3483
        %v3548 = vmul.f32 %v2099, %v3484
        %v3549 = vmul.f32 %v2104, %v3485
        %v3550 = vmul.f32 %v2109, %v3486
        %v3551 = vmul.f32 %v2114, %v3487
        %v3552 = vmul.f32 %v2119, %v3488
        %v3553 = vmul.f32 %v2124, %v3489
        %v3554 = vmul.f32 %v2129, %v3490
        %v3555 = vmul.f32 %v2134, %v3491
        %v3556 = vmul.f32 %v2139, %v3492
        %v3557 = vmul.f32 %v2144, %v3493
        %3558 = vadd.xlane.f32.xlu0 %v3494
        %v3559 = vpop.xlane.xlu0 %3558
        %3560 = vadd.xlane.f32.xlu0 %v3495
        %v3561 = vpop.xlane.xlu0 %3560
        %3562 = vadd.xlane.f32.xlu0 %v3496
        %v3563 = vpop.xlane.xlu0 %3562
        %3564 = vadd.xlane.f32.xlu0 %v3497
        %v3565 = vpop.xlane.xlu0 %3564
        %3566 = vadd.xlane.f32.xlu0 %v3498
        %v3567 = vpop.xlane.xlu0 %3566
        %3568 = vadd.xlane.f32.xlu0 %v3499
        %v3569 = vpop.xlane.xlu0 %3568
        %3570 = vadd.xlane.f32.xlu0 %v3500
        %v3571 = vpop.xlane.xlu0 %3570
        %3572 = vadd.xlane.f32.xlu0 %v3501
        %v3573 = vpop.xlane.xlu0 %3572
        %3574 = vadd.xlane.f32.xlu0 %v3502
        %v3575 = vpop.xlane.xlu0 %3574
        %3576 = vadd.xlane.f32.xlu0 %v3503
        %v3577 = vpop.xlane.xlu0 %3576
        %3578 = vadd.xlane.f32.xlu0 %v3504
        %v3579 = vpop.xlane.xlu0 %3578
        %3580 = vadd.xlane.f32.xlu0 %v3505
        %v3581 = vpop.xlane.xlu0 %3580
        %3582 = vadd.xlane.f32.xlu0 %v3506
        %v3583 = vpop.xlane.xlu0 %3582
        %3584 = vadd.xlane.f32.xlu0 %v3507
        %v3585 = vpop.xlane.xlu0 %3584
        %3586 = vadd.xlane.f32.xlu0 %v3508
        %v3587 = vpop.xlane.xlu0 %3586
        %3588 = vadd.xlane.f32.xlu0 %v3509
        %v3589 = vpop.xlane.xlu0 %3588
        %3590 = vadd.xlane.f32.xlu0 %v3510
        %v3591 = vpop.xlane.xlu0 %3590
        %3592 = vadd.xlane.f32.xlu0 %v3511
        %v3593 = vpop.xlane.xlu0 %3592
        %3594 = vadd.xlane.f32.xlu0 %v3512
        %v3595 = vpop.xlane.xlu0 %3594
        %3596 = vadd.xlane.f32.xlu0 %v3513
        %v3597 = vpop.xlane.xlu0 %3596
        %3598 = vadd.xlane.f32.xlu0 %v3514
        %v3599 = vpop.xlane.xlu0 %3598
        %3600 = vadd.xlane.f32.xlu0 %v3515
        %v3601 = vpop.xlane.xlu0 %3600
        %3602 = vadd.xlane.f32.xlu0 %v3516
        %v3603 = vpop.xlane.xlu0 %3602
        %3604 = vadd.xlane.f32.xlu0 %v3517
        %v3605 = vpop.xlane.xlu0 %3604
        %3606 = vadd.xlane.f32.xlu0 %v3518
        %v3607 = vpop.xlane.xlu0 %3606
        %3608 = vadd.xlane.f32.xlu0 %v3519
        %v3609 = vpop.xlane.xlu0 %3608
        %3610 = vadd.xlane.f32.xlu0 %v3520
        %v3611 = vpop.xlane.xlu0 %3610
        %3612 = vadd.xlane.f32.xlu0 %v3521
        %v3613 = vpop.xlane.xlu0 %3612
        %3614 = vadd.xlane.f32.xlu0 %v3522
        %v3615 = vpop.xlane.xlu0 %3614
        %3616 = vadd.xlane.f32.xlu0 %v3523
        %v3617 = vpop.xlane.xlu0 %3616
        %3618 = vadd.xlane.f32.xlu0 %v3524
        %v3619 = vpop.xlane.xlu0 %3618
        %3620 = vadd.xlane.f32.xlu0 %v3525
        %v3621 = vpop.xlane.xlu0 %3620
        %3622 = vadd.xlane.f32.xlu0 %v3526
        %v3623 = vpop.xlane.xlu0 %3622
        %3624 = vadd.xlane.f32.xlu0 %v3527
        %v3625 = vpop.xlane.xlu0 %3624
        %3626 = vadd.xlane.f32.xlu0 %v3528
        %v3627 = vpop.xlane.xlu0 %3626
        %3628 = vadd.xlane.f32.xlu0 %v3529
        %v3629 = vpop.xlane.xlu0 %3628
        %3630 = vadd.xlane.f32.xlu0 %v3530
        %v3631 = vpop.xlane.xlu0 %3630
        %3632 = vadd.xlane.f32.xlu0 %v3531
        %v3633 = vpop.xlane.xlu0 %3632
        %3634 = vadd.xlane.f32.xlu0 %v3532
        %v3635 = vpop.xlane.xlu0 %3634
        %3636 = vadd.xlane.f32.xlu0 %v3533
        %v3637 = vpop.xlane.xlu0 %3636
        %3638 = vadd.xlane.f32.xlu0 %v3534
        %v3639 = vpop.xlane.xlu0 %3638
        %3640 = vadd.xlane.f32.xlu0 %v3535
        %v3641 = vpop.xlane.xlu0 %3640
        %3642 = vadd.xlane.f32.xlu0 %v3536
        %v3643 = vpop.xlane.xlu0 %3642
        %3644 = vadd.xlane.f32.xlu0 %v3537
        %v3645 = vpop.xlane.xlu0 %3644
        %3646 = vadd.xlane.f32.xlu0 %v3538
        %v3647 = vpop.xlane.xlu0 %3646
        %3648 = vadd.xlane.f32.xlu0 %v3539
        %v3649 = vpop.xlane.xlu0 %3648
        %3650 = vadd.xlane.f32.xlu0 %v3540
        %v3651 = vpop.xlane.xlu0 %3650
        %3652 = vadd.xlane.f32.xlu0 %v3541
        %v3653 = vpop.xlane.xlu0 %3652
        %3654 = vadd.xlane.f32.xlu0 %v3542
        %v3655 = vpop.xlane.xlu0 %3654
        %3656 = vadd.xlane.f32.xlu0 %v3543
        %v3657 = vpop.xlane.xlu0 %3656
        %3658 = vadd.xlane.f32.xlu0 %v3544
        %v3659 = vpop.xlane.xlu0 %3658
        %3660 = vadd.xlane.f32.xlu0 %v3545
        %v3661 = vpop.xlane.xlu0 %3660
        %3662 = vadd.xlane.f32.xlu0 %v3546
        %v3663 = vpop.xlane.xlu0 %3662
        %3664 = vadd.xlane.f32.xlu0 %v3547
        %v3665 = vpop.xlane.xlu0 %3664
        %3666 = vadd.xlane.f32.xlu0 %v3548
        %v3667 = vpop.xlane.xlu0 %3666
        %3668 = vadd.xlane.f32.xlu0 %v3549
        %v3669 = vpop.xlane.xlu0 %3668
        %3670 = vadd.xlane.f32.xlu0 %v3550
        %v3671 = vpop.xlane.xlu0 %3670
        %3672 = vadd.xlane.f32.xlu0 %v3551
        %v3673 = vpop.xlane.xlu0 %3672
        %3674 = vadd.xlane.f32.xlu0 %v3552
        %v3675 = vpop.xlane.xlu0 %3674
        %3676 = vadd.xlane.f32.xlu0 %v3553
        %v3677 = vpop.xlane.xlu0 %3676
        %3678 = vadd.xlane.f32.xlu0 %v3554
        %v3679 = vpop.xlane.xlu0 %3678
        %3680 = vadd.xlane.f32.xlu0 %v3555
        %v3681 = vpop.xlane.xlu0 %3680
        %3682 = vadd.xlane.f32.xlu0 %v3556
        %v3683 = vpop.xlane.xlu0 %3682
        %3684 = vadd.xlane.f32.xlu0 %v3557
        %v3685 = vpop.xlane.xlu0 %3684
        %v3686 = vadd.f32 %v881, %v882
        %v3687 = vadd.f32 %v3686, %v883
        %3688 = vadd.xlane.f32.xlu0 %v3687
        %v3689 = vpop.xlane.xlu0 %3688
        %v3690 = vadd.f32 %v884, %v885
        %v3691 = vadd.f32 %v3690, %v886
        %3692 = vadd.xlane.f32.xlu0 %v3691
        %v3693 = vpop.xlane.xlu0 %3692
        %v3694 = vadd.f32 %v887, %v888
        %v3695 = vadd.f32 %v3694, %v889
        %3696 = vadd.xlane.f32.xlu0 %v3695
        %v3697 = vpop.xlane.xlu0 %3696
        %v3698 = vadd.f32 %v890, %v891
        %v3699 = vadd.f32 %v3698, %v892
        %3700 = vadd.xlane.f32.xlu0 %v3699
        %v3701 = vpop.xlane.xlu0 %3700
        %v3702 = vadd.f32 %v893, %v894
        %v3703 = vadd.f32 %v3702, %v895
        %3704 = vadd.xlane.f32.xlu0 %v3703
        %v3705 = vpop.xlane.xlu0 %3704
        %v3706 = vadd.f32 %v896, %v897
        %v3707 = vadd.f32 %v3706, %v898
        %3708 = vadd.xlane.f32.xlu0 %v3707
        %v3709 = vpop.xlane.xlu0 %3708
        %v3710 = vadd.f32 %v899, %v900
        %v3711 = vadd.f32 %v3710, %v901
        %3712 = vadd.xlane.f32.xlu0 %v3711
        %v3713 = vpop.xlane.xlu0 %3712
        %v3714 = vadd.f32 %v902, %v903
        %v3715 = vadd.f32 %v3714, %v904
        %3716 = vadd.xlane.f32.xlu0 %v3715
        %v3717 = vpop.xlane.xlu0 %3716
        %v3718 = vadd.f32 %v905, %v906
        %v3719 = vadd.f32 %v3718, %v907
        %3720 = vadd.xlane.f32.xlu0 %v3719
        %v3721 = vpop.xlane.xlu0 %3720
        %v3722 = vadd.f32 %v908, %v909
        %v3723 = vadd.f32 %v3722, %v910
        %3724 = vadd.xlane.f32.xlu0 %v3723
        %v3725 = vpop.xlane.xlu0 %3724
        %v3726 = vadd.f32 %v911, %v912
        %v3727 = vadd.f32 %v3726, %v913
        %3728 = vadd.xlane.f32.xlu0 %v3727
        %v3729 = vpop.xlane.xlu0 %3728
        %v3730 = vadd.f32 %v914, %v915
        %v3731 = vadd.f32 %v3730, %v916
        %3732 = vadd.xlane.f32.xlu0 %v3731
        %v3733 = vpop.xlane.xlu0 %3732
        %v3734 = vadd.f32 %v917, %v918
        %v3735 = vadd.f32 %v3734, %v919
        %3736 = vadd.xlane.f32.xlu0 %v3735
        %v3737 = vpop.xlane.xlu0 %3736
        %v3738 = vadd.f32 %v920, %v921
        %v3739 = vadd.f32 %v3738, %v922
        %3740 = vadd.xlane.f32.xlu0 %v3739
        %v3741 = vpop.xlane.xlu0 %3740
        %v3742 = vadd.f32 %v923, %v924
        %v3743 = vadd.f32 %v3742, %v925
        %3744 = vadd.xlane.f32.xlu0 %v3743
        %v3745 = vpop.xlane.xlu0 %3744
        %v3746 = vadd.f32 %v926, %v927
        %v3747 = vadd.f32 %v3746, %v928
        %3748 = vadd.xlane.f32.xlu0 %v3747
        %v3749 = vpop.xlane.xlu0 %3748
        %v3750 = vadd.f32 %v929, %v930
        %v3751 = vadd.f32 %v3750, %v931
        %3752 = vadd.xlane.f32.xlu0 %v3751
        %v3753 = vpop.xlane.xlu0 %3752
        %v3754 = vadd.f32 %v932, %v933
        %v3755 = vadd.f32 %v3754, %v934
        %3756 = vadd.xlane.f32.xlu0 %v3755
        %v3757 = vpop.xlane.xlu0 %3756
        %v3758 = vadd.f32 %v935, %v936
        %v3759 = vadd.f32 %v3758, %v937
        %3760 = vadd.xlane.f32.xlu0 %v3759
        %v3761 = vpop.xlane.xlu0 %3760
        %v3762 = vadd.f32 %v938, %v939
        %v3763 = vadd.f32 %v3762, %v940
        %3764 = vadd.xlane.f32.xlu0 %v3763
        %v3765 = vpop.xlane.xlu0 %3764
        %v3766 = vadd.f32 %v941, %v942
        %v3767 = vadd.f32 %v3766, %v943
        %3768 = vadd.xlane.f32.xlu0 %v3767
        %v3769 = vpop.xlane.xlu0 %3768
        %v3770 = vadd.f32 %v944, %v945
        %v3771 = vadd.f32 %v3770, %v946
        %3772 = vadd.xlane.f32.xlu0 %v3771
        %v3773 = vpop.xlane.xlu0 %3772
        %v3774 = vadd.f32 %v947, %v948
        %v3775 = vadd.f32 %v3774, %v949
        %3776 = vadd.xlane.f32.xlu0 %v3775
        %v3777 = vpop.xlane.xlu0 %3776
        %v3778 = vadd.f32 %v950, %v951
        %v3779 = vadd.f32 %v3778, %v952
        %3780 = vadd.xlane.f32.xlu0 %v3779
        %v3781 = vpop.xlane.xlu0 %3780
        %v3782 = vadd.f32 %v953, %v954
        %v3783 = vadd.f32 %v3782, %v955
        %3784 = vadd.xlane.f32.xlu0 %v3783
        %v3785 = vpop.xlane.xlu0 %3784
        %v3786 = vadd.f32 %v956, %v957
        %v3787 = vadd.f32 %v3786, %v958
        %3788 = vadd.xlane.f32.xlu0 %v3787
        %v3789 = vpop.xlane.xlu0 %3788
        %v3790 = vadd.f32 %v959, %v960
        %v3791 = vadd.f32 %v3790, %v961
        %3792 = vadd.xlane.f32.xlu0 %v3791
        %v3793 = vpop.xlane.xlu0 %3792
        %v3794 = vadd.f32 %v962, %v963
        %v3795 = vadd.f32 %v3794, %v964
        %3796 = vadd.xlane.f32.xlu0 %v3795
        %v3797 = vpop.xlane.xlu0 %3796
        %v3798 = vadd.f32 %v965, %v966
        %v3799 = vadd.f32 %v3798, %v967
        %3800 = vadd.xlane.f32.xlu0 %v3799
        %v3801 = vpop.xlane.xlu0 %3800
        %v3802 = vadd.f32 %v968, %v969
        %v3803 = vadd.f32 %v3802, %v970
        %3804 = vadd.xlane.f32.xlu0 %v3803
        %v3805 = vpop.xlane.xlu0 %3804
        %v3806 = vadd.f32 %v971, %v972
        %v3807 = vadd.f32 %v3806, %v973
        %3808 = vadd.xlane.f32.xlu0 %v3807
        %v3809 = vpop.xlane.xlu0 %3808
        %v3810 = vadd.f32 %v974, %v975
        %v3811 = vadd.f32 %v3810, %v976
        %3812 = vadd.xlane.f32.xlu0 %v3811
        %v3813 = vpop.xlane.xlu0 %3812
        %v3814 = vadd.f32 %v977, %v978
        %v3815 = vadd.f32 %v3814, %v979
        %3816 = vadd.xlane.f32.xlu0 %v3815
        %v3817 = vpop.xlane.xlu0 %3816
        %v3818 = vadd.f32 %v980, %v981
        %v3819 = vadd.f32 %v3818, %v982
        %3820 = vadd.xlane.f32.xlu0 %v3819
        %v3821 = vpop.xlane.xlu0 %3820
        %v3822 = vadd.f32 %v983, %v984
        %v3823 = vadd.f32 %v3822, %v985
        %3824 = vadd.xlane.f32.xlu0 %v3823
        %v3825 = vpop.xlane.xlu0 %3824
        %v3826 = vadd.f32 %v986, %v987
        %v3827 = vadd.f32 %v3826, %v988
        %3828 = vadd.xlane.f32.xlu0 %v3827
        %v3829 = vpop.xlane.xlu0 %3828
        %v3830 = vadd.f32 %v989, %v990
        %v3831 = vadd.f32 %v3830, %v991
        %3832 = vadd.xlane.f32.xlu0 %v3831
        %v3833 = vpop.xlane.xlu0 %3832
        %v3834 = vadd.f32 %v992, %v993
        %v3835 = vadd.f32 %v3834, %v994
        %3836 = vadd.xlane.f32.xlu0 %v3835
        %v3837 = vpop.xlane.xlu0 %3836
        %v3838 = vadd.f32 %v995, %v996
        %v3839 = vadd.f32 %v3838, %v997
        %3840 = vadd.xlane.f32.xlu0 %v3839
        %v3841 = vpop.xlane.xlu0 %3840
        %v3842 = vadd.f32 %v998, %v999
        %v3843 = vadd.f32 %v3842, %v1000
        %3844 = vadd.xlane.f32.xlu0 %v3843
        %v3845 = vpop.xlane.xlu0 %3844
        %v3846 = vadd.f32 %v1001, %v1002
        %v3847 = vadd.f32 %v3846, %v1003
        %3848 = vadd.xlane.f32.xlu0 %v3847
        %v3849 = vpop.xlane.xlu0 %3848
        %v3850 = vadd.f32 %v1004, %v1005
        %v3851 = vadd.f32 %v3850, %v1006
        %3852 = vadd.xlane.f32.xlu0 %v3851
        %v3853 = vpop.xlane.xlu0 %3852
        %v3854 = vadd.f32 %v1007, %v1008
        %v3855 = vadd.f32 %v3854, %v1009
        %3856 = vadd.xlane.f32.xlu0 %v3855
        %v3857 = vpop.xlane.xlu0 %3856
        %v3858 = vadd.f32 %v1010, %v1011
        %v3859 = vadd.f32 %v3858, %v1012
        %3860 = vadd.xlane.f32.xlu0 %v3859
        %v3861 = vpop.xlane.xlu0 %3860
        %v3862 = vadd.f32 %v1013, %v1014
        %v3863 = vadd.f32 %v3862, %v1015
        %3864 = vadd.xlane.f32.xlu0 %v3863
        %v3865 = vpop.xlane.xlu0 %3864
        %v3866 = vadd.f32 %v1016, %v1017
        %v3867 = vadd.f32 %v3866, %v1018
        %3868 = vadd.xlane.f32.xlu0 %v3867
        %v3869 = vpop.xlane.xlu0 %3868
        %v3870 = vadd.f32 %v1019, %v1020
        %v3871 = vadd.f32 %v3870, %v1021
        %3872 = vadd.xlane.f32.xlu0 %v3871
        %v3873 = vpop.xlane.xlu0 %3872
        %v3874 = vadd.f32 %v1022, %v1023
        %v3875 = vadd.f32 %v3874, %v1024
        %3876 = vadd.xlane.f32.xlu0 %v3875
        %v3877 = vpop.xlane.xlu0 %3876
        %v3878 = vadd.f32 %v1025, %v1026
        %v3879 = vadd.f32 %v3878, %v1027
        %3880 = vadd.xlane.f32.xlu0 %v3879
        %v3881 = vpop.xlane.xlu0 %3880
        %v3882 = vadd.f32 %v1028, %v1029
        %v3883 = vadd.f32 %v3882, %v1030
        %3884 = vadd.xlane.f32.xlu0 %v3883
        %v3885 = vpop.xlane.xlu0 %3884
        %v3886 = vadd.f32 %v1031, %v1032
        %v3887 = vadd.f32 %v3886, %v1033
        %3888 = vadd.xlane.f32.xlu0 %v3887
        %v3889 = vpop.xlane.xlu0 %3888
        %v3890 = vadd.f32 %v1034, %v1035
        %v3891 = vadd.f32 %v3890, %v1036
        %3892 = vadd.xlane.f32.xlu0 %v3891
        %v3893 = vpop.xlane.xlu0 %3892
        %v3894 = vadd.f32 %v1037, %v1038
        %v3895 = vadd.f32 %v3894, %v1039
        %3896 = vadd.xlane.f32.xlu0 %v3895
        %v3897 = vpop.xlane.xlu0 %3896
        %v3898 = vadd.f32 %v1040, %v1041
        %v3899 = vadd.f32 %v3898, %v1042
        %3900 = vadd.xlane.f32.xlu0 %v3899
        %v3901 = vpop.xlane.xlu0 %3900
        %v3902 = vadd.f32 %v1043, %v1044
        %v3903 = vadd.f32 %v3902, %v1045
        %3904 = vadd.xlane.f32.xlu0 %v3903
        %v3905 = vpop.xlane.xlu0 %3904
        %v3906 = vadd.f32 %v1046, %v1047
        %v3907 = vadd.f32 %v3906, %v1048
        %3908 = vadd.xlane.f32.xlu0 %v3907
        %v3909 = vpop.xlane.xlu0 %3908
        %v3910 = vadd.f32 %v1049, %v1050
        %v3911 = vadd.f32 %v3910, %v1051
        %3912 = vadd.xlane.f32.xlu0 %v3911
        %v3913 = vpop.xlane.xlu0 %3912
        %v3914 = vadd.f32 %v1052, %v1053
        %v3915 = vadd.f32 %v3914, %v1054
        %3916 = vadd.xlane.f32.xlu0 %v3915
        %v3917 = vpop.xlane.xlu0 %3916
        %v3918 = vadd.f32 %v1055, %v1056
        %v3919 = vadd.f32 %v3918, %v1057
        %3920 = vadd.xlane.f32.xlu0 %v3919
        %v3921 = vpop.xlane.xlu0 %3920
        %v3922 = vadd.f32 %v1058, %v1059
        %v3923 = vadd.f32 %v3922, %v1060
        %3924 = vadd.xlane.f32.xlu0 %v3923
        %v3925 = vpop.xlane.xlu0 %3924
        %v3926 = vadd.f32 %v1061, %v1062
        %v3927 = vadd.f32 %v3926, %v1063
        %3928 = vadd.xlane.f32.xlu0 %v3927
        %v3929 = vpop.xlane.xlu0 %3928
        %v3930 = vadd.f32 %v1064, %v1065
        %v3931 = vadd.f32 %v3930, %v1066
        %3932 = vadd.xlane.f32.xlu0 %v3931
        %v3933 = vpop.xlane.xlu0 %3932
        %v3934 = vadd.f32 %v1067, %v1068
        %v3935 = vadd.f32 %v3934, %v1069
        %3936 = vadd.xlane.f32.xlu0 %v3935
        %v3937 = vpop.xlane.xlu0 %3936
        %v3938 = vadd.f32 %v1070, %v1071
        %v3939 = vadd.f32 %v3938, %v1072
        %3940 = vadd.xlane.f32.xlu0 %v3939
        %v3941 = vpop.xlane.xlu0 %3940
        %vm3942 = vcmp.gt.f32.partialorder %v3689, 0.5
        %vm3943 = vcmp.gt.f32.partialorder %v3693, 0.5
        %vm3944 = vcmp.gt.f32.partialorder %v3697, 0.5
        %vm3945 = vcmp.gt.f32.partialorder %v3701, 0.5
        %vm3946 = vcmp.gt.f32.partialorder %v3705, 0.5
        %vm3947 = vcmp.gt.f32.partialorder %v3709, 0.5
        %vm3948 = vcmp.gt.f32.partialorder %v3713, 0.5
        %vm3949 = vcmp.gt.f32.partialorder %v3717, 0.5
        %vm3950 = vcmp.gt.f32.partialorder %v3721, 0.5
        %vm3951 = vcmp.gt.f32.partialorder %v3725, 0.5
        %vm3952 = vcmp.gt.f32.partialorder %v3729, 0.5
        %vm3953 = vcmp.gt.f32.partialorder %v3733, 0.5
        %vm3954 = vcmp.gt.f32.partialorder %v3737, 0.5
        %vm3955 = vcmp.gt.f32.partialorder %v3741, 0.5
        %vm3956 = vcmp.gt.f32.partialorder %v3745, 0.5
        %vm3957 = vcmp.gt.f32.partialorder %v3749, 0.5
        %vm3958 = vcmp.gt.f32.partialorder %v3753, 0.5
        %vm3959 = vcmp.gt.f32.partialorder %v3757, 0.5
        %vm3960 = vcmp.gt.f32.partialorder %v3761, 0.5
        %vm3961 = vcmp.gt.f32.partialorder %v3765, 0.5
        %vm3962 = vcmp.gt.f32.partialorder %v3769, 0.5
        %vm3963 = vcmp.gt.f32.partialorder %v3773, 0.5
        %vm3964 = vcmp.gt.f32.partialorder %v3777, 0.5
        %vm3965 = vcmp.gt.f32.partialorder %v3781, 0.5
        %vm3966 = vcmp.gt.f32.partialorder %v3785, 0.5
        %vm3967 = vcmp.gt.f32.partialorder %v3789, 0.5
        %vm3968 = vcmp.gt.f32.partialorder %v3793, 0.5
        %vm3969 = vcmp.gt.f32.partialorder %v3797, 0.5
        %vm3970 = vcmp.gt.f32.partialorder %v3801, 0.5
        %vm3971 = vcmp.gt.f32.partialorder %v3805, 0.5
        %vm3972 = vcmp.gt.f32.partialorder %v3809, 0.5
        %vm3973 = vcmp.gt.f32.partialorder %v3813, 0.5
        %vm3974 = vcmp.gt.f32.partialorder %v3817, 0.5
        %vm3975 = vcmp.gt.f32.partialorder %v3821, 0.5
        %vm3976 = vcmp.gt.f32.partialorder %v3825, 0.5
        %vm3977 = vcmp.gt.f32.partialorder %v3829, 0.5
        %vm3978 = vcmp.gt.f32.partialorder %v3833, 0.5
        %vm3979 = vcmp.gt.f32.partialorder %v3837, 0.5
        %vm3980 = vcmp.gt.f32.partialorder %v3841, 0.5
        %vm3981 = vcmp.gt.f32.partialorder %v3845, 0.5
        %vm3982 = vcmp.gt.f32.partialorder %v3849, 0.5
        %vm3983 = vcmp.gt.f32.partialorder %v3853, 0.5
        %vm3984 = vcmp.gt.f32.partialorder %v3857, 0.5
        %vm3985 = vcmp.gt.f32.partialorder %v3861, 0.5
        %vm3986 = vcmp.gt.f32.partialorder %v3865, 0.5
        %vm3987 = vcmp.gt.f32.partialorder %v3869, 0.5
        %vm3988 = vcmp.gt.f32.partialorder %v3873, 0.5
        %vm3989 = vcmp.gt.f32.partialorder %v3877, 0.5
        %vm3990 = vcmp.gt.f32.partialorder %v3881, 0.5
        %vm3991 = vcmp.gt.f32.partialorder %v3885, 0.5
        %vm3992 = vcmp.gt.f32.partialorder %v3889, 0.5
        %vm3993 = vcmp.gt.f32.partialorder %v3893, 0.5
        %vm3994 = vcmp.gt.f32.partialorder %v3897, 0.5
        %vm3995 = vcmp.gt.f32.partialorder %v3901, 0.5
        %vm3996 = vcmp.gt.f32.partialorder %v3905, 0.5
        %vm3997 = vcmp.gt.f32.partialorder %v3909, 0.5
        %vm3998 = vcmp.gt.f32.partialorder %v3913, 0.5
        %vm3999 = vcmp.gt.f32.partialorder %v3917, 0.5
        %vm4000 = vcmp.gt.f32.partialorder %v3921, 0.5
        %vm4001 = vcmp.gt.f32.partialorder %v3925, 0.5
        %vm4002 = vcmp.gt.f32.partialorder %v3929, 0.5
        %vm4003 = vcmp.gt.f32.partialorder %v3933, 0.5
        %vm4004 = vcmp.gt.f32.partialorder %v3937, 0.5
        %vm4005 = vcmp.gt.f32.partialorder %v3941, 0.5
        %v4006 = vsel %vm3942, %v3559, -1e+30
        %v4007 = vsel %vm3943, %v3561, -1e+30
        %v4008 = vsel %vm3944, %v3563, -1e+30
        %v4009 = vsel %vm3945, %v3565, -1e+30
        %v4010 = vsel %vm3946, %v3567, -1e+30
        %v4011 = vsel %vm3947, %v3569, -1e+30
        %v4012 = vsel %vm3948, %v3571, -1e+30
        %v4013 = vsel %vm3949, %v3573, -1e+30
        %v4014 = vsel %vm3950, %v3575, -1e+30
        %v4015 = vsel %vm3951, %v3577, -1e+30
        %v4016 = vsel %vm3952, %v3579, -1e+30
        %v4017 = vsel %vm3953, %v3581, -1e+30
        %v4018 = vsel %vm3954, %v3583, -1e+30
        %v4019 = vsel %vm3955, %v3585, -1e+30
        %v4020 = vsel %vm3956, %v3587, -1e+30
        %v4021 = vsel %vm3957, %v3589, -1e+30
        %v4022 = vsel %vm3958, %v3591, -1e+30
        %v4023 = vsel %vm3959, %v3593, -1e+30
        %v4024 = vsel %vm3960, %v3595, -1e+30
        %v4025 = vsel %vm3961, %v3597, -1e+30
        %v4026 = vsel %vm3962, %v3599, -1e+30
        %v4027 = vsel %vm3963, %v3601, -1e+30
        %v4028 = vsel %vm3964, %v3603, -1e+30
        %v4029 = vsel %vm3965, %v3605, -1e+30
        %v4030 = vsel %vm3966, %v3607, -1e+30
        %v4031 = vsel %vm3967, %v3609, -1e+30
        %v4032 = vsel %vm3968, %v3611, -1e+30
        %v4033 = vsel %vm3969, %v3613, -1e+30
        %v4034 = vsel %vm3970, %v3615, -1e+30
        %v4035 = vsel %vm3971, %v3617, -1e+30
        %v4036 = vsel %vm3972, %v3619, -1e+30
        %v4037 = vsel %vm3973, %v3621, -1e+30
        %v4038 = vsel %vm3974, %v3623, -1e+30
        %v4039 = vsel %vm3975, %v3625, -1e+30
        %v4040 = vsel %vm3976, %v3627, -1e+30
        %v4041 = vsel %vm3977, %v3629, -1e+30
        %v4042 = vsel %vm3978, %v3631, -1e+30
        %v4043 = vsel %vm3979, %v3633, -1e+30
        %v4044 = vsel %vm3980, %v3635, -1e+30
        %v4045 = vsel %vm3981, %v3637, -1e+30
        %v4046 = vsel %vm3982, %v3639, -1e+30
        %v4047 = vsel %vm3983, %v3641, -1e+30
        %v4048 = vsel %vm3984, %v3643, -1e+30
        %v4049 = vsel %vm3985, %v3645, -1e+30
        %v4050 = vsel %vm3986, %v3647, -1e+30
        %v4051 = vsel %vm3987, %v3649, -1e+30
        %v4052 = vsel %vm3988, %v3651, -1e+30
        %v4053 = vsel %vm3989, %v3653, -1e+30
        %v4054 = vsel %vm3990, %v3655, -1e+30
        %v4055 = vsel %vm3991, %v3657, -1e+30
        %v4056 = vsel %vm3992, %v3659, -1e+30
        %v4057 = vsel %vm3993, %v3661, -1e+30
        %v4058 = vsel %vm3994, %v3663, -1e+30
        %v4059 = vsel %vm3995, %v3665, -1e+30
        %v4060 = vsel %vm3996, %v3667, -1e+30
        %v4061 = vsel %vm3997, %v3669, -1e+30
        %v4062 = vsel %vm3998, %v3671, -1e+30
        %v4063 = vsel %vm3999, %v3673, -1e+30
        %v4064 = vsel %vm4000, %v3675, -1e+30
        %v4065 = vsel %vm4001, %v3677, -1e+30
        %v4066 = vsel %vm4002, %v3679, -1e+30
        %v4067 = vsel %vm4003, %v3681, -1e+30
        %v4068 = vsel %vm4004, %v3683, -1e+30
        %v4069 = vsel %vm4005, %v3685, -1e+30
        %v4070 = vmax.f32 %v4006, %v4010
        %v4071 = vmax.f32 %v4007, %v4011
        %v4072 = vmax.f32 %v4008, %v4012
        %v4073 = vmax.f32 %v4009, %v4013
        %v4074 = vmax.f32 %v4070, %v4014
        %v4075 = vmax.f32 %v4071, %v4015
        %v4076 = vmax.f32 %v4072, %v4016
        %v4077 = vmax.f32 %v4073, %v4017
        %v4078 = vmax.f32 %v4074, %v4018
        %v4079 = vmax.f32 %v4075, %v4019
        %v4080 = vmax.f32 %v4076, %v4020
        %v4081 = vmax.f32 %v4077, %v4021
        %v4082 = vmax.f32 %v4078, %v4022
        %v4083 = vmax.f32 %v4079, %v4023
        %v4084 = vmax.f32 %v4080, %v4024
        %v4085 = vmax.f32 %v4081, %v4025
        %v4086 = vmax.f32 %v4082, %v4026
        %v4087 = vmax.f32 %v4083, %v4027
        %v4088 = vmax.f32 %v4084, %v4028
        %v4089 = vmax.f32 %v4085, %v4029
        %v4090 = vmax.f32 %v4086, %v4030
        %v4091 = vmax.f32 %v4087, %v4031
        %v4092 = vmax.f32 %v4088, %v4032
        %v4093 = vmax.f32 %v4089, %v4033
        %v4094 = vmax.f32 %v4090, %v4034
        %v4095 = vmax.f32 %v4091, %v4035
        %v4096 = vmax.f32 %v4092, %v4036
        %v4097 = vmax.f32 %v4093, %v4037
        %v4098 = vmax.f32 %v4094, %v4038
        %v4099 = vmax.f32 %v4095, %v4039
        %v4100 = vmax.f32 %v4096, %v4040
        %v4101 = vmax.f32 %v4097, %v4041
        %v4102 = vmax.f32 %v4098, %v4042
        %v4103 = vmax.f32 %v4099, %v4043
        %v4104 = vmax.f32 %v4100, %v4044
        %v4105 = vmax.f32 %v4101, %v4045
        %v4106 = vmax.f32 %v4102, %v4046
        %v4107 = vmax.f32 %v4103, %v4047
        %v4108 = vmax.f32 %v4104, %v4048
        %v4109 = vmax.f32 %v4105, %v4049
        %v4110 = vmax.f32 %v4106, %v4050
        %v4111 = vmax.f32 %v4107, %v4051
        %v4112 = vmax.f32 %v4108, %v4052
        %v4113 = vmax.f32 %v4109, %v4053
        %v4114 = vmax.f32 %v4110, %v4054
        %v4115 = vmax.f32 %v4111, %v4055
        %v4116 = vmax.f32 %v4112, %v4056
        %v4117 = vmax.f32 %v4113, %v4057
        %v4118 = vmax.f32 %v4114, %v4058
        %v4119 = vmax.f32 %v4115, %v4059
        %v4120 = vmax.f32 %v4116, %v4060
        %v4121 = vmax.f32 %v4117, %v4061
        %v4122 = vmax.f32 %v4118, %v4062
        %v4123 = vmax.f32 %v4119, %v4063
        %v4124 = vmax.f32 %v4120, %v4064
        %v4125 = vmax.f32 %v4121, %v4065
        %v4126 = vmax.f32 %v4122, %v4066
        %v4127 = vmax.f32 %v4123, %v4067
        %v4128 = vmax.f32 %v4124, %v4068
        %v4129 = vmax.f32 %v4125, %v4069
        %v4130 = vmax.f32 %v4126, %v4127
        %v4131 = vmax.f32 %v4128, %v4129
        %v4132 = vmax.f32 %v4130, %v4131
        %v4133 = vrot.slane %v4132, 4
        %v4134 = vmax.f32 %v4132, %v4133
        %v4135 = vrot.slane %v4134, 2
        %v4136 = vmax.f32 %v4134, %v4135
        %v4137 = vrot.slane %v4136, 1
        %v4138 = vmax.f32 %v4136, %v4137
        %v4139 = vld [vmem:[#allocation2] sm:$0x1]
        %v4140 = vmax.f32 %v4139, %v4138
        %v4141 = vsub.f32 %v4139, %v4140
        %v4142 = vmul.f32 %v4141, 1.442695
        %v4143 = vpow.pop %v4142
        %vm4144 = vcmask 0
        %4145 = vst.msk [vmem:[#allocation2] sm:$0x1] %vm4144, %v4140
        %v4147 = vlaneseq
        %v4148 = vshrl.u32 %v4147, 7
        %v4149 = vsub.s32 0, %v4148
        %v4150 = vrot.slane %v4140, %v4149
        %v4152 = vsub.f32 %v3559, %v4150
        %v4153 = vsub.f32 %v3561, %v4150
        %v4154 = vsub.f32 %v3563, %v4150
        %v4155 = vsub.f32 %v3565, %v4150
        %v4156 = vsub.f32 %v3567, %v4150
        %v4157 = vsub.f32 %v3569, %v4150
        %v4158 = vsub.f32 %v3571, %v4150
        %v4159 = vsub.f32 %v3573, %v4150
        %v4160 = vsub.f32 %v3575, %v4150
        %v4161 = vsub.f32 %v3577, %v4150
        %v4162 = vsub.f32 %v3579, %v4150
        %v4163 = vsub.f32 %v3581, %v4150
        %v4164 = vsub.f32 %v3583, %v4150
        %v4165 = vsub.f32 %v3585, %v4150
        %v4166 = vsub.f32 %v3587, %v4150
        %v4167 = vsub.f32 %v3589, %v4150
        %v4168 = vsub.f32 %v3591, %v4150
        %v4169 = vsub.f32 %v3593, %v4150
        %v4170 = vsub.f32 %v3595, %v4150
        %v4171 = vsub.f32 %v3597, %v4150
        %v4172 = vsub.f32 %v3599, %v4150
        %v4173 = vsub.f32 %v3601, %v4150
        %v4174 = vsub.f32 %v3603, %v4150
        %v4175 = vsub.f32 %v3605, %v4150
        %v4176 = vsub.f32 %v3607, %v4150
        %v4177 = vsub.f32 %v3609, %v4150
        %v4178 = vsub.f32 %v3611, %v4150
        %v4179 = vsub.f32 %v3613, %v4150
        %v4180 = vsub.f32 %v3615, %v4150
        %v4181 = vsub.f32 %v3617, %v4150
        %v4182 = vsub.f32 %v3619, %v4150
        %v4183 = vsub.f32 %v3621, %v4150
        %v4184 = vsub.f32 %v3623, %v4150
        %v4185 = vsub.f32 %v3625, %v4150
        %v4186 = vsub.f32 %v3627, %v4150
        %v4187 = vsub.f32 %v3629, %v4150
        %v4188 = vsub.f32 %v3631, %v4150
        %v4189 = vsub.f32 %v3633, %v4150
        %v4190 = vsub.f32 %v3635, %v4150
        %v4191 = vsub.f32 %v3637, %v4150
        %v4192 = vsub.f32 %v3639, %v4150
        %v4193 = vsub.f32 %v3641, %v4150
        %v4194 = vsub.f32 %v3643, %v4150
        %v4195 = vsub.f32 %v3645, %v4150
        %v4196 = vsub.f32 %v3647, %v4150
        %v4197 = vsub.f32 %v3649, %v4150
        %v4198 = vsub.f32 %v3651, %v4150
        %v4199 = vsub.f32 %v3653, %v4150
        %v4200 = vsub.f32 %v3655, %v4150
        %v4201 = vsub.f32 %v3657, %v4150
        %v4202 = vsub.f32 %v3659, %v4150
        %v4203 = vsub.f32 %v3661, %v4150
        %v4204 = vsub.f32 %v3663, %v4150
        %v4205 = vsub.f32 %v3665, %v4150
        %v4206 = vsub.f32 %v3667, %v4150
        %v4207 = vsub.f32 %v3669, %v4150
        %v4208 = vsub.f32 %v3671, %v4150
        %v4209 = vsub.f32 %v3673, %v4150
        %v4210 = vsub.f32 %v3675, %v4150
        %v4211 = vsub.f32 %v3677, %v4150
        %v4212 = vsub.f32 %v3679, %v4150
        %v4213 = vsub.f32 %v3681, %v4150
        %v4214 = vsub.f32 %v3683, %v4150
        %v4215 = vsub.f32 %v3685, %v4150
        %v4216 = vmin.f32 %v4152, 0.0
        %v4217 = vmin.f32 %v4153, 0.0
        %v4218 = vmin.f32 %v4154, 0.0
        %v4219 = vmin.f32 %v4155, 0.0
        %v4220 = vmin.f32 %v4156, 0.0
        %v4221 = vmin.f32 %v4157, 0.0
        %v4222 = vmin.f32 %v4158, 0.0
        %v4223 = vmin.f32 %v4159, 0.0
        %v4224 = vmin.f32 %v4160, 0.0
        %v4225 = vmin.f32 %v4161, 0.0
        %v4226 = vmin.f32 %v4162, 0.0
        %v4227 = vmin.f32 %v4163, 0.0
        %v4228 = vmin.f32 %v4164, 0.0
        %v4229 = vmin.f32 %v4165, 0.0
        %v4230 = vmin.f32 %v4166, 0.0
        %v4231 = vmin.f32 %v4167, 0.0
        %v4232 = vmin.f32 %v4168, 0.0
        %v4233 = vmin.f32 %v4169, 0.0
        %v4234 = vmin.f32 %v4170, 0.0
        %v4235 = vmin.f32 %v4171, 0.0
        %v4236 = vmin.f32 %v4172, 0.0
        %v4237 = vmin.f32 %v4173, 0.0
        %v4238 = vmin.f32 %v4174, 0.0
        %v4239 = vmin.f32 %v4175, 0.0
        %v4240 = vmin.f32 %v4176, 0.0
        %v4241 = vmin.f32 %v4177, 0.0
        %v4242 = vmin.f32 %v4178, 0.0
        %v4243 = vmin.f32 %v4179, 0.0
        %v4244 = vmin.f32 %v4180, 0.0
        %v4245 = vmin.f32 %v4181, 0.0
        %v4246 = vmin.f32 %v4182, 0.0
        %v4247 = vmin.f32 %v4183, 0.0
        %v4248 = vmin.f32 %v4184, 0.0
        %v4249 = vmin.f32 %v4185, 0.0
        %v4250 = vmin.f32 %v4186, 0.0
        %v4251 = vmin.f32 %v4187, 0.0
        %v4252 = vmin.f32 %v4188, 0.0
        %v4253 = vmin.f32 %v4189, 0.0
        %v4254 = vmin.f32 %v4190, 0.0
        %v4255 = vmin.f32 %v4191, 0.0
        %v4256 = vmin.f32 %v4192, 0.0
        %v4257 = vmin.f32 %v4193, 0.0
        %v4258 = vmin.f32 %v4194, 0.0
        %v4259 = vmin.f32 %v4195, 0.0
        %v4260 = vmin.f32 %v4196, 0.0
        %v4261 = vmin.f32 %v4197, 0.0
        %v4262 = vmin.f32 %v4198, 0.0
        %v4263 = vmin.f32 %v4199, 0.0
        %v4264 = vmin.f32 %v4200, 0.0
        %v4265 = vmin.f32 %v4201, 0.0
        %v4266 = vmin.f32 %v4202, 0.0
        %v4267 = vmin.f32 %v4203, 0.0
        %v4268 = vmin.f32 %v4204, 0.0
        %v4269 = vmin.f32 %v4205, 0.0
        %v4270 = vmin.f32 %v4206, 0.0
        %v4271 = vmin.f32 %v4207, 0.0
        %v4272 = vmin.f32 %v4208, 0.0
        %v4273 = vmin.f32 %v4209, 0.0
        %v4274 = vmin.f32 %v4210, 0.0
        %v4275 = vmin.f32 %v4211, 0.0
        %v4276 = vmin.f32 %v4212, 0.0
        %v4277 = vmin.f32 %v4213, 0.0
        %v4278 = vmin.f32 %v4214, 0.0
        %v4279 = vmin.f32 %v4215, 0.0
        %v4280 = vmul.f32 %v4216, 1.442695
        %v4281 = vpow.pop %v4280
        %v4282 = vmul.f32 %v4217, 1.442695
        %v4283 = vpow.pop %v4282
        %v4284 = vmul.f32 %v4218, 1.442695
        %v4285 = vpow.pop %v4284
        %v4286 = vmul.f32 %v4219, 1.442695
        %v4287 = vpow.pop %v4286
        %v4288 = vmul.f32 %v4220, 1.442695
        %v4289 = vpow.pop %v4288
        %v4290 = vmul.f32 %v4221, 1.442695
        %v4291 = vpow.pop %v4290
        %v4292 = vmul.f32 %v4222, 1.442695
        %v4293 = vpow.pop %v4292
        %v4294 = vmul.f32 %v4223, 1.442695
        %v4295 = vpow.pop %v4294
        %v4296 = vmul.f32 %v4224, 1.442695
        %v4297 = vpow.pop %v4296
        %v4298 = vmul.f32 %v4225, 1.442695
        %v4299 = vpow.pop %v4298
        %v4300 = vmul.f32 %v4226, 1.442695
        %v4301 = vpow.pop %v4300
        %v4302 = vmul.f32 %v4227, 1.442695
        %v4303 = vpow.pop %v4302
        %v4304 = vmul.f32 %v4228, 1.442695
        %v4305 = vpow.pop %v4304
        %v4306 = vmul.f32 %v4229, 1.442695
        %v4307 = vpow.pop %v4306
        %v4308 = vmul.f32 %v4230, 1.442695
        %v4309 = vpow.pop %v4308
        %v4310 = vmul.f32 %v4231, 1.442695
        %v4311 = vpow.pop %v4310
        %v4312 = vmul.f32 %v4232, 1.442695
        %v4313 = vpow.pop %v4312
        %v4314 = vmul.f32 %v4233, 1.442695
        %v4315 = vpow.pop %v4314
        %v4316 = vmul.f32 %v4234, 1.442695
        %v4317 = vpow.pop %v4316
        %v4318 = vmul.f32 %v4235, 1.442695
        %v4319 = vpow.pop %v4318
        %v4320 = vmul.f32 %v4236, 1.442695
        %v4321 = vpow.pop %v4320
        %v4322 = vmul.f32 %v4237, 1.442695
        %v4323 = vpow.pop %v4322
        %v4324 = vmul.f32 %v4238, 1.442695
        %v4325 = vpow.pop %v4324
        %v4326 = vmul.f32 %v4239, 1.442695
        %v4327 = vpow.pop %v4326
        %v4328 = vmul.f32 %v4240, 1.442695
        %v4329 = vpow.pop %v4328
        %v4330 = vmul.f32 %v4241, 1.442695
        %v4331 = vpow.pop %v4330
        %v4332 = vmul.f32 %v4242, 1.442695
        %v4333 = vpow.pop %v4332
        %v4334 = vmul.f32 %v4243, 1.442695
        %v4335 = vpow.pop %v4334
        %v4336 = vmul.f32 %v4244, 1.442695
        %v4337 = vpow.pop %v4336
        %v4338 = vmul.f32 %v4245, 1.442695
        %v4339 = vpow.pop %v4338
        %v4340 = vmul.f32 %v4246, 1.442695
        %v4341 = vpow.pop %v4340
        %v4342 = vmul.f32 %v4247, 1.442695
        %v4343 = vpow.pop %v4342
        %v4344 = vmul.f32 %v4248, 1.442695
        %v4345 = vpow.pop %v4344
        %v4346 = vmul.f32 %v4249, 1.442695
        %v4347 = vpow.pop %v4346
        %v4348 = vmul.f32 %v4250, 1.442695
        %v4349 = vpow.pop %v4348
        %v4350 = vmul.f32 %v4251, 1.442695
        %v4351 = vpow.pop %v4350
        %v4352 = vmul.f32 %v4252, 1.442695
        %v4353 = vpow.pop %v4352
        %v4354 = vmul.f32 %v4253, 1.442695
        %v4355 = vpow.pop %v4354
        %v4356 = vmul.f32 %v4254, 1.442695
        %v4357 = vpow.pop %v4356
        %v4358 = vmul.f32 %v4255, 1.442695
        %v4359 = vpow.pop %v4358
        %v4360 = vmul.f32 %v4256, 1.442695
        %v4361 = vpow.pop %v4360
        %v4362 = vmul.f32 %v4257, 1.442695
        %v4363 = vpow.pop %v4362
        %v4364 = vmul.f32 %v4258, 1.442695
        %v4365 = vpow.pop %v4364
        %v4366 = vmul.f32 %v4259, 1.442695
        %v4367 = vpow.pop %v4366
        %v4368 = vmul.f32 %v4260, 1.442695
        %v4369 = vpow.pop %v4368
        %v4370 = vmul.f32 %v4261, 1.442695
        %v4371 = vpow.pop %v4370
        %v4372 = vmul.f32 %v4262, 1.442695
        %v4373 = vpow.pop %v4372
        %v4374 = vmul.f32 %v4263, 1.442695
        %v4375 = vpow.pop %v4374
        %v4376 = vmul.f32 %v4264, 1.442695
        %v4377 = vpow.pop %v4376
        %v4378 = vmul.f32 %v4265, 1.442695
        %v4379 = vpow.pop %v4378
        %v4380 = vmul.f32 %v4266, 1.442695
        %v4381 = vpow.pop %v4380
        %v4382 = vmul.f32 %v4267, 1.442695
        %v4383 = vpow.pop %v4382
        %v4384 = vmul.f32 %v4268, 1.442695
        %v4385 = vpow.pop %v4384
        %v4386 = vmul.f32 %v4269, 1.442695
        %v4387 = vpow.pop %v4386
        %v4388 = vmul.f32 %v4270, 1.442695
        %v4389 = vpow.pop %v4388
        %v4390 = vmul.f32 %v4271, 1.442695
        %v4391 = vpow.pop %v4390
        %v4392 = vmul.f32 %v4272, 1.442695
        %v4393 = vpow.pop %v4392
        %v4394 = vmul.f32 %v4273, 1.442695
        %v4395 = vpow.pop %v4394
        %v4396 = vmul.f32 %v4274, 1.442695
        %v4397 = vpow.pop %v4396
        %v4398 = vmul.f32 %v4275, 1.442695
        %v4399 = vpow.pop %v4398
        %v4400 = vmul.f32 %v4276, 1.442695
        %v4401 = vpow.pop %v4400
        %v4402 = vmul.f32 %v4277, 1.442695
        %v4403 = vpow.pop %v4402
        %v4404 = vmul.f32 %v4278, 1.442695
        %v4405 = vpow.pop %v4404
        %v4406 = vmul.f32 %v4279, 1.442695
        %v4407 = vpow.pop %v4406
        %4409 = vset.pattern.permute.xlu0 0
        %4410 = vperm.xlu0 %4409, %v4281
        %v4411 = vpop.permute.xlu0 %4410
        %4414 = vset.pattern.permute.xlu0 0
        %4415 = vperm.xlu0 %4414, %v4283
        %v4416 = vpop.permute.xlu0 %4415
        %4419 = vset.pattern.permute.xlu0 0
        %4420 = vperm.xlu0 %4419, %v4285
        %v4421 = vpop.permute.xlu0 %4420
        %4424 = vset.pattern.permute.xlu0 0
        %4425 = vperm.xlu0 %4424, %v4287
        %v4426 = vpop.permute.xlu0 %4425
        %4429 = vset.pattern.permute.xlu0 0
        %4430 = vperm.xlu0 %4429, %v4289
        %v4431 = vpop.permute.xlu0 %4430
        %4434 = vset.pattern.permute.xlu0 0
        %4435 = vperm.xlu0 %4434, %v4291
        %v4436 = vpop.permute.xlu0 %4435
        %4439 = vset.pattern.permute.xlu0 0
        %4440 = vperm.xlu0 %4439, %v4293
        %v4441 = vpop.permute.xlu0 %4440
        %4444 = vset.pattern.permute.xlu0 0
        %4445 = vperm.xlu0 %4444, %v4295
        %v4446 = vpop.permute.xlu0 %4445
        %4449 = vset.pattern.permute.xlu0 0
        %4450 = vperm.xlu0 %4449, %v4297
        %v4451 = vpop.permute.xlu0 %4450
        %4454 = vset.pattern.permute.xlu0 0
        %4455 = vperm.xlu0 %4454, %v4299
        %v4456 = vpop.permute.xlu0 %4455
        %4459 = vset.pattern.permute.xlu0 0
        %4460 = vperm.xlu0 %4459, %v4301
        %v4461 = vpop.permute.xlu0 %4460
        %4464 = vset.pattern.permute.xlu0 0
        %4465 = vperm.xlu0 %4464, %v4303
        %v4466 = vpop.permute.xlu0 %4465
        %4469 = vset.pattern.permute.xlu0 0
        %4470 = vperm.xlu0 %4469, %v4305
        %v4471 = vpop.permute.xlu0 %4470
        %4474 = vset.pattern.permute.xlu0 0
        %4475 = vperm.xlu0 %4474, %v4307
        %v4476 = vpop.permute.xlu0 %4475
        %4479 = vset.pattern.permute.xlu0 0
        %4480 = vperm.xlu0 %4479, %v4309
        %v4481 = vpop.permute.xlu0 %4480
        %4484 = vset.pattern.permute.xlu0 0
        %4485 = vperm.xlu0 %4484, %v4311
        %v4486 = vpop.permute.xlu0 %4485
        %4489 = vset.pattern.permute.xlu0 0
        %4490 = vperm.xlu0 %4489, %v4313
        %v4491 = vpop.permute.xlu0 %4490
        %4494 = vset.pattern.permute.xlu0 0
        %4495 = vperm.xlu0 %4494, %v4315
        %v4496 = vpop.permute.xlu0 %4495
        %4499 = vset.pattern.permute.xlu0 0
        %4500 = vperm.xlu0 %4499, %v4317
        %v4501 = vpop.permute.xlu0 %4500
        %4504 = vset.pattern.permute.xlu0 0
        %4505 = vperm.xlu0 %4504, %v4319
        %v4506 = vpop.permute.xlu0 %4505
        %4509 = vset.pattern.permute.xlu0 0
        %4510 = vperm.xlu0 %4509, %v4321
        %v4511 = vpop.permute.xlu0 %4510
        %4514 = vset.pattern.permute.xlu0 0
        %4515 = vperm.xlu0 %4514, %v4323
        %v4516 = vpop.permute.xlu0 %4515
        %4519 = vset.pattern.permute.xlu0 0
        %4520 = vperm.xlu0 %4519, %v4325
        %v4521 = vpop.permute.xlu0 %4520
        %4524 = vset.pattern.permute.xlu0 0
        %4525 = vperm.xlu0 %4524, %v4327
        %v4526 = vpop.permute.xlu0 %4525
        %4529 = vset.pattern.permute.xlu0 0
        %4530 = vperm.xlu0 %4529, %v4329
        %v4531 = vpop.permute.xlu0 %4530
        %4534 = vset.pattern.permute.xlu0 0
        %4535 = vperm.xlu0 %4534, %v4331
        %v4536 = vpop.permute.xlu0 %4535
        %4539 = vset.pattern.permute.xlu0 0
        %4540 = vperm.xlu0 %4539, %v4333
        %v4541 = vpop.permute.xlu0 %4540
        %4544 = vset.pattern.permute.xlu0 0
        %4545 = vperm.xlu0 %4544, %v4335
        %v4546 = vpop.permute.xlu0 %4545
        %4549 = vset.pattern.permute.xlu0 0
        %4550 = vperm.xlu0 %4549, %v4337
        %v4551 = vpop.permute.xlu0 %4550
        %4554 = vset.pattern.permute.xlu0 0
        %4555 = vperm.xlu0 %4554, %v4339
        %v4556 = vpop.permute.xlu0 %4555
        %4559 = vset.pattern.permute.xlu0 0
        %4560 = vperm.xlu0 %4559, %v4341
        %v4561 = vpop.permute.xlu0 %4560
        %4564 = vset.pattern.permute.xlu0 0
        %4565 = vperm.xlu0 %4564, %v4343
        %v4566 = vpop.permute.xlu0 %4565
        %4569 = vset.pattern.permute.xlu0 0
        %4570 = vperm.xlu0 %4569, %v4345
        %v4571 = vpop.permute.xlu0 %4570
        %4574 = vset.pattern.permute.xlu0 0
        %4575 = vperm.xlu0 %4574, %v4347
        %v4576 = vpop.permute.xlu0 %4575
        %4579 = vset.pattern.permute.xlu0 0
        %4580 = vperm.xlu0 %4579, %v4349
        %v4581 = vpop.permute.xlu0 %4580
        %4584 = vset.pattern.permute.xlu0 0
        %4585 = vperm.xlu0 %4584, %v4351
        %v4586 = vpop.permute.xlu0 %4585
        %4589 = vset.pattern.permute.xlu0 0
        %4590 = vperm.xlu0 %4589, %v4353
        %v4591 = vpop.permute.xlu0 %4590
        %4594 = vset.pattern.permute.xlu0 0
        %4595 = vperm.xlu0 %4594, %v4355
        %v4596 = vpop.permute.xlu0 %4595
        %4599 = vset.pattern.permute.xlu0 0
        %4600 = vperm.xlu0 %4599, %v4357
        %v4601 = vpop.permute.xlu0 %4600
        %4604 = vset.pattern.permute.xlu0 0
        %4605 = vperm.xlu0 %4604, %v4359
        %v4606 = vpop.permute.xlu0 %4605
        %4609 = vset.pattern.permute.xlu0 0
        %4610 = vperm.xlu0 %4609, %v4361
        %v4611 = vpop.permute.xlu0 %4610
        %4614 = vset.pattern.permute.xlu0 0
        %4615 = vperm.xlu0 %4614, %v4363
        %v4616 = vpop.permute.xlu0 %4615
        %4619 = vset.pattern.permute.xlu0 0
        %4620 = vperm.xlu0 %4619, %v4365
        %v4621 = vpop.permute.xlu0 %4620
        %4624 = vset.pattern.permute.xlu0 0
        %4625 = vperm.xlu0 %4624, %v4367
        %v4626 = vpop.permute.xlu0 %4625
        %4629 = vset.pattern.permute.xlu0 0
        %4630 = vperm.xlu0 %4629, %v4369
        %v4631 = vpop.permute.xlu0 %4630
        %4634 = vset.pattern.permute.xlu0 0
        %4635 = vperm.xlu0 %4634, %v4371
        %v4636 = vpop.permute.xlu0 %4635
        %4639 = vset.pattern.permute.xlu0 0
        %4640 = vperm.xlu0 %4639, %v4373
        %v4641 = vpop.permute.xlu0 %4640
        %4644 = vset.pattern.permute.xlu0 0
        %4645 = vperm.xlu0 %4644, %v4375
        %v4646 = vpop.permute.xlu0 %4645
        %4649 = vset.pattern.permute.xlu0 0
        %4650 = vperm.xlu0 %4649, %v4377
        %v4651 = vpop.permute.xlu0 %4650
        %4654 = vset.pattern.permute.xlu0 0
        %4655 = vperm.xlu0 %4654, %v4379
        %v4656 = vpop.permute.xlu0 %4655
        %4659 = vset.pattern.permute.xlu0 0
        %4660 = vperm.xlu0 %4659, %v4381
        %v4661 = vpop.permute.xlu0 %4660
        %4664 = vset.pattern.permute.xlu0 0
        %4665 = vperm.xlu0 %4664, %v4383
        %v4666 = vpop.permute.xlu0 %4665
        %4669 = vset.pattern.permute.xlu0 0
        %4670 = vperm.xlu0 %4669, %v4385
        %v4671 = vpop.permute.xlu0 %4670
        %4674 = vset.pattern.permute.xlu0 0
        %4675 = vperm.xlu0 %4674, %v4387
        %v4676 = vpop.permute.xlu0 %4675
        %4679 = vset.pattern.permute.xlu0 0
        %4680 = vperm.xlu0 %4679, %v4389
        %v4681 = vpop.permute.xlu0 %4680
        %4684 = vset.pattern.permute.xlu0 0
        %4685 = vperm.xlu0 %4684, %v4391
        %v4686 = vpop.permute.xlu0 %4685
        %4689 = vset.pattern.permute.xlu0 0
        %4690 = vperm.xlu0 %4689, %v4393
        %v4691 = vpop.permute.xlu0 %4690
        %4694 = vset.pattern.permute.xlu0 0
        %4695 = vperm.xlu0 %4694, %v4395
        %v4696 = vpop.permute.xlu0 %4695
        %4699 = vset.pattern.permute.xlu0 0
        %4700 = vperm.xlu0 %4699, %v4397
        %v4701 = vpop.permute.xlu0 %4700
        %4704 = vset.pattern.permute.xlu0 0
        %4705 = vperm.xlu0 %4704, %v4399
        %v4706 = vpop.permute.xlu0 %4705
        %4709 = vset.pattern.permute.xlu0 0
        %4710 = vperm.xlu0 %4709, %v4401
        %v4711 = vpop.permute.xlu0 %4710
        %4714 = vset.pattern.permute.xlu0 0
        %4715 = vperm.xlu0 %4714, %v4403
        %v4716 = vpop.permute.xlu0 %4715
        %4719 = vset.pattern.permute.xlu0 0
        %4720 = vperm.xlu0 %4719, %v4405
        %v4721 = vpop.permute.xlu0 %4720
        %4724 = vset.pattern.permute.xlu0 0
        %4725 = vperm.xlu0 %4724, %v4407
        %v4726 = vpop.permute.xlu0 %4725
        %v4728 = vmul.f32 %v4411, %v2965
        %v4729 = vmul.f32 %v4416, %v2966
        %v4730 = vmul.f32 %v4421, %v2967
        %v4731 = vmul.f32 %v4426, %v2968
        %v4732 = vmul.f32 %v4431, %v2969
        %v4733 = vmul.f32 %v4436, %v2970
        %v4734 = vmul.f32 %v4441, %v2971
        %v4735 = vmul.f32 %v4446, %v2972
        %v4736 = vmul.f32 %v4451, %v2973
        %v4737 = vmul.f32 %v4456, %v2974
        %v4738 = vmul.f32 %v4461, %v2975
        %v4739 = vmul.f32 %v4466, %v2976
        %v4740 = vmul.f32 %v4471, %v2977
        %v4741 = vmul.f32 %v4476, %v2978
        %v4742 = vmul.f32 %v4481, %v2979
        %v4743 = vmul.f32 %v4486, %v2980
        %v4744 = vmul.f32 %v4491, %v2981
        %v4745 = vmul.f32 %v4496, %v2982
        %v4746 = vmul.f32 %v4501, %v2983
        %v4747 = vmul.f32 %v4506, %v2984
        %v4748 = vmul.f32 %v4511, %v2985
        %v4749 = vmul.f32 %v4516, %v2986
        %v4750 = vmul.f32 %v4521, %v2987
        %v4751 = vmul.f32 %v4526, %v2988
        %v4752 = vmul.f32 %v4531, %v2989
        %v4753 = vmul.f32 %v4536, %v2990
        %v4754 = vmul.f32 %v4541, %v2991
        %v4755 = vmul.f32 %v4546, %v2992
        %v4756 = vmul.f32 %v4551, %v2993
        %v4757 = vmul.f32 %v4556, %v2994
        %v4758 = vmul.f32 %v4561, %v2995
        %v4759 = vmul.f32 %v4566, %v2996
        %v4760 = vmul.f32 %v4571, %v2997
        %v4761 = vmul.f32 %v4576, %v2998
        %v4762 = vmul.f32 %v4581, %v2999
        %v4763 = vmul.f32 %v4586, %v3000
        %v4764 = vmul.f32 %v4591, %v3001
        %v4765 = vmul.f32 %v4596, %v3002
        %v4766 = vmul.f32 %v4601, %v3003
        %v4767 = vmul.f32 %v4606, %v3004
        %v4768 = vmul.f32 %v4611, %v3005
        %v4769 = vmul.f32 %v4616, %v3006
        %v4770 = vmul.f32 %v4621, %v3007
        %v4771 = vmul.f32 %v4626, %v3008
        %v4772 = vmul.f32 %v4631, %v3009
        %v4773 = vmul.f32 %v4636, %v3010
        %v4774 = vmul.f32 %v4641, %v3011
        %v4775 = vmul.f32 %v4646, %v3012
        %v4776 = vmul.f32 %v4651, %v3013
        %v4777 = vmul.f32 %v4656, %v3014
        %v4778 = vmul.f32 %v4661, %v3015
        %v4779 = vmul.f32 %v4666, %v3016
        %v4780 = vmul.f32 %v4671, %v3017
        %v4781 = vmul.f32 %v4676, %v3018
        %v4782 = vmul.f32 %v4681, %v3019
        %v4783 = vmul.f32 %v4686, %v3020
        %v4784 = vmul.f32 %v4691, %v3021
        %v4785 = vmul.f32 %v4696, %v3022
        %v4786 = vmul.f32 %v4701, %v3023
        %v4787 = vmul.f32 %v4706, %v3024
        %v4788 = vmul.f32 %v4711, %v3025
        %v4789 = vmul.f32 %v4716, %v3026
        %v4790 = vmul.f32 %v4721, %v3027
        %v4791 = vmul.f32 %v4726, %v3028
        %4792 = vxpose.xlu0.b32.start [1/16] %v881, 128
        %4793 = vxpose.xlu0.b32.cont [2/16] %v884, 128
        %4794 = vxpose.xlu0.b32.cont [3/16] %v887, 128
        %4795 = vxpose.xlu0.b32.cont [4/16] %v890, 128
        %4796 = vxpose.xlu0.b32.cont [5/16] %v893, 128
        %4797 = vxpose.xlu0.b32.cont [6/16] %v896, 128
        %4798 = vxpose.xlu0.b32.cont [7/16] %v899, 128
        %4799 = vxpose.xlu0.b32.cont [8/16] %v902, 128
        %4800 = vxpose.xlu0.b32.cont [9/16] %v905, 128
        %4801 = vxpose.xlu0.b32.cont [10/16] %v908, 128
        %4802 = vxpose.xlu0.b32.cont [11/16] %v911, 128
        %4803 = vxpose.xlu0.b32.cont [12/16] %v914, 128
        %4804 = vxpose.xlu0.b32.cont [13/16] %v917, 128
        %4805 = vxpose.xlu0.b32.cont [14/16] %v920, 128
        %4806 = vxpose.xlu0.b32.cont [15/16] %v923, 128
        %4807 = vxpose.xlu0.b32.end [16/16] %v926, 128
        %v4808 = vpop.trf.xlu0
        %v4809 = vpop.trf.xlu0
        %v4810 = vpop.trf.xlu0
        %v4811 = vpop.trf.xlu0
        %v4812 = vpop.trf.xlu0
        %v4813 = vpop.trf.xlu0
        %v4814 = vpop.trf.xlu0
        %v4815 = vpop.trf.xlu0
        %v4816 = vpop.trf.xlu0
        %v4817 = vpop.trf.xlu0
        %v4818 = vpop.trf.xlu0
        %v4819 = vpop.trf.xlu0
        %v4820 = vpop.trf.xlu0
        %v4821 = vpop.trf.xlu0
        %v4822 = vpop.trf.xlu0
        %v4823 = vpop.trf.xlu0
        %4824 = vxpose.xlu0.b32.start [1/16] %v882, 128
        %4825 = vxpose.xlu0.b32.cont [2/16] %v885, 128
        %4826 = vxpose.xlu0.b32.cont [3/16] %v888, 128
        %4827 = vxpose.xlu0.b32.cont [4/16] %v891, 128
        %4828 = vxpose.xlu0.b32.cont [5/16] %v894, 128
        %4829 = vxpose.xlu0.b32.cont [6/16] %v897, 128
        %4830 = vxpose.xlu0.b32.cont [7/16] %v900, 128
        %4831 = vxpose.xlu0.b32.cont [8/16] %v903, 128
        %4832 = vxpose.xlu0.b32.cont [9/16] %v906, 128
        %4833 = vxpose.xlu0.b32.cont [10/16] %v909, 128
        %4834 = vxpose.xlu0.b32.cont [11/16] %v912, 128
        %4835 = vxpose.xlu0.b32.cont [12/16] %v915, 128
        %4836 = vxpose.xlu0.b32.cont [13/16] %v918, 128
        %4837 = vxpose.xlu0.b32.cont [14/16] %v921, 128
        %4838 = vxpose.xlu0.b32.cont [15/16] %v924, 128
        %4839 = vxpose.xlu0.b32.end [16/16] %v927, 128
        %v4840 = vpop.trf.xlu0
        %v4841 = vpop.trf.xlu0
        %v4842 = vpop.trf.xlu0
        %v4843 = vpop.trf.xlu0
        %v4844 = vpop.trf.xlu0
        %v4845 = vpop.trf.xlu0
        %v4846 = vpop.trf.xlu0
        %v4847 = vpop.trf.xlu0
        %v4848 = vpop.trf.xlu0
        %v4849 = vpop.trf.xlu0
        %v4850 = vpop.trf.xlu0
        %v4851 = vpop.trf.xlu0
        %v4852 = vpop.trf.xlu0
        %v4853 = vpop.trf.xlu0
        %v4854 = vpop.trf.xlu0
        %v4855 = vpop.trf.xlu0
        %4856 = vxpose.xlu0.b32.start [1/16] %v883, 128
        %4857 = vxpose.xlu0.b32.cont [2/16] %v886, 128
        %4858 = vxpose.xlu0.b32.cont [3/16] %v889, 128
        %4859 = vxpose.xlu0.b32.cont [4/16] %v892, 128
        %4860 = vxpose.xlu0.b32.cont [5/16] %v895, 128
        %4861 = vxpose.xlu0.b32.cont [6/16] %v898, 128
        %4862 = vxpose.xlu0.b32.cont [7/16] %v901, 128
        %4863 = vxpose.xlu0.b32.cont [8/16] %v904, 128
        %4864 = vxpose.xlu0.b32.cont [9/16] %v907, 128
        %4865 = vxpose.xlu0.b32.cont [10/16] %v910, 128
        %4866 = vxpose.xlu0.b32.cont [11/16] %v913, 128
        %4867 = vxpose.xlu0.b32.cont [12/16] %v916, 128
        %4868 = vxpose.xlu0.b32.cont [13/16] %v919, 128
        %4869 = vxpose.xlu0.b32.cont [14/16] %v922, 128
        %4870 = vxpose.xlu0.b32.cont [15/16] %v925, 128
        %4871 = vxpose.xlu0.b32.end [16/16] %v928, 128
        %v4872 = vpop.trf.xlu0
        %v4873 = vpop.trf.xlu0
        %v4874 = vpop.trf.xlu0
        %v4875 = vpop.trf.xlu0
        %v4876 = vpop.trf.xlu0
        %v4877 = vpop.trf.xlu0
        %v4878 = vpop.trf.xlu0
        %v4879 = vpop.trf.xlu0
        %v4880 = vpop.trf.xlu0
        %v4881 = vpop.trf.xlu0
        %v4882 = vpop.trf.xlu0
        %v4883 = vpop.trf.xlu0
        %v4884 = vpop.trf.xlu0
        %v4885 = vpop.trf.xlu0
        %v4886 = vpop.trf.xlu0
        %v4887 = vpop.trf.xlu0
        %4888 = vxpose.xlu0.b32.start [1/16] %v929, 128
        %4889 = vxpose.xlu0.b32.cont [2/16] %v932, 128
        %4890 = vxpose.xlu0.b32.cont [3/16] %v935, 128
        %4891 = vxpose.xlu0.b32.cont [4/16] %v938, 128
        %4892 = vxpose.xlu0.b32.cont [5/16] %v941, 128
        %4893 = vxpose.xlu0.b32.cont [6/16] %v944, 128
        %4894 = vxpose.xlu0.b32.cont [7/16] %v947, 128
        %4895 = vxpose.xlu0.b32.cont [8/16] %v950, 128
        %4896 = vxpose.xlu0.b32.cont [9/16] %v953, 128
        %4897 = vxpose.xlu0.b32.cont [10/16] %v956, 128
        %4898 = vxpose.xlu0.b32.cont [11/16] %v959, 128
        %4899 = vxpose.xlu0.b32.cont [12/16] %v962, 128
        %4900 = vxpose.xlu0.b32.cont [13/16] %v965, 128
        %4901 = vxpose.xlu0.b32.cont [14/16] %v968, 128
        %4902 = vxpose.xlu0.b32.cont [15/16] %v971, 128
        %4903 = vxpose.xlu0.b32.end [16/16] %v974, 128
        %v4904 = vpop.trf.xlu0
        %v4905 = vpop.trf.xlu0
        %v4906 = vpop.trf.xlu0
        %v4907 = vpop.trf.xlu0
        %v4908 = vpop.trf.xlu0
        %v4909 = vpop.trf.xlu0
        %v4910 = vpop.trf.xlu0
        %v4911 = vpop.trf.xlu0
        %v4912 = vpop.trf.xlu0
        %v4913 = vpop.trf.xlu0
        %v4914 = vpop.trf.xlu0
        %v4915 = vpop.trf.xlu0
        %v4916 = vpop.trf.xlu0
        %v4917 = vpop.trf.xlu0
        %v4918 = vpop.trf.xlu0
        %v4919 = vpop.trf.xlu0
        %4920 = vxpose.xlu0.b32.start [1/16] %v930, 128
        %4921 = vxpose.xlu0.b32.cont [2/16] %v933, 128
        %4922 = vxpose.xlu0.b32.cont [3/16] %v936, 128
        %4923 = vxpose.xlu0.b32.cont [4/16] %v939, 128
        %4924 = vxpose.xlu0.b32.cont [5/16] %v942, 128
        %4925 = vxpose.xlu0.b32.cont [6/16] %v945, 128
        %4926 = vxpose.xlu0.b32.cont [7/16] %v948, 128
        %4927 = vxpose.xlu0.b32.cont [8/16] %v951, 128
        %4928 = vxpose.xlu0.b32.cont [9/16] %v954, 128
        %4929 = vxpose.xlu0.b32.cont [10/16] %v957, 128
        %4930 = vxpose.xlu0.b32.cont [11/16] %v960, 128
        %4931 = vxpose.xlu0.b32.cont [12/16] %v963, 128
        %4932 = vxpose.xlu0.b32.cont [13/16] %v966, 128
        %4933 = vxpose.xlu0.b32.cont [14/16] %v969, 128
        %4934 = vxpose.xlu0.b32.cont [15/16] %v972, 128
        %4935 = vxpose.xlu0.b32.end [16/16] %v975, 128
        %v4936 = vpop.trf.xlu0
        %v4937 = vpop.trf.xlu0
        %v4938 = vpop.trf.xlu0
        %v4939 = vpop.trf.xlu0
        %v4940 = vpop.trf.xlu0
        %v4941 = vpop.trf.xlu0
        %v4942 = vpop.trf.xlu0
        %v4943 = vpop.trf.xlu0
        %v4944 = vpop.trf.xlu0
        %v4945 = vpop.trf.xlu0
        %v4946 = vpop.trf.xlu0
        %v4947 = vpop.trf.xlu0
        %v4948 = vpop.trf.xlu0
        %v4949 = vpop.trf.xlu0
        %v4950 = vpop.trf.xlu0
        %v4951 = vpop.trf.xlu0
        %4952 = vxpose.xlu0.b32.start [1/16] %v931, 128
        %4953 = vxpose.xlu0.b32.cont [2/16] %v934, 128
        %4954 = vxpose.xlu0.b32.cont [3/16] %v937, 128
        %4955 = vxpose.xlu0.b32.cont [4/16] %v940, 128
        %4956 = vxpose.xlu0.b32.cont [5/16] %v943, 128
        %4957 = vxpose.xlu0.b32.cont [6/16] %v946, 128
        %4958 = vxpose.xlu0.b32.cont [7/16] %v949, 128
        %4959 = vxpose.xlu0.b32.cont [8/16] %v952, 128
        %4960 = vxpose.xlu0.b32.cont [9/16] %v955, 128
        %4961 = vxpose.xlu0.b32.cont [10/16] %v958, 128
        %4962 = vxpose.xlu0.b32.cont [11/16] %v961, 128
        %4963 = vxpose.xlu0.b32.cont [12/16] %v964, 128
        %4964 = vxpose.xlu0.b32.cont [13/16] %v967, 128
        %4965 = vxpose.xlu0.b32.cont [14/16] %v970, 128
        %4966 = vxpose.xlu0.b32.cont [15/16] %v973, 128
        %4967 = vxpose.xlu0.b32.end [16/16] %v976, 128
        %v4968 = vpop.trf.xlu0
        %v4969 = vpop.trf.xlu0
        %v4970 = vpop.trf.xlu0
        %v4971 = vpop.trf.xlu0
        %v4972 = vpop.trf.xlu0
        %v4973 = vpop.trf.xlu0
        %v4974 = vpop.trf.xlu0
        %v4975 = vpop.trf.xlu0
        %v4976 = vpop.trf.xlu0
        %v4977 = vpop.trf.xlu0
        %v4978 = vpop.trf.xlu0
        %v4979 = vpop.trf.xlu0
        %v4980 = vpop.trf.xlu0
        %v4981 = vpop.trf.xlu0
        %v4982 = vpop.trf.xlu0
        %v4983 = vpop.trf.xlu0
        %4984 = vxpose.xlu0.b32.start [1/16] %v977, 128
        %4985 = vxpose.xlu0.b32.cont [2/16] %v980, 128
        %4986 = vxpose.xlu0.b32.cont [3/16] %v983, 128
        %4987 = vxpose.xlu0.b32.cont [4/16] %v986, 128
        %4988 = vxpose.xlu0.b32.cont [5/16] %v989, 128
        %4989 = vxpose.xlu0.b32.cont [6/16] %v992, 128
        %4990 = vxpose.xlu0.b32.cont [7/16] %v995, 128
        %4991 = vxpose.xlu0.b32.cont [8/16] %v998, 128
        %4992 = vxpose.xlu0.b32.cont [9/16] %v1001, 128
        %4993 = vxpose.xlu0.b32.cont [10/16] %v1004, 128
        %4994 = vxpose.xlu0.b32.cont [11/16] %v1007, 128
        %4995 = vxpose.xlu0.b32.cont [12/16] %v1010, 128
        %4996 = vxpose.xlu0.b32.cont [13/16] %v1013, 128
        %4997 = vxpose.xlu0.b32.cont [14/16] %v1016, 128
        %4998 = vxpose.xlu0.b32.cont [15/16] %v1019, 128
        %4999 = vxpose.xlu0.b32.end [16/16] %v1022, 128
        %v5000 = vpop.trf.xlu0
        %v5001 = vpop.trf.xlu0
        %v5002 = vpop.trf.xlu0
        %v5003 = vpop.trf.xlu0
        %v5004 = vpop.trf.xlu0
        %v5005 = vpop.trf.xlu0
        %v5006 = vpop.trf.xlu0
        %v5007 = vpop.trf.xlu0
        %v5008 = vpop.trf.xlu0
        %v5009 = vpop.trf.xlu0
        %v5010 = vpop.trf.xlu0
        %v5011 = vpop.trf.xlu0
        %v5012 = vpop.trf.xlu0
        %v5013 = vpop.trf.xlu0
        %v5014 = vpop.trf.xlu0
        %v5015 = vpop.trf.xlu0
        %5016 = vxpose.xlu0.b32.start [1/16] %v978, 128
        %5017 = vxpose.xlu0.b32.cont [2/16] %v981, 128
        %5018 = vxpose.xlu0.b32.cont [3/16] %v984, 128
        %5019 = vxpose.xlu0.b32.cont [4/16] %v987, 128
        %5020 = vxpose.xlu0.b32.cont [5/16] %v990, 128
        %5021 = vxpose.xlu0.b32.cont [6/16] %v993, 128
        %5022 = vxpose.xlu0.b32.cont [7/16] %v996, 128
        %5023 = vxpose.xlu0.b32.cont [8/16] %v999, 128
        %5024 = vxpose.xlu0.b32.cont [9/16] %v1002, 128
        %5025 = vxpose.xlu0.b32.cont [10/16] %v1005, 128
        %5026 = vxpose.xlu0.b32.cont [11/16] %v1008, 128
        %5027 = vxpose.xlu0.b32.cont [12/16] %v1011, 128
        %5028 = vxpose.xlu0.b32.cont [13/16] %v1014, 128
        %5029 = vxpose.xlu0.b32.cont [14/16] %v1017, 128
        %5030 = vxpose.xlu0.b32.cont [15/16] %v1020, 128
        %5031 = vxpose.xlu0.b32.end [16/16] %v1023, 128
        %v5032 = vpop.trf.xlu0
        %v5033 = vpop.trf.xlu0
        %v5034 = vpop.trf.xlu0
        %v5035 = vpop.trf.xlu0
        %v5036 = vpop.trf.xlu0
        %v5037 = vpop.trf.xlu0
        %v5038 = vpop.trf.xlu0
        %v5039 = vpop.trf.xlu0
        %v5040 = vpop.trf.xlu0
        %v5041 = vpop.trf.xlu0
        %v5042 = vpop.trf.xlu0
        %v5043 = vpop.trf.xlu0
        %v5044 = vpop.trf.xlu0
        %v5045 = vpop.trf.xlu0
        %v5046 = vpop.trf.xlu0
        %v5047 = vpop.trf.xlu0
        %5048 = vxpose.xlu0.b32.start [1/16] %v979, 128
        %5049 = vxpose.xlu0.b32.cont [2/16] %v982, 128
        %5050 = vxpose.xlu0.b32.cont [3/16] %v985, 128
        %5051 = vxpose.xlu0.b32.cont [4/16] %v988, 128
        %5052 = vxpose.xlu0.b32.cont [5/16] %v991, 128
        %5053 = vxpose.xlu0.b32.cont [6/16] %v994, 128
        %5054 = vxpose.xlu0.b32.cont [7/16] %v997, 128
        %5055 = vxpose.xlu0.b32.cont [8/16] %v1000, 128
        %5056 = vxpose.xlu0.b32.cont [9/16] %v1003, 128
        %5057 = vxpose.xlu0.b32.cont [10/16] %v1006, 128
        %5058 = vxpose.xlu0.b32.cont [11/16] %v1009, 128
        %5059 = vxpose.xlu0.b32.cont [12/16] %v1012, 128
        %5060 = vxpose.xlu0.b32.cont [13/16] %v1015, 128
        %5061 = vxpose.xlu0.b32.cont [14/16] %v1018, 128
        %5062 = vxpose.xlu0.b32.cont [15/16] %v1021, 128
        %5063 = vxpose.xlu0.b32.end [16/16] %v1024, 128
        %v5064 = vpop.trf.xlu0
        %v5065 = vpop.trf.xlu0
        %v5066 = vpop.trf.xlu0
        %v5067 = vpop.trf.xlu0
        %v5068 = vpop.trf.xlu0
        %v5069 = vpop.trf.xlu0
        %v5070 = vpop.trf.xlu0
        %v5071 = vpop.trf.xlu0
        %v5072 = vpop.trf.xlu0
        %v5073 = vpop.trf.xlu0
        %v5074 = vpop.trf.xlu0
        %v5075 = vpop.trf.xlu0
        %v5076 = vpop.trf.xlu0
        %v5077 = vpop.trf.xlu0
        %v5078 = vpop.trf.xlu0
        %v5079 = vpop.trf.xlu0
        %5080 = vxpose.xlu0.b32.start [1/16] %v1025, 128
        %5081 = vxpose.xlu0.b32.cont [2/16] %v1028, 128
        %5082 = vxpose.xlu0.b32.cont [3/16] %v1031, 128
        %5083 = vxpose.xlu0.b32.cont [4/16] %v1034, 128
        %5084 = vxpose.xlu0.b32.cont [5/16] %v1037, 128
        %5085 = vxpose.xlu0.b32.cont [6/16] %v1040, 128
        %5086 = vxpose.xlu0.b32.cont [7/16] %v1043, 128
        %5087 = vxpose.xlu0.b32.cont [8/16] %v1046, 128
        %5088 = vxpose.xlu0.b32.cont [9/16] %v1049, 128
        %5089 = vxpose.xlu0.b32.cont [10/16] %v1052, 128
        %5090 = vxpose.xlu0.b32.cont [11/16] %v1055, 128
        %5091 = vxpose.xlu0.b32.cont [12/16] %v1058, 128
        %5092 = vxpose.xlu0.b32.cont [13/16] %v1061, 128
        %5093 = vxpose.xlu0.b32.cont [14/16] %v1064, 128
        %5094 = vxpose.xlu0.b32.cont [15/16] %v1067, 128
        %5095 = vxpose.xlu0.b32.end [16/16] %v1070, 128
        %v5096 = vpop.trf.xlu0
        %v5097 = vpop.trf.xlu0
        %v5098 = vpop.trf.xlu0
        %v5099 = vpop.trf.xlu0
        %v5100 = vpop.trf.xlu0
        %v5101 = vpop.trf.xlu0
        %v5102 = vpop.trf.xlu0
        %v5103 = vpop.trf.xlu0
        %v5104 = vpop.trf.xlu0
        %v5105 = vpop.trf.xlu0
        %v5106 = vpop.trf.xlu0
        %v5107 = vpop.trf.xlu0
        %v5108 = vpop.trf.xlu0
        %v5109 = vpop.trf.xlu0
        %v5110 = vpop.trf.xlu0
        %v5111 = vpop.trf.xlu0
        %5112 = vxpose.xlu0.b32.start [1/16] %v1026, 128
        %5113 = vxpose.xlu0.b32.cont [2/16] %v1029, 128
        %5114 = vxpose.xlu0.b32.cont [3/16] %v1032, 128
        %5115 = vxpose.xlu0.b32.cont [4/16] %v1035, 128
        %5116 = vxpose.xlu0.b32.cont [5/16] %v1038, 128
        %5117 = vxpose.xlu0.b32.cont [6/16] %v1041, 128
        %5118 = vxpose.xlu0.b32.cont [7/16] %v1044, 128
        %5119 = vxpose.xlu0.b32.cont [8/16] %v1047, 128
        %5120 = vxpose.xlu0.b32.cont [9/16] %v1050, 128
        %5121 = vxpose.xlu0.b32.cont [10/16] %v1053, 128
        %5122 = vxpose.xlu0.b32.cont [11/16] %v1056, 128
        %5123 = vxpose.xlu0.b32.cont [12/16] %v1059, 128
        %5124 = vxpose.xlu0.b32.cont [13/16] %v1062, 128
        %5125 = vxpose.xlu0.b32.cont [14/16] %v1065, 128
        %5126 = vxpose.xlu0.b32.cont [15/16] %v1068, 128
        %5127 = vxpose.xlu0.b32.end [16/16] %v1071, 128
        %v5128 = vpop.trf.xlu0
        %v5129 = vpop.trf.xlu0
        %v5130 = vpop.trf.xlu0
        %v5131 = vpop.trf.xlu0
        %v5132 = vpop.trf.xlu0
        %v5133 = vpop.trf.xlu0
        %v5134 = vpop.trf.xlu0
        %v5135 = vpop.trf.xlu0
        %v5136 = vpop.trf.xlu0
        %v5137 = vpop.trf.xlu0
        %v5138 = vpop.trf.xlu0
        %v5139 = vpop.trf.xlu0
        %v5140 = vpop.trf.xlu0
        %v5141 = vpop.trf.xlu0
        %v5142 = vpop.trf.xlu0
        %v5143 = vpop.trf.xlu0
        %5144 = vxpose.xlu0.b32.start [1/16] %v1027, 128
        %5145 = vxpose.xlu0.b32.cont [2/16] %v1030, 128
        %5146 = vxpose.xlu0.b32.cont [3/16] %v1033, 128
        %5147 = vxpose.xlu0.b32.cont [4/16] %v1036, 128
        %5148 = vxpose.xlu0.b32.cont [5/16] %v1039, 128
        %5149 = vxpose.xlu0.b32.cont [6/16] %v1042, 128
        %5150 = vxpose.xlu0.b32.cont [7/16] %v1045, 128
        %5151 = vxpose.xlu0.b32.cont [8/16] %v1048, 128
        %5152 = vxpose.xlu0.b32.cont [9/16] %v1051, 128
        %5153 = vxpose.xlu0.b32.cont [10/16] %v1054, 128
        %5154 = vxpose.xlu0.b32.cont [11/16] %v1057, 128
        %5155 = vxpose.xlu0.b32.cont [12/16] %v1060, 128
        %5156 = vxpose.xlu0.b32.cont [13/16] %v1063, 128
        %5157 = vxpose.xlu0.b32.cont [14/16] %v1066, 128
        %5158 = vxpose.xlu0.b32.cont [15/16] %v1069, 128
        %5159 = vxpose.xlu0.b32.end [16/16] %v1072, 128
        %v5160 = vpop.trf.xlu0
        %v5161 = vpop.trf.xlu0
        %v5162 = vpop.trf.xlu0
        %v5163 = vpop.trf.xlu0
        %v5164 = vpop.trf.xlu0
        %v5165 = vpop.trf.xlu0
        %v5166 = vpop.trf.xlu0
        %v5167 = vpop.trf.xlu0
        %v5168 = vpop.trf.xlu0
        %v5169 = vpop.trf.xlu0
        %v5170 = vpop.trf.xlu0
        %v5171 = vpop.trf.xlu0
        %v5172 = vpop.trf.xlu0
        %v5173 = vpop.trf.xlu0
        %v5174 = vpop.trf.xlu0
        %v5175 = vpop.trf.xlu0
        %5176 = vmatprep.subr.mxu0 0.0
        %5177 = vmatpush1.msra.mxu0 %v4743
        %5178 = vmatprep.subr.mxu0 0.0
        %5179 = vmatpush1.msra.mxu0 %v4742
        %5180 = vmatprep.subr.mxu0 0.0
        %5181 = vmatpush1.msra.mxu0 %v4741
        %5182 = vmatprep.subr.mxu0 0.0
        %5183 = vmatpush1.msra.mxu0 %v4740
        %5184 = vmatprep.subr.mxu0 0.0
        %5185 = vmatpush1.msra.mxu0 %v4739
        %5186 = vmatprep.subr.mxu0 0.0
        %5187 = vmatpush1.msra.mxu0 %v4738
        %5188 = vmatprep.subr.mxu0 0.0
        %5189 = vmatpush1.msra.mxu0 %v4737
        %5190 = vmatprep.subr.mxu0 0.0
        %5191 = vmatpush1.msra.mxu0 %v4736
        %5192 = vmatprep.subr.mxu0 0.0
        %5193 = vmatpush1.msra.mxu0 %v4735
        %5194 = vmatprep.subr.mxu0 0.0
        %5195 = vmatpush1.msra.mxu0 %v4734
        %5196 = vmatprep.subr.mxu0 0.0
        %5197 = vmatpush1.msra.mxu0 %v4733
        %5198 = vmatprep.subr.mxu0 0.0
        %5199 = vmatpush1.msra.mxu0 %v4732
        %5200 = vmatprep.subr.mxu0 0.0
        %5201 = vmatpush1.msra.mxu0 %v4731
        %5202 = vmatprep.subr.mxu0 0.0
        %5203 = vmatpush1.msra.mxu0 %v4730
        %5204 = vmatprep.subr.mxu0 0.0
        %5205 = vmatpush1.msra.mxu0 %v4729
        %5206 = vmatprep.subr.mxu0 0.0
        %5207 = vmatpush1.msra.mxu0 %v4728
        %5208 = vmatprep.subr.mxu0 0.0
        %5209 = vmatpush2.msra.mxu0 %v4759
        %5210 = vmatprep.subr.mxu0 0.0
        %5211 = vmatpush2.msra.mxu0 %v4758
        %5212 = vmatprep.subr.mxu0 0.0
        %5213 = vmatpush2.msra.mxu0 %v4757
        %5214 = vmatprep.subr.mxu0 0.0
        %5215 = vmatpush2.msra.mxu0 %v4756
        %5216 = vmatprep.subr.mxu0 0.0
        %5217 = vmatpush2.msra.mxu0 %v4755
        %5218 = vmatprep.subr.mxu0 0.0
        %5219 = vmatpush2.msra.mxu0 %v4754
        %5220 = vmatprep.subr.mxu0 0.0
        %5221 = vmatpush2.msra.mxu0 %v4753
        %5222 = vmatprep.subr.mxu0 0.0
        %5223 = vmatpush2.msra.mxu0 %v4752
        %5224 = vmatprep.subr.mxu0 0.0
        %5225 = vmatpush2.msra.mxu0 %v4751
        %5226 = vmatprep.subr.mxu0 0.0
        %5227 = vmatpush2.msra.mxu0 %v4750
        %5228 = vmatprep.subr.mxu0 0.0
        %5229 = vmatpush2.msra.mxu0 %v4749
        %5230 = vmatprep.subr.mxu0 0.0
        %5231 = vmatpush2.msra.mxu0 %v4748
        %5232 = vmatprep.subr.mxu0 0.0
        %5233 = vmatpush2.msra.mxu0 %v4747
        %5234 = vmatprep.subr.mxu0 0.0
        %5235 = vmatpush2.msra.mxu0 %v4746
        %5236 = vmatprep.subr.mxu0 0.0
        %5237 = vmatpush2.msra.mxu0 %v4745
        %5238 = vmatprep.subr.mxu0 0.0
        %5239 = vmatpush2.msra.mxu0 %v4744
        %5240 = vmatprep.mubr.f32.mxu0 %v4904
        %5241 = vmatmul.mubr.f32.gmra.mxu0 %v4808
        %v5242 = vpop.f32.mrf.mxu0
        %v5243 = vadd.f32 0.0, %v5242
        %v5244 = vpop.f32.mrf.mxu0
        %5245 = vmatprep.mubr.f32.mxu0 %v4905
        %5246 = vmatmul.mubr.f32.gmra.mxu0 %v4809
        %v5247 = vpop.f32.mrf.mxu0
        %v5248 = vadd.f32 0.0, %v5247
        %v5249 = vpop.f32.mrf.mxu0
        %5250 = vmatprep.mubr.f32.mxu0 %v4906
        %5251 = vmatmul.mubr.f32.gmra.mxu0 %v4810
        %v5252 = vpop.f32.mrf.mxu0
        %v5253 = vadd.f32 0.0, %v5252
        %v5254 = vpop.f32.mrf.mxu0
        %5255 = vmatprep.mubr.f32.mxu0 %v4907
        %5256 = vmatmul.mubr.f32.gmra.mxu0 %v4811
        %v5257 = vpop.f32.mrf.mxu0
        %v5258 = vadd.f32 0.0, %v5257
        %v5259 = vpop.f32.mrf.mxu0
        %5260 = vmatprep.mubr.f32.mxu0 %v4908
        %5261 = vmatmul.mubr.f32.gmra.mxu0 %v4812
        %v5262 = vpop.f32.mrf.mxu0
        %v5263 = vadd.f32 0.0, %v5262
        %v5264 = vpop.f32.mrf.mxu0
        %5265 = vmatprep.mubr.f32.mxu0 %v4909
        %5266 = vmatmul.mubr.f32.gmra.mxu0 %v4813
        %v5267 = vpop.f32.mrf.mxu0
        %v5268 = vadd.f32 0.0, %v5267
        %v5269 = vpop.f32.mrf.mxu0
        %5270 = vmatprep.mubr.f32.mxu0 %v4910
        %5271 = vmatmul.mubr.f32.gmra.mxu0 %v4814
        %v5272 = vpop.f32.mrf.mxu0
        %v5273 = vadd.f32 0.0, %v5272
        %v5274 = vpop.f32.mrf.mxu0
        %5275 = vmatprep.mubr.f32.mxu0 %v4911
        %5276 = vmatmul.mubr.f32.gmra.mxu0 %v4815
        %v5277 = vpop.f32.mrf.mxu0
        %v5278 = vadd.f32 0.0, %v5277
        %v5279 = vpop.f32.mrf.mxu0
        %5280 = vmatprep.mubr.f32.mxu0 %v4912
        %5281 = vmatmul.mubr.f32.gmra.mxu0 %v4816
        %v5282 = vpop.f32.mrf.mxu0
        %v5283 = vadd.f32 0.0, %v5282
        %v5284 = vpop.f32.mrf.mxu0
        %5285 = vmatprep.mubr.f32.mxu0 %v4913
        %5286 = vmatmul.mubr.f32.gmra.mxu0 %v4817
        %v5287 = vpop.f32.mrf.mxu0
        %v5288 = vadd.f32 0.0, %v5287
        %v5289 = vpop.f32.mrf.mxu0
        %5290 = vmatprep.mubr.f32.mxu0 %v4914
        %5291 = vmatmul.mubr.f32.gmra.mxu0 %v4818
        %v5292 = vpop.f32.mrf.mxu0
        %v5293 = vadd.f32 0.0, %v5292
        %v5294 = vpop.f32.mrf.mxu0
        %5295 = vmatprep.mubr.f32.mxu0 %v4915
        %5296 = vmatmul.mubr.f32.gmra.mxu0 %v4819
        %v5297 = vpop.f32.mrf.mxu0
        %v5298 = vadd.f32 0.0, %v5297
        %v5299 = vpop.f32.mrf.mxu0
        %5300 = vmatprep.mubr.f32.mxu0 %v4916
        %5301 = vmatmul.mubr.f32.gmra.mxu0 %v4820
        %v5302 = vpop.f32.mrf.mxu0
        %v5303 = vadd.f32 0.0, %v5302
        %v5304 = vpop.f32.mrf.mxu0
        %5305 = vmatprep.mubr.f32.mxu0 %v4917
        %5306 = vmatmul.mubr.f32.gmra.mxu0 %v4821
        %v5307 = vpop.f32.mrf.mxu0
        %v5308 = vadd.f32 0.0, %v5307
        %v5309 = vpop.f32.mrf.mxu0
        %5310 = vmatprep.mubr.f32.mxu0 %v4918
        %5311 = vmatmul.mubr.f32.gmra.mxu0 %v4822
        %v5312 = vpop.f32.mrf.mxu0
        %v5313 = vadd.f32 0.0, %v5312
        %v5314 = vpop.f32.mrf.mxu0
        %5315 = vmatprep.mubr.f32.mxu0 %v4919
        %5316 = vmatmul.mubr.f32.gmra.mxu0 %v4823
        %v5317 = vpop.f32.mrf.mxu0
        %v5318 = vadd.f32 0.0, %v5317
        %v5319 = vpop.f32.mrf.mxu0
        %5320 = vmatprep.mubr.f32.mxu0 %v4936
        %5321 = vmatmul.mubr.f32.gmra.mxu0 %v4840
        %v5322 = vpop.f32.mrf.mxu0
        %v5323 = vadd.f32 0.0, %v5322
        %v5324 = vpop.f32.mrf.mxu0
        %5325 = vmatprep.mubr.f32.mxu0 %v4937
        %5326 = vmatmul.mubr.f32.gmra.mxu0 %v4841
        %v5327 = vpop.f32.mrf.mxu0
        %v5328 = vadd.f32 0.0, %v5327
        %v5329 = vpop.f32.mrf.mxu0
        %5330 = vmatprep.mubr.f32.mxu0 %v4938
        %5331 = vmatmul.mubr.f32.gmra.mxu0 %v4842
        %v5332 = vpop.f32.mrf.mxu0
        %v5333 = vadd.f32 0.0, %v5332
        %v5334 = vpop.f32.mrf.mxu0
        %5335 = vmatprep.mubr.f32.mxu0 %v4939
        %5336 = vmatmul.mubr.f32.gmra.mxu0 %v4843
        %v5337 = vpop.f32.mrf.mxu0
        %v5338 = vadd.f32 0.0, %v5337
        %v5339 = vpop.f32.mrf.mxu0
        %5340 = vmatprep.mubr.f32.mxu0 %v4940
        %5341 = vmatmul.mubr.f32.gmra.mxu0 %v4844
        %v5342 = vpop.f32.mrf.mxu0
        %v5343 = vadd.f32 0.0, %v5342
        %v5344 = vpop.f32.mrf.mxu0
        %5345 = vmatprep.mubr.f32.mxu0 %v4941
        %5346 = vmatmul.mubr.f32.gmra.mxu0 %v4845
        %v5347 = vpop.f32.mrf.mxu0
        %v5348 = vadd.f32 0.0, %v5347
        %v5349 = vpop.f32.mrf.mxu0
        %5350 = vmatprep.mubr.f32.mxu0 %v4942
        %5351 = vmatmul.mubr.f32.gmra.mxu0 %v4846
        %v5352 = vpop.f32.mrf.mxu0
        %v5353 = vadd.f32 0.0, %v5352
        %v5354 = vpop.f32.mrf.mxu0
        %5355 = vmatprep.mubr.f32.mxu0 %v4943
        %5356 = vmatmul.mubr.f32.gmra.mxu0 %v4847
        %v5357 = vpop.f32.mrf.mxu0
        %v5358 = vadd.f32 0.0, %v5357
        %v5359 = vpop.f32.mrf.mxu0
        %5360 = vmatprep.mubr.f32.mxu0 %v4944
        %5361 = vmatmul.mubr.f32.gmra.mxu0 %v4848
        %v5362 = vpop.f32.mrf.mxu0
        %v5363 = vadd.f32 0.0, %v5362
        %v5364 = vpop.f32.mrf.mxu0
        %5365 = vmatprep.mubr.f32.mxu0 %v4945
        %5366 = vmatmul.mubr.f32.gmra.mxu0 %v4849
        %v5367 = vpop.f32.mrf.mxu0
        %v5368 = vadd.f32 0.0, %v5367
        %v5369 = vpop.f32.mrf.mxu0
        %5370 = vmatprep.mubr.f32.mxu0 %v4946
        %5371 = vmatmul.mubr.f32.gmra.mxu0 %v4850
        %v5372 = vpop.f32.mrf.mxu0
        %v5373 = vadd.f32 0.0, %v5372
        %v5374 = vpop.f32.mrf.mxu0
        %5375 = vmatprep.mubr.f32.mxu0 %v4947
        %5376 = vmatmul.mubr.f32.gmra.mxu0 %v4851
        %v5377 = vpop.f32.mrf.mxu0
        %v5378 = vadd.f32 0.0, %v5377
        %v5379 = vpop.f32.mrf.mxu0
        %5380 = vmatprep.mubr.f32.mxu0 %v4948
        %5381 = vmatmul.mubr.f32.gmra.mxu0 %v4852
        %v5382 = vpop.f32.mrf.mxu0
        %v5383 = vadd.f32 0.0, %v5382
        %v5384 = vpop.f32.mrf.mxu0
        %5385 = vmatprep.mubr.f32.mxu0 %v4949
        %5386 = vmatmul.mubr.f32.gmra.mxu0 %v4853
        %v5387 = vpop.f32.mrf.mxu0
        %v5388 = vadd.f32 0.0, %v5387
        %v5389 = vpop.f32.mrf.mxu0
        %5390 = vmatprep.mubr.f32.mxu0 %v4950
        %5391 = vmatmul.mubr.f32.gmra.mxu0 %v4854
        %v5392 = vpop.f32.mrf.mxu0
        %v5393 = vadd.f32 0.0, %v5392
        %v5394 = vpop.f32.mrf.mxu0
        %5395 = vmatprep.mubr.f32.mxu0 %v4951
        %5396 = vmatmul.mubr.f32.gmra.mxu0 %v4855
        %v5397 = vpop.f32.mrf.mxu0
        %v5398 = vadd.f32 0.0, %v5397
        %v5399 = vpop.f32.mrf.mxu0
        %5400 = vmatprep.mubr.f32.mxu0 %v4968
        %5401 = vmatmul.mubr.f32.gmra.mxu0 %v4872
        %v5402 = vpop.f32.mrf.mxu0
        %v5403 = vadd.f32 0.0, %v5402
        %v5404 = vpop.f32.mrf.mxu0
        %5405 = vmatprep.mubr.f32.mxu0 %v4969
        %5406 = vmatmul.mubr.f32.gmra.mxu0 %v4873
        %v5407 = vpop.f32.mrf.mxu0
        %v5408 = vadd.f32 0.0, %v5407
        %v5409 = vpop.f32.mrf.mxu0
        %5410 = vmatprep.mubr.f32.mxu0 %v4970
        %5411 = vmatmul.mubr.f32.gmra.mxu0 %v4874
        %v5412 = vpop.f32.mrf.mxu0
        %v5413 = vadd.f32 0.0, %v5412
        %v5414 = vpop.f32.mrf.mxu0
        %5415 = vmatprep.mubr.f32.mxu0 %v4971
        %5416 = vmatmul.mubr.f32.gmra.mxu0 %v4875
        %v5417 = vpop.f32.mrf.mxu0
        %v5418 = vadd.f32 0.0, %v5417
        %v5419 = vpop.f32.mrf.mxu0
        %5420 = vmatprep.mubr.f32.mxu0 %v4972
        %5421 = vmatmul.mubr.f32.gmra.mxu0 %v4876
        %v5422 = vpop.f32.mrf.mxu0
        %v5423 = vadd.f32 0.0, %v5422
        %v5424 = vpop.f32.mrf.mxu0
        %5425 = vmatprep.mubr.f32.mxu0 %v4973
        %5426 = vmatmul.mubr.f32.gmra.mxu0 %v4877
        %v5427 = vpop.f32.mrf.mxu0
        %v5428 = vadd.f32 0.0, %v5427
        %v5429 = vpop.f32.mrf.mxu0
        %5430 = vmatprep.mubr.f32.mxu0 %v4974
        %5431 = vmatmul.mubr.f32.gmra.mxu0 %v4878
        %v5432 = vpop.f32.mrf.mxu0
        %v5433 = vadd.f32 0.0, %v5432
        %v5434 = vpop.f32.mrf.mxu0
        %5435 = vmatprep.mubr.f32.mxu0 %v4975
        %5436 = vmatmul.mubr.f32.gmra.mxu0 %v4879
        %v5437 = vpop.f32.mrf.mxu0
        %v5438 = vadd.f32 0.0, %v5437
        %v5439 = vpop.f32.mrf.mxu0
        %5440 = vmatprep.mubr.f32.mxu0 %v4976
        %5441 = vmatmul.mubr.f32.gmra.mxu0 %v4880
        %v5442 = vpop.f32.mrf.mxu0
        %v5443 = vadd.f32 0.0, %v5442
        %v5444 = vpop.f32.mrf.mxu0
        %5445 = vmatprep.mubr.f32.mxu0 %v4977
        %5446 = vmatmul.mubr.f32.gmra.mxu0 %v4881
        %v5447 = vpop.f32.mrf.mxu0
        %v5448 = vadd.f32 0.0, %v5447
        %v5449 = vpop.f32.mrf.mxu0
        %5450 = vmatprep.mubr.f32.mxu0 %v4978
        %5451 = vmatmul.mubr.f32.gmra.mxu0 %v4882
        %v5452 = vpop.f32.mrf.mxu0
        %v5453 = vadd.f32 0.0, %v5452
        %v5454 = vpop.f32.mrf.mxu0
        %5455 = vmatprep.mubr.f32.mxu0 %v4979
        %5456 = vmatmul.mubr.f32.gmra.mxu0 %v4883
        %v5457 = vpop.f32.mrf.mxu0
        %v5458 = vadd.f32 0.0, %v5457
        %v5459 = vpop.f32.mrf.mxu0
        %5460 = vmatprep.mubr.f32.mxu0 %v4980
        %5461 = vmatmul.mubr.f32.gmra.mxu0 %v4884
        %v5462 = vpop.f32.mrf.mxu0
        %v5463 = vadd.f32 0.0, %v5462
        %v5464 = vpop.f32.mrf.mxu0
        %5465 = vmatprep.mubr.f32.mxu0 %v4981
        %5466 = vmatmul.mubr.f32.gmra.mxu0 %v4885
        %v5467 = vpop.f32.mrf.mxu0
        %v5468 = vadd.f32 0.0, %v5467
        %v5469 = vpop.f32.mrf.mxu0
        %5470 = vmatprep.mubr.f32.mxu0 %v4982
        %5471 = vmatmul.mubr.f32.gmra.mxu0 %v4886
        %v5472 = vpop.f32.mrf.mxu0
        %v5473 = vadd.f32 0.0, %v5472
        %v5474 = vpop.f32.mrf.mxu0
        %5475 = vmatprep.mubr.f32.mxu0 %v4983
        %5476 = vmatmul.mubr.f32.gmra.mxu0 %v4887
        %v5477 = vpop.f32.mrf.mxu0
        %v5478 = vadd.f32 0.0, %v5477
        %v5479 = vpop.f32.mrf.mxu0
        %5480 = vdwg.mxu0
        %5481 = vmatprep.subr.mxu0 0.0
        %5482 = vmatpush1.msra.mxu0 %v4775
        %5483 = vmatprep.subr.mxu0 0.0
        %5484 = vmatpush1.msra.mxu0 %v4774
        %5485 = vmatprep.subr.mxu0 0.0
        %5486 = vmatpush1.msra.mxu0 %v4773
        %5487 = vmatprep.subr.mxu0 0.0
        %5488 = vmatpush1.msra.mxu0 %v4772
        %5489 = vmatprep.subr.mxu0 0.0
        %5490 = vmatpush1.msra.mxu0 %v4771
        %5491 = vmatprep.subr.mxu0 0.0
        %5492 = vmatpush1.msra.mxu0 %v4770
        %5493 = vmatprep.subr.mxu0 0.0
        %5494 = vmatpush1.msra.mxu0 %v4769
        %5495 = vmatprep.subr.mxu0 0.0
        %5496 = vmatpush1.msra.mxu0 %v4768
        %5497 = vmatprep.subr.mxu0 0.0
        %5498 = vmatpush1.msra.mxu0 %v4767
        %5499 = vmatprep.subr.mxu0 0.0
        %5500 = vmatpush1.msra.mxu0 %v4766
        %5501 = vmatprep.subr.mxu0 0.0
        %5502 = vmatpush1.msra.mxu0 %v4765
        %5503 = vmatprep.subr.mxu0 0.0
        %5504 = vmatpush1.msra.mxu0 %v4764
        %5505 = vmatprep.subr.mxu0 0.0
        %5506 = vmatpush1.msra.mxu0 %v4763
        %5507 = vmatprep.subr.mxu0 0.0
        %5508 = vmatpush1.msra.mxu0 %v4762
        %5509 = vmatprep.subr.mxu0 0.0
        %5510 = vmatpush1.msra.mxu0 %v4761
        %5511 = vmatprep.subr.mxu0 0.0
        %5512 = vmatpush1.msra.mxu0 %v4760
        %5513 = vmatprep.subr.mxu0 0.0
        %5514 = vmatpush2.msra.mxu0 %v4791
        %5515 = vmatprep.subr.mxu0 0.0
        %5516 = vmatpush2.msra.mxu0 %v4790
        %5517 = vmatprep.subr.mxu0 0.0
        %5518 = vmatpush2.msra.mxu0 %v4789
        %5519 = vmatprep.subr.mxu0 0.0
        %5520 = vmatpush2.msra.mxu0 %v4788
        %5521 = vmatprep.subr.mxu0 0.0
        %5522 = vmatpush2.msra.mxu0 %v4787
        %5523 = vmatprep.subr.mxu0 0.0
        %5524 = vmatpush2.msra.mxu0 %v4786
        %5525 = vmatprep.subr.mxu0 0.0
        %5526 = vmatpush2.msra.mxu0 %v4785
        %5527 = vmatprep.subr.mxu0 0.0
        %5528 = vmatpush2.msra.mxu0 %v4784
        %5529 = vmatprep.subr.mxu0 0.0
        %5530 = vmatpush2.msra.mxu0 %v4783
        %5531 = vmatprep.subr.mxu0 0.0
        %5532 = vmatpush2.msra.mxu0 %v4782
        %5533 = vmatprep.subr.mxu0 0.0
        %5534 = vmatpush2.msra.mxu0 %v4781
        %5535 = vmatprep.subr.mxu0 0.0
        %5536 = vmatpush2.msra.mxu0 %v4780
        %5537 = vmatprep.subr.mxu0 0.0
        %5538 = vmatpush2.msra.mxu0 %v4779
        %5539 = vmatprep.subr.mxu0 0.0
        %5540 = vmatpush2.msra.mxu0 %v4778
        %5541 = vmatprep.subr.mxu0 0.0
        %5542 = vmatpush2.msra.mxu0 %v4777
        %5543 = vmatprep.subr.mxu0 0.0
        %5544 = vmatpush2.msra.mxu0 %v4776
        %5545 = vmatprep.mubr.f32.mxu0 %v5096
        %5546 = vmatmul.mubr.f32.gmra.mxu0 %v5000
        %v5547 = vpop.f32.mrf.mxu0
        %v5548 = vadd.f32 %v5243, %v5547
        %v5549 = vpop.f32.mrf.mxu0
        %5550 = vmatprep.mubr.f32.mxu0 %v5097
        %5551 = vmatmul.mubr.f32.gmra.mxu0 %v5001
        %v5552 = vpop.f32.mrf.mxu0
        %v5553 = vadd.f32 %v5248, %v5552
        %v5554 = vpop.f32.mrf.mxu0
        %5555 = vmatprep.mubr.f32.mxu0 %v5098
        %5556 = vmatmul.mubr.f32.gmra.mxu0 %v5002
        %v5557 = vpop.f32.mrf.mxu0
        %v5558 = vadd.f32 %v5253, %v5557
        %v5559 = vpop.f32.mrf.mxu0
        %5560 = vmatprep.mubr.f32.mxu0 %v5099
        %5561 = vmatmul.mubr.f32.gmra.mxu0 %v5003
        %v5562 = vpop.f32.mrf.mxu0
        %v5563 = vadd.f32 %v5258, %v5562
        %v5564 = vpop.f32.mrf.mxu0
        %5565 = vmatprep.mubr.f32.mxu0 %v5100
        %5566 = vmatmul.mubr.f32.gmra.mxu0 %v5004
        %v5567 = vpop.f32.mrf.mxu0
        %v5568 = vadd.f32 %v5263, %v5567
        %v5569 = vpop.f32.mrf.mxu0
        %5570 = vmatprep.mubr.f32.mxu0 %v5101
        %5571 = vmatmul.mubr.f32.gmra.mxu0 %v5005
        %v5572 = vpop.f32.mrf.mxu0
        %v5573 = vadd.f32 %v5268, %v5572
        %v5574 = vpop.f32.mrf.mxu0
        %5575 = vmatprep.mubr.f32.mxu0 %v5102
        %5576 = vmatmul.mubr.f32.gmra.mxu0 %v5006
        %v5577 = vpop.f32.mrf.mxu0
        %v5578 = vadd.f32 %v5273, %v5577
        %v5579 = vpop.f32.mrf.mxu0
        %5580 = vmatprep.mubr.f32.mxu0 %v5103
        %5581 = vmatmul.mubr.f32.gmra.mxu0 %v5007
        %v5582 = vpop.f32.mrf.mxu0
        %v5583 = vadd.f32 %v5278, %v5582
        %v5584 = vpop.f32.mrf.mxu0
        %5585 = vmatprep.mubr.f32.mxu0 %v5104
        %5586 = vmatmul.mubr.f32.gmra.mxu0 %v5008
        %v5587 = vpop.f32.mrf.mxu0
        %v5588 = vadd.f32 %v5283, %v5587
        %v5589 = vpop.f32.mrf.mxu0
        %5590 = vmatprep.mubr.f32.mxu0 %v5105
        %5591 = vmatmul.mubr.f32.gmra.mxu0 %v5009
        %v5592 = vpop.f32.mrf.mxu0
        %v5593 = vadd.f32 %v5288, %v5592
        %v5594 = vpop.f32.mrf.mxu0
        %5595 = vmatprep.mubr.f32.mxu0 %v5106
        %5596 = vmatmul.mubr.f32.gmra.mxu0 %v5010
        %v5597 = vpop.f32.mrf.mxu0
        %v5598 = vadd.f32 %v5293, %v5597
        %v5599 = vpop.f32.mrf.mxu0
        %5600 = vmatprep.mubr.f32.mxu0 %v5107
        %5601 = vmatmul.mubr.f32.gmra.mxu0 %v5011
        %v5602 = vpop.f32.mrf.mxu0
        %v5603 = vadd.f32 %v5298, %v5602
        %v5604 = vpop.f32.mrf.mxu0
        %5605 = vmatprep.mubr.f32.mxu0 %v5108
        %5606 = vmatmul.mubr.f32.gmra.mxu0 %v5012
        %v5607 = vpop.f32.mrf.mxu0
        %v5608 = vadd.f32 %v5303, %v5607
        %v5609 = vpop.f32.mrf.mxu0
        %5610 = vmatprep.mubr.f32.mxu0 %v5109
        %5611 = vmatmul.mubr.f32.gmra.mxu0 %v5013
        %v5612 = vpop.f32.mrf.mxu0
        %v5613 = vadd.f32 %v5308, %v5612
        %v5614 = vpop.f32.mrf.mxu0
        %5615 = vmatprep.mubr.f32.mxu0 %v5110
        %5616 = vmatmul.mubr.f32.gmra.mxu0 %v5014
        %v5617 = vpop.f32.mrf.mxu0
        %v5618 = vadd.f32 %v5313, %v5617
        %v5619 = vpop.f32.mrf.mxu0
        %5620 = vmatprep.mubr.f32.mxu0 %v5111
        %5621 = vmatmul.mubr.f32.gmra.mxu0 %v5015
        %v5622 = vpop.f32.mrf.mxu0
        %v5623 = vadd.f32 %v5318, %v5622
        %v5624 = vpop.f32.mrf.mxu0
        %5625 = vmatprep.mubr.f32.mxu0 %v5128
        %5626 = vmatmul.mubr.f32.gmra.mxu0 %v5032
        %v5627 = vpop.f32.mrf.mxu0
        %v5628 = vadd.f32 %v5323, %v5627
        %v5629 = vpop.f32.mrf.mxu0
        %5630 = vmatprep.mubr.f32.mxu0 %v5129
        %5631 = vmatmul.mubr.f32.gmra.mxu0 %v5033
        %v5632 = vpop.f32.mrf.mxu0
        %v5633 = vadd.f32 %v5328, %v5632
        %v5634 = vpop.f32.mrf.mxu0
        %5635 = vmatprep.mubr.f32.mxu0 %v5130
        %5636 = vmatmul.mubr.f32.gmra.mxu0 %v5034
        %v5637 = vpop.f32.mrf.mxu0
        %v5638 = vadd.f32 %v5333, %v5637
        %v5639 = vpop.f32.mrf.mxu0
        %5640 = vmatprep.mubr.f32.mxu0 %v5131
        %5641 = vmatmul.mubr.f32.gmra.mxu0 %v5035
        %v5642 = vpop.f32.mrf.mxu0
        %v5643 = vadd.f32 %v5338, %v5642
        %v5644 = vpop.f32.mrf.mxu0
        %5645 = vmatprep.mubr.f32.mxu0 %v5132
        %5646 = vmatmul.mubr.f32.gmra.mxu0 %v5036
        %v5647 = vpop.f32.mrf.mxu0
        %v5648 = vadd.f32 %v5343, %v5647
        %v5649 = vpop.f32.mrf.mxu0
        %5650 = vmatprep.mubr.f32.mxu0 %v5133
        %5651 = vmatmul.mubr.f32.gmra.mxu0 %v5037
        %v5652 = vpop.f32.mrf.mxu0
        %v5653 = vadd.f32 %v5348, %v5652
        %v5654 = vpop.f32.mrf.mxu0
        %5655 = vmatprep.mubr.f32.mxu0 %v5134
        %5656 = vmatmul.mubr.f32.gmra.mxu0 %v5038
        %v5657 = vpop.f32.mrf.mxu0
        %v5658 = vadd.f32 %v5353, %v5657
        %v5659 = vpop.f32.mrf.mxu0
        %5660 = vmatprep.mubr.f32.mxu0 %v5135
        %5661 = vmatmul.mubr.f32.gmra.mxu0 %v5039
        %v5662 = vpop.f32.mrf.mxu0
        %v5663 = vadd.f32 %v5358, %v5662
        %v5664 = vpop.f32.mrf.mxu0
        %5665 = vmatprep.mubr.f32.mxu0 %v5136
        %5666 = vmatmul.mubr.f32.gmra.mxu0 %v5040
        %v5667 = vpop.f32.mrf.mxu0
        %v5668 = vadd.f32 %v5363, %v5667
        %v5669 = vpop.f32.mrf.mxu0
        %5670 = vmatprep.mubr.f32.mxu0 %v5137
        %5671 = vmatmul.mubr.f32.gmra.mxu0 %v5041
        %v5672 = vpop.f32.mrf.mxu0
        %v5673 = vadd.f32 %v5368, %v5672
        %v5674 = vpop.f32.mrf.mxu0
        %5675 = vmatprep.mubr.f32.mxu0 %v5138
        %5676 = vmatmul.mubr.f32.gmra.mxu0 %v5042
        %v5677 = vpop.f32.mrf.mxu0
        %v5678 = vadd.f32 %v5373, %v5677
        %v5679 = vpop.f32.mrf.mxu0
        %5680 = vmatprep.mubr.f32.mxu0 %v5139
        %5681 = vmatmul.mubr.f32.gmra.mxu0 %v5043
        %v5682 = vpop.f32.mrf.mxu0
        %v5683 = vadd.f32 %v5378, %v5682
        %v5684 = vpop.f32.mrf.mxu0
        %5685 = vmatprep.mubr.f32.mxu0 %v5140
        %5686 = vmatmul.mubr.f32.gmra.mxu0 %v5044
        %v5687 = vpop.f32.mrf.mxu0
        %v5688 = vadd.f32 %v5383, %v5687
        %v5689 = vpop.f32.mrf.mxu0
        %5690 = vmatprep.mubr.f32.mxu0 %v5141
        %5691 = vmatmul.mubr.f32.gmra.mxu0 %v5045
        %v5692 = vpop.f32.mrf.mxu0
        %v5693 = vadd.f32 %v5388, %v5692
        %v5694 = vpop.f32.mrf.mxu0
        %5695 = vmatprep.mubr.f32.mxu0 %v5142
        %5696 = vmatmul.mubr.f32.gmra.mxu0 %v5046
        %v5697 = vpop.f32.mrf.mxu0
        %v5698 = vadd.f32 %v5393, %v5697
        %v5699 = vpop.f32.mrf.mxu0
        %5700 = vmatprep.mubr.f32.mxu0 %v5143
        %5701 = vmatmul.mubr.f32.gmra.mxu0 %v5047
        %v5702 = vpop.f32.mrf.mxu0
        %v5703 = vadd.f32 %v5398, %v5702
        %v5704 = vpop.f32.mrf.mxu0
        %5705 = vmatprep.mubr.f32.mxu0 %v5160
        %5706 = vmatmul.mubr.f32.gmra.mxu0 %v5064
        %v5707 = vpop.f32.mrf.mxu0
        %v5708 = vadd.f32 %v5403, %v5707
        %v5709 = vpop.f32.mrf.mxu0
        %5710 = vmatprep.mubr.f32.mxu0 %v5161
        %5711 = vmatmul.mubr.f32.gmra.mxu0 %v5065
        %v5712 = vpop.f32.mrf.mxu0
        %v5713 = vadd.f32 %v5408, %v5712
        %v5714 = vpop.f32.mrf.mxu0
        %5715 = vmatprep.mubr.f32.mxu0 %v5162
        %5716 = vmatmul.mubr.f32.gmra.mxu0 %v5066
        %v5717 = vpop.f32.mrf.mxu0
        %v5718 = vadd.f32 %v5413, %v5717
        %v5719 = vpop.f32.mrf.mxu0
        %5720 = vmatprep.mubr.f32.mxu0 %v5163
        %5721 = vmatmul.mubr.f32.gmra.mxu0 %v5067
        %v5722 = vpop.f32.mrf.mxu0
        %v5723 = vadd.f32 %v5418, %v5722
        %v5724 = vpop.f32.mrf.mxu0
        %5725 = vmatprep.mubr.f32.mxu0 %v5164
        %5726 = vmatmul.mubr.f32.gmra.mxu0 %v5068
        %v5727 = vpop.f32.mrf.mxu0
        %v5728 = vadd.f32 %v5423, %v5727
        %v5729 = vpop.f32.mrf.mxu0
        %5730 = vmatprep.mubr.f32.mxu0 %v5165
        %5731 = vmatmul.mubr.f32.gmra.mxu0 %v5069
        %v5732 = vpop.f32.mrf.mxu0
        %v5733 = vadd.f32 %v5428, %v5732
        %v5734 = vpop.f32.mrf.mxu0
        %5735 = vmatprep.mubr.f32.mxu0 %v5166
        %5736 = vmatmul.mubr.f32.gmra.mxu0 %v5070
        %v5737 = vpop.f32.mrf.mxu0
        %v5738 = vadd.f32 %v5433, %v5737
        %v5739 = vpop.f32.mrf.mxu0
        %5740 = vmatprep.mubr.f32.mxu0 %v5167
        %5741 = vmatmul.mubr.f32.gmra.mxu0 %v5071
        %v5742 = vpop.f32.mrf.mxu0
        %v5743 = vadd.f32 %v5438, %v5742
        %v5744 = vpop.f32.mrf.mxu0
        %5745 = vmatprep.mubr.f32.mxu0 %v5168
        %5746 = vmatmul.mubr.f32.gmra.mxu0 %v5072
        %v5747 = vpop.f32.mrf.mxu0
        %v5748 = vadd.f32 %v5443, %v5747
        %v5749 = vpop.f32.mrf.mxu0
        %5750 = vmatprep.mubr.f32.mxu0 %v5169
        %5751 = vmatmul.mubr.f32.gmra.mxu0 %v5073
        %v5752 = vpop.f32.mrf.mxu0
        %v5753 = vadd.f32 %v5448, %v5752
        %v5754 = vpop.f32.mrf.mxu0
        %5755 = vmatprep.mubr.f32.mxu0 %v5170
        %5756 = vmatmul.mubr.f32.gmra.mxu0 %v5074
        %v5757 = vpop.f32.mrf.mxu0
        %v5758 = vadd.f32 %v5453, %v5757
        %v5759 = vpop.f32.mrf.mxu0
        %5760 = vmatprep.mubr.f32.mxu0 %v5171
        %5761 = vmatmul.mubr.f32.gmra.mxu0 %v5075
        %v5762 = vpop.f32.mrf.mxu0
        %v5763 = vadd.f32 %v5458, %v5762
        %v5764 = vpop.f32.mrf.mxu0
        %5765 = vmatprep.mubr.f32.mxu0 %v5172
        %5766 = vmatmul.mubr.f32.gmra.mxu0 %v5076
        %v5767 = vpop.f32.mrf.mxu0
        %v5768 = vadd.f32 %v5463, %v5767
        %v5769 = vpop.f32.mrf.mxu0
        %5770 = vmatprep.mubr.f32.mxu0 %v5173
        %5771 = vmatmul.mubr.f32.gmra.mxu0 %v5077
        %v5772 = vpop.f32.mrf.mxu0
        %v5773 = vadd.f32 %v5468, %v5772
        %v5774 = vpop.f32.mrf.mxu0
        %5775 = vmatprep.mubr.f32.mxu0 %v5174
        %5776 = vmatmul.mubr.f32.gmra.mxu0 %v5078
        %v5777 = vpop.f32.mrf.mxu0
        %v5778 = vadd.f32 %v5473, %v5777
        %v5779 = vpop.f32.mrf.mxu0
        %5780 = vmatprep.mubr.f32.mxu0 %v5175
        %5781 = vmatmul.mubr.f32.gmra.mxu0 %v5079
        %v5782 = vpop.f32.mrf.mxu0
        %v5783 = vadd.f32 %v5478, %v5782
        %v5784 = vpop.f32.mrf.mxu0
        %5785 = vdwg.mxu0
        %v5786 = vld [vmem:[#allocation3] sm:$0xff]
        %v5787 = vld [vmem:[#allocation3 + $0x8] sm:$0xff]
        %v5788 = vld [vmem:[#allocation3 + $0x10] sm:$0xff]
        %v5789 = vld [vmem:[#allocation3 + $0x18] sm:$0xff]
        %v5790 = vld [vmem:[#allocation3 + $0x20] sm:$0xff]
        %v5791 = vld [vmem:[#allocation3 + $0x28] sm:$0xff]
        %v5792 = vld [vmem:[#allocation3 + $0x30] sm:$0xff]
        %v5793 = vld [vmem:[#allocation3 + $0x38] sm:$0xff]
        %v5794 = vld [vmem:[#allocation3 + $0x40] sm:$0xff]
        %v5795 = vld [vmem:[#allocation3 + $0x48] sm:$0xff]
        %v5796 = vld [vmem:[#allocation3 + $0x50] sm:$0xff]
        %v5797 = vld [vmem:[#allocation3 + $0x58] sm:$0xff]
        %v5798 = vld [vmem:[#allocation3 + $0x60] sm:$0xff]
        %v5799 = vld [vmem:[#allocation3 + $0x68] sm:$0xff]
        %v5800 = vld [vmem:[#allocation3 + $0x70] sm:$0xff]
        %v5801 = vld [vmem:[#allocation3 + $0x78] sm:$0xff]
        %v5802 = vld [vmem:[#allocation3 + $0x80] sm:$0xff]
        %v5803 = vld [vmem:[#allocation3 + $0x88] sm:$0xff]
        %v5804 = vld [vmem:[#allocation3 + $0x90] sm:$0xff]
        %v5805 = vld [vmem:[#allocation3 + $0x98] sm:$0xff]
        %v5806 = vld [vmem:[#allocation3 + $0xa0] sm:$0xff]
        %v5807 = vld [vmem:[#allocation3 + $0xa8] sm:$0xff]
        %v5808 = vld [vmem:[#allocation3 + $0xb0] sm:$0xff]
        %v5809 = vld [vmem:[#allocation3 + $0xb8] sm:$0xff]
        %v5810 = vld [vmem:[#allocation3 + $0xc0] sm:$0xff]
        %v5811 = vld [vmem:[#allocation3 + $0xc8] sm:$0xff]
        %v5812 = vld [vmem:[#allocation3 + $0xd0] sm:$0xff]
        %v5813 = vld [vmem:[#allocation3 + $0xd8] sm:$0xff]
        %v5814 = vld [vmem:[#allocation3 + $0xe0] sm:$0xff]
        %v5815 = vld [vmem:[#allocation3 + $0xe8] sm:$0xff]
        %v5816 = vld [vmem:[#allocation3 + $0xf0] sm:$0xff]
        %v5817 = vld [vmem:[#allocation3 + $0xf8] sm:$0xff]
        %v5818 = vld [vmem:[#allocation3 + $0x100] sm:$0xff]
        %v5819 = vld [vmem:[#allocation3 + $0x108] sm:$0xff]
        %v5820 = vld [vmem:[#allocation3 + $0x110] sm:$0xff]
        %v5821 = vld [vmem:[#allocation3 + $0x118] sm:$0xff]
        %v5822 = vld [vmem:[#allocation3 + $0x120] sm:$0xff]
        %v5823 = vld [vmem:[#allocation3 + $0x128] sm:$0xff]
        %v5824 = vld [vmem:[#allocation3 + $0x130] sm:$0xff]
        %v5825 = vld [vmem:[#allocation3 + $0x138] sm:$0xff]
        %v5826 = vld [vmem:[#allocation3 + $0x140] sm:$0xff]
        %v5827 = vld [vmem:[#allocation3 + $0x148] sm:$0xff]
        %v5828 = vld [vmem:[#allocation3 + $0x150] sm:$0xff]
        %v5829 = vld [vmem:[#allocation3 + $0x158] sm:$0xff]
        %v5830 = vld [vmem:[#allocation3 + $0x160] sm:$0xff]
        %v5831 = vld [vmem:[#allocation3 + $0x168] sm:$0xff]
        %v5832 = vld [vmem:[#allocation3 + $0x170] sm:$0xff]
        %v5833 = vld [vmem:[#allocation3 + $0x178] sm:$0xff]
        %v5835 = vlaneseq
        %v5836 = vshrl.u32 %v5835, 7
        %v5837 = vsub.s32 0, %v5836
        %v5838 = vrot.slane %v4143, %v5837
        %5839 = vset.pattern.permute.xlu0 0
        %5840 = vperm.xlu0 %5839, %v5838
        %v5841 = vpop.permute.xlu0 %5840
        %v5843 = vmul.f32 %v5786, %v5841
        %v5844 = vmul.f32 %v5787, %v5841
        %v5845 = vmul.f32 %v5788, %v5841
        %v5846 = vmul.f32 %v5789, %v5841
        %v5847 = vmul.f32 %v5790, %v5841
        %v5848 = vmul.f32 %v5791, %v5841
        %v5849 = vmul.f32 %v5792, %v5841
        %v5850 = vmul.f32 %v5793, %v5841
        %v5851 = vmul.f32 %v5794, %v5841
        %v5852 = vmul.f32 %v5795, %v5841
        %v5853 = vmul.f32 %v5796, %v5841
        %v5854 = vmul.f32 %v5797, %v5841
        %v5855 = vmul.f32 %v5798, %v5841
        %v5856 = vmul.f32 %v5799, %v5841
        %v5857 = vmul.f32 %v5800, %v5841
        %v5858 = vmul.f32 %v5801, %v5841
        %v5859 = vmul.f32 %v5802, %v5841
        %v5860 = vmul.f32 %v5803, %v5841
        %v5861 = vmul.f32 %v5804, %v5841
        %v5862 = vmul.f32 %v5805, %v5841
        %v5863 = vmul.f32 %v5806, %v5841
        %v5864 = vmul.f32 %v5807, %v5841
        %v5865 = vmul.f32 %v5808, %v5841
        %v5866 = vmul.f32 %v5809, %v5841
        %v5867 = vmul.f32 %v5810, %v5841
        %v5868 = vmul.f32 %v5811, %v5841
        %v5869 = vmul.f32 %v5812, %v5841
        %v5870 = vmul.f32 %v5813, %v5841
        %v5871 = vmul.f32 %v5814, %v5841
        %v5872 = vmul.f32 %v5815, %v5841
        %v5873 = vmul.f32 %v5816, %v5841
        %v5874 = vmul.f32 %v5817, %v5841
        %v5875 = vmul.f32 %v5818, %v5841
        %v5876 = vmul.f32 %v5819, %v5841
        %v5877 = vmul.f32 %v5820, %v5841
        %v5878 = vmul.f32 %v5821, %v5841
        %v5879 = vmul.f32 %v5822, %v5841
        %v5880 = vmul.f32 %v5823, %v5841
        %v5881 = vmul.f32 %v5824, %v5841
        %v5882 = vmul.f32 %v5825, %v5841
        %v5883 = vmul.f32 %v5826, %v5841
        %v5884 = vmul.f32 %v5827, %v5841
        %v5885 = vmul.f32 %v5828, %v5841
        %v5886 = vmul.f32 %v5829, %v5841
        %v5887 = vmul.f32 %v5830, %v5841
        %v5888 = vmul.f32 %v5831, %v5841
        %v5889 = vmul.f32 %v5832, %v5841
        %v5890 = vmul.f32 %v5833, %v5841
        %v5891 = vadd.f32 %v5843, %v5548
        %v5892 = vadd.f32 %v5844, %v5553
        %v5893 = vadd.f32 %v5845, %v5558
        %v5894 = vadd.f32 %v5846, %v5563
        %v5895 = vadd.f32 %v5847, %v5568
        %v5896 = vadd.f32 %v5848, %v5573
        %v5897 = vadd.f32 %v5849, %v5578
        %v5898 = vadd.f32 %v5850, %v5583
        %v5899 = vadd.f32 %v5851, %v5588
        %v5900 = vadd.f32 %v5852, %v5593
        %v5901 = vadd.f32 %v5853, %v5598
        %v5902 = vadd.f32 %v5854, %v5603
        %v5903 = vadd.f32 %v5855, %v5608
        %v5904 = vadd.f32 %v5856, %v5613
        %v5905 = vadd.f32 %v5857, %v5618
        %v5906 = vadd.f32 %v5858, %v5623
        %v5907 = vadd.f32 %v5859, %v5628
        %v5908 = vadd.f32 %v5860, %v5633
        %v5909 = vadd.f32 %v5861, %v5638
        %v5910 = vadd.f32 %v5862, %v5643
        %v5911 = vadd.f32 %v5863, %v5648
        %v5912 = vadd.f32 %v5864, %v5653
        %v5913 = vadd.f32 %v5865, %v5658
        %v5914 = vadd.f32 %v5866, %v5663
        %v5915 = vadd.f32 %v5867, %v5668
        %v5916 = vadd.f32 %v5868, %v5673
        %v5917 = vadd.f32 %v5869, %v5678
        %v5918 = vadd.f32 %v5870, %v5683
        %v5919 = vadd.f32 %v5871, %v5688
        %v5920 = vadd.f32 %v5872, %v5693
        %v5921 = vadd.f32 %v5873, %v5698
        %v5922 = vadd.f32 %v5874, %v5703
        %v5923 = vadd.f32 %v5875, %v5708
        %v5924 = vadd.f32 %v5876, %v5713
        %v5925 = vadd.f32 %v5877, %v5718
        %v5926 = vadd.f32 %v5878, %v5723
        %v5927 = vadd.f32 %v5879, %v5728
        %v5928 = vadd.f32 %v5880, %v5733
        %v5929 = vadd.f32 %v5881, %v5738
        %v5930 = vadd.f32 %v5882, %v5743
        %v5931 = vadd.f32 %v5883, %v5748
        %v5932 = vadd.f32 %v5884, %v5753
        %v5933 = vadd.f32 %v5885, %v5758
        %v5934 = vadd.f32 %v5886, %v5763
        %v5935 = vadd.f32 %v5887, %v5768
        %v5936 = vadd.f32 %v5888, %v5773
        %v5937 = vadd.f32 %v5889, %v5778
        %v5938 = vadd.f32 %v5890, %v5783
        %5939 = vst [vmem:[#allocation3] sm:$0xff] %v5891
        %5940 = vst [vmem:[#allocation3 + $0x8] sm:$0xff] %v5892
        %5941 = vst [vmem:[#allocation3 + $0x10] sm:$0xff] %v5893
        %5942 = vst [vmem:[#allocation3 + $0x18] sm:$0xff] %v5894
        %5943 = vst [vmem:[#allocation3 + $0x20] sm:$0xff] %v5895
        %5944 = vst [vmem:[#allocation3 + $0x28] sm:$0xff] %v5896
        %5945 = vst [vmem:[#allocation3 + $0x30] sm:$0xff] %v5897
        %5946 = vst [vmem:[#allocation3 + $0x38] sm:$0xff] %v5898
        %5947 = vst [vmem:[#allocation3 + $0x40] sm:$0xff] %v5899
        %5948 = vst [vmem:[#allocation3 + $0x48] sm:$0xff] %v5900
        %5949 = vst [vmem:[#allocation3 + $0x50] sm:$0xff] %v5901
        %5950 = vst [vmem:[#allocation3 + $0x58] sm:$0xff] %v5902
        %5951 = vst [vmem:[#allocation3 + $0x60] sm:$0xff] %v5903
        %5952 = vst [vmem:[#allocation3 + $0x68] sm:$0xff] %v5904
        %5953 = vst [vmem:[#allocation3 + $0x70] sm:$0xff] %v5905
        %5954 = vst [vmem:[#allocation3 + $0x78] sm:$0xff] %v5906
        %5955 = vst [vmem:[#allocation3 + $0x80] sm:$0xff] %v5907
        %5956 = vst [vmem:[#allocation3 + $0x88] sm:$0xff] %v5908
        %5957 = vst [vmem:[#allocation3 + $0x90] sm:$0xff] %v5909
        %5958 = vst [vmem:[#allocation3 + $0x98] sm:$0xff] %v5910
        %5959 = vst [vmem:[#allocation3 + $0xa0] sm:$0xff] %v5911
        %5960 = vst [vmem:[#allocation3 + $0xa8] sm:$0xff] %v5912
        %5961 = vst [vmem:[#allocation3 + $0xb0] sm:$0xff] %v5913
        %5962 = vst [vmem:[#allocation3 + $0xb8] sm:$0xff] %v5914
        %5963 = vst [vmem:[#allocation3 + $0xc0] sm:$0xff] %v5915
        %5964 = vst [vmem:[#allocation3 + $0xc8] sm:$0xff] %v5916
        %5965 = vst [vmem:[#allocation3 + $0xd0] sm:$0xff] %v5917
        %5966 = vst [vmem:[#allocation3 + $0xd8] sm:$0xff] %v5918
        %5967 = vst [vmem:[#allocation3 + $0xe0] sm:$0xff] %v5919
        %5968 = vst [vmem:[#allocation3 + $0xe8] sm:$0xff] %v5920
        %5969 = vst [vmem:[#allocation3 + $0xf0] sm:$0xff] %v5921
        %5970 = vst [vmem:[#allocation3 + $0xf8] sm:$0xff] %v5922
        %5971 = vst [vmem:[#allocation3 + $0x100] sm:$0xff] %v5923
        %5972 = vst [vmem:[#allocation3 + $0x108] sm:$0xff] %v5924
        %5973 = vst [vmem:[#allocation3 + $0x110] sm:$0xff] %v5925
        %5974 = vst [vmem:[#allocation3 + $0x118] sm:$0xff] %v5926
        %5975 = vst [vmem:[#allocation3 + $0x120] sm:$0xff] %v5927
        %5976 = vst [vmem:[#allocation3 + $0x128] sm:$0xff] %v5928
        %5977 = vst [vmem:[#allocation3 + $0x130] sm:$0xff] %v5929
        %5978 = vst [vmem:[#allocation3 + $0x138] sm:$0xff] %v5930
        %5979 = vst [vmem:[#allocation3 + $0x140] sm:$0xff] %v5931
        %5980 = vst [vmem:[#allocation3 + $0x148] sm:$0xff] %v5932
        %5981 = vst [vmem:[#allocation3 + $0x150] sm:$0xff] %v5933
        %5982 = vst [vmem:[#allocation3 + $0x158] sm:$0xff] %v5934
        %5983 = vst [vmem:[#allocation3 + $0x160] sm:$0xff] %v5935
        %5984 = vst [vmem:[#allocation3 + $0x168] sm:$0xff] %v5936
        %5985 = vst [vmem:[#allocation3 + $0x170] sm:$0xff] %v5937
        %5986 = vst [vmem:[#allocation3 + $0x178] sm:$0xff] %v5938
        %p5987 = scmp.eq.s32.totalorder %s29, 2
        // Predicated region
        $region73: #{tpu_custom_call.1} parent=43 // pred_check
          %p5988 = pneg %p5987
        $region74: #{tpu_custom_call.1} parent=43 // pred_check_branch
          %5990 = sbr.rel (%p5988) target = $region76
        $region75: #{tpu_custom_call.1} parent=43 // pred_region
          %v5991 = vld [vmem:[#allocation3] sm:$0xff]
          %v5992 = vld [vmem:[#allocation3 + $0x8] sm:$0xff]
          %v5993 = vld [vmem:[#allocation3 + $0x10] sm:$0xff]
          %v5994 = vld [vmem:[#allocation3 + $0x18] sm:$0xff]
          %v5995 = vld [vmem:[#allocation3 + $0x20] sm:$0xff]
          %v5996 = vld [vmem:[#allocation3 + $0x28] sm:$0xff]
          %v5997 = vld [vmem:[#allocation3 + $0x30] sm:$0xff]
          %v5998 = vld [vmem:[#allocation3 + $0x38] sm:$0xff]
          %v5999 = vld [vmem:[#allocation3 + $0x40] sm:$0xff]
          %v6000 = vld [vmem:[#allocation3 + $0x48] sm:$0xff]
          %v6001 = vld [vmem:[#allocation3 + $0x50] sm:$0xff]
          %v6002 = vld [vmem:[#allocation3 + $0x58] sm:$0xff]
          %v6003 = vld [vmem:[#allocation3 + $0x60] sm:$0xff]
          %v6004 = vld [vmem:[#allocation3 + $0x68] sm:$0xff]
          %v6005 = vld [vmem:[#allocation3 + $0x70] sm:$0xff]
          %v6006 = vld [vmem:[#allocation3 + $0x78] sm:$0xff]
          %v6007 = vld [vmem:[#allocation3 + $0x80] sm:$0xff]
          %v6008 = vld [vmem:[#allocation3 + $0x88] sm:$0xff]
          %v6009 = vld [vmem:[#allocation3 + $0x90] sm:$0xff]
          %v6010 = vld [vmem:[#allocation3 + $0x98] sm:$0xff]
          %v6011 = vld [vmem:[#allocation3 + $0xa0] sm:$0xff]
          %v6012 = vld [vmem:[#allocation3 + $0xa8] sm:$0xff]
          %v6013 = vld [vmem:[#allocation3 + $0xb0] sm:$0xff]
          %v6014 = vld [vmem:[#allocation3 + $0xb8] sm:$0xff]
          %v6015 = vld [vmem:[#allocation3 + $0xc0] sm:$0xff]
          %v6016 = vld [vmem:[#allocation3 + $0xc8] sm:$0xff]
          %v6017 = vld [vmem:[#allocation3 + $0xd0] sm:$0xff]
          %v6018 = vld [vmem:[#allocation3 + $0xd8] sm:$0xff]
          %v6019 = vld [vmem:[#allocation3 + $0xe0] sm:$0xff]
          %v6020 = vld [vmem:[#allocation3 + $0xe8] sm:$0xff]
          %v6021 = vld [vmem:[#allocation3 + $0xf0] sm:$0xff]
          %v6022 = vld [vmem:[#allocation3 + $0xf8] sm:$0xff]
          %v6023 = vld [vmem:[#allocation3 + $0x100] sm:$0xff]
          %v6024 = vld [vmem:[#allocation3 + $0x108] sm:$0xff]
          %v6025 = vld [vmem:[#allocation3 + $0x110] sm:$0xff]
          %v6026 = vld [vmem:[#allocation3 + $0x118] sm:$0xff]
          %v6027 = vld [vmem:[#allocation3 + $0x120] sm:$0xff]
          %v6028 = vld [vmem:[#allocation3 + $0x128] sm:$0xff]
          %v6029 = vld [vmem:[#allocation3 + $0x130] sm:$0xff]
          %v6030 = vld [vmem:[#allocation3 + $0x138] sm:$0xff]
          %v6031 = vld [vmem:[#allocation3 + $0x140] sm:$0xff]
          %v6032 = vld [vmem:[#allocation3 + $0x148] sm:$0xff]
          %v6033 = vld [vmem:[#allocation3 + $0x150] sm:$0xff]
          %v6034 = vld [vmem:[#allocation3 + $0x158] sm:$0xff]
          %v6035 = vld [vmem:[#allocation3 + $0x160] sm:$0xff]
          %v6036 = vld [vmem:[#allocation3 + $0x168] sm:$0xff]
          %v6037 = vld [vmem:[#allocation3 + $0x170] sm:$0xff]
          %v6038 = vld [vmem:[#allocation3 + $0x178] sm:$0xff]
          %v6039 = vmul.f32 %v5991, %v5991
          %v6040 = vmul.f32 %v5992, %v5992
          %v6041 = vmul.f32 %v5993, %v5993
          %v6042 = vmul.f32 %v5994, %v5994
          %v6043 = vmul.f32 %v5995, %v5995
          %v6044 = vmul.f32 %v5996, %v5996
          %v6045 = vmul.f32 %v5997, %v5997
          %v6046 = vmul.f32 %v5998, %v5998
          %v6047 = vmul.f32 %v5999, %v5999
          %v6048 = vmul.f32 %v6000, %v6000
          %v6049 = vmul.f32 %v6001, %v6001
          %v6050 = vmul.f32 %v6002, %v6002
          %v6051 = vmul.f32 %v6003, %v6003
          %v6052 = vmul.f32 %v6004, %v6004
          %v6053 = vmul.f32 %v6005, %v6005
          %v6054 = vmul.f32 %v6006, %v6006
          %v6055 = vmul.f32 %v6007, %v6007
          %v6056 = vmul.f32 %v6008, %v6008
          %v6057 = vmul.f32 %v6009, %v6009
          %v6058 = vmul.f32 %v6010, %v6010
          %v6059 = vmul.f32 %v6011, %v6011
          %v6060 = vmul.f32 %v6012, %v6012
          %v6061 = vmul.f32 %v6013, %v6013
          %v6062 = vmul.f32 %v6014, %v6014
          %v6063 = vmul.f32 %v6015, %v6015
          %v6064 = vmul.f32 %v6016, %v6016
          %v6065 = vmul.f32 %v6017, %v6017
          %v6066 = vmul.f32 %v6018, %v6018
          %v6067 = vmul.f32 %v6019, %v6019
          %v6068 = vmul.f32 %v6020, %v6020
          %v6069 = vmul.f32 %v6021, %v6021
          %v6070 = vmul.f32 %v6022, %v6022
          %v6071 = vmul.f32 %v6023, %v6023
          %v6072 = vmul.f32 %v6024, %v6024
          %v6073 = vmul.f32 %v6025, %v6025
          %v6074 = vmul.f32 %v6026, %v6026
          %v6075 = vmul.f32 %v6027, %v6027
          %v6076 = vmul.f32 %v6028, %v6028
          %v6077 = vmul.f32 %v6029, %v6029
          %v6078 = vmul.f32 %v6030, %v6030
          %v6079 = vmul.f32 %v6031, %v6031
          %v6080 = vmul.f32 %v6032, %v6032
          %v6081 = vmul.f32 %v6033, %v6033
          %v6082 = vmul.f32 %v6034, %v6034
          %v6083 = vmul.f32 %v6035, %v6035
          %v6084 = vmul.f32 %v6036, %v6036
          %v6085 = vmul.f32 %v6037, %v6037
          %v6086 = vmul.f32 %v6038, %v6038
          %6087 = vadd.xlane.f32.xlu0 %v6039
          %v6088 = vpop.xlane.xlu0 %6087
          %6089 = vadd.xlane.f32.xlu0 %v6040
          %v6090 = vpop.xlane.xlu0 %6089
          %6091 = vadd.xlane.f32.xlu0 %v6041
          %v6092 = vpop.xlane.xlu0 %6091
          %6093 = vadd.xlane.f32.xlu0 %v6042
          %v6094 = vpop.xlane.xlu0 %6093
          %6095 = vadd.xlane.f32.xlu0 %v6043
          %v6096 = vpop.xlane.xlu0 %6095
          %6097 = vadd.xlane.f32.xlu0 %v6044
          %v6098 = vpop.xlane.xlu0 %6097
          %6099 = vadd.xlane.f32.xlu0 %v6045
          %v6100 = vpop.xlane.xlu0 %6099
          %6101 = vadd.xlane.f32.xlu0 %v6046
          %v6102 = vpop.xlane.xlu0 %6101
          %6103 = vadd.xlane.f32.xlu0 %v6047
          %v6104 = vpop.xlane.xlu0 %6103
          %6105 = vadd.xlane.f32.xlu0 %v6048
          %v6106 = vpop.xlane.xlu0 %6105
          %6107 = vadd.xlane.f32.xlu0 %v6049
          %v6108 = vpop.xlane.xlu0 %6107
          %6109 = vadd.xlane.f32.xlu0 %v6050
          %v6110 = vpop.xlane.xlu0 %6109
          %6111 = vadd.xlane.f32.xlu0 %v6051
          %v6112 = vpop.xlane.xlu0 %6111
          %6113 = vadd.xlane.f32.xlu0 %v6052
          %v6114 = vpop.xlane.xlu0 %6113
          %6115 = vadd.xlane.f32.xlu0 %v6053
          %v6116 = vpop.xlane.xlu0 %6115
          %6117 = vadd.xlane.f32.xlu0 %v6054
          %v6118 = vpop.xlane.xlu0 %6117
          %6119 = vadd.xlane.f32.xlu0 %v6055
          %v6120 = vpop.xlane.xlu0 %6119
          %6121 = vadd.xlane.f32.xlu0 %v6056
          %v6122 = vpop.xlane.xlu0 %6121
          %6123 = vadd.xlane.f32.xlu0 %v6057
          %v6124 = vpop.xlane.xlu0 %6123
          %6125 = vadd.xlane.f32.xlu0 %v6058
          %v6126 = vpop.xlane.xlu0 %6125
          %6127 = vadd.xlane.f32.xlu0 %v6059
          %v6128 = vpop.xlane.xlu0 %6127
          %6129 = vadd.xlane.f32.xlu0 %v6060
          %v6130 = vpop.xlane.xlu0 %6129
          %6131 = vadd.xlane.f32.xlu0 %v6061
          %v6132 = vpop.xlane.xlu0 %6131
          %6133 = vadd.xlane.f32.xlu0 %v6062
          %v6134 = vpop.xlane.xlu0 %6133
          %6135 = vadd.xlane.f32.xlu0 %v6063
          %v6136 = vpop.xlane.xlu0 %6135
          %6137 = vadd.xlane.f32.xlu0 %v6064
          %v6138 = vpop.xlane.xlu0 %6137
          %6139 = vadd.xlane.f32.xlu0 %v6065
          %v6140 = vpop.xlane.xlu0 %6139
          %6141 = vadd.xlane.f32.xlu0 %v6066
          %v6142 = vpop.xlane.xlu0 %6141
          %6143 = vadd.xlane.f32.xlu0 %v6067
          %v6144 = vpop.xlane.xlu0 %6143
          %6145 = vadd.xlane.f32.xlu0 %v6068
          %v6146 = vpop.xlane.xlu0 %6145
          %6147 = vadd.xlane.f32.xlu0 %v6069
          %v6148 = vpop.xlane.xlu0 %6147
          %6149 = vadd.xlane.f32.xlu0 %v6070
          %v6150 = vpop.xlane.xlu0 %6149
          %6151 = vadd.xlane.f32.xlu0 %v6071
          %v6152 = vpop.xlane.xlu0 %6151
          %6153 = vadd.xlane.f32.xlu0 %v6072
          %v6154 = vpop.xlane.xlu0 %6153
          %6155 = vadd.xlane.f32.xlu0 %v6073
          %v6156 = vpop.xlane.xlu0 %6155
          %6157 = vadd.xlane.f32.xlu0 %v6074
          %v6158 = vpop.xlane.xlu0 %6157
          %6159 = vadd.xlane.f32.xlu0 %v6075
          %v6160 = vpop.xlane.xlu0 %6159
          %6161 = vadd.xlane.f32.xlu0 %v6076
          %v6162 = vpop.xlane.xlu0 %6161
          %6163 = vadd.xlane.f32.xlu0 %v6077
          %v6164 = vpop.xlane.xlu0 %6163
          %6165 = vadd.xlane.f32.xlu0 %v6078
          %v6166 = vpop.xlane.xlu0 %6165
          %6167 = vadd.xlane.f32.xlu0 %v6079
          %v6168 = vpop.xlane.xlu0 %6167
          %6169 = vadd.xlane.f32.xlu0 %v6080
          %v6170 = vpop.xlane.xlu0 %6169
          %6171 = vadd.xlane.f32.xlu0 %v6081
          %v6172 = vpop.xlane.xlu0 %6171
          %6173 = vadd.xlane.f32.xlu0 %v6082
          %v6174 = vpop.xlane.xlu0 %6173
          %6175 = vadd.xlane.f32.xlu0 %v6083
          %v6176 = vpop.xlane.xlu0 %6175
          %6177 = vadd.xlane.f32.xlu0 %v6084
          %v6178 = vpop.xlane.xlu0 %6177
          %6179 = vadd.xlane.f32.xlu0 %v6085
          %v6180 = vpop.xlane.xlu0 %6179
          %6181 = vadd.xlane.f32.xlu0 %v6086
          %v6182 = vpop.xlane.xlu0 %6181
          %v6183 = vmax.f32 %v6088, 1e-24
          %v6184 = vmax.f32 %v6090, 1e-24
          %v6185 = vmax.f32 %v6092, 1e-24
          %v6186 = vmax.f32 %v6094, 1e-24
          %v6187 = vmax.f32 %v6096, 1e-24
          %v6188 = vmax.f32 %v6098, 1e-24
          %v6189 = vmax.f32 %v6100, 1e-24
          %v6190 = vmax.f32 %v6102, 1e-24
          %v6191 = vmax.f32 %v6104, 1e-24
          %v6192 = vmax.f32 %v6106, 1e-24
          %v6193 = vmax.f32 %v6108, 1e-24
          %v6194 = vmax.f32 %v6110, 1e-24
          %v6195 = vmax.f32 %v6112, 1e-24
          %v6196 = vmax.f32 %v6114, 1e-24
          %v6197 = vmax.f32 %v6116, 1e-24
          %v6198 = vmax.f32 %v6118, 1e-24
          %v6199 = vmax.f32 %v6120, 1e-24
          %v6200 = vmax.f32 %v6122, 1e-24
          %v6201 = vmax.f32 %v6124, 1e-24
          %v6202 = vmax.f32 %v6126, 1e-24
          %v6203 = vmax.f32 %v6128, 1e-24
          %v6204 = vmax.f32 %v6130, 1e-24
          %v6205 = vmax.f32 %v6132, 1e-24
          %v6206 = vmax.f32 %v6134, 1e-24
          %v6207 = vmax.f32 %v6136, 1e-24
          %v6208 = vmax.f32 %v6138, 1e-24
          %v6209 = vmax.f32 %v6140, 1e-24
          %v6210 = vmax.f32 %v6142, 1e-24
          %v6211 = vmax.f32 %v6144, 1e-24
          %v6212 = vmax.f32 %v6146, 1e-24
          %v6213 = vmax.f32 %v6148, 1e-24
          %v6214 = vmax.f32 %v6150, 1e-24
          %v6215 = vmax.f32 %v6152, 1e-24
          %v6216 = vmax.f32 %v6154, 1e-24
          %v6217 = vmax.f32 %v6156, 1e-24
          %v6218 = vmax.f32 %v6158, 1e-24
          %v6219 = vmax.f32 %v6160, 1e-24
          %v6220 = vmax.f32 %v6162, 1e-24
          %v6221 = vmax.f32 %v6164, 1e-24
          %v6222 = vmax.f32 %v6166, 1e-24
          %v6223 = vmax.f32 %v6168, 1e-24
          %v6224 = vmax.f32 %v6170, 1e-24
          %v6225 = vmax.f32 %v6172, 1e-24
          %v6226 = vmax.f32 %v6174, 1e-24
          %v6227 = vmax.f32 %v6176, 1e-24
          %v6228 = vmax.f32 %v6178, 1e-24
          %v6229 = vmax.f32 %v6180, 1e-24
          %v6230 = vmax.f32 %v6182, 1e-24
          %v6231 = vrsqrt.pop %v6183
          %v6232 = vrsqrt.pop %v6184
          %v6233 = vrsqrt.pop %v6185
          %v6234 = vrsqrt.pop %v6186
          %v6235 = vrsqrt.pop %v6187
          %v6236 = vrsqrt.pop %v6188
          %v6237 = vrsqrt.pop %v6189
          %v6238 = vrsqrt.pop %v6190
          %v6239 = vrsqrt.pop %v6191
          %v6240 = vrsqrt.pop %v6192
          %v6241 = vrsqrt.pop %v6193
          %v6242 = vrsqrt.pop %v6194
          %v6243 = vrsqrt.pop %v6195
          %v6244 = vrsqrt.pop %v6196
          %v6245 = vrsqrt.pop %v6197
          %v6246 = vrsqrt.pop %v6198
          %v6247 = vrsqrt.pop %v6199
          %v6248 = vrsqrt.pop %v6200
          %v6249 = vrsqrt.pop %v6201
          %v6250 = vrsqrt.pop %v6202
          %v6251 = vrsqrt.pop %v6203
          %v6252 = vrsqrt.pop %v6204
          %v6253 = vrsqrt.pop %v6205
          %v6254 = vrsqrt.pop %v6206
          %v6255 = vrsqrt.pop %v6207
          %v6256 = vrsqrt.pop %v6208
          %v6257 = vrsqrt.pop %v6209
          %v6258 = vrsqrt.pop %v6210
          %v6259 = vrsqrt.pop %v6211
          %v6260 = vrsqrt.pop %v6212
          %v6261 = vrsqrt.pop %v6213
          %v6262 = vrsqrt.pop %v6214
          %v6263 = vrsqrt.pop %v6215
          %v6264 = vrsqrt.pop %v6216
          %v6265 = vrsqrt.pop %v6217
          %v6266 = vrsqrt.pop %v6218
          %v6267 = vrsqrt.pop %v6219
          %v6268 = vrsqrt.pop %v6220
          %v6269 = vrsqrt.pop %v6221
          %v6270 = vrsqrt.pop %v6222
          %v6271 = vrsqrt.pop %v6223
          %v6272 = vrsqrt.pop %v6224
          %v6273 = vrsqrt.pop %v6225
          %v6274 = vrsqrt.pop %v6226
          %v6275 = vrsqrt.pop %v6227
          %v6276 = vrsqrt.pop %v6228
          %v6277 = vrsqrt.pop %v6229
          %v6278 = vrsqrt.pop %v6230
          %v6279 = vmul.f32 %v5991, %v6231
          %v6280 = vmul.f32 %v5992, %v6232
          %v6281 = vmul.f32 %v5993, %v6233
          %v6282 = vmul.f32 %v5994, %v6234
          %v6283 = vmul.f32 %v5995, %v6235
          %v6284 = vmul.f32 %v5996, %v6236
          %v6285 = vmul.f32 %v5997, %v6237
          %v6286 = vmul.f32 %v5998, %v6238
          %v6287 = vmul.f32 %v5999, %v6239
          %v6288 = vmul.f32 %v6000, %v6240
          %v6289 = vmul.f32 %v6001, %v6241
          %v6290 = vmul.f32 %v6002, %v6242
          %v6291 = vmul.f32 %v6003, %v6243
          %v6292 = vmul.f32 %v6004, %v6244
          %v6293 = vmul.f32 %v6005, %v6245
          %v6294 = vmul.f32 %v6006, %v6246
          %v6295 = vmul.f32 %v6007, %v6247
          %v6296 = vmul.f32 %v6008, %v6248
          %v6297 = vmul.f32 %v6009, %v6249
          %v6298 = vmul.f32 %v6010, %v6250
          %v6299 = vmul.f32 %v6011, %v6251
          %v6300 = vmul.f32 %v6012, %v6252
          %v6301 = vmul.f32 %v6013, %v6253
          %v6302 = vmul.f32 %v6014, %v6254
          %v6303 = vmul.f32 %v6015, %v6255
          %v6304 = vmul.f32 %v6016, %v6256
          %v6305 = vmul.f32 %v6017, %v6257
          %v6306 = vmul.f32 %v6018, %v6258
          %v6307 = vmul.f32 %v6019, %v6259
          %v6308 = vmul.f32 %v6020, %v6260
          %v6309 = vmul.f32 %v6021, %v6261
          %v6310 = vmul.f32 %v6022, %v6262
          %v6311 = vmul.f32 %v6023, %v6263
          %v6312 = vmul.f32 %v6024, %v6264
          %v6313 = vmul.f32 %v6025, %v6265
          %v6314 = vmul.f32 %v6026, %v6266
          %v6315 = vmul.f32 %v6027, %v6267
          %v6316 = vmul.f32 %v6028, %v6268
          %v6317 = vmul.f32 %v6029, %v6269
          %v6318 = vmul.f32 %v6030, %v6270
          %v6319 = vmul.f32 %v6031, %v6271
          %v6320 = vmul.f32 %v6032, %v6272
          %v6321 = vmul.f32 %v6033, %v6273
          %v6322 = vmul.f32 %v6034, %v6274
          %v6323 = vmul.f32 %v6035, %v6275
          %v6324 = vmul.f32 %v6036, %v6276
          %v6325 = vmul.f32 %v6037, %v6277
          %v6326 = vmul.f32 %v6038, %v6278
          %6327 = vst [vmem:[#allocation16] sm:$0xff] %v6279
          %6328 = vst [vmem:[#allocation16 + $0x8] sm:$0xff] %v6280
          %6329 = vst [vmem:[#allocation16 + $0x10] sm:$0xff] %v6281
          %6330 = vst [vmem:[#allocation16 + $0x18] sm:$0xff] %v6282
          %6331 = vst [vmem:[#allocation16 + $0x20] sm:$0xff] %v6283
          %6332 = vst [vmem:[#allocation16 + $0x28] sm:$0xff] %v6284
          %6333 = vst [vmem:[#allocation16 + $0x30] sm:$0xff] %v6285
          %6334 = vst [vmem:[#allocation16 + $0x38] sm:$0xff] %v6286
          %6335 = vst [vmem:[#allocation16 + $0x40] sm:$0xff] %v6287
          %6336 = vst [vmem:[#allocation16 + $0x48] sm:$0xff] %v6288
          %6337 = vst [vmem:[#allocation16 + $0x50] sm:$0xff] %v6289
          %6338 = vst [vmem:[#allocation16 + $0x58] sm:$0xff] %v6290
          %6339 = vst [vmem:[#allocation16 + $0x60] sm:$0xff] %v6291
          %6340 = vst [vmem:[#allocation16 + $0x68] sm:$0xff] %v6292
          %6341 = vst [vmem:[#allocation16 + $0x70] sm:$0xff] %v6293
          %6342 = vst [vmem:[#allocation16 + $0x78] sm:$0xff] %v6294
          %6343 = vst [vmem:[#allocation16 + $0x80] sm:$0xff] %v6295
          %6344 = vst [vmem:[#allocation16 + $0x88] sm:$0xff] %v6296
          %6345 = vst [vmem:[#allocation16 + $0x90] sm:$0xff] %v6297
          %6346 = vst [vmem:[#allocation16 + $0x98] sm:$0xff] %v6298
          %6347 = vst [vmem:[#allocation16 + $0xa0] sm:$0xff] %v6299
          %6348 = vst [vmem:[#allocation16 + $0xa8] sm:$0xff] %v6300
          %6349 = vst [vmem:[#allocation16 + $0xb0] sm:$0xff] %v6301
          %6350 = vst [vmem:[#allocation16 + $0xb8] sm:$0xff] %v6302
          %6351 = vst [vmem:[#allocation16 + $0xc0] sm:$0xff] %v6303
          %6352 = vst [vmem:[#allocation16 + $0xc8] sm:$0xff] %v6304
          %6353 = vst [vmem:[#allocation16 + $0xd0] sm:$0xff] %v6305
          %6354 = vst [vmem:[#allocation16 + $0xd8] sm:$0xff] %v6306
          %6355 = vst [vmem:[#allocation16 + $0xe0] sm:$0xff] %v6307
          %6356 = vst [vmem:[#allocation16 + $0xe8] sm:$0xff] %v6308
          %6357 = vst [vmem:[#allocation16 + $0xf0] sm:$0xff] %v6309
          %6358 = vst [vmem:[#allocation16 + $0xf8] sm:$0xff] %v6310
          %6359 = vst [vmem:[#allocation16 + $0x100] sm:$0xff] %v6311
          %6360 = vst [vmem:[#allocation16 + $0x108] sm:$0xff] %v6312
          %6361 = vst [vmem:[#allocation16 + $0x110] sm:$0xff] %v6313
          %6362 = vst [vmem:[#allocation16 + $0x118] sm:$0xff] %v6314
          %6363 = vst [vmem:[#allocation16 + $0x120] sm:$0xff] %v6315
          %6364 = vst [vmem:[#allocation16 + $0x128] sm:$0xff] %v6316
          %6365 = vst [vmem:[#allocation16 + $0x130] sm:$0xff] %v6317
          %6366 = vst [vmem:[#allocation16 + $0x138] sm:$0xff] %v6318
          %6367 = vst [vmem:[#allocation16 + $0x140] sm:$0xff] %v6319
          %6368 = vst [vmem:[#allocation16 + $0x148] sm:$0xff] %v6320
          %6369 = vst [vmem:[#allocation16 + $0x150] sm:$0xff] %v6321
          %6370 = vst [vmem:[#allocation16 + $0x158] sm:$0xff] %v6322
          %6371 = vst [vmem:[#allocation16 + $0x160] sm:$0xff] %v6323
          %6372 = vst [vmem:[#allocation16 + $0x168] sm:$0xff] %v6324
          %6373 = vst [vmem:[#allocation16 + $0x170] sm:$0xff] %v6325
          %6374 = vst [vmem:[#allocation16 + $0x178] sm:$0xff] %v6326
          %6375 = vst [vmem:[#allocation17] sm:$0xff] %v6279
          %6376 = vst [vmem:[#allocation17 + $0x8] sm:$0xff] %v6280
          %6377 = vst [vmem:[#allocation17 + $0x10] sm:$0xff] %v6281
          %6378 = vst [vmem:[#allocation17 + $0x18] sm:$0xff] %v6282
          %6379 = vst [vmem:[#allocation17 + $0x20] sm:$0xff] %v6283
          %6380 = vst [vmem:[#allocation17 + $0x28] sm:$0xff] %v6284
          %6381 = vst [vmem:[#allocation17 + $0x30] sm:$0xff] %v6285
          %6382 = vst [vmem:[#allocation17 + $0x38] sm:$0xff] %v6286
          %6383 = vst [vmem:[#allocation17 + $0x40] sm:$0xff] %v6287
          %6384 = vst [vmem:[#allocation17 + $0x48] sm:$0xff] %v6288
          %6385 = vst [vmem:[#allocation17 + $0x50] sm:$0xff] %v6289
          %6386 = vst [vmem:[#allocation17 + $0x58] sm:$0xff] %v6290
          %6387 = vst [vmem:[#allocation17 + $0x60] sm:$0xff] %v6291
          %6388 = vst [vmem:[#allocation17 + $0x68] sm:$0xff] %v6292
          %6389 = vst [vmem:[#allocation17 + $0x70] sm:$0xff] %v6293
          %6390 = vst [vmem:[#allocation17 + $0x78] sm:$0xff] %v6294
          %6391 = vst [vmem:[#allocation17 + $0x80] sm:$0xff] %v6295
          %6392 = vst [vmem:[#allocation17 + $0x88] sm:$0xff] %v6296
          %6393 = vst [vmem:[#allocation17 + $0x90] sm:$0xff] %v6297
          %6394 = vst [vmem:[#allocation17 + $0x98] sm:$0xff] %v6298
          %6395 = vst [vmem:[#allocation17 + $0xa0] sm:$0xff] %v6299
          %6396 = vst [vmem:[#allocation17 + $0xa8] sm:$0xff] %v6300
          %6397 = vst [vmem:[#allocation17 + $0xb0] sm:$0xff] %v6301
          %6398 = vst [vmem:[#allocation17 + $0xb8] sm:$0xff] %v6302
          %6399 = vst [vmem:[#allocation17 + $0xc0] sm:$0xff] %v6303
          %6400 = vst [vmem:[#allocation17 + $0xc8] sm:$0xff] %v6304
          %6401 = vst [vmem:[#allocation17 + $0xd0] sm:$0xff] %v6305
          %6402 = vst [vmem:[#allocation17 + $0xd8] sm:$0xff] %v6306
          %6403 = vst [vmem:[#allocation17 + $0xe0] sm:$0xff] %v6307
          %6404 = vst [vmem:[#allocation17 + $0xe8] sm:$0xff] %v6308
          %6405 = vst [vmem:[#allocation17 + $0xf0] sm:$0xff] %v6309
          %6406 = vst [vmem:[#allocation17 + $0xf8] sm:$0xff] %v6310
          %6407 = vst [vmem:[#allocation17 + $0x100] sm:$0xff] %v6311
          %6408 = vst [vmem:[#allocation17 + $0x108] sm:$0xff] %v6312
          %6409 = vst [vmem:[#allocation17 + $0x110] sm:$0xff] %v6313
          %6410 = vst [vmem:[#allocation17 + $0x118] sm:$0xff] %v6314
          %6411 = vst [vmem:[#allocation17 + $0x120] sm:$0xff] %v6315
          %6412 = vst [vmem:[#allocation17 + $0x128] sm:$0xff] %v6316
          %6413 = vst [vmem:[#allocation17 + $0x130] sm:$0xff] %v6317
          %6414 = vst [vmem:[#allocation17 + $0x138] sm:$0xff] %v6318
          %6415 = vst [vmem:[#allocation17 + $0x140] sm:$0xff] %v6319
          %6416 = vst [vmem:[#allocation17 + $0x148] sm:$0xff] %v6320
          %6417 = vst [vmem:[#allocation17 + $0x150] sm:$0xff] %v6321
          %6418 = vst [vmem:[#allocation17 + $0x158] sm:$0xff] %v6322
          %6419 = vst [vmem:[#allocation17 + $0x160] sm:$0xff] %v6323
          %6420 = vst [vmem:[#allocation17 + $0x168] sm:$0xff] %v6324
          %6421 = vst [vmem:[#allocation17 + $0x170] sm:$0xff] %v6325
          %6422 = vst [vmem:[#allocation17 + $0x178] sm:$0xff] %v6326
        $region76: #{tpu_custom_call.1} parent=43 // pred_fallthru
          _
        // Predicated region
        $region77: #{tpu_custom_call.1} parent=43 // pred_check
          %p6423 = pneg %p183
        $region78: #{tpu_custom_call.1} parent=43 // pred_check_branch
          %6425 = sbr.rel (%p6423) target = $region80
        $region79: #{tpu_custom_call.1} parent=43 // pred_region
          %s6427 = ssub.s32 6144, 6144
          %6428 = vsyncadd [#allocation7], %s6427
          %s6429 = sshll.u32 [#allocation16], 4
          %s6430 = int_to_ptr.vmem [resolvable:$true] %s6429
          %6435 = dma.vmem_to_hbm [thread:$0]  %s6430, 6144, %s6, [#allocation7], 128, 128, 8
        $region80: #{tpu_custom_call.1} parent=43 // pred_fallthru
          _
        // Predicated region
        $region81: #{tpu_custom_call.1} parent=43 // pred_check
          %p6436 = pneg %p204
        $region82: #{tpu_custom_call.1} parent=43 // pred_check_branch
          %6438 = sbr.rel (%p6436) target = $region84
        $region83: #{tpu_custom_call.1} parent=43 // pred_region
          %s6440 = ssub.s32 6144, 6144
          %6441 = vsyncadd [#allocation18], %s6440
          %s6442 = sshll.u32 [#allocation17], 4
          %s6443 = int_to_ptr.vmem [resolvable:$true] %s6442
          %6448 = dma.vmem_to_hbm [thread:$0]  %s6443, 6144, %s7, [#allocation18], 128, 128, 8
        $region84: #{tpu_custom_call.1} parent=43 // pred_fallthru
          _
        // Predicated region
        $region85: #{tpu_custom_call.1} parent=43 // pred_check
          %p6449 = pneg %p183
        $region86: #{tpu_custom_call.1} parent=43 // pred_check_branch
          %6451 = sbr.rel (%p6449) target = $region88
        $region87: #{tpu_custom_call.1} parent=43 // pred_region
          %6452 = dma.done [#allocation7], 6144
        $region88: #{tpu_custom_call.1} parent=43 // pred_fallthru
          _
        // Predicated region
        $region89: #{tpu_custom_call.1} parent=43 // pred_check
          %p6453 = pneg %p204
        $region90: #{tpu_custom_call.1} parent=43 // pred_check_branch
          %6455 = sbr.rel (%p6453) target = $region92
        $region91: #{tpu_custom_call.1} parent=43 // pred_region
          %6456 = dma.done [#allocation18], 6144
        $region92: #{tpu_custom_call.1} parent=43 // pred_fallthru
          _
      $region44: #{tpu_custom_call.1} parent=5 // pred_fallthru
        _
      %p6457 = scmp.le.s32.totalorder 2, %s24
      // Predicated region
      $region93: #{tpu_custom_call.1} parent=5 // pred_check
        %p6458 = pneg %p6457
      $region94: #{tpu_custom_call.1} parent=5 // pred_check_branch
        %6460 = sbr.rel (%p6458) target = $region96
      $region95: #{tpu_custom_call.1} parent=5 // pred_region
        %s6461 = ssub.s32 %s24, 2
      $region96: #{tpu_custom_call.1} parent=5 // pred_fallthru
        _
    $region6: #{tpu_custom_call.1} parent=1 // loop_footer
      %s28 = sadd.s32 1, %s24
    $region7: #{tpu_custom_call.1} parent=1 // loop_footer_branch
      %23 = sbr.rel target = $region3
    $region8: #{tpu_custom_call.1} parent=1 // loop_exit
      _
    %6462 = vsyncpa [#allocation6], 1
    %s6463 = scalar_lea.sflag [#allocation6], 1
    %6464 = vsyncpa %s6463, 1
    %6465 = vsyncpa [#allocation9], 1
    %s6466 = scalar_lea.sflag [#allocation9], 1
    %6467 = vsyncpa %s6466, 1
    %6468 = vsyncpa [#allocation12], 1
    %6469 = vsyncpa [#allocation15], 1
    %6470 = vsyncpa [#allocation7], 1
    %s6471 = scalar_lea.sflag [#allocation7], 1
    %6472 = vsyncpa %s6471, 1
    %6473 = vsyncpa [#allocation18], 1

</llo_original>
